<compile_context>
chip_gen: v7x
topology: tpu7x:2x2x1
jax: 0.10.0
libtpu: 0.0.40
codegen_flags: <defaults>
</compile_context>

<pallas_src>
import functools

import numpy as np

import jax
import jax.numpy as jnp
from jax import lax
from jax.experimental import pallas as pl
from jax.experimental.pallas import tpu as pltpu


# ------------------------------ fused kernel ------------------------------

def _cifar10_fused_kernel(
    x_ref,                      # [bt, 32, 96]   rows = H, lanes = (w, c_in)
    a1_ref, cb1_ref,            # [5, 96, 168], [1, 168]     conv1 Toeplitz + bias row
    p1r_ref, p1c_ref,           # [2, 14, 28],  [2, 168, 84] pool1 row/lane selectors
    a2_ref, cb2_ref,            # [5, 84, 160], [1, 160]     conv2 Toeplitz + bias row
    p2r_ref, p2c_ref,           # [2, 5, 10],   [2, 160, 80] pool2 row/lane selectors
    f1_ref, fb1_ref,            # [5, 80, 128], [1, 128]     fc1 (flatten perm folded in)
    w2_ref, fb2_ref,            # [128, 128],   [1, 128]     fc2 (zero padded)
    w3_ref, fb3_ref,            # [128, 128],   [1, 128]     fc3 (zero padded)
    feat_ref, out_ref,          # [bt, 128], [bt, 128]
    p1_s, p2_s,                 # VMEM scratch [14, 84], [5, 80]
    *, bt):
  f32 = jnp.float32

  for b in range(bt):           # static unroll over the images of this batch tile
    # ---- conv1 (5x5, 3->6) + ReLU; y1[h, w*6+co] : [28, 168] ----
    acc1 = jnp.zeros((28, 168), f32)
    for kh in range(5):
      acc1 = acc1 + jnp.dot(x_ref[b, kh:kh + 28, :], a1_ref[kh],
                            preferred_element_type=f32)
    y1 = jnp.maximum(acc1 + cb1_ref[...], 0.0)

    # ---- maxpool 2x2 via exact 0/1 selection matmuls -> [14, 84] ----
    r1 = jnp.maximum(jnp.dot(p1r_ref[0], y1, preferred_element_type=f32),
                     jnp.dot(p1r_ref[1], y1, preferred_element_type=f32))
    p1_s[...] = jnp.maximum(jnp.dot(r1, p1c_ref[0], preferred_element_type=f32),
                            jnp.dot(r1, p1c_ref[1], preferred_element_type=f32))

    # ---- conv2 (5x5, 6->16) + ReLU -> [10, 160] ----
    acc2 = jnp.zeros((10, 160), f32)
    for kh in range(5):
      acc2 = acc2 + jnp.dot(p1_s[kh:kh + 10, :], a2_ref[kh],
                            preferred_element_type=f32)
    y2 = jnp.maximum(acc2 + cb2_ref[...], 0.0)

    # ---- maxpool 2x2 -> [5, 80] ----
    r2 = jnp.maximum(jnp.dot(p2r_ref[0], y2, preferred_element_type=f32),
                     jnp.dot(p2r_ref[1], y2, preferred_element_type=f32))
    p2_s[...] = jnp.maximum(jnp.dot(r2, p2c_ref[0], preferred_element_type=f32),
                            jnp.dot(r2, p2c_ref[1], preferred_element_type=f32))

    # ---- fc1 (torch NCHW-flatten order folded into f1) + ReLU -> [1, 128] ----
    h1 = fb1_ref[...]
    for h in range(5):
      h1 = h1 + jnp.dot(p2_s[h:h + 1, :], f1_ref[h], preferred_element_type=f32)
    h1 = jnp.maximum(h1, 0.0)

    # ---- fc2 + ReLU (features), fc3 (logits); 128-lane padded ----
    h2 = jnp.maximum(
        jnp.dot(h1, w2_ref[...], preferred_element_type=f32) + fb2_ref[...], 0.0)
    o = jnp.dot(h2, w3_ref[...], preferred_element_type=f32) + fb3_ref[...]

    feat_ref[b:b + 1, :] = h2
    out_ref[b:b + 1, :] = o


# ------------------------ one-time weight packing -------------------------

def _conv_toeplitz(w_oihw, w_in):
  """A[kh][w*Cin+ci, ow*Cout+co] = w[co, ci, kh, w-ow] (0 <= w-ow < K)."""
  cout, cin, k, _ = w_oihw.shape
  ow_n = w_in - k + 1
  a = np.zeros((k, w_in * cin, ow_n * cout), np.float32)
  for kh in range(k):
    for kw in range(k):
      blk = np.asarray(w_oihw[:, :, kh, kw], np.float32).T        # [cin, cout]
      for ow in range(ow_n):
        w = ow + kw
        a[kh, w * cin:(w + 1) * cin, ow * cout:(ow + 1) * cout] = blk
  return a


def _conv_bias_row(b, ow_n):
  return np.tile(np.asarray(b, np.float32), ow_n)[None, :]        # [1, ow_n*cout]


def _pool_row_select(h_in):
  ph = h_in // 2
  p = np.zeros((2, ph, h_in), np.float32)
  p[0, np.arange(ph), 2 * np.arange(ph)] = 1.0
  p[1, np.arange(ph), 2 * np.arange(ph) + 1] = 1.0
  return p


def _pool_col_select(w_in, c):
  pw = w_in // 2
  p = np.zeros((2, w_in * c, pw * c), np.float32)
  for j in range(pw):
    for ch in range(c):
      p[0, (2 * j) * c + ch, j * c + ch] = 1.0
      p[1, (2 * j + 1) * c + ch, j * c + ch] = 1.0
  return p


def _fc1_fold(w_fc1, b_fc1, h=5, w=5, c=16, pad=128):
  """Fold torch.flatten(NCHW) ordering into fc1; F[h][w*c+ci, j] = W1[j, ci*25+h*5+w]."""
  n_out = w_fc1.shape[0]
  f = np.zeros((h, w * c, pad), np.float32)
  for hh in range(h):
    for ww in range(w):
      for cc in range(c):
        f[hh, ww * c + cc, :n_out] = w_fc1[:, cc * h * w + hh * w + ww]
  bias = np.zeros((1, pad), np.float32)
  bias[0, :n_out] = b_fc1
  return f, bias


def _fc_pad(w_t, b_t, pad_in=128, pad_out=128):
  n_out, n_in = w_t.shape
  wp = np.zeros((pad_in, pad_out), np.float32)
  wp[:n_in, :n_out] = np.asarray(w_t, np.float32).T
  bp = np.zeros((1, pad_out), np.float32)
  bp[0, :n_out] = b_t
  return wp, bp


def pack_params(raw):
  """raw: PyTorch-layout weights -> kernel-ready constant matrices (built once)."""
  w1 = np.asarray(raw["conv1_w"]); b1 = np.asarray(raw["conv1_b"])
  w2 = np.asarray(raw["conv2_w"]); b2 = np.asarray(raw["conv2_b"])
  f1w = np.asarray(raw["fc1_w"]); f1b = np.asarray(raw["fc1_b"])
  f2w = np.asarray(raw["fc2_w"]); f2b = np.asarray(raw["fc2_b"])
  f3w = np.asarray(raw["fc3_w"]); f3b = np.asarray(raw["fc3_b"])
  fc1_f, fc1_b = _fc1_fold(f1w, f1b)
  fc2_w, fc2_b = _fc_pad(f2w, f2b)
  fc3_w, fc3_b = _fc_pad(f3w, f3b)
  packed = {
      "a1": _conv_toeplitz(w1, 32), "cb1": _conv_bias_row(b1, 28),
      "p1r": _pool_row_select(28), "p1c": _pool_col_select(28, 6),
      "a2": _conv_toeplitz(w2, 14), "cb2": _conv_bias_row(b2, 10),
      "p2r": _pool_row_select(10), "p2c": _pool_col_select(10, 16),
      "f1": fc1_f, "fb1": fc1_b,
      "w2": fc2_w, "fb2": fc2_b,
      "w3": fc3_w, "fb3": fc3_b,
  }
  return {k: jnp.asarray(v) for k, v in packed.items()}


# ------------------------------ forward pass ------------------------------

@functools.partial(jax.jit, static_argnames=("batch_tile",))
def cifar10_cnn_forward(x_nchw, packed, batch_tile=8):
  b = x_nchw.shape[0]
  bt = b if b <= batch_tile else batch_tile
  bp = ((b + bt - 1) // bt) * bt

  # NCHW -> [B, H, W*Cin] rows, with (w, c_in) interleaved along lanes.
  x = jnp.transpose(x_nchw.astype(jnp.float32), (0, 2, 3, 1)).reshape(b, 32, 96)
  if bp != b:
    x = jnp.pad(x, ((0, bp - b), (0, 0), (0, 0)))

  def full(*shape):
    return pl.BlockSpec(shape, lambda i: (0,) * len(shape))

  feat_p, out_p = pl.pallas_call(
      functools.partial(_cifar10_fused_kernel, bt=bt),
      out_shape=(jax.ShapeDtypeStruct((bp, 128), jnp.float32),
                 jax.ShapeDtypeStruct((bp, 128), jnp.float32)),
      grid_spec=pltpu.PrefetchScalarGridSpec(
          num_scalar_prefetch=0,
          grid=(bp // bt,),
          in_specs=[
              pl.BlockSpec((bt, 32, 96), lambda i: (i, 0, 0)),
              full(5, 96, 168), full(1, 168),
              full(2, 14, 28), full(2, 168, 84),
              full(5, 84, 160), full(1, 160),
              full(2, 5, 10), full(2, 160, 80),
              full(5, 80, 128), full(1, 128),
              full(128, 128), full(1, 128),
              full(128, 128), full(1, 128),
          ],
          out_specs=(pl.BlockSpec((bt, 128), lambda i: (i, 0)),
                     pl.BlockSpec((bt, 128), lambda i: (i, 0))),
          scratch_shapes=[pltpu.VMEM((14, 84), jnp.float32),
                          pltpu.VMEM((5, 80), jnp.float32)],
      ),
      compiler_params=pltpu.CompilerParams(
          dimension_semantics=("parallel",),
          vmem_limit_bytes=32 * 1024 * 1024),
  )(x,
    packed["a1"], packed["cb1"], packed["p1r"], packed["p1c"],
    packed["a2"], packed["cb2"], packed["p2r"], packed["p2c"],
    packed["f1"], packed["fb1"], packed["w2"], packed["fb2"],
    packed["w3"], packed["fb3"])

  features = feat_p[:b, :84]
  output = out_p[:b, :10]
  return features, output


# ----------------------- params + plain-XLA reference ----------------------

def init_raw_params(key):
  ks = jax.random.split(key, 10)

  def w(k, shape, scale=0.1):
    return scale * jax.random.normal(k, shape, dtype=jnp.float32)

  # PyTorch layouts: conv [out, in, kh, kw]; fc [out, in].
  return {
      "conv1_w": w(ks[0], (6, 3, 5, 5)), "conv1_b": w(ks[1], (6,)),
      "conv2_w": w(ks[2], (16, 6, 5, 5)), "conv2_b": w(ks[3], (16,)),
      "fc1_w": w(ks[4], (120, 400)), "fc1_b": w(ks[5], (120,)),
      "fc2_w": w(ks[6], (84, 120)), "fc2_b": w(ks[7], (84,)),
      "fc3_w": w(ks[8], (10, 84)), "fc3_b": w(ks[9], (10,)),
  }


def reference_forward(x_nchw, raw):
  hp = lax.Precision.HIGHEST
  y = lax.conv_general_dilated(x_nchw, raw["conv1_w"], (1, 1), "VALID",
                               dimension_numbers=("NCHW", "OIHW", "NCHW"),
                               precision=hp)
  y = jnp.maximum(y + raw["conv1_b"].reshape(1, -1, 1, 1), 0.0)
  y = lax.reduce_window(y, -jnp.inf, lax.max, (1, 1, 2, 2), (1, 1, 2, 2), "VALID")
  y = lax.conv_general_dilated(y, raw["conv2_w"], (1, 1), "VALID",
                               dimension_numbers=("NCHW", "OIHW", "NCHW"),
                               precision=hp)
  y = jnp.maximum(y + raw["conv2_b"].reshape(1, -1, 1, 1), 0.0)
  y = lax.reduce_window(y, -jnp.inf, lax.max, (1, 1, 2, 2), (1, 1, 2, 2), "VALID")
  flat = y.reshape(y.shape[0], -1)                       # torch.flatten (NCHW order)
  h1 = jnp.maximum(jnp.dot(flat, raw["fc1_w"].T, precision=hp) + raw["fc1_b"], 0.0)
  h2 = jnp.maximum(jnp.dot(h1, raw["fc2_w"].T, precision=hp) + raw["fc2_b"], 0.0)
  out = jnp.dot(h2, raw["fc3_w"].T, precision=hp) + raw["fc3_b"]
  return h2, out


if __name__ == "__main__":
  key = jax.random.PRNGKey(0)
  pkey, xkey = jax.random.split(key)
  raw = init_raw_params(pkey)
  packed = pack_params(raw)

  # Input must be 32x32 so that 16*5*5 = 400 matches fc1's input dim (NCHW, like PyTorch).
  x = jax.random.normal(xkey, (2, 3, 32, 32), dtype=jnp.float32)

  features, output = cifar10_cnn_forward(x, packed)
  jax.block_until_ready((features, output))
  assert features.shape == (2, 84), features.shape
  assert output.shape == (2, 10), output.shape

  # Sanity check against a plain-XLA reference (loose tol: MXU f32-via-bf16 passes).
  ref_feat, ref_out = reference_forward(x, raw)
  err_f = float(jnp.max(jnp.abs(features - ref_feat)))
  err_o = float(jnp.max(jnp.abs(output - ref_out)))
  assert err_f < 5e-2 and err_o < 5e-2, (err_f, err_o)

  print("KERNEL_OK")
</pallas_src>

<mosaic_0001>
module attributes {stable_mosaic.version = 11 : i64} {
  func.func @_cifar10_fused_kernel(%arg0: i32, %arg1: memref<2x32x96xf32, #tpu.memory_space<vmem>>, %arg2: memref<5x96x168xf32, #tpu.memory_space<vmem>>, %arg3: memref<1x168xf32, #tpu.memory_space<vmem>>, %arg4: memref<2x14x28xf32, #tpu.memory_space<vmem>>, %arg5: memref<2x168x84xf32, #tpu.memory_space<vmem>>, %arg6: memref<5x84x160xf32, #tpu.memory_space<vmem>>, %arg7: memref<1x160xf32, #tpu.memory_space<vmem>>, %arg8: memref<2x5x10xf32, #tpu.memory_space<vmem>>, %arg9: memref<2x160x80xf32, #tpu.memory_space<vmem>>, %arg10: memref<5x80x128xf32, #tpu.memory_space<vmem>>, %arg11: memref<1x128xf32, #tpu.memory_space<vmem>>, %arg12: memref<128x128xf32, #tpu.memory_space<vmem>>, %arg13: memref<1x128xf32, #tpu.memory_space<vmem>>, %arg14: memref<128x128xf32, #tpu.memory_space<vmem>>, %arg15: memref<1x128xf32, #tpu.memory_space<vmem>>, %arg16: memref<2x128xf32, #tpu.memory_space<vmem>>, %arg17: memref<2x128xf32, #tpu.memory_space<vmem>>, %arg18: memref<14x84xf32, #tpu.memory_space<vmem>>, %arg19: memref<5x80xf32, #tpu.memory_space<vmem>>) attributes {dimension_semantics = [#tpu.dimension_semantics<parallel>], iteration_bounds = array<i64: 1>, scalar_prefetch = 0 : i64, scratch_operands = 2 : i64, tpu.core_type = #tpu.core_type<tc>, window_params = [{transform_indices = @transform_0, window_bounds = array<i64: 2, 32, 96>}, {pipeline_mode = #tpu.pipeline_mode<synchronous>, transform_indices = @transform_1, window_bounds = array<i64: 5, 96, 168>}, {pipeline_mode = #tpu.pipeline_mode<synchronous>, transform_indices = @transform_2, window_bounds = array<i64: 1, 168>}, {pipeline_mode = #tpu.pipeline_mode<synchronous>, transform_indices = @transform_3, window_bounds = array<i64: 2, 14, 28>}, {pipeline_mode = #tpu.pipeline_mode<synchronous>, transform_indices = @transform_4, window_bounds = array<i64: 2, 168, 84>}, {pipeline_mode = #tpu.pipeline_mode<synchronous>, transform_indices = @transform_5, window_bounds = array<i64: 5, 84, 160>}, {pipeline_mode = #tpu.pipeline_mode<synchronous>, transform_indices = @transform_6, window_bounds = array<i64: 1, 160>}, {pipeline_mode = #tpu.pipeline_mode<synchronous>, transform_indices = @transform_7, window_bounds = array<i64: 2, 5, 10>}, {pipeline_mode = #tpu.pipeline_mode<synchronous>, transform_indices = @transform_8, window_bounds = array<i64: 2, 160, 80>}, {pipeline_mode = #tpu.pipeline_mode<synchronous>, transform_indices = @transform_9, window_bounds = array<i64: 5, 80, 128>}, {pipeline_mode = #tpu.pipeline_mode<synchronous>, transform_indices = @transform_10, window_bounds = array<i64: 1, 128>}, {pipeline_mode = #tpu.pipeline_mode<synchronous>, transform_indices = @transform_11, window_bounds = array<i64: 128, 128>}, {pipeline_mode = #tpu.pipeline_mode<synchronous>, transform_indices = @transform_12, window_bounds = array<i64: 1, 128>}, {pipeline_mode = #tpu.pipeline_mode<synchronous>, transform_indices = @transform_13, window_bounds = array<i64: 128, 128>}, {pipeline_mode = #tpu.pipeline_mode<synchronous>, transform_indices = @transform_14, window_bounds = array<i64: 1, 128>}, {transform_indices = @transform_15, window_bounds = array<i64: 2, 128>}, {transform_indices = @transform_16, window_bounds = array<i64: 2, 128>}]} {
    %cst = arith.constant 0.000000e+00 : f32
    %0 = vector.broadcast %cst : f32 to vector<28x168xf32>
    %c0 = arith.constant 0 : index
    %c0_0 = arith.constant 0 : index
    %c0_1 = arith.constant 0 : index
    %1 = vector.load %arg1[%c0, %c0_0, %c0_1] : memref<2x32x96xf32, #tpu.memory_space<vmem>>, vector<1x28x96xf32>
    %2 = vector.shape_cast %1 : vector<1x28x96xf32> to vector<28x96xf32>
    %c0_2 = arith.constant 0 : index
    %c0_3 = arith.constant 0 : index
    %c0_4 = arith.constant 0 : index
    %3 = vector.load %arg2[%c0_2, %c0_3, %c0_4] : memref<5x96x168xf32, #tpu.memory_space<vmem>>, vector<1x96x168xf32>
    %4 = vector.shape_cast %3 : vector<1x96x168xf32> to vector<96x168xf32>
    %cst_5 = arith.constant dense<0.000000e+00> : vector<28x168xf32>
    %5 = tpu.matmul %2, %4, %cst_5 {dimension_numbers = #tpu.dot_dimension_numbers<[1], [0], [0], [1], [0, 0, 1, 1], [], []>} : vector<28x96xf32>, vector<96x168xf32>, vector<28x168xf32> -> vector<28x168xf32>
    %6 = arith.addf %0, %5 : vector<28x168xf32>
    %c0_6 = arith.constant 0 : index
    %c1 = arith.constant 1 : index
    %c0_7 = arith.constant 0 : index
    %7 = vector.load %arg1[%c0_6, %c1, %c0_7] : memref<2x32x96xf32, #tpu.memory_space<vmem>>, vector<1x28x96xf32>
    %8 = vector.shape_cast %7 : vector<1x28x96xf32> to vector<28x96xf32>
    %c1_8 = arith.constant 1 : index
    %c0_9 = arith.constant 0 : index
    %c0_10 = arith.constant 0 : index
    %9 = vector.load %arg2[%c1_8, %c0_9, %c0_10] : memref<5x96x168xf32, #tpu.memory_space<vmem>>, vector<1x96x168xf32>
    %10 = vector.shape_cast %9 : vector<1x96x168xf32> to vector<96x168xf32>
    %cst_11 = arith.constant dense<0.000000e+00> : vector<28x168xf32>
    %11 = tpu.matmul %8, %10, %cst_11 {dimension_numbers = #tpu.dot_dimension_numbers<[1], [0], [0], [1], [0, 0, 1, 1], [], []>} : vector<28x96xf32>, vector<96x168xf32>, vector<28x168xf32> -> vector<28x168xf32>
    %12 = arith.addf %6, %11 : vector<28x168xf32>
    %c0_12 = arith.constant 0 : index
    %c2 = arith.constant 2 : index
    %c0_13 = arith.constant 0 : index
    %13 = vector.load %arg1[%c0_12, %c2, %c0_13] : memref<2x32x96xf32, #tpu.memory_space<vmem>>, vector<1x28x96xf32>
    %14 = vector.shape_cast %13 : vector<1x28x96xf32> to vector<28x96xf32>
    %c2_14 = arith.constant 2 : index
    %c0_15 = arith.constant 0 : index
    %c0_16 = arith.constant 0 : index
    %15 = vector.load %arg2[%c2_14, %c0_15, %c0_16] : memref<5x96x168xf32, #tpu.memory_space<vmem>>, vector<1x96x168xf32>
    %16 = vector.shape_cast %15 : vector<1x96x168xf32> to vector<96x168xf32>
    %cst_17 = arith.constant dense<0.000000e+00> : vector<28x168xf32>
    %17 = tpu.matmul %14, %16, %cst_17 {dimension_numbers = #tpu.dot_dimension_numbers<[1], [0], [0], [1], [0, 0, 1, 1], [], []>} : vector<28x96xf32>, vector<96x168xf32>, vector<28x168xf32> -> vector<28x168xf32>
    %18 = arith.addf %12, %17 : vector<28x168xf32>
    %c0_18 = arith.constant 0 : index
    %c3 = arith.constant 3 : index
    %c0_19 = arith.constant 0 : index
    %19 = vector.load %arg1[%c0_18, %c3, %c0_19] : memref<2x32x96xf32, #tpu.memory_space<vmem>>, vector<1x28x96xf32>
    %20 = vector.shape_cast %19 : vector<1x28x96xf32> to vector<28x96xf32>
    %c3_20 = arith.constant 3 : index
    %c0_21 = arith.constant 0 : index
    %c0_22 = arith.constant 0 : index
    %21 = vector.load %arg2[%c3_20, %c0_21, %c0_22] : memref<5x96x168xf32, #tpu.memory_space<vmem>>, vector<1x96x168xf32>
    %22 = vector.shape_cast %21 : vector<1x96x168xf32> to vector<96x168xf32>
    %cst_23 = arith.constant dense<0.000000e+00> : vector<28x168xf32>
    %23 = tpu.matmul %20, %22, %cst_23 {dimension_numbers = #tpu.dot_dimension_numbers<[1], [0], [0], [1], [0, 0, 1, 1], [], []>} : vector<28x96xf32>, vector<96x168xf32>, vector<28x168xf32> -> vector<28x168xf32>
    %24 = arith.addf %18, %23 : vector<28x168xf32>
    %c0_24 = arith.constant 0 : index
    %c4 = arith.constant 4 : index
    %c0_25 = arith.constant 0 : index
    %25 = vector.load %arg1[%c0_24, %c4, %c0_25] : memref<2x32x96xf32, #tpu.memory_space<vmem>>, vector<1x28x96xf32>
    %26 = vector.shape_cast %25 : vector<1x28x96xf32> to vector<28x96xf32>
    %c4_26 = arith.constant 4 : index
    %c0_27 = arith.constant 0 : index
    %c0_28 = arith.constant 0 : index
    %27 = vector.load %arg2[%c4_26, %c0_27, %c0_28] : memref<5x96x168xf32, #tpu.memory_space<vmem>>, vector<1x96x168xf32>
    %28 = vector.shape_cast %27 : vector<1x96x168xf32> to vector<96x168xf32>
    %cst_29 = arith.constant dense<0.000000e+00> : vector<28x168xf32>
    %29 = tpu.matmul %26, %28, %cst_29 {dimension_numbers = #tpu.dot_dimension_numbers<[1], [0], [0], [1], [0, 0, 1, 1], [], []>} : vector<28x96xf32>, vector<96x168xf32>, vector<28x168xf32> -> vector<28x168xf32>
    %30 = arith.addf %24, %29 : vector<28x168xf32>
    %c0_30 = arith.constant 0 : index
    %c0_31 = arith.constant 0 : index
    %31 = vector.load %arg3[%c0_30, %c0_31] : memref<1x168xf32, #tpu.memory_space<vmem>>, vector<1x168xf32>
    %32 = vector.broadcast %31 : vector<1x168xf32> to vector<28x168xf32>
    %33 = arith.addf %30, %32 : vector<28x168xf32>
    %cst_32 = arith.constant 0.000000e+00 : f32
    %34 = vector.broadcast %cst_32 : f32 to vector<28x168xf32>
    %35 = arith.maximumf %33, %34 : vector<28x168xf32>
    %c0_33 = arith.constant 0 : index
    %c0_34 = arith.constant 0 : index
    %c0_35 = arith.constant 0 : index
    %36 = vector.load %arg4[%c0_33, %c0_34, %c0_35] : memref<2x14x28xf32, #tpu.memory_space<vmem>>, vector<1x14x28xf32>
    %37 = vector.shape_cast %36 : vector<1x14x28xf32> to vector<14x28xf32>
    %cst_36 = arith.constant dense<0.000000e+00> : vector<14x168xf32>
    %38 = tpu.matmul %37, %35, %cst_36 {dimension_numbers = #tpu.dot_dimension_numbers<[1], [0], [0], [1], [0, 0, 1, 1], [], []>} : vector<14x28xf32>, vector<28x168xf32>, vector<14x168xf32> -> vector<14x168xf32>
    %c1_37 = arith.constant 1 : index
    %c0_38 = arith.constant 0 : index
    %c0_39 = arith.constant 0 : index
    %39 = vector.load %arg4[%c1_37, %c0_38, %c0_39] : memref<2x14x28xf32, #tpu.memory_space<vmem>>, vector<1x14x28xf32>
    %40 = vector.shape_cast %39 : vector<1x14x28xf32> to vector<14x28xf32>
    %cst_40 = arith.constant dense<0.000000e+00> : vector<14x168xf32>
    %41 = tpu.matmul %40, %35, %cst_40 {dimension_numbers = #tpu.dot_dimension_numbers<[1], [0], [0], [1], [0, 0, 1, 1], [], []>} : vector<14x28xf32>, vector<28x168xf32>, vector<14x168xf32> -> vector<14x168xf32>
    %42 = arith.maximumf %38, %41 : vector<14x168xf32>
    %c0_41 = arith.constant 0 : index
    %c0_42 = arith.constant 0 : index
    %c0_43 = arith.constant 0 : index
    %43 = vector.load %arg5[%c0_41, %c0_42, %c0_43] : memref<2x168x84xf32, #tpu.memory_space<vmem>>, vector<1x168x84xf32>
    %44 = vector.shape_cast %43 : vector<1x168x84xf32> to vector<168x84xf32>
    %cst_44 = arith.constant dense<0.000000e+00> : vector<14x84xf32>
    %45 = tpu.matmul %42, %44, %cst_44 {dimension_numbers = #tpu.dot_dimension_numbers<[1], [0], [0], [1], [0, 0, 1, 1], [], []>} : vector<14x168xf32>, vector<168x84xf32>, vector<14x84xf32> -> vector<14x84xf32>
    %c1_45 = arith.constant 1 : index
    %c0_46 = arith.constant 0 : index
    %c0_47 = arith.constant 0 : index
    %46 = vector.load %arg5[%c1_45, %c0_46, %c0_47] : memref<2x168x84xf32, #tpu.memory_space<vmem>>, vector<1x168x84xf32>
    %47 = vector.shape_cast %46 : vector<1x168x84xf32> to vector<168x84xf32>
    %cst_48 = arith.constant dense<0.000000e+00> : vector<14x84xf32>
    %48 = tpu.matmul %42, %47, %cst_48 {dimension_numbers = #tpu.dot_dimension_numbers<[1], [0], [0], [1], [0, 0, 1, 1], [], []>} : vector<14x168xf32>, vector<168x84xf32>, vector<14x84xf32> -> vector<14x84xf32>
    %49 = arith.maximumf %45, %48 : vector<14x84xf32>
    %c0_49 = arith.constant 0 : index
    %c0_50 = arith.constant 0 : index
    %50 = vector.load %arg18[%c0_49, %c0_50] : memref<14x84xf32, #tpu.memory_space<vmem>>, vector<14x84xf32>
    tpu.vector_store %arg18[%c0_49, %c0_50], %49 {strides = array<i32>} : memref<14x84xf32, #tpu.memory_space<vmem>>, vector<14x84xf32>,
    %cst_51 = arith.constant 0.000000e+00 : f32
    %51 = vector.broadcast %cst_51 : f32 to vector<10x160xf32>
    %c0_52 = arith.constant 0 : index
    %c0_53 = arith.constant 0 : index
    %52 = vector.load %arg18[%c0_52, %c0_53] : memref<14x84xf32, #tpu.memory_space<vmem>>, vector<10x84xf32>
    %c0_54 = arith.constant 0 : index
    %c0_55 = arith.constant 0 : index
    %c0_56 = arith.constant 0 : index
    %53 = vector.load %arg6[%c0_54, %c0_55, %c0_56] : memref<5x84x160xf32, #tpu.memory_space<vmem>>, vector<1x84x160xf32>
    %54 = vector.shape_cast %53 : vector<1x84x160xf32> to vector<84x160xf32>
    %cst_57 = arith.constant dense<0.000000e+00> : vector<10x160xf32>
    %55 = tpu.matmul %52, %54, %cst_57 {dimension_numbers = #tpu.dot_dimension_numbers<[1], [0], [0], [1], [0, 0, 1, 1], [], []>} : vector<10x84xf32>, vector<84x160xf32>, vector<10x160xf32> -> vector<10x160xf32>
    %56 = arith.addf %51, %55 : vector<10x160xf32>
    %c1_58 = arith.constant 1 : index
    %c0_59 = arith.constant 0 : index
    %57 = vector.load %arg18[%c1_58, %c0_59] : memref<14x84xf32, #tpu.memory_space<vmem>>, vector<10x84xf32>
    %c1_60 = arith.constant 1 : index
    %c0_61 = arith.constant 0 : index
    %c0_62 = arith.constant 0 : index
    %58 = vector.load %arg6[%c1_60, %c0_61, %c0_62] : memref<5x84x160xf32, #tpu.memory_space<vmem>>, vector<1x84x160xf32>
    %59 = vector.shape_cast %58 : vector<1x84x160xf32> to vector<84x160xf32>
    %cst_63 = arith.constant dense<0.000000e+00> : vector<10x160xf32>
    %60 = tpu.matmul %57, %59, %cst_63 {dimension_numbers = #tpu.dot_dimension_numbers<[1], [0], [0], [1], [0, 0, 1, 1], [], []>} : vector<10x84xf32>, vector<84x160xf32>, vector<10x160xf32> -> vector<10x160xf32>
    %61 = arith.addf %56, %60 : vector<10x160xf32>
    %c2_64 = arith.constant 2 : index
    %c0_65 = arith.constant 0 : index
    %62 = vector.load %arg18[%c2_64, %c0_65] : memref<14x84xf32, #tpu.memory_space<vmem>>, vector<10x84xf32>
    %c2_66 = arith.constant 2 : index
    %c0_67 = arith.constant 0 : index
    %c0_68 = arith.constant 0 : index
    %63 = vector.load %arg6[%c2_66, %c0_67, %c0_68] : memref<5x84x160xf32, #tpu.memory_space<vmem>>, vector<1x84x160xf32>
    %64 = vector.shape_cast %63 : vector<1x84x160xf32> to vector<84x160xf32>
    %cst_69 = arith.constant dense<0.000000e+00> : vector<10x160xf32>
    %65 = tpu.matmul %62, %64, %cst_69 {dimension_numbers = #tpu.dot_dimension_numbers<[1], [0], [0], [1], [0, 0, 1, 1], [], []>} : vector<10x84xf32>, vector<84x160xf32>, vector<10x160xf32> -> vector<10x160xf32>
    %66 = arith.addf %61, %65 : vector<10x160xf32>
    %c3_70 = arith.constant 3 : index
    %c0_71 = arith.constant 0 : index
    %67 = vector.load %arg18[%c3_70, %c0_71] : memref<14x84xf32, #tpu.memory_space<vmem>>, vector<10x84xf32>
    %c3_72 = arith.constant 3 : index
    %c0_73 = arith.constant 0 : index
    %c0_74 = arith.constant 0 : index
    %68 = vector.load %arg6[%c3_72, %c0_73, %c0_74] : memref<5x84x160xf32, #tpu.memory_space<vmem>>, vector<1x84x160xf32>
    %69 = vector.shape_cast %68 : vector<1x84x160xf32> to vector<84x160xf32>
    %cst_75 = arith.constant dense<0.000000e+00> : vector<10x160xf32>
    %70 = tpu.matmul %67, %69, %cst_75 {dimension_numbers = #tpu.dot_dimension_numbers<[1], [0], [0], [1], [0, 0, 1, 1], [], []>} : vector<10x84xf32>, vector<84x160xf32>, vector<10x160xf32> -> vector<10x160xf32>
    %71 = arith.addf %66, %70 : vector<10x160xf32>
    %c4_76 = arith.constant 4 : index
    %c0_77 = arith.constant 0 : index
    %72 = vector.load %arg18[%c4_76, %c0_77] : memref<14x84xf32, #tpu.memory_space<vmem>>, vector<10x84xf32>
    %c4_78 = arith.constant 4 : index
    %c0_79 = arith.constant 0 : index
    %c0_80 = arith.constant 0 : index
    %73 = vector.load %arg6[%c4_78, %c0_79, %c0_80] : memref<5x84x160xf32, #tpu.memory_space<vmem>>, vector<1x84x160xf32>
    %74 = vector.shape_cast %73 : vector<1x84x160xf32> to vector<84x160xf32>
    %cst_81 = arith.constant dense<0.000000e+00> : vector<10x160xf32>
    %75 = tpu.matmul %72, %74, %cst_81 {dimension_numbers = #tpu.dot_dimension_numbers<[1], [0], [0], [1], [0, 0, 1, 1], [], []>} : vector<10x84xf32>, vector<84x160xf32>, vector<10x160xf32> -> vector<10x160xf32>
    %76 = arith.addf %71, %75 : vector<10x160xf32>
    %c0_82 = arith.constant 0 : index
    %c0_83 = arith.constant 0 : index
    %77 = vector.load %arg7[%c0_82, %c0_83] : memref<1x160xf32, #tpu.memory_space<vmem>>, vector<1x160xf32>
    %78 = vector.broadcast %77 : vector<1x160xf32> to vector<10x160xf32>
    %79 = arith.addf %76, %78 : vector<10x160xf32>
    %cst_84 = arith.constant 0.000000e+00 : f32
    %80 = vector.broadcast %cst_84 : f32 to vector<10x160xf32>
    %81 = arith.maximumf %79, %80 : vector<10x160xf32>
    %c0_85 = arith.constant 0 : index
    %c0_86 = arith.constant 0 : index
    %c0_87 = arith.constant 0 : index
    %82 = vector.load %arg8[%c0_85, %c0_86, %c0_87] : memref<2x5x10xf32, #tpu.memory_space<vmem>>, vector<1x5x10xf32>
    %83 = vector.shape_cast %82 : vector<1x5x10xf32> to vector<5x10xf32>
    %cst_88 = arith.constant dense<0.000000e+00> : vector<5x160xf32>
    %84 = tpu.matmul %83, %81, %cst_88 {dimension_numbers = #tpu.dot_dimension_numbers<[1], [0], [0], [1], [0, 0, 1, 1], [], []>} : vector<5x10xf32>, vector<10x160xf32>, vector<5x160xf32> -> vector<5x160xf32>
    %c1_89 = arith.constant 1 : index
    %c0_90 = arith.constant 0 : index
    %c0_91 = arith.constant 0 : index
    %85 = vector.load %arg8[%c1_89, %c0_90, %c0_91] : memref<2x5x10xf32, #tpu.memory_space<vmem>>, vector<1x5x10xf32>
    %86 = vector.shape_cast %85 : vector<1x5x10xf32> to vector<5x10xf32>
    %cst_92 = arith.constant dense<0.000000e+00> : vector<5x160xf32>
    %87 = tpu.matmul %86, %81, %cst_92 {dimension_numbers = #tpu.dot_dimension_numbers<[1], [0], [0], [1], [0, 0, 1, 1], [], []>} : vector<5x10xf32>, vector<10x160xf32>, vector<5x160xf32> -> vector<5x160xf32>
    %88 = arith.maximumf %84, %87 : vector<5x160xf32>
    %c0_93 = arith.constant 0 : index
    %c0_94 = arith.constant 0 : index
    %c0_95 = arith.constant 0 : index
    %89 = vector.load %arg9[%c0_93, %c0_94, %c0_95] : memref<2x160x80xf32, #tpu.memory_space<vmem>>, vector<1x160x80xf32>
    %90 = vector.shape_cast %89 : vector<1x160x80xf32> to vector<160x80xf32>
    %cst_96 = arith.constant dense<0.000000e+00> : vector<5x80xf32>
    %91 = tpu.matmul %88, %90, %cst_96 {dimension_numbers = #tpu.dot_dimension_numbers<[1], [0], [0], [1], [0, 0, 1, 1], [], []>} : vector<5x160xf32>, vector<160x80xf32>, vector<5x80xf32> -> vector<5x80xf32>
    %c1_97 = arith.constant 1 : index
    %c0_98 = arith.constant 0 : index
    %c0_99 = arith.constant 0 : index
    %92 = vector.load %arg9[%c1_97, %c0_98, %c0_99] : memref<2x160x80xf32, #tpu.memory_space<vmem>>, vector<1x160x80xf32>
    %93 = vector.shape_cast %92 : vector<1x160x80xf32> to vector<160x80xf32>
    %cst_100 = arith.constant dense<0.000000e+00> : vector<5x80xf32>
    %94 = tpu.matmul %88, %93, %cst_100 {dimension_numbers = #tpu.dot_dimension_numbers<[1], [0], [0], [1], [0, 0, 1, 1], [], []>} : vector<5x160xf32>, vector<160x80xf32>, vector<5x80xf32> -> vector<5x80xf32>
    %95 = arith.maximumf %91, %94 : vector<5x80xf32>
    %c0_101 = arith.constant 0 : index
    %c0_102 = arith.constant 0 : index
    %96 = vector.load %arg19[%c0_101, %c0_102] : memref<5x80xf32, #tpu.memory_space<vmem>>, vector<5x80xf32>
    tpu.vector_store %arg19[%c0_101, %c0_102], %95 {strides = array<i32>} : memref<5x80xf32, #tpu.memory_space<vmem>>, vector<5x80xf32>,
    %c0_103 = arith.constant 0 : index
    %c0_104 = arith.constant 0 : index
    %97 = vector.load %arg11[%c0_103, %c0_104] : memref<1x128xf32, #tpu.memory_space<vmem>>, vector<1x128xf32>
    %c0_105 = arith.constant 0 : index
    %c0_106 = arith.constant 0 : index
    %98 = vector.load %arg19[%c0_105, %c0_106] : memref<5x80xf32, #tpu.memory_space<vmem>>, vector<1x80xf32>
    %c0_107 = arith.constant 0 : index
    %c0_108 = arith.constant 0 : index
    %c0_109 = arith.constant 0 : index
    %99 = vector.load %arg10[%c0_107, %c0_108, %c0_109] : memref<5x80x128xf32, #tpu.memory_space<vmem>>, vector<1x80x128xf32>
    %100 = vector.shape_cast %99 : vector<1x80x128xf32> to vector<80x128xf32>
    %cst_110 = arith.constant dense<0.000000e+00> : vector<1x128xf32>
    %101 = tpu.matmul %98, %100, %cst_110 {dimension_numbers = #tpu.dot_dimension_numbers<[1], [0], [0], [1], [0, 0, 1, 1], [], []>} : vector<1x80xf32>, vector<80x128xf32>, vector<1x128xf32> -> vector<1x128xf32>
    %102 = arith.addf %97, %101 : vector<1x128xf32>
    %c1_111 = arith.constant 1 : index
    %c0_112 = arith.constant 0 : index
    %103 = vector.load %arg19[%c1_111, %c0_112] : memref<5x80xf32, #tpu.memory_space<vmem>>, vector<1x80xf32>
    %c1_113 = arith.constant 1 : index
    %c0_114 = arith.constant 0 : index
    %c0_115 = arith.constant 0 : index
    %104 = vector.load %arg10[%c1_113, %c0_114, %c0_115] : memref<5x80x128xf32, #tpu.memory_space<vmem>>, vector<1x80x128xf32>
    %105 = vector.shape_cast %104 : vector<1x80x128xf32> to vector<80x128xf32>
    %cst_116 = arith.constant dense<0.000000e+00> : vector<1x128xf32>
    %106 = tpu.matmul %103, %105, %cst_116 {dimension_numbers = #tpu.dot_dimension_numbers<[1], [0], [0], [1], [0, 0, 1, 1], [], []>} : vector<1x80xf32>, vector<80x128xf32>, vector<1x128xf32> -> vector<1x128xf32>
    %107 = arith.addf %102, %106 : vector<1x128xf32>
    %c2_117 = arith.constant 2 : index
    %c0_118 = arith.constant 0 : index
    %108 = vector.load %arg19[%c2_117, %c0_118] : memref<5x80xf32, #tpu.memory_space<vmem>>, vector<1x80xf32>
    %c2_119 = arith.constant 2 : index
    %c0_120 = arith.constant 0 : index
    %c0_121 = arith.constant 0 : index
    %109 = vector.load %arg10[%c2_119, %c0_120, %c0_121] : memref<5x80x128xf32, #tpu.memory_space<vmem>>, vector<1x80x128xf32>
    %110 = vector.shape_cast %109 : vector<1x80x128xf32> to vector<80x128xf32>
    %cst_122 = arith.constant dense<0.000000e+00> : vector<1x128xf32>
    %111 = tpu.matmul %108, %110, %cst_122 {dimension_numbers = #tpu.dot_dimension_numbers<[1], [0], [0], [1], [0, 0, 1, 1], [], []>} : vector<1x80xf32>, vector<80x128xf32>, vector<1x128xf32> -> vector<1x128xf32>
    %112 = arith.addf %107, %111 : vector<1x128xf32>
    %c3_123 = arith.constant 3 : index
    %c0_124 = arith.constant 0 : index
    %113 = vector.load %arg19[%c3_123, %c0_124] : memref<5x80xf32, #tpu.memory_space<vmem>>, vector<1x80xf32>
    %c3_125 = arith.constant 3 : index
    %c0_126 = arith.constant 0 : index
    %c0_127 = arith.constant 0 : index
    %114 = vector.load %arg10[%c3_125, %c0_126, %c0_127] : memref<5x80x128xf32, #tpu.memory_space<vmem>>, vector<1x80x128xf32>
    %115 = vector.shape_cast %114 : vector<1x80x128xf32> to vector<80x128xf32>
    %cst_128 = arith.constant dense<0.000000e+00> : vector<1x128xf32>
    %116 = tpu.matmul %113, %115, %cst_128 {dimension_numbers = #tpu.dot_dimension_numbers<[1], [0], [0], [1], [0, 0, 1, 1], [], []>} : vector<1x80xf32>, vector<80x128xf32>, vector<1x128xf32> -> vector<1x128xf32>
    %117 = arith.addf %112, %116 : vector<1x128xf32>
    %c4_129 = arith.constant 4 : index
    %c0_130 = arith.constant 0 : index
    %118 = vector.load %arg19[%c4_129, %c0_130] : memref<5x80xf32, #tpu.memory_space<vmem>>, vector<1x80xf32>
    %c4_131 = arith.constant 4 : index
    %c0_132 = arith.constant 0 : index
    %c0_133 = arith.constant 0 : index
    %119 = vector.load %arg10[%c4_131, %c0_132, %c0_133] : memref<5x80x128xf32, #tpu.memory_space<vmem>>, vector<1x80x128xf32>
    %120 = vector.shape_cast %119 : vector<1x80x128xf32> to vector<80x128xf32>
    %cst_134 = arith.constant dense<0.000000e+00> : vector<1x128xf32>
    %121 = tpu.matmul %118, %120, %cst_134 {dimension_numbers = #tpu.dot_dimension_numbers<[1], [0], [0], [1], [0, 0, 1, 1], [], []>} : vector<1x80xf32>, vector<80x128xf32>, vector<1x128xf32> -> vector<1x128xf32>
    %122 = arith.addf %117, %121 : vector<1x128xf32>
    %cst_135 = arith.constant 0.000000e+00 : f32
    %123 = vector.broadcast %cst_135 : f32 to vector<1x128xf32>
    %124 = arith.maximumf %122, %123 : vector<1x128xf32>
    %c0_136 = arith.constant 0 : index
    %c0_137 = arith.constant 0 : index
    %125 = vector.load %arg12[%c0_136, %c0_137] : memref<128x128xf32, #tpu.memory_space<vmem>>, vector<128x128xf32>
    %cst_138 = arith.constant dense<0.000000e+00> : vector<1x128xf32>
    %126 = tpu.matmul %124, %125, %cst_138 {dimension_numbers = #tpu.dot_dimension_numbers<[1], [0], [0], [1], [0, 0, 1, 1], [], []>} : vector<1x128xf32>, vector<128x128xf32>, vector<1x128xf32> -> vector<1x128xf32>
    %c0_139 = arith.constant 0 : index
    %c0_140 = arith.constant 0 : index
    %127 = vector.load %arg13[%c0_139, %c0_140] : memref<1x128xf32, #tpu.memory_space<vmem>>, vector<1x128xf32>
    %128 = arith.addf %126, %127 : vector<1x128xf32>
    %cst_141 = arith.constant 0.000000e+00 : f32
    %129 = vector.broadcast %cst_141 : f32 to vector<1x128xf32>
    %130 = arith.maximumf %128, %129 : vector<1x128xf32>
    %c0_142 = arith.constant 0 : index
    %c0_143 = arith.constant 0 : index
    %131 = vector.load %arg14[%c0_142, %c0_143] : memref<128x128xf32, #tpu.memory_space<vmem>>, vector<128x128xf32>
    %cst_144 = arith.constant dense<0.000000e+00> : vector<1x128xf32>
    %132 = tpu.matmul %130, %131, %cst_144 {dimension_numbers = #tpu.dot_dimension_numbers<[1], [0], [0], [1], [0, 0, 1, 1], [], []>} : vector<1x128xf32>, vector<128x128xf32>, vector<1x128xf32> -> vector<1x128xf32>
    %c0_145 = arith.constant 0 : index
    %c0_146 = arith.constant 0 : index
    %133 = vector.load %arg15[%c0_145, %c0_146] : memref<1x128xf32, #tpu.memory_space<vmem>>, vector<1x128xf32>
    %134 = arith.addf %132, %133 : vector<1x128xf32>
    %c0_147 = arith.constant 0 : index
    %c0_148 = arith.constant 0 : index
    %135 = vector.load %arg16[%c0_147, %c0_148] : memref<2x128xf32, #tpu.memory_space<vmem>>, vector<1x128xf32>
    tpu.vector_store %arg16[%c0_147, %c0_148], %130 {strides = array<i32>} : memref<2x128xf32, #tpu.memory_space<vmem>>, vector<1x128xf32>,
    %c0_149 = arith.constant 0 : index
    %c0_150 = arith.constant 0 : index
    %136 = vector.load %arg17[%c0_149, %c0_150] : memref<2x128xf32, #tpu.memory_space<vmem>>, vector<1x128xf32>
    tpu.vector_store %arg17[%c0_149, %c0_150], %134 {strides = array<i32>} : memref<2x128xf32, #tpu.memory_space<vmem>>, vector<1x128xf32>,
    %cst_151 = arith.constant 0.000000e+00 : f32
    %137 = vector.broadcast %cst_151 : f32 to vector<28x168xf32>
    %c1_152 = arith.constant 1 : index
    %c0_153 = arith.constant 0 : index
    %c0_154 = arith.constant 0 : index
    %138 = vector.load %arg1[%c1_152, %c0_153, %c0_154] : memref<2x32x96xf32, #tpu.memory_space<vmem>>, vector<1x28x96xf32>
    %139 = vector.shape_cast %138 : vector<1x28x96xf32> to vector<28x96xf32>
    %c0_155 = arith.constant 0 : index
    %c0_156 = arith.constant 0 : index
    %c0_157 = arith.constant 0 : index
    %140 = vector.load %arg2[%c0_155, %c0_156, %c0_157] : memref<5x96x168xf32, #tpu.memory_space<vmem>>, vector<1x96x168xf32>
    %141 = vector.shape_cast %140 : vector<1x96x168xf32> to vector<96x168xf32>
    %cst_158 = arith.constant dense<0.000000e+00> : vector<28x168xf32>
    %142 = tpu.matmul %139, %141, %cst_158 {dimension_numbers = #tpu.dot_dimension_numbers<[1], [0], [0], [1], [0, 0, 1, 1], [], []>} : vector<28x96xf32>, vector<96x168xf32>, vector<28x168xf32> -> vector<28x168xf32>
    %143 = arith.addf %137, %142 : vector<28x168xf32>
    %c1_159 = arith.constant 1 : index
    %c1_160 = arith.constant 1 : index
    %c0_161 = arith.constant 0 : index
    %144 = vector.load %arg1[%c1_159, %c1_160, %c0_161] : memref<2x32x96xf32, #tpu.memory_space<vmem>>, vector<1x28x96xf32>
    %145 = vector.shape_cast %144 : vector<1x28x96xf32> to vector<28x96xf32>
    %c1_162 = arith.constant 1 : index
    %c0_163 = arith.constant 0 : index
    %c0_164 = arith.constant 0 : index
    %146 = vector.load %arg2[%c1_162, %c0_163, %c0_164] : memref<5x96x168xf32, #tpu.memory_space<vmem>>, vector<1x96x168xf32>
    %147 = vector.shape_cast %146 : vector<1x96x168xf32> to vector<96x168xf32>
    %cst_165 = arith.constant dense<0.000000e+00> : vector<28x168xf32>
    %148 = tpu.matmul %145, %147, %cst_165 {dimension_numbers = #tpu.dot_dimension_numbers<[1], [0], [0], [1], [0, 0, 1, 1], [], []>} : vector<28x96xf32>, vector<96x168xf32>, vector<28x168xf32> -> vector<28x168xf32>
    %149 = arith.addf %143, %148 : vector<28x168xf32>
    %c1_166 = arith.constant 1 : index
    %c2_167 = arith.constant 2 : index
    %c0_168 = arith.constant 0 : index
    %150 = vector.load %arg1[%c1_166, %c2_167, %c0_168] : memref<2x32x96xf32, #tpu.memory_space<vmem>>, vector<1x28x96xf32>
    %151 = vector.shape_cast %150 : vector<1x28x96xf32> to vector<28x96xf32>
    %c2_169 = arith.constant 2 : index
    %c0_170 = arith.constant 0 : index
    %c0_171 = arith.constant 0 : index
    %152 = vector.load %arg2[%c2_169, %c0_170, %c0_171] : memref<5x96x168xf32, #tpu.memory_space<vmem>>, vector<1x96x168xf32>
    %153 = vector.shape_cast %152 : vector<1x96x168xf32> to vector<96x168xf32>
    %cst_172 = arith.constant dense<0.000000e+00> : vector<28x168xf32>
    %154 = tpu.matmul %151, %153, %cst_172 {dimension_numbers = #tpu.dot_dimension_numbers<[1], [0], [0], [1], [0, 0, 1, 1], [], []>} : vector<28x96xf32>, vector<96x168xf32>, vector<28x168xf32> -> vector<28x168xf32>
    %155 = arith.addf %149, %154 : vector<28x168xf32>
    %c1_173 = arith.constant 1 : index
    %c3_174 = arith.constant 3 : index
    %c0_175 = arith.constant 0 : index
    %156 = vector.load %arg1[%c1_173, %c3_174, %c0_175] : memref<2x32x96xf32, #tpu.memory_space<vmem>>, vector<1x28x96xf32>
    %157 = vector.shape_cast %156 : vector<1x28x96xf32> to vector<28x96xf32>
    %c3_176 = arith.constant 3 : index
    %c0_177 = arith.constant 0 : index
    %c0_178 = arith.constant 0 : index
    %158 = vector.load %arg2[%c3_176, %c0_177, %c0_178] : memref<5x96x168xf32, #tpu.memory_space<vmem>>, vector<1x96x168xf32>
    %159 = vector.shape_cast %158 : vector<1x96x168xf32> to vector<96x168xf32>
    %cst_179 = arith.constant dense<0.000000e+00> : vector<28x168xf32>
    %160 = tpu.matmul %157, %159, %cst_179 {dimension_numbers = #tpu.dot_dimension_numbers<[1], [0], [0], [1], [0, 0, 1, 1], [], []>} : vector<28x96xf32>, vector<96x168xf32>, vector<28x168xf32> -> vector<28x168xf32>
    %161 = arith.addf %155, %160 : vector<28x168xf32>
    %c1_180 = arith.constant 1 : index
    %c4_181 = arith.constant 4 : index
    %c0_182 = arith.constant 0 : index
    %162 = vector.load %arg1[%c1_180, %c4_181, %c0_182] : memref<2x32x96xf32, #tpu.memory_space<vmem>>, vector<1x28x96xf32>
    %163 = vector.shape_cast %162 : vector<1x28x96xf32> to vector<28x96xf32>
    %c4_183 = arith.constant 4 : index
    %c0_184 = arith.constant 0 : index
    %c0_185 = arith.constant 0 : index
    %164 = vector.load %arg2[%c4_183, %c0_184, %c0_185] : memref<5x96x168xf32, #tpu.memory_space<vmem>>, vector<1x96x168xf32>
    %165 = vector.shape_cast %164 : vector<1x96x168xf32> to vector<96x168xf32>
    %cst_186 = arith.constant dense<0.000000e+00> : vector<28x168xf32>
    %166 = tpu.matmul %163, %165, %cst_186 {dimension_numbers = #tpu.dot_dimension_numbers<[1], [0], [0], [1], [0, 0, 1, 1], [], []>} : vector<28x96xf32>, vector<96x168xf32>, vector<28x168xf32> -> vector<28x168xf32>
    %167 = arith.addf %161, %166 : vector<28x168xf32>
    %c0_187 = arith.constant 0 : index
    %c0_188 = arith.constant 0 : index
    %168 = vector.load %arg3[%c0_187, %c0_188] : memref<1x168xf32, #tpu.memory_space<vmem>>, vector<1x168xf32>
    %169 = vector.broadcast %168 : vector<1x168xf32> to vector<28x168xf32>
    %170 = arith.addf %167, %169 : vector<28x168xf32>
    %cst_189 = arith.constant 0.000000e+00 : f32
    %171 = vector.broadcast %cst_189 : f32 to vector<28x168xf32>
    %172 = arith.maximumf %170, %171 : vector<28x168xf32>
    %c0_190 = arith.constant 0 : index
    %c0_191 = arith.constant 0 : index
    %c0_192 = arith.constant 0 : index
    %173 = vector.load %arg4[%c0_190, %c0_191, %c0_192] : memref<2x14x28xf32, #tpu.memory_space<vmem>>, vector<1x14x28xf32>
    %174 = vector.shape_cast %173 : vector<1x14x28xf32> to vector<14x28xf32>
    %cst_193 = arith.constant dense<0.000000e+00> : vector<14x168xf32>
    %175 = tpu.matmul %174, %172, %cst_193 {dimension_numbers = #tpu.dot_dimension_numbers<[1], [0], [0], [1], [0, 0, 1, 1], [], []>} : vector<14x28xf32>, vector<28x168xf32>, vector<14x168xf32> -> vector<14x168xf32>
    %c1_194 = arith.constant 1 : index
    %c0_195 = arith.constant 0 : index
    %c0_196 = arith.constant 0 : index
    %176 = vector.load %arg4[%c1_194, %c0_195, %c0_196] : memref<2x14x28xf32, #tpu.memory_space<vmem>>, vector<1x14x28xf32>
    %177 = vector.shape_cast %176 : vector<1x14x28xf32> to vector<14x28xf32>
    %cst_197 = arith.constant dense<0.000000e+00> : vector<14x168xf32>
    %178 = tpu.matmul %177, %172, %cst_197 {dimension_numbers = #tpu.dot_dimension_numbers<[1], [0], [0], [1], [0, 0, 1, 1], [], []>} : vector<14x28xf32>, vector<28x168xf32>, vector<14x168xf32> -> vector<14x168xf32>
    %179 = arith.maximumf %175, %178 : vector<14x168xf32>
    %c0_198 = arith.constant 0 : index
    %c0_199 = arith.constant 0 : index
    %c0_200 = arith.constant 0 : index
    %180 = vector.load %arg5[%c0_198, %c0_199, %c0_200] : memref<2x168x84xf32, #tpu.memory_space<vmem>>, vector<1x168x84xf32>
    %181 = vector.shape_cast %180 : vector<1x168x84xf32> to vector<168x84xf32>
    %cst_201 = arith.constant dense<0.000000e+00> : vector<14x84xf32>
    %182 = tpu.matmul %179, %181, %cst_201 {dimension_numbers = #tpu.dot_dimension_numbers<[1], [0], [0], [1], [0, 0, 1, 1], [], []>} : vector<14x168xf32>, vector<168x84xf32>, vector<14x84xf32> -> vector<14x84xf32>
    %c1_202 = arith.constant 1 : index
    %c0_203 = arith.constant 0 : index
    %c0_204 = arith.constant 0 : index
    %183 = vector.load %arg5[%c1_202, %c0_203, %c0_204] : memref<2x168x84xf32, #tpu.memory_space<vmem>>, vector<1x168x84xf32>
    %184 = vector.shape_cast %183 : vector<1x168x84xf32> to vector<168x84xf32>
    %cst_205 = arith.constant dense<0.000000e+00> : vector<14x84xf32>
    %185 = tpu.matmul %179, %184, %cst_205 {dimension_numbers = #tpu.dot_dimension_numbers<[1], [0], [0], [1], [0, 0, 1, 1], [], []>} : vector<14x168xf32>, vector<168x84xf32>, vector<14x84xf32> -> vector<14x84xf32>
    %186 = arith.maximumf %182, %185 : vector<14x84xf32>
    %c0_206 = arith.constant 0 : index
    %c0_207 = arith.constant 0 : index
    %187 = vector.load %arg18[%c0_206, %c0_207] : memref<14x84xf32, #tpu.memory_space<vmem>>, vector<14x84xf32>
    tpu.vector_store %arg18[%c0_206, %c0_207], %186 {strides = array<i32>} : memref<14x84xf32, #tpu.memory_space<vmem>>, vector<14x84xf32>,
    %cst_208 = arith.constant 0.000000e+00 : f32
    %188 = vector.broadcast %cst_208 : f32 to vector<10x160xf32>
    %c0_209 = arith.constant 0 : index
    %c0_210 = arith.constant 0 : index
    %189 = vector.load %arg18[%c0_209, %c0_210] : memref<14x84xf32, #tpu.memory_space<vmem>>, vector<10x84xf32>
    %c0_211 = arith.constant 0 : index
    %c0_212 = arith.constant 0 : index
    %c0_213 = arith.constant 0 : index
    %190 = vector.load %arg6[%c0_211, %c0_212, %c0_213] : memref<5x84x160xf32, #tpu.memory_space<vmem>>, vector<1x84x160xf32>
    %191 = vector.shape_cast %190 : vector<1x84x160xf32> to vector<84x160xf32>
    %cst_214 = arith.constant dense<0.000000e+00> : vector<10x160xf32>
    %192 = tpu.matmul %189, %191, %cst_214 {dimension_numbers = #tpu.dot_dimension_numbers<[1], [0], [0], [1], [0, 0, 1, 1], [], []>} : vector<10x84xf32>, vector<84x160xf32>, vector<10x160xf32> -> vector<10x160xf32>
    %193 = arith.addf %188, %192 : vector<10x160xf32>
    %c1_215 = arith.constant 1 : index
    %c0_216 = arith.constant 0 : index
    %194 = vector.load %arg18[%c1_215, %c0_216] : memref<14x84xf32, #tpu.memory_space<vmem>>, vector<10x84xf32>
    %c1_217 = arith.constant 1 : index
    %c0_218 = arith.constant 0 : index
    %c0_219 = arith.constant 0 : index
    %195 = vector.load %arg6[%c1_217, %c0_218, %c0_219] : memref<5x84x160xf32, #tpu.memory_space<vmem>>, vector<1x84x160xf32>
    %196 = vector.shape_cast %195 : vector<1x84x160xf32> to vector<84x160xf32>
    %cst_220 = arith.constant dense<0.000000e+00> : vector<10x160xf32>
    %197 = tpu.matmul %194, %196, %cst_220 {dimension_numbers = #tpu.dot_dimension_numbers<[1], [0], [0], [1], [0, 0, 1, 1], [], []>} : vector<10x84xf32>, vector<84x160xf32>, vector<10x160xf32> -> vector<10x160xf32>
    %198 = arith.addf %193, %197 : vector<10x160xf32>
    %c2_221 = arith.constant 2 : index
    %c0_222 = arith.constant 0 : index
    %199 = vector.load %arg18[%c2_221, %c0_222] : memref<14x84xf32, #tpu.memory_space<vmem>>, vector<10x84xf32>
    %c2_223 = arith.constant 2 : index
    %c0_224 = arith.constant 0 : index
    %c0_225 = arith.constant 0 : index
    %200 = vector.load %arg6[%c2_223, %c0_224, %c0_225] : memref<5x84x160xf32, #tpu.memory_space<vmem>>, vector<1x84x160xf32>
    %201 = vector.shape_cast %200 : vector<1x84x160xf32> to vector<84x160xf32>
    %cst_226 = arith.constant dense<0.000000e+00> : vector<10x160xf32>
    %202 = tpu.matmul %199, %201, %cst_226 {dimension_numbers = #tpu.dot_dimension_numbers<[1], [0], [0], [1], [0, 0, 1, 1], [], []>} : vector<10x84xf32>, vector<84x160xf32>, vector<10x160xf32> -> vector<10x160xf32>
    %203 = arith.addf %198, %202 : vector<10x160xf32>
    %c3_227 = arith.constant 3 : index
    %c0_228 = arith.constant 0 : index
    %204 = vector.load %arg18[%c3_227, %c0_228] : memref<14x84xf32, #tpu.memory_space<vmem>>, vector<10x84xf32>
    %c3_229 = arith.constant 3 : index
    %c0_230 = arith.constant 0 : index
    %c0_231 = arith.constant 0 : index
    %205 = vector.load %arg6[%c3_229, %c0_230, %c0_231] : memref<5x84x160xf32, #tpu.memory_space<vmem>>, vector<1x84x160xf32>
    %206 = vector.shape_cast %205 : vector<1x84x160xf32> to vector<84x160xf32>
    %cst_232 = arith.constant dense<0.000000e+00> : vector<10x160xf32>
    %207 = tpu.matmul %204, %206, %cst_232 {dimension_numbers = #tpu.dot_dimension_numbers<[1], [0], [0], [1], [0, 0, 1, 1], [], []>} : vector<10x84xf32>, vector<84x160xf32>, vector<10x160xf32> -> vector<10x160xf32>
    %208 = arith.addf %203, %207 : vector<10x160xf32>
    %c4_233 = arith.constant 4 : index
    %c0_234 = arith.constant 0 : index
    %209 = vector.load %arg18[%c4_233, %c0_234] : memref<14x84xf32, #tpu.memory_space<vmem>>, vector<10x84xf32>
    %c4_235 = arith.constant 4 : index
    %c0_236 = arith.constant 0 : index
    %c0_237 = arith.constant 0 : index
    %210 = vector.load %arg6[%c4_235, %c0_236, %c0_237] : memref<5x84x160xf32, #tpu.memory_space<vmem>>, vector<1x84x160xf32>
    %211 = vector.shape_cast %210 : vector<1x84x160xf32> to vector<84x160xf32>
    %cst_238 = arith.constant dense<0.000000e+00> : vector<10x160xf32>
    %212 = tpu.matmul %209, %211, %cst_238 {dimension_numbers = #tpu.dot_dimension_numbers<[1], [0], [0], [1], [0, 0, 1, 1], [], []>} : vector<10x84xf32>, vector<84x160xf32>, vector<10x160xf32> -> vector<10x160xf32>
    %213 = arith.addf %208, %212 : vector<10x160xf32>
    %c0_239 = arith.constant 0 : index
    %c0_240 = arith.constant 0 : index
    %214 = vector.load %arg7[%c0_239, %c0_240] : memref<1x160xf32, #tpu.memory_space<vmem>>, vector<1x160xf32>
    %215 = vector.broadcast %214 : vector<1x160xf32> to vector<10x160xf32>
    %216 = arith.addf %213, %215 : vector<10x160xf32>
    %cst_241 = arith.constant 0.000000e+00 : f32
    %217 = vector.broadcast %cst_241 : f32 to vector<10x160xf32>
    %218 = arith.maximumf %216, %217 : vector<10x160xf32>
    %c0_242 = arith.constant 0 : index
    %c0_243 = arith.constant 0 : index
    %c0_244 = arith.constant 0 : index
    %219 = vector.load %arg8[%c0_242, %c0_243, %c0_244] : memref<2x5x10xf32, #tpu.memory_space<vmem>>, vector<1x5x10xf32>
    %220 = vector.shape_cast %219 : vector<1x5x10xf32> to vector<5x10xf32>
    %cst_245 = arith.constant dense<0.000000e+00> : vector<5x160xf32>
    %221 = tpu.matmul %220, %218, %cst_245 {dimension_numbers = #tpu.dot_dimension_numbers<[1], [0], [0], [1], [0, 0, 1, 1], [], []>} : vector<5x10xf32>, vector<10x160xf32>, vector<5x160xf32> -> vector<5x160xf32>
    %c1_246 = arith.constant 1 : index
    %c0_247 = arith.constant 0 : index
    %c0_248 = arith.constant 0 : index
    %222 = vector.load %arg8[%c1_246, %c0_247, %c0_248] : memref<2x5x10xf32, #tpu.memory_space<vmem>>, vector<1x5x10xf32>
    %223 = vector.shape_cast %222 : vector<1x5x10xf32> to vector<5x10xf32>
    %cst_249 = arith.constant dense<0.000000e+00> : vector<5x160xf32>
    %224 = tpu.matmul %223, %218, %cst_249 {dimension_numbers = #tpu.dot_dimension_numbers<[1], [0], [0], [1], [0, 0, 1, 1], [], []>} : vector<5x10xf32>, vector<10x160xf32>, vector<5x160xf32> -> vector<5x160xf32>
    %225 = arith.maximumf %221, %224 : vector<5x160xf32>
    %c0_250 = arith.constant 0 : index
    %c0_251 = arith.constant 0 : index
    %c0_252 = arith.constant 0 : index
    %226 = vector.load %arg9[%c0_250, %c0_251, %c0_252] : memref<2x160x80xf32, #tpu.memory_space<vmem>>, vector<1x160x80xf32>
    %227 = vector.shape_cast %226 : vector<1x160x80xf32> to vector<160x80xf32>
    %cst_253 = arith.constant dense<0.000000e+00> : vector<5x80xf32>
    %228 = tpu.matmul %225, %227, %cst_253 {dimension_numbers = #tpu.dot_dimension_numbers<[1], [0], [0], [1], [0, 0, 1, 1], [], []>} : vector<5x160xf32>, vector<160x80xf32>, vector<5x80xf32> -> vector<5x80xf32>
    %c1_254 = arith.constant 1 : index
    %c0_255 = arith.constant 0 : index
    %c0_256 = arith.constant 0 : index
    %229 = vector.load %arg9[%c1_254, %c0_255, %c0_256] : memref<2x160x80xf32, #tpu.memory_space<vmem>>, vector<1x160x80xf32>
    %230 = vector.shape_cast %229 : vector<1x160x80xf32> to vector<160x80xf32>
    %cst_257 = arith.constant dense<0.000000e+00> : vector<5x80xf32>
    %231 = tpu.matmul %225, %230, %cst_257 {dimension_numbers = #tpu.dot_dimension_numbers<[1], [0], [0], [1], [0, 0, 1, 1], [], []>} : vector<5x160xf32>, vector<160x80xf32>, vector<5x80xf32> -> vector<5x80xf32>
    %232 = arith.maximumf %228, %231 : vector<5x80xf32>
    %c0_258 = arith.constant 0 : index
    %c0_259 = arith.constant 0 : index
    %233 = vector.load %arg19[%c0_258, %c0_259] : memref<5x80xf32, #tpu.memory_space<vmem>>, vector<5x80xf32>
    tpu.vector_store %arg19[%c0_258, %c0_259], %232 {strides = array<i32>} : memref<5x80xf32, #tpu.memory_space<vmem>>, vector<5x80xf32>,
    %c0_260 = arith.constant 0 : index
    %c0_261 = arith.constant 0 : index
    %234 = vector.load %arg11[%c0_260, %c0_261] : memref<1x128xf32, #tpu.memory_space<vmem>>, vector<1x128xf32>
    %c0_262 = arith.constant 0 : index
    %c0_263 = arith.constant 0 : index
    %235 = vector.load %arg19[%c0_262, %c0_263] : memref<5x80xf32, #tpu.memory_space<vmem>>, vector<1x80xf32>
    %c0_264 = arith.constant 0 : index
    %c0_265 = arith.constant 0 : index
    %c0_266 = arith.constant 0 : index
    %236 = vector.load %arg10[%c0_264, %c0_265, %c0_266] : memref<5x80x128xf32, #tpu.memory_space<vmem>>, vector<1x80x128xf32>
    %237 = vector.shape_cast %236 : vector<1x80x128xf32> to vector<80x128xf32>
    %cst_267 = arith.constant dense<0.000000e+00> : vector<1x128xf32>
    %238 = tpu.matmul %235, %237, %cst_267 {dimension_numbers = #tpu.dot_dimension_numbers<[1], [0], [0], [1], [0, 0, 1, 1], [], []>} : vector<1x80xf32>, vector<80x128xf32>, vector<1x128xf32> -> vector<1x128xf32>
    %239 = arith.addf %234, %238 : vector<1x128xf32>
    %c1_268 = arith.constant 1 : index
    %c0_269 = arith.constant 0 : index
    %240 = vector.load %arg19[%c1_268, %c0_269] : memref<5x80xf32, #tpu.memory_space<vmem>>, vector<1x80xf32>
    %c1_270 = arith.constant 1 : index
    %c0_271 = arith.constant 0 : index
    %c0_272 = arith.constant 0 : index
    %241 = vector.load %arg10[%c1_270, %c0_271, %c0_272] : memref<5x80x128xf32, #tpu.memory_space<vmem>>, vector<1x80x128xf32>
    %242 = vector.shape_cast %241 : vector<1x80x128xf32> to vector<80x128xf32>
    %cst_273 = arith.constant dense<0.000000e+00> : vector<1x128xf32>
    %243 = tpu.matmul %240, %242, %cst_273 {dimension_numbers = #tpu.dot_dimension_numbers<[1], [0], [0], [1], [0, 0, 1, 1], [], []>} : vector<1x80xf32>, vector<80x128xf32>, vector<1x128xf32> -> vector<1x128xf32>
    %244 = arith.addf %239, %243 : vector<1x128xf32>
    %c2_274 = arith.constant 2 : index
    %c0_275 = arith.constant 0 : index
    %245 = vector.load %arg19[%c2_274, %c0_275] : memref<5x80xf32, #tpu.memory_space<vmem>>, vector<1x80xf32>
    %c2_276 = arith.constant 2 : index
    %c0_277 = arith.constant 0 : index
    %c0_278 = arith.constant 0 : index
    %246 = vector.load %arg10[%c2_276, %c0_277, %c0_278] : memref<5x80x128xf32, #tpu.memory_space<vmem>>, vector<1x80x128xf32>
    %247 = vector.shape_cast %246 : vector<1x80x128xf32> to vector<80x128xf32>
    %cst_279 = arith.constant dense<0.000000e+00> : vector<1x128xf32>
    %248 = tpu.matmul %245, %247, %cst_279 {dimension_numbers = #tpu.dot_dimension_numbers<[1], [0], [0], [1], [0, 0, 1, 1], [], []>} : vector<1x80xf32>, vector<80x128xf32>, vector<1x128xf32> -> vector<1x128xf32>
    %249 = arith.addf %244, %248 : vector<1x128xf32>
    %c3_280 = arith.constant 3 : index
    %c0_281 = arith.constant 0 : index
    %250 = vector.load %arg19[%c3_280, %c0_281] : memref<5x80xf32, #tpu.memory_space<vmem>>, vector<1x80xf32>
    %c3_282 = arith.constant 3 : index
    %c0_283 = arith.constant 0 : index
    %c0_284 = arith.constant 0 : index
    %251 = vector.load %arg10[%c3_282, %c0_283, %c0_284] : memref<5x80x128xf32, #tpu.memory_space<vmem>>, vector<1x80x128xf32>
    %252 = vector.shape_cast %251 : vector<1x80x128xf32> to vector<80x128xf32>
    %cst_285 = arith.constant dense<0.000000e+00> : vector<1x128xf32>
    %253 = tpu.matmul %250, %252, %cst_285 {dimension_numbers = #tpu.dot_dimension_numbers<[1], [0], [0], [1], [0, 0, 1, 1], [], []>} : vector<1x80xf32>, vector<80x128xf32>, vector<1x128xf32> -> vector<1x128xf32>
    %254 = arith.addf %249, %253 : vector<1x128xf32>
    %c4_286 = arith.constant 4 : index
    %c0_287 = arith.constant 0 : index
    %255 = vector.load %arg19[%c4_286, %c0_287] : memref<5x80xf32, #tpu.memory_space<vmem>>, vector<1x80xf32>
    %c4_288 = arith.constant 4 : index
    %c0_289 = arith.constant 0 : index
    %c0_290 = arith.constant 0 : index
    %256 = vector.load %arg10[%c4_288, %c0_289, %c0_290] : memref<5x80x128xf32, #tpu.memory_space<vmem>>, vector<1x80x128xf32>
    %257 = vector.shape_cast %256 : vector<1x80x128xf32> to vector<80x128xf32>
    %cst_291 = arith.constant dense<0.000000e+00> : vector<1x128xf32>
    %258 = tpu.matmul %255, %257, %cst_291 {dimension_numbers = #tpu.dot_dimension_numbers<[1], [0], [0], [1], [0, 0, 1, 1], [], []>} : vector<1x80xf32>, vector<80x128xf32>, vector<1x128xf32> -> vector<1x128xf32>
    %259 = arith.addf %254, %258 : vector<1x128xf32>
    %cst_292 = arith.constant 0.000000e+00 : f32
    %260 = vector.broadcast %cst_292 : f32 to vector<1x128xf32>
    %261 = arith.maximumf %259, %260 : vector<1x128xf32>
    %c0_293 = arith.constant 0 : index
    %c0_294 = arith.constant 0 : index
    %262 = vector.load %arg12[%c0_293, %c0_294] : memref<128x128xf32, #tpu.memory_space<vmem>>, vector<128x128xf32>
    %cst_295 = arith.constant dense<0.000000e+00> : vector<1x128xf32>
    %263 = tpu.matmul %261, %262, %cst_295 {dimension_numbers = #tpu.dot_dimension_numbers<[1], [0], [0], [1], [0, 0, 1, 1], [], []>} : vector<1x128xf32>, vector<128x128xf32>, vector<1x128xf32> -> vector<1x128xf32>
    %c0_296 = arith.constant 0 : index
    %c0_297 = arith.constant 0 : index
    %264 = vector.load %arg13[%c0_296, %c0_297] : memref<1x128xf32, #tpu.memory_space<vmem>>, vector<1x128xf32>
    %265 = arith.addf %263, %264 : vector<1x128xf32>
    %cst_298 = arith.constant 0.000000e+00 : f32
    %266 = vector.broadcast %cst_298 : f32 to vector<1x128xf32>
    %267 = arith.maximumf %265, %266 : vector<1x128xf32>
    %c0_299 = arith.constant 0 : index
    %c0_300 = arith.constant 0 : index
    %268 = vector.load %arg14[%c0_299, %c0_300] : memref<128x128xf32, #tpu.memory_space<vmem>>, vector<128x128xf32>
    %cst_301 = arith.constant dense<0.000000e+00> : vector<1x128xf32>
    %269 = tpu.matmul %267, %268, %cst_301 {dimension_numbers = #tpu.dot_dimension_numbers<[1], [0], [0], [1], [0, 0, 1, 1], [], []>} : vector<1x128xf32>, vector<128x128xf32>, vector<1x128xf32> -> vector<1x128xf32>
    %c0_302 = arith.constant 0 : index
    %c0_303 = arith.constant 0 : index
    %270 = vector.load %arg15[%c0_302, %c0_303] : memref<1x128xf32, #tpu.memory_space<vmem>>, vector<1x128xf32>
    %271 = arith.addf %269, %270 : vector<1x128xf32>
    %c1_304 = arith.constant 1 : index
    %c0_305 = arith.constant 0 : index
    %272 = vector.load %arg16[%c1_304, %c0_305] : memref<2x128xf32, #tpu.memory_space<vmem>>, vector<1x128xf32>
    tpu.vector_store %arg16[%c1_304, %c0_305], %267 {strides = array<i32>} : memref<2x128xf32, #tpu.memory_space<vmem>>, vector<1x128xf32>,
    %c1_306 = arith.constant 1 : index
    %c0_307 = arith.constant 0 : index
    %273 = vector.load %arg17[%c1_306, %c0_307] : memref<2x128xf32, #tpu.memory_space<vmem>>, vector<1x128xf32>
    tpu.vector_store %arg17[%c1_306, %c0_307], %271 {strides = array<i32>} : memref<2x128xf32, #tpu.memory_space<vmem>>, vector<1x128xf32>,
    return
  }
  func.func @transform_0(%arg0: i32) -> (i32, i32, i32) {
    %c0_i32 = arith.constant 0 : i32
    %c0_i32_0 = arith.constant 0 : i32
    %c0_i32_1 = arith.constant 0 : i32
    return %arg0, %c0_i32, %c0_i32_0 : i32, i32, i32
  }
  func.func @transform_1(%arg0: i32) -> (i32, i32, i32) {
    %c0_i32 = arith.constant 0 : i32
    %c0_i32_0 = arith.constant 0 : i32
    %c0_i32_1 = arith.constant 0 : i32
    %c0_i32_2 = arith.constant 0 : i32
    return %c0_i32, %c0_i32_0, %c0_i32_1 : i32, i32, i32
  }
  func.func @transform_2(%arg0: i32) -> (i32, i32) {
    %c0_i32 = arith.constant 0 : i32
    %c0_i32_0 = arith.constant 0 : i32
    %c0_i32_1 = arith.constant 0 : i32
    return %c0_i32, %c0_i32_0 : i32, i32
  }
  func.func @transform_3(%arg0: i32) -> (i32, i32, i32) {
    %c0_i32 = arith.constant 0 : i32
    %c0_i32_0 = arith.constant 0 : i32
    %c0_i32_1 = arith.constant 0 : i32
    %c0_i32_2 = arith.constant 0 : i32
    return %c0_i32, %c0_i32_0, %c0_i32_1 : i32, i32, i32
  }
  func.func @transform_4(%arg0: i32) -> (i32, i32, i32) {
    %c0_i32 = arith.constant 0 : i32
    %c0_i32_0 = arith.constant 0 : i32
    %c0_i32_1 = arith.constant 0 : i32
    %c0_i32_2 = arith.constant 0 : i32
    return %c0_i32, %c0_i32_0, %c0_i32_1 : i32, i32, i32
  }
  func.func @transform_5(%arg0: i32) -> (i32, i32, i32) {
    %c0_i32 = arith.constant 0 : i32
    %c0_i32_0 = arith.constant 0 : i32
    %c0_i32_1 = arith.constant 0 : i32
    %c0_i32_2 = arith.constant 0 : i32
    return %c0_i32, %c0_i32_0, %c0_i32_1 : i32, i32, i32
  }
  func.func @transform_6(%arg0: i32) -> (i32, i32) {
    %c0_i32 = arith.constant 0 : i32
    %c0_i32_0 = arith.constant 0 : i32
    %c0_i32_1 = arith.constant 0 : i32
    return %c0_i32, %c0_i32_0 : i32, i32
  }
  func.func @transform_7(%arg0: i32) -> (i32, i32, i32) {
    %c0_i32 = arith.constant 0 : i32
    %c0_i32_0 = arith.constant 0 : i32
    %c0_i32_1 = arith.constant 0 : i32
    %c0_i32_2 = arith.constant 0 : i32
    return %c0_i32, %c0_i32_0, %c0_i32_1 : i32, i32, i32
  }
  func.func @transform_8(%arg0: i32) -> (i32, i32, i32) {
    %c0_i32 = arith.constant 0 : i32
    %c0_i32_0 = arith.constant 0 : i32
    %c0_i32_1 = arith.constant 0 : i32
    %c0_i32_2 = arith.constant 0 : i32
    return %c0_i32, %c0_i32_0, %c0_i32_1 : i32, i32, i32
  }
  func.func @transform_9(%arg0: i32) -> (i32, i32, i32) {
    %c0_i32 = arith.constant 0 : i32
    %c0_i32_0 = arith.constant 0 : i32
    %c0_i32_1 = arith.constant 0 : i32
    %c0_i32_2 = arith.constant 0 : i32
    return %c0_i32, %c0_i32_0, %c0_i32_1 : i32, i32, i32
  }
  func.func @transform_10(%arg0: i32) -> (i32, i32) {
    %c0_i32 = arith.constant 0 : i32
    %c0_i32_0 = arith.constant 0 : i32
    %c0_i32_1 = arith.constant 0 : i32
    return %c0_i32, %c0_i32_0 : i32, i32
  }
  func.func @transform_11(%arg0: i32) -> (i32, i32) {
    %c0_i32 = arith.constant 0 : i32
    %c0_i32_0 = arith.constant 0 : i32
    %c0_i32_1 = arith.constant 0 : i32
    return %c0_i32, %c0_i32_0 : i32, i32
  }
  func.func @transform_12(%arg0: i32) -> (i32, i32) {
    %c0_i32 = arith.constant 0 : i32
    %c0_i32_0 = arith.constant 0 : i32
    %c0_i32_1 = arith.constant 0 : i32
    return %c0_i32, %c0_i32_0 : i32, i32
  }
  func.func @transform_13(%arg0: i32) -> (i32, i32) {
    %c0_i32 = arith.constant 0 : i32
    %c0_i32_0 = arith.constant 0 : i32
    %c0_i32_1 = arith.constant 0 : i32
    return %c0_i32, %c0_i32_0 : i32, i32
  }
  func.func @transform_14(%arg0: i32) -> (i32, i32) {
    %c0_i32 = arith.constant 0 : i32
    %c0_i32_0 = arith.constant 0 : i32
    %c0_i32_1 = arith.constant 0 : i32
    return %c0_i32, %c0_i32_0 : i32, i32
  }
  func.func @transform_15(%arg0: i32) -> (i32, i32) {
    %c0_i32 = arith.constant 0 : i32
    %c0_i32_0 = arith.constant 0 : i32
    return %arg0, %c0_i32 : i32, i32
  }
  func.func @transform_16(%arg0: i32) -> (i32, i32) {
    %c0_i32 = arith.constant 0 : i32
    %c0_i32_0 = arith.constant 0 : i32
    return %arg0, %c0_i32 : i32, i32
  }
}

</mosaic_0001>

<llo_original>
// kernel: cifar10_cnn_forward.1
$region0: #{cifar10_cnn_forward.1}
  #allocation0 [shape = 'u32[]', space=smem, size = 0x4, offset = 0x4, fixed_abs, tag = 'smem constant byte address 0x4 - core index']
  #allocation1 [shape = 'u32[144,128]{1,0:T(1,128)}', space=vmem, size = 0x12000, scoped, tag = 'internal scratch']
  #allocation2 [shape = 'f32[14,84]{1,0:T(8,128)}', space=vmem, size = 0x2000, scoped, tag = 'scratch operand']
  #allocation3 [shape = 'f32[5,80]{1,0:T(8,128)}', space=vmem, size = 0x1000, scoped, tag = 'scratch operand']
  %s0 = inlined_call_operand.vmem [shape: f32[2,32,96], index: 0, kind: input, shape index: {}]
  %s1 = inlined_call_operand.vmem [shape: f32[5,96,168], index: 1, kind: input, shape index: {}]
  %s2 = inlined_call_operand.vmem [shape: f32[1,168], index: 2, kind: input, shape index: {}]
  %s3 = inlined_call_operand.vmem [shape: f32[2,14,28], index: 3, kind: input, shape index: {}]
  %s4 = inlined_call_operand.vmem [shape: f32[2,168,84], index: 4, kind: input, shape index: {}]
  %s5 = inlined_call_operand.vmem [shape: f32[5,84,160], index: 5, kind: input, shape index: {}]
  %s6 = inlined_call_operand.vmem [shape: f32[1,160], index: 6, kind: input, shape index: {}]
  %s7 = inlined_call_operand.vmem [shape: f32[2,5,10], index: 7, kind: input, shape index: {}]
  %s8 = inlined_call_operand.vmem [shape: f32[2,160,80], index: 8, kind: input, shape index: {}]
  %s9 = inlined_call_operand.vmem [shape: f32[5,80,128], index: 9, kind: input, shape index: {}]
  %s10 = inlined_call_operand.vmem [shape: f32[1,128], index: 10, kind: input, shape index: {}]
  %s11 = inlined_call_operand.vmem [shape: f32[128,128], index: 11, kind: input, shape index: {}]
  %s12 = inlined_call_operand.vmem [shape: f32[1,128], index: 12, kind: input, shape index: {}]
  %s13 = inlined_call_operand.vmem [shape: f32[128,128], index: 13, kind: input, shape index: {}]
  %s14 = inlined_call_operand.vmem [shape: f32[1,128], index: 14, kind: input, shape index: {}]
  %s15 = inlined_call_operand.hbm [shape: f32[2,128], index: 15, kind: output, shape index: {0}]
  %s16 = inlined_call_operand.hbm [shape: f32[2,128], index: 16, kind: output, shape index: {1}]
  %17 = xla_tuple %s15, %s16
  %s18 = sld [smem:[#allocation0]]
  $region78: #{cifar10_cnn_forward.1} parent=0
    _
  %s20 = ssub.s32 1, %s18
  %s21 = scalar_select 0, %s20, %s18
  $region1: #{cifar10_cnn_forward.1} parent=0
    #allocation4 [shape = 'u8[1024]{0}', space=vmem, size = 0x400, scoped, tag = 'output window, operand 0, single buffered']
    #allocation5 [shape = 's32[1]{0}', space=sflag, size = 0x4, scoped, tag = 'scoped memory for cifar10_cnn_forward.1']
    #allocation6 [shape = 'u8[1024]{0}', space=vmem, size = 0x400, scoped, tag = 'output window, operand 1, single buffered']
    #allocation7 [shape = 's32[1]{0}', space=sflag, size = 0x4, scoped, tag = 'scoped memory for cifar10_cnn_forward.1']
    %22 = vsyncpa [#allocation5], 0
    %23 = vsyncpa [#allocation7], 0
    // Predicated region
    $region2: #{cifar10_cnn_forward.1} parent=1 // pred_check
      _
    $region3: #{cifar10_cnn_forward.1} parent=1 // pred_check_branch
      %25 = sbr.rel (0) target = $region5
    $region4: #{cifar10_cnn_forward.1} parent=1 // pred_region
      _
    $region5: #{cifar10_cnn_forward.1} parent=1 // pred_fallthru
      _
    // Predicated region
    $region6: #{cifar10_cnn_forward.1} parent=1 // pred_check
      _
    $region7: #{cifar10_cnn_forward.1} parent=1 // pred_check_branch
      %27 = sbr.rel (0) target = $region9
    $region8: #{cifar10_cnn_forward.1} parent=1 // pred_region
      _
    $region9: #{cifar10_cnn_forward.1} parent=1 // pred_fallthru
      _
    // Predicated region
    $region10: #{cifar10_cnn_forward.1} parent=1 // pred_check
      _
    $region11: #{cifar10_cnn_forward.1} parent=1 // pred_check_branch
      %29 = sbr.rel (0) target = $region13
    $region12: #{cifar10_cnn_forward.1} parent=1 // pred_region
      _
    $region13: #{cifar10_cnn_forward.1} parent=1 // pred_fallthru
      _
    // Predicated region
    $region14: #{cifar10_cnn_forward.1} parent=1 // pred_check
      _
    $region15: #{cifar10_cnn_forward.1} parent=1 // pred_check_branch
      %31 = sbr.rel (0) target = $region17
    $region16: #{cifar10_cnn_forward.1} parent=1 // pred_region
      _
    $region17: #{cifar10_cnn_forward.1} parent=1 // pred_fallthru
      _
    // Predicated region
    $region18: #{cifar10_cnn_forward.1} parent=1 // pred_check
      _
    $region19: #{cifar10_cnn_forward.1} parent=1 // pred_check_branch
      %33 = sbr.rel (0) target = $region21
    $region20: #{cifar10_cnn_forward.1} parent=1 // pred_region
      _
    $region21: #{cifar10_cnn_forward.1} parent=1 // pred_fallthru
      _
    // Predicated region
    $region22: #{cifar10_cnn_forward.1} parent=1 // pred_check
      _
    $region23: #{cifar10_cnn_forward.1} parent=1 // pred_check_branch
      %35 = sbr.rel (0) target = $region25
    $region24: #{cifar10_cnn_forward.1} parent=1 // pred_region
      _
    $region25: #{cifar10_cnn_forward.1} parent=1 // pred_fallthru
      _
    // Predicated region
    $region26: #{cifar10_cnn_forward.1} parent=1 // pred_check
      _
    $region27: #{cifar10_cnn_forward.1} parent=1 // pred_check_branch
      %37 = sbr.rel (0) target = $region29
    $region28: #{cifar10_cnn_forward.1} parent=1 // pred_region
      _
    $region29: #{cifar10_cnn_forward.1} parent=1 // pred_fallthru
      _
    // Predicated region
    $region30: #{cifar10_cnn_forward.1} parent=1 // pred_check
      _
    $region31: #{cifar10_cnn_forward.1} parent=1 // pred_check_branch
      %39 = sbr.rel (0) target = $region33
    $region32: #{cifar10_cnn_forward.1} parent=1 // pred_region
      _
    $region33: #{cifar10_cnn_forward.1} parent=1 // pred_fallthru
      _
    // Predicated region
    $region34: #{cifar10_cnn_forward.1} parent=1 // pred_check
      _
    $region35: #{cifar10_cnn_forward.1} parent=1 // pred_check_branch
      %41 = sbr.rel (0) target = $region37
    $region36: #{cifar10_cnn_forward.1} parent=1 // pred_region
      _
    $region37: #{cifar10_cnn_forward.1} parent=1 // pred_fallthru
      _
    // Predicated region
    $region38: #{cifar10_cnn_forward.1} parent=1 // pred_check
      _
    $region39: #{cifar10_cnn_forward.1} parent=1 // pred_check_branch
      %43 = sbr.rel (0) target = $region41
    $region40: #{cifar10_cnn_forward.1} parent=1 // pred_region
      _
    $region41: #{cifar10_cnn_forward.1} parent=1 // pred_fallthru
      _
    // Predicated region
    $region42: #{cifar10_cnn_forward.1} parent=1 // pred_check
      _
    $region43: #{cifar10_cnn_forward.1} parent=1 // pred_check_branch
      %45 = sbr.rel (0) target = $region45
    $region44: #{cifar10_cnn_forward.1} parent=1 // pred_region
      _
    $region45: #{cifar10_cnn_forward.1} parent=1 // pred_fallthru
      _
    // Predicated region
    $region46: #{cifar10_cnn_forward.1} parent=1 // pred_check
      _
    $region47: #{cifar10_cnn_forward.1} parent=1 // pred_check_branch
      %47 = sbr.rel (0) target = $region49
    $region48: #{cifar10_cnn_forward.1} parent=1 // pred_region
      _
    $region49: #{cifar10_cnn_forward.1} parent=1 // pred_fallthru
      _
    // Predicated region
    $region50: #{cifar10_cnn_forward.1} parent=1 // pred_check
      _
    $region51: #{cifar10_cnn_forward.1} parent=1 // pred_check_branch
      %49 = sbr.rel (0) target = $region53
    $region52: #{cifar10_cnn_forward.1} parent=1 // pred_region
      _
    $region53: #{cifar10_cnn_forward.1} parent=1 // pred_fallthru
      _
    // Predicated region
    $region54: #{cifar10_cnn_forward.1} parent=1 // pred_check
      _
    $region55: #{cifar10_cnn_forward.1} parent=1 // pred_check_branch
      %51 = sbr.rel (0) target = $region57
    $region56: #{cifar10_cnn_forward.1} parent=1 // pred_region
      _
    $region57: #{cifar10_cnn_forward.1} parent=1 // pred_fallthru
      _
    // Predicated region
    $region58: #{cifar10_cnn_forward.1} parent=1 // pred_check
      _
    $region59: #{cifar10_cnn_forward.1} parent=1 // pred_check_branch
      %53 = sbr.rel (0) target = $region61
    $region60: #{cifar10_cnn_forward.1} parent=1 // pred_region
      _
    $region61: #{cifar10_cnn_forward.1} parent=1 // pred_fallthru
      _
    %v54 = vld [vmem:[%s0] sm:$0xff]
    %v55 = vld [vmem:[%s0 + $0x8] sm:$0xff]
    %v56 = vld [vmem:[%s0 + $0x10] sm:$0xff]
    %v57 = vld [vmem:[%s0 + $0x18] sm:$0xf]
    %v58 = vld [vmem:[%s1] sm:$0xff]
    %v59 = vld [vmem:[%s1 + $0x8] sm:$0xff]
    %v60 = vld [vmem:[%s1 + $0x10] sm:$0xff]
    %v61 = vld [vmem:[%s1 + $0x18] sm:$0xff]
    %v62 = vld [vmem:[%s1 + $0x20] sm:$0xff]
    %v63 = vld [vmem:[%s1 + $0x28] sm:$0xff]
    %v64 = vld [vmem:[%s1 + $0x30] sm:$0xff]
    %v65 = vld [vmem:[%s1 + $0x38] sm:$0xff]
    %v66 = vld [vmem:[%s1 + $0x40] sm:$0xff]
    %v67 = vld [vmem:[%s1 + $0x48] sm:$0xff]
    %v68 = vld [vmem:[%s1 + $0x50] sm:$0xff]
    %v69 = vld [vmem:[%s1 + $0x58] sm:$0xff]
    %v70 = vld [vmem:[%s1 + $0x60] sm:$0xff]
    %v71 = vld [vmem:[%s1 + $0x68] sm:$0xff]
    %v72 = vld [vmem:[%s1 + $0x70] sm:$0xff]
    %v73 = vld [vmem:[%s1 + $0x78] sm:$0xff]
    %v74 = vld [vmem:[%s1 + $0x80] sm:$0xff]
    %v75 = vld [vmem:[%s1 + $0x88] sm:$0xff]
    %v76 = vld [vmem:[%s1 + $0x90] sm:$0xff]
    %v77 = vld [vmem:[%s1 + $0x98] sm:$0xff]
    %v78 = vld [vmem:[%s1 + $0xa0] sm:$0xff]
    %v79 = vld [vmem:[%s1 + $0xa8] sm:$0xff]
    %v80 = vld [vmem:[%s1 + $0xb0] sm:$0xff]
    %v81 = vld [vmem:[%s1 + $0xb8] sm:$0xff]
    %v82 = vld [vmem:[%s0 + $0x1] sm:$0xff]
    %v83 = vld [vmem:[%s0 + $0x9] sm:$0xff]
    %v84 = vld [vmem:[%s0 + $0x11] sm:$0xff]
    %v85 = vld [vmem:[%s0 + $0x19] sm:$0xf]
    %s86 = scalar_lea.vmem %s1, 192
    %v87 = vld [vmem:[%s86] sm:$0xff]
    %v88 = vld [vmem:[%s86 + $0x8] sm:$0xff]
    %v89 = vld [vmem:[%s86 + $0x10] sm:$0xff]
    %v90 = vld [vmem:[%s86 + $0x18] sm:$0xff]
    %v91 = vld [vmem:[%s86 + $0x20] sm:$0xff]
    %v92 = vld [vmem:[%s86 + $0x28] sm:$0xff]
    %v93 = vld [vmem:[%s86 + $0x30] sm:$0xff]
    %v94 = vld [vmem:[%s86 + $0x38] sm:$0xff]
    %v95 = vld [vmem:[%s86 + $0x40] sm:$0xff]
    %v96 = vld [vmem:[%s86 + $0x48] sm:$0xff]
    %v97 = vld [vmem:[%s86 + $0x50] sm:$0xff]
    %v98 = vld [vmem:[%s86 + $0x58] sm:$0xff]
    %v99 = vld [vmem:[%s86 + $0x60] sm:$0xff]
    %v100 = vld [vmem:[%s86 + $0x68] sm:$0xff]
    %v101 = vld [vmem:[%s86 + $0x70] sm:$0xff]
    %v102 = vld [vmem:[%s86 + $0x78] sm:$0xff]
    %v103 = vld [vmem:[%s86 + $0x80] sm:$0xff]
    %v104 = vld [vmem:[%s86 + $0x88] sm:$0xff]
    %v105 = vld [vmem:[%s86 + $0x90] sm:$0xff]
    %v106 = vld [vmem:[%s86 + $0x98] sm:$0xff]
    %v107 = vld [vmem:[%s86 + $0xa0] sm:$0xff]
    %v108 = vld [vmem:[%s86 + $0xa8] sm:$0xff]
    %v109 = vld [vmem:[%s86 + $0xb0] sm:$0xff]
    %v110 = vld [vmem:[%s86 + $0xb8] sm:$0xff]
    %vm111 = vcmask 785408
    %v113 = vsel %vm111, %v82, 0
    %v116 = vsel %vm111, %v83, 0
    %v119 = vsel %vm111, %v84, 0
    %v122 = vsel %vm111, %v85, 0
    %124 = vmatprep.subr.mxu0 %v88
    %125 = vmatpush1.msra.mxu0 %v87
    %126 = vmatprep.subr.mxu0 %v90
    %127 = vmatpush1.msra.mxu0 %v89
    %128 = vmatprep.subr.mxu0 %v92
    %129 = vmatpush1.msra.mxu0 %v91
    %130 = vmatprep.subr.mxu0 %v94
    %131 = vmatpush1.msra.mxu0 %v93
    %132 = vmatprep.subr.mxu0 %v96
    %133 = vmatpush1.msra.mxu0 %v95
    %134 = vmatprep.subr.mxu0 %v98
    %135 = vmatpush1.msra.mxu0 %v97
    %136 = vmatprep.subr.mxu0 %v100
    %137 = vmatpush1.msra.mxu0 %v99
    %138 = vmatprep.subr.mxu0 %v102
    %139 = vmatpush1.msra.mxu0 %v101
    %140 = vmatprep.subr.mxu0 %v104
    %141 = vmatpush1.msra.mxu0 %v103
    %142 = vmatprep.subr.mxu0 %v106
    %143 = vmatpush1.msra.mxu0 %v105
    %144 = vmatprep.subr.mxu0 %v108
    %145 = vmatpush1.msra.mxu0 %v107
    %146 = vmatprep.subr.mxu0 %v110
    %147 = vmatpush1.msra.mxu0 %v109
    %148 = vmatprep.subr.mxu0 0.0
    %149 = vmatpush1.msra.mxu0 0.0
    %150 = vmatprep.subr.mxu0 0.0
    %151 = vmatpush1.msra.mxu0 0.0
    %152 = vmatprep.subr.mxu0 0.0
    %153 = vmatpush1.msra.mxu0 0.0
    %154 = vmatprep.subr.mxu0 0.0
    %155 = vmatpush1.msra.mxu0 0.0
    %156 = vmatprep.subr.mxu0 0.0
    %157 = vmatpush1.msra.mxu0 0.0
    %158 = vmatprep.subr.mxu0 0.0
    %159 = vmatpush1.msra.mxu0 0.0
    %160 = vmatprep.subr.mxu0 0.0
    %161 = vmatpush1.msra.mxu0 0.0
    %162 = vmatprep.subr.mxu0 0.0
    %163 = vmatpush1.msra.mxu0 0.0
    %164 = vmatprep.subr.mxu0 0.0
    %165 = vmatpush1.msra.mxu0 0.0
    %166 = vmatprep.subr.mxu0 0.0
    %167 = vmatpush1.msra.mxu0 0.0
    %168 = vmatprep.subr.mxu0 0.0
    %169 = vmatpush1.msra.mxu0 0.0
    %170 = vmatprep.subr.mxu0 0.0
    %171 = vmatpush1.msra.mxu0 0.0
    %172 = vmatprep.subr.mxu0 0.0
    %173 = vmatpush1.msra.mxu0 0.0
    %174 = vmatprep.subr.mxu0 0.0
    %175 = vmatpush1.msra.mxu0 0.0
    %176 = vmatprep.subr.mxu0 0.0
    %177 = vmatpush1.msra.mxu0 0.0
    %178 = vmatprep.subr.mxu0 0.0
    %179 = vmatpush1.msra.mxu0 0.0
    %180 = vmatprep.subr.mxu0 0.0
    %181 = vmatpush1.msra.mxu0 0.0
    %182 = vmatprep.subr.mxu0 0.0
    %183 = vmatpush1.msra.mxu0 0.0
    %184 = vmatprep.subr.mxu0 0.0
    %185 = vmatpush1.msra.mxu0 0.0
    %186 = vmatprep.subr.mxu0 0.0
    %187 = vmatpush1.msra.mxu0 0.0
    %188 = vmatprep.mubr.f32.mxu0 0.0
    %189 = vmatmul.mubr.f32.gmra.mrb[0].mxu0 %v113
    %v190 = vpop.f32.mrb[0].mxu0
    %v191 = vadd.f32 0.0, %v190
    %v192 = vpop.f32.mrb[0].mxu0
    %v193 = vadd.f32 0.0, %v192
    %194 = vmatprep.mubr.f32.mxu0 0.0
    %195 = vmatmul.mubr.f32.gmra.mrb[0].mxu0 %v116
    %v196 = vpop.f32.mrb[0].mxu0
    %v197 = vadd.f32 0.0, %v196
    %v198 = vpop.f32.mrb[0].mxu0
    %v199 = vadd.f32 0.0, %v198
    %200 = vmatprep.mubr.f32.mxu0 0.0
    %201 = vmatmul.mubr.f32.gmra.mrb[0].mxu0 %v119
    %v202 = vpop.f32.mrb[0].mxu0
    %v203 = vadd.f32 0.0, %v202
    %v204 = vpop.f32.mrb[0].mxu0
    %v205 = vadd.f32 0.0, %v204
    %206 = vmatprep.mubr.f32.mxu0 0.0
    %207 = vmatmul.mubr.f32.gmra.mrb[0].mxu0 %v122
    %v208 = vpop.f32.mrb[0].mxu0
    %v209 = vadd.f32 0.0, %v208
    %v210 = vpop.f32.mrb[0].mxu0
    %v211 = vadd.f32 0.0, %v210
    %212 = vdwg.mxu0
    %v214 = vsel %vm111, %v54, 0
    %v217 = vsel %vm111, %v55, 0
    %v220 = vsel %vm111, %v56, 0
    %v223 = vsel %vm111, %v57, 0
    %225 = vmatprep.subr.mxu0 %v59
    %226 = vmatpush1.msra.mxu0 %v58
    %227 = vmatprep.subr.mxu0 %v61
    %228 = vmatpush1.msra.mxu0 %v60
    %229 = vmatprep.subr.mxu0 %v63
    %230 = vmatpush1.msra.mxu0 %v62
    %231 = vmatprep.subr.mxu0 %v65
    %232 = vmatpush1.msra.mxu0 %v64
    %233 = vmatprep.subr.mxu0 %v67
    %234 = vmatpush1.msra.mxu0 %v66
    %235 = vmatprep.subr.mxu0 %v69
    %236 = vmatpush1.msra.mxu0 %v68
    %237 = vmatprep.subr.mxu0 %v71
    %238 = vmatpush1.msra.mxu0 %v70
    %239 = vmatprep.subr.mxu0 %v73
    %240 = vmatpush1.msra.mxu0 %v72
    %241 = vmatprep.subr.mxu0 %v75
    %242 = vmatpush1.msra.mxu0 %v74
    %243 = vmatprep.subr.mxu0 %v77
    %244 = vmatpush1.msra.mxu0 %v76
    %245 = vmatprep.subr.mxu0 %v79
    %246 = vmatpush1.msra.mxu0 %v78
    %247 = vmatprep.subr.mxu0 %v81
    %248 = vmatpush1.msra.mxu0 %v80
    %249 = vmatprep.subr.mxu0 0.0
    %250 = vmatpush1.msra.mxu0 0.0
    %251 = vmatprep.subr.mxu0 0.0
    %252 = vmatpush1.msra.mxu0 0.0
    %253 = vmatprep.subr.mxu0 0.0
    %254 = vmatpush1.msra.mxu0 0.0
    %255 = vmatprep.subr.mxu0 0.0
    %256 = vmatpush1.msra.mxu0 0.0
    %257 = vmatprep.subr.mxu0 0.0
    %258 = vmatpush1.msra.mxu0 0.0
    %259 = vmatprep.subr.mxu0 0.0
    %260 = vmatpush1.msra.mxu0 0.0
    %261 = vmatprep.subr.mxu0 0.0
    %262 = vmatpush1.msra.mxu0 0.0
    %263 = vmatprep.subr.mxu0 0.0
    %264 = vmatpush1.msra.mxu0 0.0
    %265 = vmatprep.subr.mxu0 0.0
    %266 = vmatpush1.msra.mxu0 0.0
    %267 = vmatprep.subr.mxu0 0.0
    %268 = vmatpush1.msra.mxu0 0.0
    %269 = vmatprep.subr.mxu0 0.0
    %270 = vmatpush1.msra.mxu0 0.0
    %271 = vmatprep.subr.mxu0 0.0
    %272 = vmatpush1.msra.mxu0 0.0
    %273 = vmatprep.subr.mxu0 0.0
    %274 = vmatpush1.msra.mxu0 0.0
    %275 = vmatprep.subr.mxu0 0.0
    %276 = vmatpush1.msra.mxu0 0.0
    %277 = vmatprep.subr.mxu0 0.0
    %278 = vmatpush1.msra.mxu0 0.0
    %279 = vmatprep.subr.mxu0 0.0
    %280 = vmatpush1.msra.mxu0 0.0
    %281 = vmatprep.subr.mxu0 0.0
    %282 = vmatpush1.msra.mxu0 0.0
    %283 = vmatprep.subr.mxu0 0.0
    %284 = vmatpush1.msra.mxu0 0.0
    %285 = vmatprep.subr.mxu0 0.0
    %286 = vmatpush1.msra.mxu0 0.0
    %287 = vmatprep.subr.mxu0 0.0
    %288 = vmatpush1.msra.mxu0 0.0
    %289 = vmatprep.mubr.f32.mxu0 0.0
    %290 = vmatmul.mubr.f32.gmra.mrb[0].mxu0 %v214
    %v291 = vpop.f32.mrb[0].mxu0
    %v292 = vadd.f32 %v191, %v291
    %v293 = vpop.f32.mrb[0].mxu0
    %v294 = vadd.f32 %v193, %v293
    %295 = vmatprep.mubr.f32.mxu0 0.0
    %296 = vmatmul.mubr.f32.gmra.mrb[0].mxu0 %v217
    %v297 = vpop.f32.mrb[0].mxu0
    %v298 = vadd.f32 %v197, %v297
    %v299 = vpop.f32.mrb[0].mxu0
    %v300 = vadd.f32 %v199, %v299
    %301 = vmatprep.mubr.f32.mxu0 0.0
    %302 = vmatmul.mubr.f32.gmra.mrb[0].mxu0 %v220
    %v303 = vpop.f32.mrb[0].mxu0
    %v304 = vadd.f32 %v203, %v303
    %v305 = vpop.f32.mrb[0].mxu0
    %v306 = vadd.f32 %v205, %v305
    %307 = vmatprep.mubr.f32.mxu0 0.0
    %308 = vmatmul.mubr.f32.gmra.mrb[0].mxu0 %v223
    %v309 = vpop.f32.mrb[0].mxu0
    %v310 = vadd.f32 %v209, %v309
    %v311 = vpop.f32.mrb[0].mxu0
    %v312 = vadd.f32 %v211, %v311
    %313 = vdwg.mxu0
    %v314 = vld [vmem:[%s0 + $0x2] sm:$0xff]
    %v315 = vld [vmem:[%s0 + $0xa] sm:$0xff]
    %v316 = vld [vmem:[%s0 + $0x12] sm:$0xff]
    %v317 = vld [vmem:[%s0 + $0x1a] sm:$0xf]
    %s318 = scalar_lea.vmem %s1, 384
    %v319 = vld [vmem:[%s318] sm:$0xff]
    %v320 = vld [vmem:[%s318 + $0x8] sm:$0xff]
    %v321 = vld [vmem:[%s318 + $0x10] sm:$0xff]
    %v322 = vld [vmem:[%s318 + $0x18] sm:$0xff]
    %v323 = vld [vmem:[%s318 + $0x20] sm:$0xff]
    %v324 = vld [vmem:[%s318 + $0x28] sm:$0xff]
    %v325 = vld [vmem:[%s318 + $0x30] sm:$0xff]
    %v326 = vld [vmem:[%s318 + $0x38] sm:$0xff]
    %v327 = vld [vmem:[%s318 + $0x40] sm:$0xff]
    %v328 = vld [vmem:[%s318 + $0x48] sm:$0xff]
    %v329 = vld [vmem:[%s318 + $0x50] sm:$0xff]
    %v330 = vld [vmem:[%s318 + $0x58] sm:$0xff]
    %v331 = vld [vmem:[%s318 + $0x60] sm:$0xff]
    %v332 = vld [vmem:[%s318 + $0x68] sm:$0xff]
    %v333 = vld [vmem:[%s318 + $0x70] sm:$0xff]
    %v334 = vld [vmem:[%s318 + $0x78] sm:$0xff]
    %v335 = vld [vmem:[%s318 + $0x80] sm:$0xff]
    %v336 = vld [vmem:[%s318 + $0x88] sm:$0xff]
    %v337 = vld [vmem:[%s318 + $0x90] sm:$0xff]
    %v338 = vld [vmem:[%s318 + $0x98] sm:$0xff]
    %v339 = vld [vmem:[%s318 + $0xa0] sm:$0xff]
    %v340 = vld [vmem:[%s318 + $0xa8] sm:$0xff]
    %v341 = vld [vmem:[%s318 + $0xb0] sm:$0xff]
    %v342 = vld [vmem:[%s318 + $0xb8] sm:$0xff]
    %v344 = vsel %vm111, %v314, 0
    %v347 = vsel %vm111, %v315, 0
    %v350 = vsel %vm111, %v316, 0
    %v353 = vsel %vm111, %v317, 0
    %355 = vmatprep.subr.mxu0 %v320
    %356 = vmatpush1.msra.mxu0 %v319
    %357 = vmatprep.subr.mxu0 %v322
    %358 = vmatpush1.msra.mxu0 %v321
    %359 = vmatprep.subr.mxu0 %v324
    %360 = vmatpush1.msra.mxu0 %v323
    %361 = vmatprep.subr.mxu0 %v326
    %362 = vmatpush1.msra.mxu0 %v325
    %363 = vmatprep.subr.mxu0 %v328
    %364 = vmatpush1.msra.mxu0 %v327
    %365 = vmatprep.subr.mxu0 %v330
    %366 = vmatpush1.msra.mxu0 %v329
    %367 = vmatprep.subr.mxu0 %v332
    %368 = vmatpush1.msra.mxu0 %v331
    %369 = vmatprep.subr.mxu0 %v334
    %370 = vmatpush1.msra.mxu0 %v333
    %371 = vmatprep.subr.mxu0 %v336
    %372 = vmatpush1.msra.mxu0 %v335
    %373 = vmatprep.subr.mxu0 %v338
    %374 = vmatpush1.msra.mxu0 %v337
    %375 = vmatprep.subr.mxu0 %v340
    %376 = vmatpush1.msra.mxu0 %v339
    %377 = vmatprep.subr.mxu0 %v342
    %378 = vmatpush1.msra.mxu0 %v341
    %379 = vmatprep.subr.mxu0 0.0
    %380 = vmatpush1.msra.mxu0 0.0
    %381 = vmatprep.subr.mxu0 0.0
    %382 = vmatpush1.msra.mxu0 0.0
    %383 = vmatprep.subr.mxu0 0.0
    %384 = vmatpush1.msra.mxu0 0.0
    %385 = vmatprep.subr.mxu0 0.0
    %386 = vmatpush1.msra.mxu0 0.0
    %387 = vmatprep.subr.mxu0 0.0
    %388 = vmatpush1.msra.mxu0 0.0
    %389 = vmatprep.subr.mxu0 0.0
    %390 = vmatpush1.msra.mxu0 0.0
    %391 = vmatprep.subr.mxu0 0.0
    %392 = vmatpush1.msra.mxu0 0.0
    %393 = vmatprep.subr.mxu0 0.0
    %394 = vmatpush1.msra.mxu0 0.0
    %395 = vmatprep.subr.mxu0 0.0
    %396 = vmatpush1.msra.mxu0 0.0
    %397 = vmatprep.subr.mxu0 0.0
    %398 = vmatpush1.msra.mxu0 0.0
    %399 = vmatprep.subr.mxu0 0.0
    %400 = vmatpush1.msra.mxu0 0.0
    %401 = vmatprep.subr.mxu0 0.0
    %402 = vmatpush1.msra.mxu0 0.0
    %403 = vmatprep.subr.mxu0 0.0
    %404 = vmatpush1.msra.mxu0 0.0
    %405 = vmatprep.subr.mxu0 0.0
    %406 = vmatpush1.msra.mxu0 0.0
    %407 = vmatprep.subr.mxu0 0.0
    %408 = vmatpush1.msra.mxu0 0.0
    %409 = vmatprep.subr.mxu0 0.0
    %410 = vmatpush1.msra.mxu0 0.0
    %411 = vmatprep.subr.mxu0 0.0
    %412 = vmatpush1.msra.mxu0 0.0
    %413 = vmatprep.subr.mxu0 0.0
    %414 = vmatpush1.msra.mxu0 0.0
    %415 = vmatprep.subr.mxu0 0.0
    %416 = vmatpush1.msra.mxu0 0.0
    %417 = vmatprep.subr.mxu0 0.0
    %418 = vmatpush1.msra.mxu0 0.0
    %419 = vmatprep.mubr.f32.mxu0 0.0
    %420 = vmatmul.mubr.f32.gmra.mrb[0].mxu0 %v344
    %v421 = vpop.f32.mrb[0].mxu0
    %v422 = vadd.f32 0.0, %v421
    %v423 = vpop.f32.mrb[0].mxu0
    %v424 = vadd.f32 0.0, %v423
    %425 = vmatprep.mubr.f32.mxu0 0.0
    %426 = vmatmul.mubr.f32.gmra.mrb[0].mxu0 %v347
    %v427 = vpop.f32.mrb[0].mxu0
    %v428 = vadd.f32 0.0, %v427
    %v429 = vpop.f32.mrb[0].mxu0
    %v430 = vadd.f32 0.0, %v429
    %431 = vmatprep.mubr.f32.mxu0 0.0
    %432 = vmatmul.mubr.f32.gmra.mrb[0].mxu0 %v350
    %v433 = vpop.f32.mrb[0].mxu0
    %v434 = vadd.f32 0.0, %v433
    %v435 = vpop.f32.mrb[0].mxu0
    %v436 = vadd.f32 0.0, %v435
    %437 = vmatprep.mubr.f32.mxu0 0.0
    %438 = vmatmul.mubr.f32.gmra.mrb[0].mxu0 %v353
    %v439 = vpop.f32.mrb[0].mxu0
    %v440 = vadd.f32 0.0, %v439
    %v441 = vpop.f32.mrb[0].mxu0
    %v442 = vadd.f32 0.0, %v441
    %443 = vdwg.mxu0
    %v444 = vadd.f32 %v292, %v422
    %v445 = vadd.f32 %v294, %v424
    %v446 = vadd.f32 %v298, %v428
    %v447 = vadd.f32 %v300, %v430
    %v448 = vadd.f32 %v304, %v434
    %v449 = vadd.f32 %v306, %v436
    %v450 = vadd.f32 %v310, %v440
    %v451 = vadd.f32 %v312, %v442
    %v452 = vld [vmem:[%s0 + $0x3] sm:$0xff]
    %v453 = vld [vmem:[%s0 + $0xb] sm:$0xff]
    %v454 = vld [vmem:[%s0 + $0x13] sm:$0xff]
    %v455 = vld [vmem:[%s0 + $0x1b] sm:$0xf]
    %s456 = scalar_lea.vmem %s1, 576
    %v457 = vld [vmem:[%s456] sm:$0xff]
    %v458 = vld [vmem:[%s456 + $0x8] sm:$0xff]
    %v459 = vld [vmem:[%s456 + $0x10] sm:$0xff]
    %v460 = vld [vmem:[%s456 + $0x18] sm:$0xff]
    %v461 = vld [vmem:[%s456 + $0x20] sm:$0xff]
    %v462 = vld [vmem:[%s456 + $0x28] sm:$0xff]
    %v463 = vld [vmem:[%s456 + $0x30] sm:$0xff]
    %v464 = vld [vmem:[%s456 + $0x38] sm:$0xff]
    %v465 = vld [vmem:[%s456 + $0x40] sm:$0xff]
    %v466 = vld [vmem:[%s456 + $0x48] sm:$0xff]
    %v467 = vld [vmem:[%s456 + $0x50] sm:$0xff]
    %v468 = vld [vmem:[%s456 + $0x58] sm:$0xff]
    %v469 = vld [vmem:[%s456 + $0x60] sm:$0xff]
    %v470 = vld [vmem:[%s456 + $0x68] sm:$0xff]
    %v471 = vld [vmem:[%s456 + $0x70] sm:$0xff]
    %v472 = vld [vmem:[%s456 + $0x78] sm:$0xff]
    %v473 = vld [vmem:[%s456 + $0x80] sm:$0xff]
    %v474 = vld [vmem:[%s456 + $0x88] sm:$0xff]
    %v475 = vld [vmem:[%s456 + $0x90] sm:$0xff]
    %v476 = vld [vmem:[%s456 + $0x98] sm:$0xff]
    %v477 = vld [vmem:[%s456 + $0xa0] sm:$0xff]
    %v478 = vld [vmem:[%s456 + $0xa8] sm:$0xff]
    %v479 = vld [vmem:[%s456 + $0xb0] sm:$0xff]
    %v480 = vld [vmem:[%s456 + $0xb8] sm:$0xff]
    %v482 = vsel %vm111, %v452, 0
    %v485 = vsel %vm111, %v453, 0
    %v488 = vsel %vm111, %v454, 0
    %v491 = vsel %vm111, %v455, 0
    %493 = vmatprep.subr.mxu0 %v458
    %494 = vmatpush1.msra.mxu0 %v457
    %495 = vmatprep.subr.mxu0 %v460
    %496 = vmatpush1.msra.mxu0 %v459
    %497 = vmatprep.subr.mxu0 %v462
    %498 = vmatpush1.msra.mxu0 %v461
    %499 = vmatprep.subr.mxu0 %v464
    %500 = vmatpush1.msra.mxu0 %v463
    %501 = vmatprep.subr.mxu0 %v466
    %502 = vmatpush1.msra.mxu0 %v465
    %503 = vmatprep.subr.mxu0 %v468
    %504 = vmatpush1.msra.mxu0 %v467
    %505 = vmatprep.subr.mxu0 %v470
    %506 = vmatpush1.msra.mxu0 %v469
    %507 = vmatprep.subr.mxu0 %v472
    %508 = vmatpush1.msra.mxu0 %v471
    %509 = vmatprep.subr.mxu0 %v474
    %510 = vmatpush1.msra.mxu0 %v473
    %511 = vmatprep.subr.mxu0 %v476
    %512 = vmatpush1.msra.mxu0 %v475
    %513 = vmatprep.subr.mxu0 %v478
    %514 = vmatpush1.msra.mxu0 %v477
    %515 = vmatprep.subr.mxu0 %v480
    %516 = vmatpush1.msra.mxu0 %v479
    %517 = vmatprep.subr.mxu0 0.0
    %518 = vmatpush1.msra.mxu0 0.0
    %519 = vmatprep.subr.mxu0 0.0
    %520 = vmatpush1.msra.mxu0 0.0
    %521 = vmatprep.subr.mxu0 0.0
    %522 = vmatpush1.msra.mxu0 0.0
    %523 = vmatprep.subr.mxu0 0.0
    %524 = vmatpush1.msra.mxu0 0.0
    %525 = vmatprep.subr.mxu0 0.0
    %526 = vmatpush1.msra.mxu0 0.0
    %527 = vmatprep.subr.mxu0 0.0
    %528 = vmatpush1.msra.mxu0 0.0
    %529 = vmatprep.subr.mxu0 0.0
    %530 = vmatpush1.msra.mxu0 0.0
    %531 = vmatprep.subr.mxu0 0.0
    %532 = vmatpush1.msra.mxu0 0.0
    %533 = vmatprep.subr.mxu0 0.0
    %534 = vmatpush1.msra.mxu0 0.0
    %535 = vmatprep.subr.mxu0 0.0
    %536 = vmatpush1.msra.mxu0 0.0
    %537 = vmatprep.subr.mxu0 0.0
    %538 = vmatpush1.msra.mxu0 0.0
    %539 = vmatprep.subr.mxu0 0.0
    %540 = vmatpush1.msra.mxu0 0.0
    %541 = vmatprep.subr.mxu0 0.0
    %542 = vmatpush1.msra.mxu0 0.0
    %543 = vmatprep.subr.mxu0 0.0
    %544 = vmatpush1.msra.mxu0 0.0
    %545 = vmatprep.subr.mxu0 0.0
    %546 = vmatpush1.msra.mxu0 0.0
    %547 = vmatprep.subr.mxu0 0.0
    %548 = vmatpush1.msra.mxu0 0.0
    %549 = vmatprep.subr.mxu0 0.0
    %550 = vmatpush1.msra.mxu0 0.0
    %551 = vmatprep.subr.mxu0 0.0
    %552 = vmatpush1.msra.mxu0 0.0
    %553 = vmatprep.subr.mxu0 0.0
    %554 = vmatpush1.msra.mxu0 0.0
    %555 = vmatprep.subr.mxu0 0.0
    %556 = vmatpush1.msra.mxu0 0.0
    %557 = vmatprep.mubr.f32.mxu0 0.0
    %558 = vmatmul.mubr.f32.gmra.mrb[0].mxu0 %v482
    %v559 = vpop.f32.mrb[0].mxu0
    %v560 = vadd.f32 0.0, %v559
    %v561 = vpop.f32.mrb[0].mxu0
    %v562 = vadd.f32 0.0, %v561
    %563 = vmatprep.mubr.f32.mxu0 0.0
    %564 = vmatmul.mubr.f32.gmra.mrb[0].mxu0 %v485
    %v565 = vpop.f32.mrb[0].mxu0
    %v566 = vadd.f32 0.0, %v565
    %v567 = vpop.f32.mrb[0].mxu0
    %v568 = vadd.f32 0.0, %v567
    %569 = vmatprep.mubr.f32.mxu0 0.0
    %570 = vmatmul.mubr.f32.gmra.mrb[0].mxu0 %v488
    %v571 = vpop.f32.mrb[0].mxu0
    %v572 = vadd.f32 0.0, %v571
    %v573 = vpop.f32.mrb[0].mxu0
    %v574 = vadd.f32 0.0, %v573
    %575 = vmatprep.mubr.f32.mxu0 0.0
    %576 = vmatmul.mubr.f32.gmra.mrb[0].mxu0 %v491
    %v577 = vpop.f32.mrb[0].mxu0
    %v578 = vadd.f32 0.0, %v577
    %v579 = vpop.f32.mrb[0].mxu0
    %v580 = vadd.f32 0.0, %v579
    %581 = vdwg.mxu0
    %v582 = vadd.f32 %v444, %v560
    %v583 = vadd.f32 %v445, %v562
    %v584 = vadd.f32 %v446, %v566
    %v585 = vadd.f32 %v447, %v568
    %v586 = vadd.f32 %v448, %v572
    %v587 = vadd.f32 %v449, %v574
    %v588 = vadd.f32 %v450, %v578
    %v589 = vadd.f32 %v451, %v580
    %v590 = vld [vmem:[%s0 + $0x4] sm:$0xff]
    %v591 = vld [vmem:[%s0 + $0xc] sm:$0xff]
    %v592 = vld [vmem:[%s0 + $0x14] sm:$0xff]
    %v593 = vld [vmem:[%s0 + $0x1c] sm:$0xf]
    %s594 = scalar_lea.vmem %s1, 768
    %v595 = vld [vmem:[%s594] sm:$0xff]
    %v596 = vld [vmem:[%s594 + $0x8] sm:$0xff]
    %v597 = vld [vmem:[%s594 + $0x10] sm:$0xff]
    %v598 = vld [vmem:[%s594 + $0x18] sm:$0xff]
    %v599 = vld [vmem:[%s594 + $0x20] sm:$0xff]
    %v600 = vld [vmem:[%s594 + $0x28] sm:$0xff]
    %v601 = vld [vmem:[%s594 + $0x30] sm:$0xff]
    %v602 = vld [vmem:[%s594 + $0x38] sm:$0xff]
    %v603 = vld [vmem:[%s594 + $0x40] sm:$0xff]
    %v604 = vld [vmem:[%s594 + $0x48] sm:$0xff]
    %v605 = vld [vmem:[%s594 + $0x50] sm:$0xff]
    %v606 = vld [vmem:[%s594 + $0x58] sm:$0xff]
    %v607 = vld [vmem:[%s594 + $0x60] sm:$0xff]
    %v608 = vld [vmem:[%s594 + $0x68] sm:$0xff]
    %v609 = vld [vmem:[%s594 + $0x70] sm:$0xff]
    %v610 = vld [vmem:[%s594 + $0x78] sm:$0xff]
    %v611 = vld [vmem:[%s594 + $0x80] sm:$0xff]
    %v612 = vld [vmem:[%s594 + $0x88] sm:$0xff]
    %v613 = vld [vmem:[%s594 + $0x90] sm:$0xff]
    %v614 = vld [vmem:[%s594 + $0x98] sm:$0xff]
    %v615 = vld [vmem:[%s594 + $0xa0] sm:$0xff]
    %v616 = vld [vmem:[%s594 + $0xa8] sm:$0xff]
    %v617 = vld [vmem:[%s594 + $0xb0] sm:$0xff]
    %v618 = vld [vmem:[%s594 + $0xb8] sm:$0xff]
    %v620 = vsel %vm111, %v590, 0
    %v623 = vsel %vm111, %v591, 0
    %v626 = vsel %vm111, %v592, 0
    %v629 = vsel %vm111, %v593, 0
    %631 = vmatprep.subr.mxu0 %v596
    %632 = vmatpush1.msra.mxu0 %v595
    %633 = vmatprep.subr.mxu0 %v598
    %634 = vmatpush1.msra.mxu0 %v597
    %635 = vmatprep.subr.mxu0 %v600
    %636 = vmatpush1.msra.mxu0 %v599
    %637 = vmatprep.subr.mxu0 %v602
    %638 = vmatpush1.msra.mxu0 %v601
    %639 = vmatprep.subr.mxu0 %v604
    %640 = vmatpush1.msra.mxu0 %v603
    %641 = vmatprep.subr.mxu0 %v606
    %642 = vmatpush1.msra.mxu0 %v605
    %643 = vmatprep.subr.mxu0 %v608
    %644 = vmatpush1.msra.mxu0 %v607
    %645 = vmatprep.subr.mxu0 %v610
    %646 = vmatpush1.msra.mxu0 %v609
    %647 = vmatprep.subr.mxu0 %v612
    %648 = vmatpush1.msra.mxu0 %v611
    %649 = vmatprep.subr.mxu0 %v614
    %650 = vmatpush1.msra.mxu0 %v613
    %651 = vmatprep.subr.mxu0 %v616
    %652 = vmatpush1.msra.mxu0 %v615
    %653 = vmatprep.subr.mxu0 %v618
    %654 = vmatpush1.msra.mxu0 %v617
    %655 = vmatprep.subr.mxu0 0.0
    %656 = vmatpush1.msra.mxu0 0.0
    %657 = vmatprep.subr.mxu0 0.0
    %658 = vmatpush1.msra.mxu0 0.0
    %659 = vmatprep.subr.mxu0 0.0
    %660 = vmatpush1.msra.mxu0 0.0
    %661 = vmatprep.subr.mxu0 0.0
    %662 = vmatpush1.msra.mxu0 0.0
    %663 = vmatprep.subr.mxu0 0.0
    %664 = vmatpush1.msra.mxu0 0.0
    %665 = vmatprep.subr.mxu0 0.0
    %666 = vmatpush1.msra.mxu0 0.0
    %667 = vmatprep.subr.mxu0 0.0
    %668 = vmatpush1.msra.mxu0 0.0
    %669 = vmatprep.subr.mxu0 0.0
    %670 = vmatpush1.msra.mxu0 0.0
    %671 = vmatprep.subr.mxu0 0.0
    %672 = vmatpush1.msra.mxu0 0.0
    %673 = vmatprep.subr.mxu0 0.0
    %674 = vmatpush1.msra.mxu0 0.0
    %675 = vmatprep.subr.mxu0 0.0
    %676 = vmatpush1.msra.mxu0 0.0
    %677 = vmatprep.subr.mxu0 0.0
    %678 = vmatpush1.msra.mxu0 0.0
    %679 = vmatprep.subr.mxu0 0.0
    %680 = vmatpush1.msra.mxu0 0.0
    %681 = vmatprep.subr.mxu0 0.0
    %682 = vmatpush1.msra.mxu0 0.0
    %683 = vmatprep.subr.mxu0 0.0
    %684 = vmatpush1.msra.mxu0 0.0
    %685 = vmatprep.subr.mxu0 0.0
    %686 = vmatpush1.msra.mxu0 0.0
    %687 = vmatprep.subr.mxu0 0.0
    %688 = vmatpush1.msra.mxu0 0.0
    %689 = vmatprep.subr.mxu0 0.0
    %690 = vmatpush1.msra.mxu0 0.0
    %691 = vmatprep.subr.mxu0 0.0
    %692 = vmatpush1.msra.mxu0 0.0
    %693 = vmatprep.subr.mxu0 0.0
    %694 = vmatpush1.msra.mxu0 0.0
    %695 = vmatprep.mubr.f32.mxu0 0.0
    %696 = vmatmul.mubr.f32.gmra.mrb[0].mxu0 %v620
    %v697 = vpop.f32.mrb[0].mxu0
    %v698 = vadd.f32 0.0, %v697
    %v699 = vpop.f32.mrb[0].mxu0
    %v700 = vadd.f32 0.0, %v699
    %701 = vmatprep.mubr.f32.mxu0 0.0
    %702 = vmatmul.mubr.f32.gmra.mrb[0].mxu0 %v623
    %v703 = vpop.f32.mrb[0].mxu0
    %v704 = vadd.f32 0.0, %v703
    %v705 = vpop.f32.mrb[0].mxu0
    %v706 = vadd.f32 0.0, %v705
    %707 = vmatprep.mubr.f32.mxu0 0.0
    %708 = vmatmul.mubr.f32.gmra.mrb[0].mxu0 %v626
    %v709 = vpop.f32.mrb[0].mxu0
    %v710 = vadd.f32 0.0, %v709
    %v711 = vpop.f32.mrb[0].mxu0
    %v712 = vadd.f32 0.0, %v711
    %713 = vmatprep.mubr.f32.mxu0 0.0
    %714 = vmatmul.mubr.f32.gmra.mrb[0].mxu0 %v629
    %v715 = vpop.f32.mrb[0].mxu0
    %v716 = vadd.f32 0.0, %v715
    %v717 = vpop.f32.mrb[0].mxu0
    %v718 = vadd.f32 0.0, %v717
    %719 = vdwg.mxu0
    %v720 = vadd.f32 %v582, %v698
    %v721 = vadd.f32 %v583, %v700
    %v722 = vadd.f32 %v584, %v704
    %v723 = vadd.f32 %v585, %v706
    %v724 = vadd.f32 %v586, %v710
    %v725 = vadd.f32 %v587, %v712
    %v726 = vadd.f32 %v588, %v716
    %v727 = vadd.f32 %v589, %v718
    %v728 = vld [vmem:[%s2] sm:$0x3]
    %v730 = vlaneseq
    %v731 = vshrl.u32 %v730, 7
    %v732 = vsub.s32 0, %v731
    %v733 = vrot.slane %v728, %v732
    %v734 = vlaneseq
    %v735 = vshrl.u32 %v734, 7
    %v736 = vsub.s32 1, %v735
    %v737 = vrot.slane %v728, %v736
    %v740 = vadd.f32 %v720, %v733
    %v741 = vadd.f32 %v721, %v737
    %v742 = vadd.f32 %v722, %v733
    %v743 = vadd.f32 %v723, %v737
    %v744 = vadd.f32 %v724, %v733
    %v745 = vadd.f32 %v725, %v737
    %v746 = vadd.f32 %v726, %v733
    %v747 = vadd.f32 %v727, %v737
    %v748 = vmax.f32 %v740, 0.0
    %v749 = vmax.f32 %v741, 0.0
    %v750 = vmax.f32 %v742, 0.0
    %v751 = vmax.f32 %v743, 0.0
    %v752 = vmax.f32 %v744, 0.0
    %v753 = vmax.f32 %v745, 0.0
    %v754 = vmax.f32 %v746, 0.0
    %v755 = vmax.f32 %v747, 0.0
    %v756 = vld [vmem:[%s3] sm:$0xff]
    %v757 = vld [vmem:[%s3 + $0x8] sm:$0x3f]
    %vm758 = vcmask 228352
    %v760 = vsel %vm758, %v756, 0
    %v763 = vsel %vm758, %v757, 0
    %vm765 = vcmask 1043456
    %v767 = vsel %vm765, %v754, 0
    %v770 = vsel %vm765, %v755, 0
    %772 = vmatprep.subr.mxu0 %v749
    %773 = vmatpush1.msra.mxu0 %v748
    %774 = vmatprep.subr.mxu0 %v751
    %775 = vmatpush1.msra.mxu0 %v750
    %776 = vmatprep.subr.mxu0 %v753
    %777 = vmatpush1.msra.mxu0 %v752
    %778 = vmatprep.subr.mxu0 %v770
    %779 = vmatpush1.msra.mxu0 %v767
    %780 = vmatprep.subr.mxu0 0.0
    %781 = vmatpush1.msra.mxu0 0.0
    %782 = vmatprep.subr.mxu0 0.0
    %783 = vmatpush1.msra.mxu0 0.0
    %784 = vmatprep.subr.mxu0 0.0
    %785 = vmatpush1.msra.mxu0 0.0
    %786 = vmatprep.subr.mxu0 0.0
    %787 = vmatpush1.msra.mxu0 0.0
    %788 = vmatprep.subr.mxu0 0.0
    %789 = vmatpush1.msra.mxu0 0.0
    %790 = vmatprep.subr.mxu0 0.0
    %791 = vmatpush1.msra.mxu0 0.0
    %792 = vmatprep.subr.mxu0 0.0
    %793 = vmatpush1.msra.mxu0 0.0
    %794 = vmatprep.subr.mxu0 0.0
    %795 = vmatpush1.msra.mxu0 0.0
    %796 = vmatprep.subr.mxu0 0.0
    %797 = vmatpush1.msra.mxu0 0.0
    %798 = vmatprep.subr.mxu0 0.0
    %799 = vmatpush1.msra.mxu0 0.0
    %800 = vmatprep.subr.mxu0 0.0
    %801 = vmatpush1.msra.mxu0 0.0
    %802 = vmatprep.subr.mxu0 0.0
    %803 = vmatpush1.msra.mxu0 0.0
    %804 = vmatprep.subr.mxu0 0.0
    %805 = vmatpush1.msra.mxu0 0.0
    %806 = vmatprep.subr.mxu0 0.0
    %807 = vmatpush1.msra.mxu0 0.0
    %808 = vmatprep.subr.mxu0 0.0
    %809 = vmatpush1.msra.mxu0 0.0
    %810 = vmatprep.subr.mxu0 0.0
    %811 = vmatpush1.msra.mxu0 0.0
    %812 = vmatprep.subr.mxu0 0.0
    %813 = vmatpush1.msra.mxu0 0.0
    %814 = vmatprep.subr.mxu0 0.0
    %815 = vmatpush1.msra.mxu0 0.0
    %816 = vmatprep.subr.mxu0 0.0
    %817 = vmatpush1.msra.mxu0 0.0
    %818 = vmatprep.subr.mxu0 0.0
    %819 = vmatpush1.msra.mxu0 0.0
    %820 = vmatprep.subr.mxu0 0.0
    %821 = vmatpush1.msra.mxu0 0.0
    %822 = vmatprep.subr.mxu0 0.0
    %823 = vmatpush1.msra.mxu0 0.0
    %824 = vmatprep.subr.mxu0 0.0
    %825 = vmatpush1.msra.mxu0 0.0
    %826 = vmatprep.subr.mxu0 0.0
    %827 = vmatpush1.msra.mxu0 0.0
    %828 = vmatprep.subr.mxu0 0.0
    %829 = vmatpush1.msra.mxu0 0.0
    %830 = vmatprep.subr.mxu0 0.0
    %831 = vmatpush1.msra.mxu0 0.0
    %832 = vmatprep.subr.mxu0 0.0
    %833 = vmatpush1.msra.mxu0 0.0
    %834 = vmatprep.subr.mxu0 0.0
    %835 = vmatpush1.msra.mxu0 0.0
    %836 = vmatprep.mubr.f32.mxu0 0.0
    %837 = vmatmul.mubr.f32.gmra.mrb[0].mxu0 %v760
    %v838 = vpop.f32.mrb[0].mxu0
    %v839 = vadd.f32 0.0, %v838
    %v840 = vpop.f32.mrb[0].mxu0
    %v841 = vadd.f32 0.0, %v840
    %842 = vmatprep.mubr.f32.mxu0 0.0
    %843 = vmatmul.mubr.f32.gmra.mrb[0].mxu0 %v763
    %v844 = vpop.f32.mrb[0].mxu0
    %v845 = vadd.f32 0.0, %v844
    %v846 = vpop.f32.mrb[0].mxu0
    %v847 = vadd.f32 0.0, %v846
    %848 = vdwg.mxu0
    %s849 = scalar_lea.vmem %s3, 16
    %v850 = vld [vmem:[%s849] sm:$0xff]
    %v851 = vld [vmem:[%s849 + $0x8] sm:$0x3f]
    %v853 = vsel %vm758, %v850, 0
    %v856 = vsel %vm758, %v851, 0
    %858 = vmatprep.subr.mxu0 %v749
    %859 = vmatpush1.msra.mxu0 %v748
    %860 = vmatprep.subr.mxu0 %v751
    %861 = vmatpush1.msra.mxu0 %v750
    %862 = vmatprep.subr.mxu0 %v753
    %863 = vmatpush1.msra.mxu0 %v752
    %864 = vmatprep.subr.mxu0 %v770
    %865 = vmatpush1.msra.mxu0 %v767
    %866 = vmatprep.subr.mxu0 0.0
    %867 = vmatpush1.msra.mxu0 0.0
    %868 = vmatprep.subr.mxu0 0.0
    %869 = vmatpush1.msra.mxu0 0.0
    %870 = vmatprep.subr.mxu0 0.0
    %871 = vmatpush1.msra.mxu0 0.0
    %872 = vmatprep.subr.mxu0 0.0
    %873 = vmatpush1.msra.mxu0 0.0
    %874 = vmatprep.subr.mxu0 0.0
    %875 = vmatpush1.msra.mxu0 0.0
    %876 = vmatprep.subr.mxu0 0.0
    %877 = vmatpush1.msra.mxu0 0.0
    %878 = vmatprep.subr.mxu0 0.0
    %879 = vmatpush1.msra.mxu0 0.0
    %880 = vmatprep.subr.mxu0 0.0
    %881 = vmatpush1.msra.mxu0 0.0
    %882 = vmatprep.subr.mxu0 0.0
    %883 = vmatpush1.msra.mxu0 0.0
    %884 = vmatprep.subr.mxu0 0.0
    %885 = vmatpush1.msra.mxu0 0.0
    %886 = vmatprep.subr.mxu0 0.0
    %887 = vmatpush1.msra.mxu0 0.0
    %888 = vmatprep.subr.mxu0 0.0
    %889 = vmatpush1.msra.mxu0 0.0
    %890 = vmatprep.subr.mxu0 0.0
    %891 = vmatpush1.msra.mxu0 0.0
    %892 = vmatprep.subr.mxu0 0.0
    %893 = vmatpush1.msra.mxu0 0.0
    %894 = vmatprep.subr.mxu0 0.0
    %895 = vmatpush1.msra.mxu0 0.0
    %896 = vmatprep.subr.mxu0 0.0
    %897 = vmatpush1.msra.mxu0 0.0
    %898 = vmatprep.subr.mxu0 0.0
    %899 = vmatpush1.msra.mxu0 0.0
    %900 = vmatprep.subr.mxu0 0.0
    %901 = vmatpush1.msra.mxu0 0.0
    %902 = vmatprep.subr.mxu0 0.0
    %903 = vmatpush1.msra.mxu0 0.0
    %904 = vmatprep.subr.mxu0 0.0
    %905 = vmatpush1.msra.mxu0 0.0
    %906 = vmatprep.subr.mxu0 0.0
    %907 = vmatpush1.msra.mxu0 0.0
    %908 = vmatprep.subr.mxu0 0.0
    %909 = vmatpush1.msra.mxu0 0.0
    %910 = vmatprep.subr.mxu0 0.0
    %911 = vmatpush1.msra.mxu0 0.0
    %912 = vmatprep.subr.mxu0 0.0
    %913 = vmatpush1.msra.mxu0 0.0
    %914 = vmatprep.subr.mxu0 0.0
    %915 = vmatpush1.msra.mxu0 0.0
    %916 = vmatprep.subr.mxu0 0.0
    %917 = vmatpush1.msra.mxu0 0.0
    %918 = vmatprep.subr.mxu0 0.0
    %919 = vmatpush1.msra.mxu0 0.0
    %920 = vmatprep.subr.mxu0 0.0
    %921 = vmatpush1.msra.mxu0 0.0
    %922 = vmatprep.mubr.f32.mxu0 0.0
    %923 = vmatmul.mubr.f32.gmra.mrb[0].mxu0 %v853
    %v924 = vpop.f32.mrb[0].mxu0
    %v925 = vadd.f32 0.0, %v924
    %v926 = vpop.f32.mrb[0].mxu0
    %v927 = vadd.f32 0.0, %v926
    %928 = vmatprep.mubr.f32.mxu0 0.0
    %929 = vmatmul.mubr.f32.gmra.mrb[0].mxu0 %v856
    %v930 = vpop.f32.mrb[0].mxu0
    %v931 = vadd.f32 0.0, %v930
    %v932 = vpop.f32.mrb[0].mxu0
    %v933 = vadd.f32 0.0, %v932
    %934 = vdwg.mxu0
    %v935 = vmax.f32 %v839, %v925
    %v936 = vmax.f32 %v841, %v927
    %v937 = vmax.f32 %v845, %v931
    %v938 = vmax.f32 %v847, %v933
    %v939 = vld [vmem:[%s4] sm:$0xff]
    %v940 = vld [vmem:[%s4 + $0x8] sm:$0xff]
    %v941 = vld [vmem:[%s4 + $0x10] sm:$0xff]
    %v942 = vld [vmem:[%s4 + $0x18] sm:$0xff]
    %v943 = vld [vmem:[%s4 + $0x20] sm:$0xff]
    %v944 = vld [vmem:[%s4 + $0x28] sm:$0xff]
    %v945 = vld [vmem:[%s4 + $0x30] sm:$0xff]
    %v946 = vld [vmem:[%s4 + $0x38] sm:$0xff]
    %v947 = vld [vmem:[%s4 + $0x40] sm:$0xff]
    %v948 = vld [vmem:[%s4 + $0x48] sm:$0xff]
    %v949 = vld [vmem:[%s4 + $0x50] sm:$0xff]
    %v950 = vld [vmem:[%s4 + $0x58] sm:$0xff]
    %v951 = vld [vmem:[%s4 + $0x60] sm:$0xff]
    %v952 = vld [vmem:[%s4 + $0x68] sm:$0xff]
    %v953 = vld [vmem:[%s4 + $0x70] sm:$0xff]
    %v954 = vld [vmem:[%s4 + $0x78] sm:$0xff]
    %v955 = vld [vmem:[%s4 + $0x80] sm:$0xff]
    %v956 = vld [vmem:[%s4 + $0x88] sm:$0xff]
    %v957 = vld [vmem:[%s4 + $0x90] sm:$0xff]
    %v958 = vld [vmem:[%s4 + $0x98] sm:$0xff]
    %v959 = vld [vmem:[%s4 + $0xa0] sm:$0xff]
    %vm960 = vcmask 326656
    %v962 = vsel %vm960, %v936, 0
    %v965 = vsel %vm960, %v938, 0
    %967 = vmatprep.subr.mxu0 0.0
    %968 = vmatpush1.msra.mxu0 %v939
    %969 = vmatprep.subr.mxu0 0.0
    %970 = vmatpush1.msra.mxu0 %v940
    %971 = vmatprep.subr.mxu0 0.0
    %972 = vmatpush1.msra.mxu0 %v941
    %973 = vmatprep.subr.mxu0 0.0
    %974 = vmatpush1.msra.mxu0 %v942
    %975 = vmatprep.subr.mxu0 0.0
    %976 = vmatpush1.msra.mxu0 %v943
    %977 = vmatprep.subr.mxu0 0.0
    %978 = vmatpush1.msra.mxu0 %v944
    %979 = vmatprep.subr.mxu0 0.0
    %980 = vmatpush1.msra.mxu0 %v945
    %981 = vmatprep.subr.mxu0 0.0
    %982 = vmatpush1.msra.mxu0 %v946
    %983 = vmatprep.subr.mxu0 0.0
    %984 = vmatpush1.msra.mxu0 %v947
    %985 = vmatprep.subr.mxu0 0.0
    %986 = vmatpush1.msra.mxu0 %v948
    %987 = vmatprep.subr.mxu0 0.0
    %988 = vmatpush1.msra.mxu0 %v949
    %989 = vmatprep.subr.mxu0 0.0
    %990 = vmatpush1.msra.mxu0 %v950
    %991 = vmatprep.subr.mxu0 0.0
    %992 = vmatpush1.msra.mxu0 %v951
    %993 = vmatprep.subr.mxu0 0.0
    %994 = vmatpush1.msra.mxu0 %v952
    %995 = vmatprep.subr.mxu0 0.0
    %996 = vmatpush1.msra.mxu0 %v953
    %997 = vmatprep.subr.mxu0 0.0
    %998 = vmatpush1.msra.mxu0 %v954
    %999 = vmatprep.subr.mxu0 0.0
    %1000 = vmatpush1.msra.mxu0 %v955
    %1001 = vmatprep.subr.mxu0 0.0
    %1002 = vmatpush1.msra.mxu0 %v956
    %1003 = vmatprep.subr.mxu0 0.0
    %1004 = vmatpush1.msra.mxu0 %v957
    %1005 = vmatprep.subr.mxu0 0.0
    %1006 = vmatpush1.msra.mxu0 %v958
    %1007 = vmatprep.subr.mxu0 0.0
    %1008 = vmatpush1.msra.mxu0 %v959
    %1009 = vmatprep.subr.mxu0 0.0
    %1010 = vmatpush1.msra.mxu0 0.0
    %1011 = vmatprep.subr.mxu0 0.0
    %1012 = vmatpush1.msra.mxu0 0.0
    %1013 = vmatprep.subr.mxu0 0.0
    %1014 = vmatpush1.msra.mxu0 0.0
    %1015 = vmatprep.subr.mxu0 0.0
    %1016 = vmatpush1.msra.mxu0 0.0
    %1017 = vmatprep.subr.mxu0 0.0
    %1018 = vmatpush1.msra.mxu0 0.0
    %1019 = vmatprep.subr.mxu0 0.0
    %1020 = vmatpush1.msra.mxu0 0.0
    %1021 = vmatprep.subr.mxu0 0.0
    %1022 = vmatpush1.msra.mxu0 0.0
    %1023 = vmatprep.subr.mxu0 0.0
    %1024 = vmatpush1.msra.mxu0 0.0
    %1025 = vmatprep.subr.mxu0 0.0
    %1026 = vmatpush1.msra.mxu0 0.0
    %1027 = vmatprep.subr.mxu0 0.0
    %1028 = vmatpush1.msra.mxu0 0.0
    %1029 = vmatprep.subr.mxu0 0.0
    %1030 = vmatpush1.msra.mxu0 0.0
    %1031 = vmatprep.mubr.f32.mxu0 %v962
    %1032 = vmatmul.mubr.f32.gmra.mrb[0].mxu0 %v935
    %v1033 = vpop.f32.mrb[0].mxu0
    %v1034 = vadd.f32 0.0, %v1033
    %v1035 = vpop.f32.mrb[0].mxu0
    %1036 = vmatprep.mubr.f32.mxu0 %v965
    %1037 = vmatmul.mubr.f32.gmra.mrb[0].mxu0 %v937
    %v1038 = vpop.f32.mrb[0].mxu0
    %v1039 = vadd.f32 0.0, %v1038
    %v1040 = vpop.f32.mrb[0].mxu0
    %1041 = vdwg.mxu0
    %s1042 = scalar_lea.vmem %s4, 168
    %v1043 = vld [vmem:[%s1042] sm:$0xff]
    %v1044 = vld [vmem:[%s1042 + $0x8] sm:$0xff]
    %v1045 = vld [vmem:[%s1042 + $0x10] sm:$0xff]
    %v1046 = vld [vmem:[%s1042 + $0x18] sm:$0xff]
    %v1047 = vld [vmem:[%s1042 + $0x20] sm:$0xff]
    %v1048 = vld [vmem:[%s1042 + $0x28] sm:$0xff]
    %v1049 = vld [vmem:[%s1042 + $0x30] sm:$0xff]
    %v1050 = vld [vmem:[%s1042 + $0x38] sm:$0xff]
    %v1051 = vld [vmem:[%s1042 + $0x40] sm:$0xff]
    %v1052 = vld [vmem:[%s1042 + $0x48] sm:$0xff]
    %v1053 = vld [vmem:[%s1042 + $0x50] sm:$0xff]
    %v1054 = vld [vmem:[%s1042 + $0x58] sm:$0xff]
    %v1055 = vld [vmem:[%s1042 + $0x60] sm:$0xff]
    %v1056 = vld [vmem:[%s1042 + $0x68] sm:$0xff]
    %v1057 = vld [vmem:[%s1042 + $0x70] sm:$0xff]
    %v1058 = vld [vmem:[%s1042 + $0x78] sm:$0xff]
    %v1059 = vld [vmem:[%s1042 + $0x80] sm:$0xff]
    %v1060 = vld [vmem:[%s1042 + $0x88] sm:$0xff]
    %v1061 = vld [vmem:[%s1042 + $0x90] sm:$0xff]
    %v1062 = vld [vmem:[%s1042 + $0x98] sm:$0xff]
    %v1063 = vld [vmem:[%s1042 + $0xa0] sm:$0xff]
    %1064 = vmatprep.subr.mxu0 0.0
    %1065 = vmatpush1.msra.mxu0 %v1043
    %1066 = vmatprep.subr.mxu0 0.0
    %1067 = vmatpush1.msra.mxu0 %v1044
    %1068 = vmatprep.subr.mxu0 0.0
    %1069 = vmatpush1.msra.mxu0 %v1045
    %1070 = vmatprep.subr.mxu0 0.0
    %1071 = vmatpush1.msra.mxu0 %v1046
    %1072 = vmatprep.subr.mxu0 0.0
    %1073 = vmatpush1.msra.mxu0 %v1047
    %1074 = vmatprep.subr.mxu0 0.0
    %1075 = vmatpush1.msra.mxu0 %v1048
    %1076 = vmatprep.subr.mxu0 0.0
    %1077 = vmatpush1.msra.mxu0 %v1049
    %1078 = vmatprep.subr.mxu0 0.0
    %1079 = vmatpush1.msra.mxu0 %v1050
    %1080 = vmatprep.subr.mxu0 0.0
    %1081 = vmatpush1.msra.mxu0 %v1051
    %1082 = vmatprep.subr.mxu0 0.0
    %1083 = vmatpush1.msra.mxu0 %v1052
    %1084 = vmatprep.subr.mxu0 0.0
    %1085 = vmatpush1.msra.mxu0 %v1053
    %1086 = vmatprep.subr.mxu0 0.0
    %1087 = vmatpush1.msra.mxu0 %v1054
    %1088 = vmatprep.subr.mxu0 0.0
    %1089 = vmatpush1.msra.mxu0 %v1055
    %1090 = vmatprep.subr.mxu0 0.0
    %1091 = vmatpush1.msra.mxu0 %v1056
    %1092 = vmatprep.subr.mxu0 0.0
    %1093 = vmatpush1.msra.mxu0 %v1057
    %1094 = vmatprep.subr.mxu0 0.0
    %1095 = vmatpush1.msra.mxu0 %v1058
    %1096 = vmatprep.subr.mxu0 0.0
    %1097 = vmatpush1.msra.mxu0 %v1059
    %1098 = vmatprep.subr.mxu0 0.0
    %1099 = vmatpush1.msra.mxu0 %v1060
    %1100 = vmatprep.subr.mxu0 0.0
    %1101 = vmatpush1.msra.mxu0 %v1061
    %1102 = vmatprep.subr.mxu0 0.0
    %1103 = vmatpush1.msra.mxu0 %v1062
    %1104 = vmatprep.subr.mxu0 0.0
    %1105 = vmatpush1.msra.mxu0 %v1063
    %1106 = vmatprep.subr.mxu0 0.0
    %1107 = vmatpush1.msra.mxu0 0.0
    %1108 = vmatprep.subr.mxu0 0.0
    %1109 = vmatpush1.msra.mxu0 0.0
    %1110 = vmatprep.subr.mxu0 0.0
    %1111 = vmatpush1.msra.mxu0 0.0
    %1112 = vmatprep.subr.mxu0 0.0
    %1113 = vmatpush1.msra.mxu0 0.0
    %1114 = vmatprep.subr.mxu0 0.0
    %1115 = vmatpush1.msra.mxu0 0.0
    %1116 = vmatprep.subr.mxu0 0.0
    %1117 = vmatpush1.msra.mxu0 0.0
    %1118 = vmatprep.subr.mxu0 0.0
    %1119 = vmatpush1.msra.mxu0 0.0
    %1120 = vmatprep.subr.mxu0 0.0
    %1121 = vmatpush1.msra.mxu0 0.0
    %1122 = vmatprep.subr.mxu0 0.0
    %1123 = vmatpush1.msra.mxu0 0.0
    %1124 = vmatprep.subr.mxu0 0.0
    %1125 = vmatpush1.msra.mxu0 0.0
    %1126 = vmatprep.subr.mxu0 0.0
    %1127 = vmatpush1.msra.mxu0 0.0
    %1128 = vmatprep.mubr.f32.mxu0 %v962
    %1129 = vmatmul.mubr.f32.gmra.mrb[0].mxu0 %v935
    %v1130 = vpop.f32.mrb[0].mxu0
    %v1131 = vadd.f32 0.0, %v1130
    %v1132 = vpop.f32.mrb[0].mxu0
    %1133 = vmatprep.mubr.f32.mxu0 %v965
    %1134 = vmatmul.mubr.f32.gmra.mrb[0].mxu0 %v937
    %v1135 = vpop.f32.mrb[0].mxu0
    %v1136 = vadd.f32 0.0, %v1135
    %v1137 = vpop.f32.mrb[0].mxu0
    %1138 = vdwg.mxu0
    %v1139 = vmax.f32 %v1034, %v1131
    %v1140 = vmax.f32 %v1039, %v1136
    %vm1141 = vcmask 687104
    %1142 = vst.msk [vmem:[#allocation2] sm:$0xff] %vm1141, %v1139
    %vm1143 = vcmask 685056
    %1144 = vst.msk [vmem:[#allocation2 + $0x8] sm:$0x3f] %vm1143, %v1140
    %v1145 = vld [vmem:[#allocation2] sm:$0xff]
    %v1146 = vld [vmem:[#allocation2 + $0x8] sm:$0x3]
    %v1147 = vld [vmem:[%s5] sm:$0xff]
    %v1148 = vld [vmem:[%s5 + $0x8] sm:$0xff]
    %v1149 = vld [vmem:[%s5 + $0x10] sm:$0xff]
    %v1150 = vld [vmem:[%s5 + $0x18] sm:$0xff]
    %v1151 = vld [vmem:[%s5 + $0x20] sm:$0xff]
    %v1152 = vld [vmem:[%s5 + $0x28] sm:$0xff]
    %v1153 = vld [vmem:[%s5 + $0x30] sm:$0xff]
    %v1154 = vld [vmem:[%s5 + $0x38] sm:$0xff]
    %v1155 = vld [vmem:[%s5 + $0x40] sm:$0xff]
    %v1156 = vld [vmem:[%s5 + $0x48] sm:$0xff]
    %v1157 = vld [vmem:[%s5 + $0x50] sm:$0xff]
    %v1158 = vld [vmem:[%s5 + $0x58] sm:$0xff]
    %v1159 = vld [vmem:[%s5 + $0x60] sm:$0xff]
    %v1160 = vld [vmem:[%s5 + $0x68] sm:$0xff]
    %v1161 = vld [vmem:[%s5 + $0x70] sm:$0xff]
    %v1162 = vld [vmem:[%s5 + $0x78] sm:$0xff]
    %v1163 = vld [vmem:[%s5 + $0x80] sm:$0xff]
    %v1164 = vld [vmem:[%s5 + $0x88] sm:$0xff]
    %v1165 = vld [vmem:[%s5 + $0x90] sm:$0xff]
    %v1166 = vld [vmem:[%s5 + $0x98] sm:$0xff]
    %v1167 = vld [vmem:[%s5 + $0xa0] sm:$0xf]
    %v1168 = vld [vmem:[%s5 + $0xa8] sm:$0xf]
    %v1169 = vld [vmem:[#allocation2 + $0x1] sm:$0xff]
    %v1170 = vld [vmem:[#allocation2 + $0x9] sm:$0x3]
    %s1171 = scalar_lea.vmem %s5, 176
    %v1172 = vld [vmem:[%s1171] sm:$0xff]
    %v1173 = vld [vmem:[%s1171 + $0x8] sm:$0xff]
    %v1174 = vld [vmem:[%s1171 + $0x10] sm:$0xff]
    %v1175 = vld [vmem:[%s1171 + $0x18] sm:$0xff]
    %v1176 = vld [vmem:[%s1171 + $0x20] sm:$0xff]
    %v1177 = vld [vmem:[%s1171 + $0x28] sm:$0xff]
    %v1178 = vld [vmem:[%s1171 + $0x30] sm:$0xff]
    %v1179 = vld [vmem:[%s1171 + $0x38] sm:$0xff]
    %v1180 = vld [vmem:[%s1171 + $0x40] sm:$0xff]
    %v1181 = vld [vmem:[%s1171 + $0x48] sm:$0xff]
    %v1182 = vld [vmem:[%s1171 + $0x50] sm:$0xff]
    %v1183 = vld [vmem:[%s1171 + $0x58] sm:$0xff]
    %v1184 = vld [vmem:[%s1171 + $0x60] sm:$0xff]
    %v1185 = vld [vmem:[%s1171 + $0x68] sm:$0xff]
    %v1186 = vld [vmem:[%s1171 + $0x70] sm:$0xff]
    %v1187 = vld [vmem:[%s1171 + $0x78] sm:$0xff]
    %v1188 = vld [vmem:[%s1171 + $0x80] sm:$0xff]
    %v1189 = vld [vmem:[%s1171 + $0x88] sm:$0xff]
    %v1190 = vld [vmem:[%s1171 + $0x90] sm:$0xff]
    %v1191 = vld [vmem:[%s1171 + $0x98] sm:$0xff]
    %v1192 = vld [vmem:[%s1171 + $0xa0] sm:$0xf]
    %v1193 = vld [vmem:[%s1171 + $0xa8] sm:$0xf]
    %v1195 = vsel %vm1141, %v1169, 0
    %v1198 = vsel %vm1141, %v1170, 0
    %v1201 = vsel %vm765, %v1192, 0
    %v1204 = vsel %vm765, %v1193, 0
    %1206 = vmatprep.subr.mxu0 %v1173
    %1207 = vmatpush1.msra.mxu0 %v1172
    %1208 = vmatprep.subr.mxu0 %v1175
    %1209 = vmatpush1.msra.mxu0 %v1174
    %1210 = vmatprep.subr.mxu0 %v1177
    %1211 = vmatpush1.msra.mxu0 %v1176
    %1212 = vmatprep.subr.mxu0 %v1179
    %1213 = vmatpush1.msra.mxu0 %v1178
    %1214 = vmatprep.subr.mxu0 %v1181
    %1215 = vmatpush1.msra.mxu0 %v1180
    %1216 = vmatprep.subr.mxu0 %v1183
    %1217 = vmatpush1.msra.mxu0 %v1182
    %1218 = vmatprep.subr.mxu0 %v1185
    %1219 = vmatpush1.msra.mxu0 %v1184
    %1220 = vmatprep.subr.mxu0 %v1187
    %1221 = vmatpush1.msra.mxu0 %v1186
    %1222 = vmatprep.subr.mxu0 %v1189
    %1223 = vmatpush1.msra.mxu0 %v1188
    %1224 = vmatprep.subr.mxu0 %v1191
    %1225 = vmatpush1.msra.mxu0 %v1190
    %1226 = vmatprep.subr.mxu0 %v1204
    %1227 = vmatpush1.msra.mxu0 %v1201
    %1228 = vmatprep.subr.mxu0 0.0
    %1229 = vmatpush1.msra.mxu0 0.0
    %1230 = vmatprep.subr.mxu0 0.0
    %1231 = vmatpush1.msra.mxu0 0.0
    %1232 = vmatprep.subr.mxu0 0.0
    %1233 = vmatpush1.msra.mxu0 0.0
    %1234 = vmatprep.subr.mxu0 0.0
    %1235 = vmatpush1.msra.mxu0 0.0
    %1236 = vmatprep.subr.mxu0 0.0
    %1237 = vmatpush1.msra.mxu0 0.0
    %1238 = vmatprep.subr.mxu0 0.0
    %1239 = vmatpush1.msra.mxu0 0.0
    %1240 = vmatprep.subr.mxu0 0.0
    %1241 = vmatpush1.msra.mxu0 0.0
    %1242 = vmatprep.subr.mxu0 0.0
    %1243 = vmatpush1.msra.mxu0 0.0
    %1244 = vmatprep.subr.mxu0 0.0
    %1245 = vmatpush1.msra.mxu0 0.0
    %1246 = vmatprep.subr.mxu0 0.0
    %1247 = vmatpush1.msra.mxu0 0.0
    %1248 = vmatprep.subr.mxu0 0.0
    %1249 = vmatpush1.msra.mxu0 0.0
    %1250 = vmatprep.subr.mxu0 0.0
    %1251 = vmatpush1.msra.mxu0 0.0
    %1252 = vmatprep.subr.mxu0 0.0
    %1253 = vmatpush1.msra.mxu0 0.0
    %1254 = vmatprep.subr.mxu0 0.0
    %1255 = vmatpush1.msra.mxu0 0.0
    %1256 = vmatprep.subr.mxu0 0.0
    %1257 = vmatpush1.msra.mxu0 0.0
    %1258 = vmatprep.subr.mxu0 0.0
    %1259 = vmatpush1.msra.mxu0 0.0
    %1260 = vmatprep.subr.mxu0 0.0
    %1261 = vmatpush1.msra.mxu0 0.0
    %1262 = vmatprep.subr.mxu0 0.0
    %1263 = vmatpush1.msra.mxu0 0.0
    %1264 = vmatprep.subr.mxu0 0.0
    %1265 = vmatpush1.msra.mxu0 0.0
    %1266 = vmatprep.subr.mxu0 0.0
    %1267 = vmatpush1.msra.mxu0 0.0
    %1268 = vmatprep.subr.mxu0 0.0
    %1269 = vmatpush1.msra.mxu0 0.0
    %1270 = vmatprep.mubr.f32.mxu0 0.0
    %1271 = vmatmul.mubr.f32.gmra.mrb[0].mxu0 %v1195
    %v1272 = vpop.f32.mrb[0].mxu0
    %v1273 = vadd.f32 0.0, %v1272
    %v1274 = vpop.f32.mrb[0].mxu0
    %v1275 = vadd.f32 0.0, %v1274
    %1276 = vmatprep.mubr.f32.mxu0 0.0
    %1277 = vmatmul.mubr.f32.gmra.mrb[0].mxu0 %v1198
    %v1278 = vpop.f32.mrb[0].mxu0
    %v1279 = vadd.f32 0.0, %v1278
    %v1280 = vpop.f32.mrb[0].mxu0
    %v1281 = vadd.f32 0.0, %v1280
    %1282 = vdwg.mxu0
    %v1284 = vsel %vm1141, %v1145, 0
    %v1287 = vsel %vm1141, %v1146, 0
    %v1290 = vsel %vm765, %v1167, 0
    %v1293 = vsel %vm765, %v1168, 0
    %1295 = vmatprep.subr.mxu0 %v1148
    %1296 = vmatpush1.msra.mxu0 %v1147
    %1297 = vmatprep.subr.mxu0 %v1150
    %1298 = vmatpush1.msra.mxu0 %v1149
    %1299 = vmatprep.subr.mxu0 %v1152
    %1300 = vmatpush1.msra.mxu0 %v1151
    %1301 = vmatprep.subr.mxu0 %v1154
    %1302 = vmatpush1.msra.mxu0 %v1153
    %1303 = vmatprep.subr.mxu0 %v1156
    %1304 = vmatpush1.msra.mxu0 %v1155
    %1305 = vmatprep.subr.mxu0 %v1158
    %1306 = vmatpush1.msra.mxu0 %v1157
    %1307 = vmatprep.subr.mxu0 %v1160
    %1308 = vmatpush1.msra.mxu0 %v1159
    %1309 = vmatprep.subr.mxu0 %v1162
    %1310 = vmatpush1.msra.mxu0 %v1161
    %1311 = vmatprep.subr.mxu0 %v1164
    %1312 = vmatpush1.msra.mxu0 %v1163
    %1313 = vmatprep.subr.mxu0 %v1166
    %1314 = vmatpush1.msra.mxu0 %v1165
    %1315 = vmatprep.subr.mxu0 %v1293
    %1316 = vmatpush1.msra.mxu0 %v1290
    %1317 = vmatprep.subr.mxu0 0.0
    %1318 = vmatpush1.msra.mxu0 0.0
    %1319 = vmatprep.subr.mxu0 0.0
    %1320 = vmatpush1.msra.mxu0 0.0
    %1321 = vmatprep.subr.mxu0 0.0
    %1322 = vmatpush1.msra.mxu0 0.0
    %1323 = vmatprep.subr.mxu0 0.0
    %1324 = vmatpush1.msra.mxu0 0.0
    %1325 = vmatprep.subr.mxu0 0.0
    %1326 = vmatpush1.msra.mxu0 0.0
    %1327 = vmatprep.subr.mxu0 0.0
    %1328 = vmatpush1.msra.mxu0 0.0
    %1329 = vmatprep.subr.mxu0 0.0
    %1330 = vmatpush1.msra.mxu0 0.0
    %1331 = vmatprep.subr.mxu0 0.0
    %1332 = vmatpush1.msra.mxu0 0.0
    %1333 = vmatprep.subr.mxu0 0.0
    %1334 = vmatpush1.msra.mxu0 0.0
    %1335 = vmatprep.subr.mxu0 0.0
    %1336 = vmatpush1.msra.mxu0 0.0
    %1337 = vmatprep.subr.mxu0 0.0
    %1338 = vmatpush1.msra.mxu0 0.0
    %1339 = vmatprep.subr.mxu0 0.0
    %1340 = vmatpush1.msra.mxu0 0.0
    %1341 = vmatprep.subr.mxu0 0.0
    %1342 = vmatpush1.msra.mxu0 0.0
    %1343 = vmatprep.subr.mxu0 0.0
    %1344 = vmatpush1.msra.mxu0 0.0
    %1345 = vmatprep.subr.mxu0 0.0
    %1346 = vmatpush1.msra.mxu0 0.0
    %1347 = vmatprep.subr.mxu0 0.0
    %1348 = vmatpush1.msra.mxu0 0.0
    %1349 = vmatprep.subr.mxu0 0.0
    %1350 = vmatpush1.msra.mxu0 0.0
    %1351 = vmatprep.subr.mxu0 0.0
    %1352 = vmatpush1.msra.mxu0 0.0
    %1353 = vmatprep.subr.mxu0 0.0
    %1354 = vmatpush1.msra.mxu0 0.0
    %1355 = vmatprep.subr.mxu0 0.0
    %1356 = vmatpush1.msra.mxu0 0.0
    %1357 = vmatprep.subr.mxu0 0.0
    %1358 = vmatpush1.msra.mxu0 0.0
    %1359 = vmatprep.mubr.f32.mxu0 0.0
    %1360 = vmatmul.mubr.f32.gmra.mrb[0].mxu0 %v1284
    %v1361 = vpop.f32.mrb[0].mxu0
    %v1362 = vadd.f32 %v1273, %v1361
    %v1363 = vpop.f32.mrb[0].mxu0
    %v1364 = vadd.f32 %v1275, %v1363
    %1365 = vmatprep.mubr.f32.mxu0 0.0
    %1366 = vmatmul.mubr.f32.gmra.mrb[0].mxu0 %v1287
    %v1367 = vpop.f32.mrb[0].mxu0
    %v1368 = vadd.f32 %v1279, %v1367
    %v1369 = vpop.f32.mrb[0].mxu0
    %v1370 = vadd.f32 %v1281, %v1369
    %1371 = vdwg.mxu0
    %v1372 = vld [vmem:[#allocation2 + $0x2] sm:$0xff]
    %v1373 = vld [vmem:[#allocation2 + $0xa] sm:$0x3]
    %s1374 = scalar_lea.vmem %s5, 352
    %v1375 = vld [vmem:[%s1374] sm:$0xff]
    %v1376 = vld [vmem:[%s1374 + $0x8] sm:$0xff]
    %v1377 = vld [vmem:[%s1374 + $0x10] sm:$0xff]
    %v1378 = vld [vmem:[%s1374 + $0x18] sm:$0xff]
    %v1379 = vld [vmem:[%s1374 + $0x20] sm:$0xff]
    %v1380 = vld [vmem:[%s1374 + $0x28] sm:$0xff]
    %v1381 = vld [vmem:[%s1374 + $0x30] sm:$0xff]
    %v1382 = vld [vmem:[%s1374 + $0x38] sm:$0xff]
    %v1383 = vld [vmem:[%s1374 + $0x40] sm:$0xff]
    %v1384 = vld [vmem:[%s1374 + $0x48] sm:$0xff]
    %v1385 = vld [vmem:[%s1374 + $0x50] sm:$0xff]
    %v1386 = vld [vmem:[%s1374 + $0x58] sm:$0xff]
    %v1387 = vld [vmem:[%s1374 + $0x60] sm:$0xff]
    %v1388 = vld [vmem:[%s1374 + $0x68] sm:$0xff]
    %v1389 = vld [vmem:[%s1374 + $0x70] sm:$0xff]
    %v1390 = vld [vmem:[%s1374 + $0x78] sm:$0xff]
    %v1391 = vld [vmem:[%s1374 + $0x80] sm:$0xff]
    %v1392 = vld [vmem:[%s1374 + $0x88] sm:$0xff]
    %v1393 = vld [vmem:[%s1374 + $0x90] sm:$0xff]
    %v1394 = vld [vmem:[%s1374 + $0x98] sm:$0xff]
    %v1395 = vld [vmem:[%s1374 + $0xa0] sm:$0xf]
    %v1396 = vld [vmem:[%s1374 + $0xa8] sm:$0xf]
    %v1398 = vsel %vm1141, %v1372, 0
    %v1401 = vsel %vm1141, %v1373, 0
    %v1404 = vsel %vm765, %v1395, 0
    %v1407 = vsel %vm765, %v1396, 0
    %1409 = vmatprep.subr.mxu0 %v1376
    %1410 = vmatpush1.msra.mxu0 %v1375
    %1411 = vmatprep.subr.mxu0 %v1378
    %1412 = vmatpush1.msra.mxu0 %v1377
    %1413 = vmatprep.subr.mxu0 %v1380
    %1414 = vmatpush1.msra.mxu0 %v1379
    %1415 = vmatprep.subr.mxu0 %v1382
    %1416 = vmatpush1.msra.mxu0 %v1381
    %1417 = vmatprep.subr.mxu0 %v1384
    %1418 = vmatpush1.msra.mxu0 %v1383
    %1419 = vmatprep.subr.mxu0 %v1386
    %1420 = vmatpush1.msra.mxu0 %v1385
    %1421 = vmatprep.subr.mxu0 %v1388
    %1422 = vmatpush1.msra.mxu0 %v1387
    %1423 = vmatprep.subr.mxu0 %v1390
    %1424 = vmatpush1.msra.mxu0 %v1389
    %1425 = vmatprep.subr.mxu0 %v1392
    %1426 = vmatpush1.msra.mxu0 %v1391
    %1427 = vmatprep.subr.mxu0 %v1394
    %1428 = vmatpush1.msra.mxu0 %v1393
    %1429 = vmatprep.subr.mxu0 %v1407
    %1430 = vmatpush1.msra.mxu0 %v1404
    %1431 = vmatprep.subr.mxu0 0.0
    %1432 = vmatpush1.msra.mxu0 0.0
    %1433 = vmatprep.subr.mxu0 0.0
    %1434 = vmatpush1.msra.mxu0 0.0
    %1435 = vmatprep.subr.mxu0 0.0
    %1436 = vmatpush1.msra.mxu0 0.0
    %1437 = vmatprep.subr.mxu0 0.0
    %1438 = vmatpush1.msra.mxu0 0.0
    %1439 = vmatprep.subr.mxu0 0.0
    %1440 = vmatpush1.msra.mxu0 0.0
    %1441 = vmatprep.subr.mxu0 0.0
    %1442 = vmatpush1.msra.mxu0 0.0
    %1443 = vmatprep.subr.mxu0 0.0
    %1444 = vmatpush1.msra.mxu0 0.0
    %1445 = vmatprep.subr.mxu0 0.0
    %1446 = vmatpush1.msra.mxu0 0.0
    %1447 = vmatprep.subr.mxu0 0.0
    %1448 = vmatpush1.msra.mxu0 0.0
    %1449 = vmatprep.subr.mxu0 0.0
    %1450 = vmatpush1.msra.mxu0 0.0
    %1451 = vmatprep.subr.mxu0 0.0
    %1452 = vmatpush1.msra.mxu0 0.0
    %1453 = vmatprep.subr.mxu0 0.0
    %1454 = vmatpush1.msra.mxu0 0.0
    %1455 = vmatprep.subr.mxu0 0.0
    %1456 = vmatpush1.msra.mxu0 0.0
    %1457 = vmatprep.subr.mxu0 0.0
    %1458 = vmatpush1.msra.mxu0 0.0
    %1459 = vmatprep.subr.mxu0 0.0
    %1460 = vmatpush1.msra.mxu0 0.0
    %1461 = vmatprep.subr.mxu0 0.0
    %1462 = vmatpush1.msra.mxu0 0.0
    %1463 = vmatprep.subr.mxu0 0.0
    %1464 = vmatpush1.msra.mxu0 0.0
    %1465 = vmatprep.subr.mxu0 0.0
    %1466 = vmatpush1.msra.mxu0 0.0
    %1467 = vmatprep.subr.mxu0 0.0
    %1468 = vmatpush1.msra.mxu0 0.0
    %1469 = vmatprep.subr.mxu0 0.0
    %1470 = vmatpush1.msra.mxu0 0.0
    %1471 = vmatprep.subr.mxu0 0.0
    %1472 = vmatpush1.msra.mxu0 0.0
    %1473 = vmatprep.mubr.f32.mxu0 0.0
    %1474 = vmatmul.mubr.f32.gmra.mrb[0].mxu0 %v1398
    %v1475 = vpop.f32.mrb[0].mxu0
    %v1476 = vadd.f32 0.0, %v1475
    %v1477 = vpop.f32.mrb[0].mxu0
    %v1478 = vadd.f32 0.0, %v1477
    %1479 = vmatprep.mubr.f32.mxu0 0.0
    %1480 = vmatmul.mubr.f32.gmra.mrb[0].mxu0 %v1401
    %v1481 = vpop.f32.mrb[0].mxu0
    %v1482 = vadd.f32 0.0, %v1481
    %v1483 = vpop.f32.mrb[0].mxu0
    %v1484 = vadd.f32 0.0, %v1483
    %1485 = vdwg.mxu0
    %v1486 = vadd.f32 %v1362, %v1476
    %v1487 = vadd.f32 %v1364, %v1478
    %v1488 = vadd.f32 %v1368, %v1482
    %v1489 = vadd.f32 %v1370, %v1484
    %v1490 = vld [vmem:[#allocation2 + $0x3] sm:$0xff]
    %v1491 = vld [vmem:[#allocation2 + $0xb] sm:$0x3]
    %s1492 = scalar_lea.vmem %s5, 528
    %v1493 = vld [vmem:[%s1492] sm:$0xff]
    %v1494 = vld [vmem:[%s1492 + $0x8] sm:$0xff]
    %v1495 = vld [vmem:[%s1492 + $0x10] sm:$0xff]
    %v1496 = vld [vmem:[%s1492 + $0x18] sm:$0xff]
    %v1497 = vld [vmem:[%s1492 + $0x20] sm:$0xff]
    %v1498 = vld [vmem:[%s1492 + $0x28] sm:$0xff]
    %v1499 = vld [vmem:[%s1492 + $0x30] sm:$0xff]
    %v1500 = vld [vmem:[%s1492 + $0x38] sm:$0xff]
    %v1501 = vld [vmem:[%s1492 + $0x40] sm:$0xff]
    %v1502 = vld [vmem:[%s1492 + $0x48] sm:$0xff]
    %v1503 = vld [vmem:[%s1492 + $0x50] sm:$0xff]
    %v1504 = vld [vmem:[%s1492 + $0x58] sm:$0xff]
    %v1505 = vld [vmem:[%s1492 + $0x60] sm:$0xff]
    %v1506 = vld [vmem:[%s1492 + $0x68] sm:$0xff]
    %v1507 = vld [vmem:[%s1492 + $0x70] sm:$0xff]
    %v1508 = vld [vmem:[%s1492 + $0x78] sm:$0xff]
    %v1509 = vld [vmem:[%s1492 + $0x80] sm:$0xff]
    %v1510 = vld [vmem:[%s1492 + $0x88] sm:$0xff]
    %v1511 = vld [vmem:[%s1492 + $0x90] sm:$0xff]
    %v1512 = vld [vmem:[%s1492 + $0x98] sm:$0xff]
    %v1513 = vld [vmem:[%s1492 + $0xa0] sm:$0xf]
    %v1514 = vld [vmem:[%s1492 + $0xa8] sm:$0xf]
    %v1516 = vsel %vm1141, %v1490, 0
    %v1519 = vsel %vm1141, %v1491, 0
    %v1522 = vsel %vm765, %v1513, 0
    %v1525 = vsel %vm765, %v1514, 0
    %1527 = vmatprep.subr.mxu0 %v1494
    %1528 = vmatpush1.msra.mxu0 %v1493
    %1529 = vmatprep.subr.mxu0 %v1496
    %1530 = vmatpush1.msra.mxu0 %v1495
    %1531 = vmatprep.subr.mxu0 %v1498
    %1532 = vmatpush1.msra.mxu0 %v1497
    %1533 = vmatprep.subr.mxu0 %v1500
    %1534 = vmatpush1.msra.mxu0 %v1499
    %1535 = vmatprep.subr.mxu0 %v1502
    %1536 = vmatpush1.msra.mxu0 %v1501
    %1537 = vmatprep.subr.mxu0 %v1504
    %1538 = vmatpush1.msra.mxu0 %v1503
    %1539 = vmatprep.subr.mxu0 %v1506
    %1540 = vmatpush1.msra.mxu0 %v1505
    %1541 = vmatprep.subr.mxu0 %v1508
    %1542 = vmatpush1.msra.mxu0 %v1507
    %1543 = vmatprep.subr.mxu0 %v1510
    %1544 = vmatpush1.msra.mxu0 %v1509
    %1545 = vmatprep.subr.mxu0 %v1512
    %1546 = vmatpush1.msra.mxu0 %v1511
    %1547 = vmatprep.subr.mxu0 %v1525
    %1548 = vmatpush1.msra.mxu0 %v1522
    %1549 = vmatprep.subr.mxu0 0.0
    %1550 = vmatpush1.msra.mxu0 0.0
    %1551 = vmatprep.subr.mxu0 0.0
    %1552 = vmatpush1.msra.mxu0 0.0
    %1553 = vmatprep.subr.mxu0 0.0
    %1554 = vmatpush1.msra.mxu0 0.0
    %1555 = vmatprep.subr.mxu0 0.0
    %1556 = vmatpush1.msra.mxu0 0.0
    %1557 = vmatprep.subr.mxu0 0.0
    %1558 = vmatpush1.msra.mxu0 0.0
    %1559 = vmatprep.subr.mxu0 0.0
    %1560 = vmatpush1.msra.mxu0 0.0
    %1561 = vmatprep.subr.mxu0 0.0
    %1562 = vmatpush1.msra.mxu0 0.0
    %1563 = vmatprep.subr.mxu0 0.0
    %1564 = vmatpush1.msra.mxu0 0.0
    %1565 = vmatprep.subr.mxu0 0.0
    %1566 = vmatpush1.msra.mxu0 0.0
    %1567 = vmatprep.subr.mxu0 0.0
    %1568 = vmatpush1.msra.mxu0 0.0
    %1569 = vmatprep.subr.mxu0 0.0
    %1570 = vmatpush1.msra.mxu0 0.0
    %1571 = vmatprep.subr.mxu0 0.0
    %1572 = vmatpush1.msra.mxu0 0.0
    %1573 = vmatprep.subr.mxu0 0.0
    %1574 = vmatpush1.msra.mxu0 0.0
    %1575 = vmatprep.subr.mxu0 0.0
    %1576 = vmatpush1.msra.mxu0 0.0
    %1577 = vmatprep.subr.mxu0 0.0
    %1578 = vmatpush1.msra.mxu0 0.0
    %1579 = vmatprep.subr.mxu0 0.0
    %1580 = vmatpush1.msra.mxu0 0.0
    %1581 = vmatprep.subr.mxu0 0.0
    %1582 = vmatpush1.msra.mxu0 0.0
    %1583 = vmatprep.subr.mxu0 0.0
    %1584 = vmatpush1.msra.mxu0 0.0
    %1585 = vmatprep.subr.mxu0 0.0
    %1586 = vmatpush1.msra.mxu0 0.0
    %1587 = vmatprep.subr.mxu0 0.0
    %1588 = vmatpush1.msra.mxu0 0.0
    %1589 = vmatprep.subr.mxu0 0.0
    %1590 = vmatpush1.msra.mxu0 0.0
    %1591 = vmatprep.mubr.f32.mxu0 0.0
    %1592 = vmatmul.mubr.f32.gmra.mrb[0].mxu0 %v1516
    %v1593 = vpop.f32.mrb[0].mxu0
    %v1594 = vadd.f32 0.0, %v1593
    %v1595 = vpop.f32.mrb[0].mxu0
    %v1596 = vadd.f32 0.0, %v1595
    %1597 = vmatprep.mubr.f32.mxu0 0.0
    %1598 = vmatmul.mubr.f32.gmra.mrb[0].mxu0 %v1519
    %v1599 = vpop.f32.mrb[0].mxu0
    %v1600 = vadd.f32 0.0, %v1599
    %v1601 = vpop.f32.mrb[0].mxu0
    %v1602 = vadd.f32 0.0, %v1601
    %1603 = vdwg.mxu0
    %v1604 = vadd.f32 %v1486, %v1594
    %v1605 = vadd.f32 %v1487, %v1596
    %v1606 = vadd.f32 %v1488, %v1600
    %v1607 = vadd.f32 %v1489, %v1602
    %v1608 = vld [vmem:[#allocation2 + $0x4] sm:$0xff]
    %v1609 = vld [vmem:[#allocation2 + $0xc] sm:$0x3]
    %s1610 = scalar_lea.vmem %s5, 704
    %v1611 = vld [vmem:[%s1610] sm:$0xff]
    %v1612 = vld [vmem:[%s1610 + $0x8] sm:$0xff]
    %v1613 = vld [vmem:[%s1610 + $0x10] sm:$0xff]
    %v1614 = vld [vmem:[%s1610 + $0x18] sm:$0xff]
    %v1615 = vld [vmem:[%s1610 + $0x20] sm:$0xff]
    %v1616 = vld [vmem:[%s1610 + $0x28] sm:$0xff]
    %v1617 = vld [vmem:[%s1610 + $0x30] sm:$0xff]
    %v1618 = vld [vmem:[%s1610 + $0x38] sm:$0xff]
    %v1619 = vld [vmem:[%s1610 + $0x40] sm:$0xff]
    %v1620 = vld [vmem:[%s1610 + $0x48] sm:$0xff]
    %v1621 = vld [vmem:[%s1610 + $0x50] sm:$0xff]
    %v1622 = vld [vmem:[%s1610 + $0x58] sm:$0xff]
    %v1623 = vld [vmem:[%s1610 + $0x60] sm:$0xff]
    %v1624 = vld [vmem:[%s1610 + $0x68] sm:$0xff]
    %v1625 = vld [vmem:[%s1610 + $0x70] sm:$0xff]
    %v1626 = vld [vmem:[%s1610 + $0x78] sm:$0xff]
    %v1627 = vld [vmem:[%s1610 + $0x80] sm:$0xff]
    %v1628 = vld [vmem:[%s1610 + $0x88] sm:$0xff]
    %v1629 = vld [vmem:[%s1610 + $0x90] sm:$0xff]
    %v1630 = vld [vmem:[%s1610 + $0x98] sm:$0xff]
    %v1631 = vld [vmem:[%s1610 + $0xa0] sm:$0xf]
    %v1632 = vld [vmem:[%s1610 + $0xa8] sm:$0xf]
    %v1634 = vsel %vm1141, %v1608, 0
    %v1637 = vsel %vm1141, %v1609, 0
    %v1640 = vsel %vm765, %v1631, 0
    %v1643 = vsel %vm765, %v1632, 0
    %1645 = vmatprep.subr.mxu0 %v1612
    %1646 = vmatpush1.msra.mxu0 %v1611
    %1647 = vmatprep.subr.mxu0 %v1614
    %1648 = vmatpush1.msra.mxu0 %v1613
    %1649 = vmatprep.subr.mxu0 %v1616
    %1650 = vmatpush1.msra.mxu0 %v1615
    %1651 = vmatprep.subr.mxu0 %v1618
    %1652 = vmatpush1.msra.mxu0 %v1617
    %1653 = vmatprep.subr.mxu0 %v1620
    %1654 = vmatpush1.msra.mxu0 %v1619
    %1655 = vmatprep.subr.mxu0 %v1622
    %1656 = vmatpush1.msra.mxu0 %v1621
    %1657 = vmatprep.subr.mxu0 %v1624
    %1658 = vmatpush1.msra.mxu0 %v1623
    %1659 = vmatprep.subr.mxu0 %v1626
    %1660 = vmatpush1.msra.mxu0 %v1625
    %1661 = vmatprep.subr.mxu0 %v1628
    %1662 = vmatpush1.msra.mxu0 %v1627
    %1663 = vmatprep.subr.mxu0 %v1630
    %1664 = vmatpush1.msra.mxu0 %v1629
    %1665 = vmatprep.subr.mxu0 %v1643
    %1666 = vmatpush1.msra.mxu0 %v1640
    %1667 = vmatprep.subr.mxu0 0.0
    %1668 = vmatpush1.msra.mxu0 0.0
    %1669 = vmatprep.subr.mxu0 0.0
    %1670 = vmatpush1.msra.mxu0 0.0
    %1671 = vmatprep.subr.mxu0 0.0
    %1672 = vmatpush1.msra.mxu0 0.0
    %1673 = vmatprep.subr.mxu0 0.0
    %1674 = vmatpush1.msra.mxu0 0.0
    %1675 = vmatprep.subr.mxu0 0.0
    %1676 = vmatpush1.msra.mxu0 0.0
    %1677 = vmatprep.subr.mxu0 0.0
    %1678 = vmatpush1.msra.mxu0 0.0
    %1679 = vmatprep.subr.mxu0 0.0
    %1680 = vmatpush1.msra.mxu0 0.0
    %1681 = vmatprep.subr.mxu0 0.0
    %1682 = vmatpush1.msra.mxu0 0.0
    %1683 = vmatprep.subr.mxu0 0.0
    %1684 = vmatpush1.msra.mxu0 0.0
    %1685 = vmatprep.subr.mxu0 0.0
    %1686 = vmatpush1.msra.mxu0 0.0
    %1687 = vmatprep.subr.mxu0 0.0
    %1688 = vmatpush1.msra.mxu0 0.0
    %1689 = vmatprep.subr.mxu0 0.0
    %1690 = vmatpush1.msra.mxu0 0.0
    %1691 = vmatprep.subr.mxu0 0.0
    %1692 = vmatpush1.msra.mxu0 0.0
    %1693 = vmatprep.subr.mxu0 0.0
    %1694 = vmatpush1.msra.mxu0 0.0
    %1695 = vmatprep.subr.mxu0 0.0
    %1696 = vmatpush1.msra.mxu0 0.0
    %1697 = vmatprep.subr.mxu0 0.0
    %1698 = vmatpush1.msra.mxu0 0.0
    %1699 = vmatprep.subr.mxu0 0.0
    %1700 = vmatpush1.msra.mxu0 0.0
    %1701 = vmatprep.subr.mxu0 0.0
    %1702 = vmatpush1.msra.mxu0 0.0
    %1703 = vmatprep.subr.mxu0 0.0
    %1704 = vmatpush1.msra.mxu0 0.0
    %1705 = vmatprep.subr.mxu0 0.0
    %1706 = vmatpush1.msra.mxu0 0.0
    %1707 = vmatprep.subr.mxu0 0.0
    %1708 = vmatpush1.msra.mxu0 0.0
    %1709 = vmatprep.mubr.f32.mxu0 0.0
    %1710 = vmatmul.mubr.f32.gmra.mrb[0].mxu0 %v1634
    %v1711 = vpop.f32.mrb[0].mxu0
    %v1712 = vadd.f32 0.0, %v1711
    %v1713 = vpop.f32.mrb[0].mxu0
    %v1714 = vadd.f32 0.0, %v1713
    %1715 = vmatprep.mubr.f32.mxu0 0.0
    %1716 = vmatmul.mubr.f32.gmra.mrb[0].mxu0 %v1637
    %v1717 = vpop.f32.mrb[0].mxu0
    %v1718 = vadd.f32 0.0, %v1717
    %v1719 = vpop.f32.mrb[0].mxu0
    %v1720 = vadd.f32 0.0, %v1719
    %1721 = vdwg.mxu0
    %v1722 = vadd.f32 %v1604, %v1712
    %v1723 = vadd.f32 %v1605, %v1714
    %v1724 = vadd.f32 %v1606, %v1718
    %v1725 = vadd.f32 %v1607, %v1720
    %v1726 = vld [vmem:[%s6] sm:$0x3]
    %v1728 = vlaneseq
    %v1729 = vshrl.u32 %v1728, 7
    %v1730 = vsub.s32 0, %v1729
    %v1731 = vrot.slane %v1726, %v1730
    %v1732 = vlaneseq
    %v1733 = vshrl.u32 %v1732, 7
    %v1734 = vsub.s32 1, %v1733
    %v1735 = vrot.slane %v1726, %v1734
    %v1738 = vadd.f32 %v1722, %v1731
    %v1739 = vadd.f32 %v1723, %v1735
    %v1740 = vadd.f32 %v1724, %v1731
    %v1741 = vadd.f32 %v1725, %v1735
    %v1742 = vmax.f32 %v1738, 0.0
    %v1743 = vmax.f32 %v1739, 0.0
    %v1744 = vmax.f32 %v1740, 0.0
    %v1745 = vmax.f32 %v1741, 0.0
    %v1746 = vld [vmem:[%s7] sm:$0x1f]
    %vm1747 = vcmask 80896
    %v1749 = vsel %vm1747, %v1746, 0
    %vm1751 = vcmask 1041408
    %v1753 = vsel %vm1751, %v1744, 0
    %v1756 = vsel %vm1751, %v1745, 0
    %1758 = vmatprep.subr.mxu0 %v1743
    %1759 = vmatpush1.msra.mxu0 %v1742
    %1760 = vmatprep.subr.mxu0 %v1756
    %1761 = vmatpush1.msra.mxu0 %v1753
    %1762 = vmatprep.subr.mxu0 0.0
    %1763 = vmatpush1.msra.mxu0 0.0
    %1764 = vmatprep.subr.mxu0 0.0
    %1765 = vmatpush1.msra.mxu0 0.0
    %1766 = vmatprep.subr.mxu0 0.0
    %1767 = vmatpush1.msra.mxu0 0.0
    %1768 = vmatprep.subr.mxu0 0.0
    %1769 = vmatpush1.msra.mxu0 0.0
    %1770 = vmatprep.subr.mxu0 0.0
    %1771 = vmatpush1.msra.mxu0 0.0
    %1772 = vmatprep.subr.mxu0 0.0
    %1773 = vmatpush1.msra.mxu0 0.0
    %1774 = vmatprep.subr.mxu0 0.0
    %1775 = vmatpush1.msra.mxu0 0.0
    %1776 = vmatprep.subr.mxu0 0.0
    %1777 = vmatpush1.msra.mxu0 0.0
    %1778 = vmatprep.subr.mxu0 0.0
    %1779 = vmatpush1.msra.mxu0 0.0
    %1780 = vmatprep.subr.mxu0 0.0
    %1781 = vmatpush1.msra.mxu0 0.0
    %1782 = vmatprep.subr.mxu0 0.0
    %1783 = vmatpush1.msra.mxu0 0.0
    %1784 = vmatprep.subr.mxu0 0.0
    %1785 = vmatpush1.msra.mxu0 0.0
    %1786 = vmatprep.subr.mxu0 0.0
    %1787 = vmatpush1.msra.mxu0 0.0
    %1788 = vmatprep.subr.mxu0 0.0
    %1789 = vmatpush1.msra.mxu0 0.0
    %1790 = vmatprep.subr.mxu0 0.0
    %1791 = vmatpush1.msra.mxu0 0.0
    %1792 = vmatprep.subr.mxu0 0.0
    %1793 = vmatpush1.msra.mxu0 0.0
    %1794 = vmatprep.subr.mxu0 0.0
    %1795 = vmatpush1.msra.mxu0 0.0
    %1796 = vmatprep.subr.mxu0 0.0
    %1797 = vmatpush1.msra.mxu0 0.0
    %1798 = vmatprep.subr.mxu0 0.0
    %1799 = vmatpush1.msra.mxu0 0.0
    %1800 = vmatprep.subr.mxu0 0.0
    %1801 = vmatpush1.msra.mxu0 0.0
    %1802 = vmatprep.subr.mxu0 0.0
    %1803 = vmatpush1.msra.mxu0 0.0
    %1804 = vmatprep.subr.mxu0 0.0
    %1805 = vmatpush1.msra.mxu0 0.0
    %1806 = vmatprep.subr.mxu0 0.0
    %1807 = vmatpush1.msra.mxu0 0.0
    %1808 = vmatprep.subr.mxu0 0.0
    %1809 = vmatpush1.msra.mxu0 0.0
    %1810 = vmatprep.subr.mxu0 0.0
    %1811 = vmatpush1.msra.mxu0 0.0
    %1812 = vmatprep.subr.mxu0 0.0
    %1813 = vmatpush1.msra.mxu0 0.0
    %1814 = vmatprep.subr.mxu0 0.0
    %1815 = vmatpush1.msra.mxu0 0.0
    %1816 = vmatprep.subr.mxu0 0.0
    %1817 = vmatpush1.msra.mxu0 0.0
    %1818 = vmatprep.subr.mxu0 0.0
    %1819 = vmatpush1.msra.mxu0 0.0
    %1820 = vmatprep.subr.mxu0 0.0
    %1821 = vmatpush1.msra.mxu0 0.0
    %1822 = vmatprep.mubr.f32.mxu0 0.0
    %1823 = vmatmul.mubr.f32.gmra.mrb[0].mxu0 %v1749
    %v1824 = vpop.f32.mrb[0].mxu0
    %v1825 = vadd.f32 0.0, %v1824
    %v1826 = vpop.f32.mrb[0].mxu0
    %v1827 = vadd.f32 0.0, %v1826
    %1828 = vdwg.mxu0
    %s1829 = scalar_lea.vmem %s7, 8
    %v1830 = vld [vmem:[%s1829] sm:$0x1f]
    %v1832 = vsel %vm1747, %v1830, 0
    %1834 = vmatprep.subr.mxu0 %v1743
    %1835 = vmatpush1.msra.mxu0 %v1742
    %1836 = vmatprep.subr.mxu0 %v1756
    %1837 = vmatpush1.msra.mxu0 %v1753
    %1838 = vmatprep.subr.mxu0 0.0
    %1839 = vmatpush1.msra.mxu0 0.0
    %1840 = vmatprep.subr.mxu0 0.0
    %1841 = vmatpush1.msra.mxu0 0.0
    %1842 = vmatprep.subr.mxu0 0.0
    %1843 = vmatpush1.msra.mxu0 0.0
    %1844 = vmatprep.subr.mxu0 0.0
    %1845 = vmatpush1.msra.mxu0 0.0
    %1846 = vmatprep.subr.mxu0 0.0
    %1847 = vmatpush1.msra.mxu0 0.0
    %1848 = vmatprep.subr.mxu0 0.0
    %1849 = vmatpush1.msra.mxu0 0.0
    %1850 = vmatprep.subr.mxu0 0.0
    %1851 = vmatpush1.msra.mxu0 0.0
    %1852 = vmatprep.subr.mxu0 0.0
    %1853 = vmatpush1.msra.mxu0 0.0
    %1854 = vmatprep.subr.mxu0 0.0
    %1855 = vmatpush1.msra.mxu0 0.0
    %1856 = vmatprep.subr.mxu0 0.0
    %1857 = vmatpush1.msra.mxu0 0.0
    %1858 = vmatprep.subr.mxu0 0.0
    %1859 = vmatpush1.msra.mxu0 0.0
    %1860 = vmatprep.subr.mxu0 0.0
    %1861 = vmatpush1.msra.mxu0 0.0
    %1862 = vmatprep.subr.mxu0 0.0
    %1863 = vmatpush1.msra.mxu0 0.0
    %1864 = vmatprep.subr.mxu0 0.0
    %1865 = vmatpush1.msra.mxu0 0.0
    %1866 = vmatprep.subr.mxu0 0.0
    %1867 = vmatpush1.msra.mxu0 0.0
    %1868 = vmatprep.subr.mxu0 0.0
    %1869 = vmatpush1.msra.mxu0 0.0
    %1870 = vmatprep.subr.mxu0 0.0
    %1871 = vmatpush1.msra.mxu0 0.0
    %1872 = vmatprep.subr.mxu0 0.0
    %1873 = vmatpush1.msra.mxu0 0.0
    %1874 = vmatprep.subr.mxu0 0.0
    %1875 = vmatpush1.msra.mxu0 0.0
    %1876 = vmatprep.subr.mxu0 0.0
    %1877 = vmatpush1.msra.mxu0 0.0
    %1878 = vmatprep.subr.mxu0 0.0
    %1879 = vmatpush1.msra.mxu0 0.0
    %1880 = vmatprep.subr.mxu0 0.0
    %1881 = vmatpush1.msra.mxu0 0.0
    %1882 = vmatprep.subr.mxu0 0.0
    %1883 = vmatpush1.msra.mxu0 0.0
    %1884 = vmatprep.subr.mxu0 0.0
    %1885 = vmatpush1.msra.mxu0 0.0
    %1886 = vmatprep.subr.mxu0 0.0
    %1887 = vmatpush1.msra.mxu0 0.0
    %1888 = vmatprep.subr.mxu0 0.0
    %1889 = vmatpush1.msra.mxu0 0.0
    %1890 = vmatprep.subr.mxu0 0.0
    %1891 = vmatpush1.msra.mxu0 0.0
    %1892 = vmatprep.subr.mxu0 0.0
    %1893 = vmatpush1.msra.mxu0 0.0
    %1894 = vmatprep.subr.mxu0 0.0
    %1895 = vmatpush1.msra.mxu0 0.0
    %1896 = vmatprep.subr.mxu0 0.0
    %1897 = vmatpush1.msra.mxu0 0.0
    %1898 = vmatprep.mubr.f32.mxu0 0.0
    %1899 = vmatmul.mubr.f32.gmra.mrb[0].mxu0 %v1832
    %v1900 = vpop.f32.mrb[0].mxu0
    %v1901 = vadd.f32 0.0, %v1900
    %v1902 = vpop.f32.mrb[0].mxu0
    %v1903 = vadd.f32 0.0, %v1902
    %1904 = vdwg.mxu0
    %v1905 = vmax.f32 %v1825, %v1901
    %v1906 = vmax.f32 %v1827, %v1903
    %v1907 = vld [vmem:[%s8] sm:$0xff]
    %v1908 = vld [vmem:[%s8 + $0x8] sm:$0xff]
    %v1909 = vld [vmem:[%s8 + $0x10] sm:$0xff]
    %v1910 = vld [vmem:[%s8 + $0x18] sm:$0xff]
    %v1911 = vld [vmem:[%s8 + $0x20] sm:$0xff]
    %v1912 = vld [vmem:[%s8 + $0x28] sm:$0xff]
    %v1913 = vld [vmem:[%s8 + $0x30] sm:$0xff]
    %v1914 = vld [vmem:[%s8 + $0x38] sm:$0xff]
    %v1915 = vld [vmem:[%s8 + $0x40] sm:$0xff]
    %v1916 = vld [vmem:[%s8 + $0x48] sm:$0xff]
    %v1917 = vld [vmem:[%s8 + $0x50] sm:$0xff]
    %v1918 = vld [vmem:[%s8 + $0x58] sm:$0xff]
    %v1919 = vld [vmem:[%s8 + $0x60] sm:$0xff]
    %v1920 = vld [vmem:[%s8 + $0x68] sm:$0xff]
    %v1921 = vld [vmem:[%s8 + $0x70] sm:$0xff]
    %v1922 = vld [vmem:[%s8 + $0x78] sm:$0xff]
    %v1923 = vld [vmem:[%s8 + $0x80] sm:$0xff]
    %v1924 = vld [vmem:[%s8 + $0x88] sm:$0xff]
    %v1925 = vld [vmem:[%s8 + $0x90] sm:$0xff]
    %v1926 = vld [vmem:[%s8 + $0x98] sm:$0xff]
    %vm1927 = vcmask 261120
    %v1929 = vsel %vm1927, %v1906, 0
    %1931 = vmatprep.subr.mxu0 0.0
    %1932 = vmatpush1.msra.mxu0 %v1907
    %1933 = vmatprep.subr.mxu0 0.0
    %1934 = vmatpush1.msra.mxu0 %v1908
    %1935 = vmatprep.subr.mxu0 0.0
    %1936 = vmatpush1.msra.mxu0 %v1909
    %1937 = vmatprep.subr.mxu0 0.0
    %1938 = vmatpush1.msra.mxu0 %v1910
    %1939 = vmatprep.subr.mxu0 0.0
    %1940 = vmatpush1.msra.mxu0 %v1911
    %1941 = vmatprep.subr.mxu0 0.0
    %1942 = vmatpush1.msra.mxu0 %v1912
    %1943 = vmatprep.subr.mxu0 0.0
    %1944 = vmatpush1.msra.mxu0 %v1913
    %1945 = vmatprep.subr.mxu0 0.0
    %1946 = vmatpush1.msra.mxu0 %v1914
    %1947 = vmatprep.subr.mxu0 0.0
    %1948 = vmatpush1.msra.mxu0 %v1915
    %1949 = vmatprep.subr.mxu0 0.0
    %1950 = vmatpush1.msra.mxu0 %v1916
    %1951 = vmatprep.subr.mxu0 0.0
    %1952 = vmatpush1.msra.mxu0 %v1917
    %1953 = vmatprep.subr.mxu0 0.0
    %1954 = vmatpush1.msra.mxu0 %v1918
    %1955 = vmatprep.subr.mxu0 0.0
    %1956 = vmatpush1.msra.mxu0 %v1919
    %1957 = vmatprep.subr.mxu0 0.0
    %1958 = vmatpush1.msra.mxu0 %v1920
    %1959 = vmatprep.subr.mxu0 0.0
    %1960 = vmatpush1.msra.mxu0 %v1921
    %1961 = vmatprep.subr.mxu0 0.0
    %1962 = vmatpush1.msra.mxu0 %v1922
    %1963 = vmatprep.subr.mxu0 0.0
    %1964 = vmatpush1.msra.mxu0 %v1923
    %1965 = vmatprep.subr.mxu0 0.0
    %1966 = vmatpush1.msra.mxu0 %v1924
    %1967 = vmatprep.subr.mxu0 0.0
    %1968 = vmatpush1.msra.mxu0 %v1925
    %1969 = vmatprep.subr.mxu0 0.0
    %1970 = vmatpush1.msra.mxu0 %v1926
    %1971 = vmatprep.subr.mxu0 0.0
    %1972 = vmatpush1.msra.mxu0 0.0
    %1973 = vmatprep.subr.mxu0 0.0
    %1974 = vmatpush1.msra.mxu0 0.0
    %1975 = vmatprep.subr.mxu0 0.0
    %1976 = vmatpush1.msra.mxu0 0.0
    %1977 = vmatprep.subr.mxu0 0.0
    %1978 = vmatpush1.msra.mxu0 0.0
    %1979 = vmatprep.subr.mxu0 0.0
    %1980 = vmatpush1.msra.mxu0 0.0
    %1981 = vmatprep.subr.mxu0 0.0
    %1982 = vmatpush1.msra.mxu0 0.0
    %1983 = vmatprep.subr.mxu0 0.0
    %1984 = vmatpush1.msra.mxu0 0.0
    %1985 = vmatprep.subr.mxu0 0.0
    %1986 = vmatpush1.msra.mxu0 0.0
    %1987 = vmatprep.subr.mxu0 0.0
    %1988 = vmatpush1.msra.mxu0 0.0
    %1989 = vmatprep.subr.mxu0 0.0
    %1990 = vmatpush1.msra.mxu0 0.0
    %1991 = vmatprep.subr.mxu0 0.0
    %1992 = vmatpush1.msra.mxu0 0.0
    %1993 = vmatprep.subr.mxu0 0.0
    %1994 = vmatpush1.msra.mxu0 0.0
    %1995 = vmatprep.mubr.f32.mxu0 %v1929
    %1996 = vmatmul.mubr.f32.gmra.mrb[0].mxu0 %v1905
    %v1997 = vpop.f32.mrb[0].mxu0
    %v1998 = vadd.f32 0.0, %v1997
    %v1999 = vpop.f32.mrb[0].mxu0
    %2000 = vdwg.mxu0
    %s2001 = scalar_lea.vmem %s8, 160
    %v2002 = vld [vmem:[%s2001] sm:$0xff]
    %v2003 = vld [vmem:[%s2001 + $0x8] sm:$0xff]
    %v2004 = vld [vmem:[%s2001 + $0x10] sm:$0xff]
    %v2005 = vld [vmem:[%s2001 + $0x18] sm:$0xff]
    %v2006 = vld [vmem:[%s2001 + $0x20] sm:$0xff]
    %v2007 = vld [vmem:[%s2001 + $0x28] sm:$0xff]
    %v2008 = vld [vmem:[%s2001 + $0x30] sm:$0xff]
    %v2009 = vld [vmem:[%s2001 + $0x38] sm:$0xff]
    %v2010 = vld [vmem:[%s2001 + $0x40] sm:$0xff]
    %v2011 = vld [vmem:[%s2001 + $0x48] sm:$0xff]
    %v2012 = vld [vmem:[%s2001 + $0x50] sm:$0xff]
    %v2013 = vld [vmem:[%s2001 + $0x58] sm:$0xff]
    %v2014 = vld [vmem:[%s2001 + $0x60] sm:$0xff]
    %v2015 = vld [vmem:[%s2001 + $0x68] sm:$0xff]
    %v2016 = vld [vmem:[%s2001 + $0x70] sm:$0xff]
    %v2017 = vld [vmem:[%s2001 + $0x78] sm:$0xff]
    %v2018 = vld [vmem:[%s2001 + $0x80] sm:$0xff]
    %v2019 = vld [vmem:[%s2001 + $0x88] sm:$0xff]
    %v2020 = vld [vmem:[%s2001 + $0x90] sm:$0xff]
    %v2021 = vld [vmem:[%s2001 + $0x98] sm:$0xff]
    %2022 = vmatprep.subr.mxu0 0.0
    %2023 = vmatpush1.msra.mxu0 %v2002
    %2024 = vmatprep.subr.mxu0 0.0
    %2025 = vmatpush1.msra.mxu0 %v2003
    %2026 = vmatprep.subr.mxu0 0.0
    %2027 = vmatpush1.msra.mxu0 %v2004
    %2028 = vmatprep.subr.mxu0 0.0
    %2029 = vmatpush1.msra.mxu0 %v2005
    %2030 = vmatprep.subr.mxu0 0.0
    %2031 = vmatpush1.msra.mxu0 %v2006
    %2032 = vmatprep.subr.mxu0 0.0
    %2033 = vmatpush1.msra.mxu0 %v2007
    %2034 = vmatprep.subr.mxu0 0.0
    %2035 = vmatpush1.msra.mxu0 %v2008
    %2036 = vmatprep.subr.mxu0 0.0
    %2037 = vmatpush1.msra.mxu0 %v2009
    %2038 = vmatprep.subr.mxu0 0.0
    %2039 = vmatpush1.msra.mxu0 %v2010
    %2040 = vmatprep.subr.mxu0 0.0
    %2041 = vmatpush1.msra.mxu0 %v2011
    %2042 = vmatprep.subr.mxu0 0.0
    %2043 = vmatpush1.msra.mxu0 %v2012
    %2044 = vmatprep.subr.mxu0 0.0
    %2045 = vmatpush1.msra.mxu0 %v2013
    %2046 = vmatprep.subr.mxu0 0.0
    %2047 = vmatpush1.msra.mxu0 %v2014
    %2048 = vmatprep.subr.mxu0 0.0
    %2049 = vmatpush1.msra.mxu0 %v2015
    %2050 = vmatprep.subr.mxu0 0.0
    %2051 = vmatpush1.msra.mxu0 %v2016
    %2052 = vmatprep.subr.mxu0 0.0
    %2053 = vmatpush1.msra.mxu0 %v2017
    %2054 = vmatprep.subr.mxu0 0.0
    %2055 = vmatpush1.msra.mxu0 %v2018
    %2056 = vmatprep.subr.mxu0 0.0
    %2057 = vmatpush1.msra.mxu0 %v2019
    %2058 = vmatprep.subr.mxu0 0.0
    %2059 = vmatpush1.msra.mxu0 %v2020
    %2060 = vmatprep.subr.mxu0 0.0
    %2061 = vmatpush1.msra.mxu0 %v2021
    %2062 = vmatprep.subr.mxu0 0.0
    %2063 = vmatpush1.msra.mxu0 0.0
    %2064 = vmatprep.subr.mxu0 0.0
    %2065 = vmatpush1.msra.mxu0 0.0
    %2066 = vmatprep.subr.mxu0 0.0
    %2067 = vmatpush1.msra.mxu0 0.0
    %2068 = vmatprep.subr.mxu0 0.0
    %2069 = vmatpush1.msra.mxu0 0.0
    %2070 = vmatprep.subr.mxu0 0.0
    %2071 = vmatpush1.msra.mxu0 0.0
    %2072 = vmatprep.subr.mxu0 0.0
    %2073 = vmatpush1.msra.mxu0 0.0
    %2074 = vmatprep.subr.mxu0 0.0
    %2075 = vmatpush1.msra.mxu0 0.0
    %2076 = vmatprep.subr.mxu0 0.0
    %2077 = vmatpush1.msra.mxu0 0.0
    %2078 = vmatprep.subr.mxu0 0.0
    %2079 = vmatpush1.msra.mxu0 0.0
    %2080 = vmatprep.subr.mxu0 0.0
    %2081 = vmatpush1.msra.mxu0 0.0
    %2082 = vmatprep.subr.mxu0 0.0
    %2083 = vmatpush1.msra.mxu0 0.0
    %2084 = vmatprep.subr.mxu0 0.0
    %2085 = vmatpush1.msra.mxu0 0.0
    %2086 = vmatprep.mubr.f32.mxu0 %v1929
    %2087 = vmatmul.mubr.f32.gmra.mrb[0].mxu0 %v1905
    %v2088 = vpop.f32.mrb[0].mxu0
    %v2089 = vadd.f32 0.0, %v2088
    %v2090 = vpop.f32.mrb[0].mxu0
    %2091 = vdwg.mxu0
    %v2092 = vmax.f32 %v1998, %v2089
    %vm2093 = vcmask 651264
    %2094 = vst.msk [vmem:[#allocation3] sm:$0x1f] %vm2093, %v2092
    %v2095 = vld [vmem:[%s10] sm:$0x1]
    %v2096 = vld [vmem:[#allocation3] sm:$0x1]
    %v2097 = vld [vmem:[%s9] sm:$0xff]
    %v2098 = vld [vmem:[%s9 + $0x8] sm:$0xff]
    %v2099 = vld [vmem:[%s9 + $0x10] sm:$0xff]
    %v2100 = vld [vmem:[%s9 + $0x18] sm:$0xff]
    %v2101 = vld [vmem:[%s9 + $0x20] sm:$0xff]
    %v2102 = vld [vmem:[%s9 + $0x28] sm:$0xff]
    %v2103 = vld [vmem:[%s9 + $0x30] sm:$0xff]
    %v2104 = vld [vmem:[%s9 + $0x38] sm:$0xff]
    %v2105 = vld [vmem:[%s9 + $0x40] sm:$0xff]
    %v2106 = vld [vmem:[%s9 + $0x48] sm:$0xff]
    %vm2107 = vcmask 654336
    %v2109 = vsel %vm2107, %v2096, 0
    %2111 = vmatprep.subr.mxu0 0.0
    %2112 = vmatpush1.msra.mxu0 %v2097
    %2113 = vmatprep.subr.mxu0 0.0
    %2114 = vmatpush1.msra.mxu0 %v2098
    %2115 = vmatprep.subr.mxu0 0.0
    %2116 = vmatpush1.msra.mxu0 %v2099
    %2117 = vmatprep.subr.mxu0 0.0
    %2118 = vmatpush1.msra.mxu0 %v2100
    %2119 = vmatprep.subr.mxu0 0.0
    %2120 = vmatpush1.msra.mxu0 %v2101
    %2121 = vmatprep.subr.mxu0 0.0
    %2122 = vmatpush1.msra.mxu0 %v2102
    %2123 = vmatprep.subr.mxu0 0.0
    %2124 = vmatpush1.msra.mxu0 %v2103
    %2125 = vmatprep.subr.mxu0 0.0
    %2126 = vmatpush1.msra.mxu0 %v2104
    %2127 = vmatprep.subr.mxu0 0.0
    %2128 = vmatpush1.msra.mxu0 %v2105
    %2129 = vmatprep.subr.mxu0 0.0
    %2130 = vmatpush1.msra.mxu0 %v2106
    %2131 = vmatprep.subr.mxu0 0.0
    %2132 = vmatpush1.msra.mxu0 0.0
    %2133 = vmatprep.subr.mxu0 0.0
    %2134 = vmatpush1.msra.mxu0 0.0
    %2135 = vmatprep.subr.mxu0 0.0
    %2136 = vmatpush1.msra.mxu0 0.0
    %2137 = vmatprep.subr.mxu0 0.0
    %2138 = vmatpush1.msra.mxu0 0.0
    %2139 = vmatprep.subr.mxu0 0.0
    %2140 = vmatpush1.msra.mxu0 0.0
    %2141 = vmatprep.subr.mxu0 0.0
    %2142 = vmatpush1.msra.mxu0 0.0
    %2143 = vmatprep.subr.mxu0 0.0
    %2144 = vmatpush1.msra.mxu0 0.0
    %2145 = vmatprep.subr.mxu0 0.0
    %2146 = vmatpush1.msra.mxu0 0.0
    %2147 = vmatprep.subr.mxu0 0.0
    %2148 = vmatpush1.msra.mxu0 0.0
    %2149 = vmatprep.subr.mxu0 0.0
    %2150 = vmatpush1.msra.mxu0 0.0
    %2151 = vmatprep.subr.mxu0 0.0
    %2152 = vmatpush1.msra.mxu0 0.0
    %2153 = vmatprep.subr.mxu0 0.0
    %2154 = vmatpush1.msra.mxu0 0.0
    %2155 = vmatprep.subr.mxu0 0.0
    %2156 = vmatpush1.msra.mxu0 0.0
    %2157 = vmatprep.subr.mxu0 0.0
    %2158 = vmatpush1.msra.mxu0 0.0
    %2159 = vmatprep.subr.mxu0 0.0
    %2160 = vmatpush1.msra.mxu0 0.0
    %2161 = vmatprep.subr.mxu0 0.0
    %2162 = vmatpush1.msra.mxu0 0.0
    %2163 = vmatprep.subr.mxu0 0.0
    %2164 = vmatpush1.msra.mxu0 0.0
    %2165 = vmatprep.subr.mxu0 0.0
    %2166 = vmatpush1.msra.mxu0 0.0
    %2167 = vmatprep.subr.mxu0 0.0
    %2168 = vmatpush1.msra.mxu0 0.0
    %2169 = vmatprep.subr.mxu0 0.0
    %2170 = vmatpush1.msra.mxu0 0.0
    %2171 = vmatprep.subr.mxu0 0.0
    %2172 = vmatpush1.msra.mxu0 0.0
    %2173 = vmatprep.subr.mxu0 0.0
    %2174 = vmatpush1.msra.mxu0 0.0
    %2175 = vmatprep.mubr.f32.mxu0 0.0
    %2176 = vmatmul.mubr.f32.gmra.mrb[0].mxu0 %v2109
    %v2177 = vpop.f32.mrb[0].mxu0
    %v2178 = vadd.f32 0.0, %v2177
    %v2179 = vpop.f32.mrb[0].mxu0
    %2180 = vdwg.mxu0
    %v2181 = vadd.f32 %v2095, %v2178
    %v2182 = vld [vmem:[#allocation3 + $0x1] sm:$0x1]
    %s2183 = scalar_lea.vmem %s9, 80
    %v2184 = vld [vmem:[%s2183] sm:$0xff]
    %v2185 = vld [vmem:[%s2183 + $0x8] sm:$0xff]
    %v2186 = vld [vmem:[%s2183 + $0x10] sm:$0xff]
    %v2187 = vld [vmem:[%s2183 + $0x18] sm:$0xff]
    %v2188 = vld [vmem:[%s2183 + $0x20] sm:$0xff]
    %v2189 = vld [vmem:[%s2183 + $0x28] sm:$0xff]
    %v2190 = vld [vmem:[%s2183 + $0x30] sm:$0xff]
    %v2191 = vld [vmem:[%s2183 + $0x38] sm:$0xff]
    %v2192 = vld [vmem:[%s2183 + $0x40] sm:$0xff]
    %v2193 = vld [vmem:[%s2183 + $0x48] sm:$0xff]
    %v2195 = vsel %vm2107, %v2182, 0
    %2197 = vmatprep.subr.mxu0 0.0
    %2198 = vmatpush1.msra.mxu0 %v2184
    %2199 = vmatprep.subr.mxu0 0.0
    %2200 = vmatpush1.msra.mxu0 %v2185
    %2201 = vmatprep.subr.mxu0 0.0
    %2202 = vmatpush1.msra.mxu0 %v2186
    %2203 = vmatprep.subr.mxu0 0.0
    %2204 = vmatpush1.msra.mxu0 %v2187
    %2205 = vmatprep.subr.mxu0 0.0
    %2206 = vmatpush1.msra.mxu0 %v2188
    %2207 = vmatprep.subr.mxu0 0.0
    %2208 = vmatpush1.msra.mxu0 %v2189
    %2209 = vmatprep.subr.mxu0 0.0
    %2210 = vmatpush1.msra.mxu0 %v2190
    %2211 = vmatprep.subr.mxu0 0.0
    %2212 = vmatpush1.msra.mxu0 %v2191
    %2213 = vmatprep.subr.mxu0 0.0
    %2214 = vmatpush1.msra.mxu0 %v2192
    %2215 = vmatprep.subr.mxu0 0.0
    %2216 = vmatpush1.msra.mxu0 %v2193
    %2217 = vmatprep.subr.mxu0 0.0
    %2218 = vmatpush1.msra.mxu0 0.0
    %2219 = vmatprep.subr.mxu0 0.0
    %2220 = vmatpush1.msra.mxu0 0.0
    %2221 = vmatprep.subr.mxu0 0.0
    %2222 = vmatpush1.msra.mxu0 0.0
    %2223 = vmatprep.subr.mxu0 0.0
    %2224 = vmatpush1.msra.mxu0 0.0
    %2225 = vmatprep.subr.mxu0 0.0
    %2226 = vmatpush1.msra.mxu0 0.0
    %2227 = vmatprep.subr.mxu0 0.0
    %2228 = vmatpush1.msra.mxu0 0.0
    %2229 = vmatprep.subr.mxu0 0.0
    %2230 = vmatpush1.msra.mxu0 0.0
    %2231 = vmatprep.subr.mxu0 0.0
    %2232 = vmatpush1.msra.mxu0 0.0
    %2233 = vmatprep.subr.mxu0 0.0
    %2234 = vmatpush1.msra.mxu0 0.0
    %2235 = vmatprep.subr.mxu0 0.0
    %2236 = vmatpush1.msra.mxu0 0.0
    %2237 = vmatprep.subr.mxu0 0.0
    %2238 = vmatpush1.msra.mxu0 0.0
    %2239 = vmatprep.subr.mxu0 0.0
    %2240 = vmatpush1.msra.mxu0 0.0
    %2241 = vmatprep.subr.mxu0 0.0
    %2242 = vmatpush1.msra.mxu0 0.0
    %2243 = vmatprep.subr.mxu0 0.0
    %2244 = vmatpush1.msra.mxu0 0.0
    %2245 = vmatprep.subr.mxu0 0.0
    %2246 = vmatpush1.msra.mxu0 0.0
    %2247 = vmatprep.subr.mxu0 0.0
    %2248 = vmatpush1.msra.mxu0 0.0
    %2249 = vmatprep.subr.mxu0 0.0
    %2250 = vmatpush1.msra.mxu0 0.0
    %2251 = vmatprep.subr.mxu0 0.0
    %2252 = vmatpush1.msra.mxu0 0.0
    %2253 = vmatprep.subr.mxu0 0.0
    %2254 = vmatpush1.msra.mxu0 0.0
    %2255 = vmatprep.subr.mxu0 0.0
    %2256 = vmatpush1.msra.mxu0 0.0
    %2257 = vmatprep.subr.mxu0 0.0
    %2258 = vmatpush1.msra.mxu0 0.0
    %2259 = vmatprep.subr.mxu0 0.0
    %2260 = vmatpush1.msra.mxu0 0.0
    %2261 = vmatprep.mubr.f32.mxu0 0.0
    %2262 = vmatmul.mubr.f32.gmra.mrb[0].mxu0 %v2195
    %v2263 = vpop.f32.mrb[0].mxu0
    %v2264 = vadd.f32 0.0, %v2263
    %v2265 = vpop.f32.mrb[0].mxu0
    %2266 = vdwg.mxu0
    %v2267 = vadd.f32 %v2181, %v2264
    %v2268 = vld [vmem:[#allocation3 + $0x2] sm:$0x1]
    %s2269 = scalar_lea.vmem %s9, 160
    %v2270 = vld [vmem:[%s2269] sm:$0xff]
    %v2271 = vld [vmem:[%s2269 + $0x8] sm:$0xff]
    %v2272 = vld [vmem:[%s2269 + $0x10] sm:$0xff]
    %v2273 = vld [vmem:[%s2269 + $0x18] sm:$0xff]
    %v2274 = vld [vmem:[%s2269 + $0x20] sm:$0xff]
    %v2275 = vld [vmem:[%s2269 + $0x28] sm:$0xff]
    %v2276 = vld [vmem:[%s2269 + $0x30] sm:$0xff]
    %v2277 = vld [vmem:[%s2269 + $0x38] sm:$0xff]
    %v2278 = vld [vmem:[%s2269 + $0x40] sm:$0xff]
    %v2279 = vld [vmem:[%s2269 + $0x48] sm:$0xff]
    %v2281 = vsel %vm2107, %v2268, 0
    %2283 = vmatprep.subr.mxu0 0.0
    %2284 = vmatpush1.msra.mxu0 %v2270
    %2285 = vmatprep.subr.mxu0 0.0
    %2286 = vmatpush1.msra.mxu0 %v2271
    %2287 = vmatprep.subr.mxu0 0.0
    %2288 = vmatpush1.msra.mxu0 %v2272
    %2289 = vmatprep.subr.mxu0 0.0
    %2290 = vmatpush1.msra.mxu0 %v2273
    %2291 = vmatprep.subr.mxu0 0.0
    %2292 = vmatpush1.msra.mxu0 %v2274
    %2293 = vmatprep.subr.mxu0 0.0
    %2294 = vmatpush1.msra.mxu0 %v2275
    %2295 = vmatprep.subr.mxu0 0.0
    %2296 = vmatpush1.msra.mxu0 %v2276
    %2297 = vmatprep.subr.mxu0 0.0
    %2298 = vmatpush1.msra.mxu0 %v2277
    %2299 = vmatprep.subr.mxu0 0.0
    %2300 = vmatpush1.msra.mxu0 %v2278
    %2301 = vmatprep.subr.mxu0 0.0
    %2302 = vmatpush1.msra.mxu0 %v2279
    %2303 = vmatprep.subr.mxu0 0.0
    %2304 = vmatpush1.msra.mxu0 0.0
    %2305 = vmatprep.subr.mxu0 0.0
    %2306 = vmatpush1.msra.mxu0 0.0
    %2307 = vmatprep.subr.mxu0 0.0
    %2308 = vmatpush1.msra.mxu0 0.0
    %2309 = vmatprep.subr.mxu0 0.0
    %2310 = vmatpush1.msra.mxu0 0.0
    %2311 = vmatprep.subr.mxu0 0.0
    %2312 = vmatpush1.msra.mxu0 0.0
    %2313 = vmatprep.subr.mxu0 0.0
    %2314 = vmatpush1.msra.mxu0 0.0
    %2315 = vmatprep.subr.mxu0 0.0
    %2316 = vmatpush1.msra.mxu0 0.0
    %2317 = vmatprep.subr.mxu0 0.0
    %2318 = vmatpush1.msra.mxu0 0.0
    %2319 = vmatprep.subr.mxu0 0.0
    %2320 = vmatpush1.msra.mxu0 0.0
    %2321 = vmatprep.subr.mxu0 0.0
    %2322 = vmatpush1.msra.mxu0 0.0
    %2323 = vmatprep.subr.mxu0 0.0
    %2324 = vmatpush1.msra.mxu0 0.0
    %2325 = vmatprep.subr.mxu0 0.0
    %2326 = vmatpush1.msra.mxu0 0.0
    %2327 = vmatprep.subr.mxu0 0.0
    %2328 = vmatpush1.msra.mxu0 0.0
    %2329 = vmatprep.subr.mxu0 0.0
    %2330 = vmatpush1.msra.mxu0 0.0
    %2331 = vmatprep.subr.mxu0 0.0
    %2332 = vmatpush1.msra.mxu0 0.0
    %2333 = vmatprep.subr.mxu0 0.0
    %2334 = vmatpush1.msra.mxu0 0.0
    %2335 = vmatprep.subr.mxu0 0.0
    %2336 = vmatpush1.msra.mxu0 0.0
    %2337 = vmatprep.subr.mxu0 0.0
    %2338 = vmatpush1.msra.mxu0 0.0
    %2339 = vmatprep.subr.mxu0 0.0
    %2340 = vmatpush1.msra.mxu0 0.0
    %2341 = vmatprep.subr.mxu0 0.0
    %2342 = vmatpush1.msra.mxu0 0.0
    %2343 = vmatprep.subr.mxu0 0.0
    %2344 = vmatpush1.msra.mxu0 0.0
    %2345 = vmatprep.subr.mxu0 0.0
    %2346 = vmatpush1.msra.mxu0 0.0
    %2347 = vmatprep.mubr.f32.mxu0 0.0
    %2348 = vmatmul.mubr.f32.gmra.mrb[0].mxu0 %v2281
    %v2349 = vpop.f32.mrb[0].mxu0
    %v2350 = vadd.f32 0.0, %v2349
    %v2351 = vpop.f32.mrb[0].mxu0
    %2352 = vdwg.mxu0
    %v2353 = vadd.f32 %v2267, %v2350
    %v2354 = vld [vmem:[#allocation3 + $0x3] sm:$0x1]
    %s2355 = scalar_lea.vmem %s9, 240
    %v2356 = vld [vmem:[%s2355] sm:$0xff]
    %v2357 = vld [vmem:[%s2355 + $0x8] sm:$0xff]
    %v2358 = vld [vmem:[%s2355 + $0x10] sm:$0xff]
    %v2359 = vld [vmem:[%s2355 + $0x18] sm:$0xff]
    %v2360 = vld [vmem:[%s2355 + $0x20] sm:$0xff]
    %v2361 = vld [vmem:[%s2355 + $0x28] sm:$0xff]
    %v2362 = vld [vmem:[%s2355 + $0x30] sm:$0xff]
    %v2363 = vld [vmem:[%s2355 + $0x38] sm:$0xff]
    %v2364 = vld [vmem:[%s2355 + $0x40] sm:$0xff]
    %v2365 = vld [vmem:[%s2355 + $0x48] sm:$0xff]
    %v2367 = vsel %vm2107, %v2354, 0
    %2369 = vmatprep.subr.mxu0 0.0
    %2370 = vmatpush1.msra.mxu0 %v2356
    %2371 = vmatprep.subr.mxu0 0.0
    %2372 = vmatpush1.msra.mxu0 %v2357
    %2373 = vmatprep.subr.mxu0 0.0
    %2374 = vmatpush1.msra.mxu0 %v2358
    %2375 = vmatprep.subr.mxu0 0.0
    %2376 = vmatpush1.msra.mxu0 %v2359
    %2377 = vmatprep.subr.mxu0 0.0
    %2378 = vmatpush1.msra.mxu0 %v2360
    %2379 = vmatprep.subr.mxu0 0.0
    %2380 = vmatpush1.msra.mxu0 %v2361
    %2381 = vmatprep.subr.mxu0 0.0
    %2382 = vmatpush1.msra.mxu0 %v2362
    %2383 = vmatprep.subr.mxu0 0.0
    %2384 = vmatpush1.msra.mxu0 %v2363
    %2385 = vmatprep.subr.mxu0 0.0
    %2386 = vmatpush1.msra.mxu0 %v2364
    %2387 = vmatprep.subr.mxu0 0.0
    %2388 = vmatpush1.msra.mxu0 %v2365
    %2389 = vmatprep.subr.mxu0 0.0
    %2390 = vmatpush1.msra.mxu0 0.0
    %2391 = vmatprep.subr.mxu0 0.0
    %2392 = vmatpush1.msra.mxu0 0.0
    %2393 = vmatprep.subr.mxu0 0.0
    %2394 = vmatpush1.msra.mxu0 0.0
    %2395 = vmatprep.subr.mxu0 0.0
    %2396 = vmatpush1.msra.mxu0 0.0
    %2397 = vmatprep.subr.mxu0 0.0
    %2398 = vmatpush1.msra.mxu0 0.0
    %2399 = vmatprep.subr.mxu0 0.0
    %2400 = vmatpush1.msra.mxu0 0.0
    %2401 = vmatprep.subr.mxu0 0.0
    %2402 = vmatpush1.msra.mxu0 0.0
    %2403 = vmatprep.subr.mxu0 0.0
    %2404 = vmatpush1.msra.mxu0 0.0
    %2405 = vmatprep.subr.mxu0 0.0
    %2406 = vmatpush1.msra.mxu0 0.0
    %2407 = vmatprep.subr.mxu0 0.0
    %2408 = vmatpush1.msra.mxu0 0.0
    %2409 = vmatprep.subr.mxu0 0.0
    %2410 = vmatpush1.msra.mxu0 0.0
    %2411 = vmatprep.subr.mxu0 0.0
    %2412 = vmatpush1.msra.mxu0 0.0
    %2413 = vmatprep.subr.mxu0 0.0
    %2414 = vmatpush1.msra.mxu0 0.0
    %2415 = vmatprep.subr.mxu0 0.0
    %2416 = vmatpush1.msra.mxu0 0.0
    %2417 = vmatprep.subr.mxu0 0.0
    %2418 = vmatpush1.msra.mxu0 0.0
    %2419 = vmatprep.subr.mxu0 0.0
    %2420 = vmatpush1.msra.mxu0 0.0
    %2421 = vmatprep.subr.mxu0 0.0
    %2422 = vmatpush1.msra.mxu0 0.0
    %2423 = vmatprep.subr.mxu0 0.0
    %2424 = vmatpush1.msra.mxu0 0.0
    %2425 = vmatprep.subr.mxu0 0.0
    %2426 = vmatpush1.msra.mxu0 0.0
    %2427 = vmatprep.subr.mxu0 0.0
    %2428 = vmatpush1.msra.mxu0 0.0
    %2429 = vmatprep.subr.mxu0 0.0
    %2430 = vmatpush1.msra.mxu0 0.0
    %2431 = vmatprep.subr.mxu0 0.0
    %2432 = vmatpush1.msra.mxu0 0.0
    %2433 = vmatprep.mubr.f32.mxu0 0.0
    %2434 = vmatmul.mubr.f32.gmra.mrb[0].mxu0 %v2367
    %v2435 = vpop.f32.mrb[0].mxu0
    %v2436 = vadd.f32 0.0, %v2435
    %v2437 = vpop.f32.mrb[0].mxu0
    %2438 = vdwg.mxu0
    %v2439 = vadd.f32 %v2353, %v2436
    %v2440 = vld [vmem:[#allocation3 + $0x4] sm:$0x1]
    %s2441 = scalar_lea.vmem %s9, 320
    %v2442 = vld [vmem:[%s2441] sm:$0xff]
    %v2443 = vld [vmem:[%s2441 + $0x8] sm:$0xff]
    %v2444 = vld [vmem:[%s2441 + $0x10] sm:$0xff]
    %v2445 = vld [vmem:[%s2441 + $0x18] sm:$0xff]
    %v2446 = vld [vmem:[%s2441 + $0x20] sm:$0xff]
    %v2447 = vld [vmem:[%s2441 + $0x28] sm:$0xff]
    %v2448 = vld [vmem:[%s2441 + $0x30] sm:$0xff]
    %v2449 = vld [vmem:[%s2441 + $0x38] sm:$0xff]
    %v2450 = vld [vmem:[%s2441 + $0x40] sm:$0xff]
    %v2451 = vld [vmem:[%s2441 + $0x48] sm:$0xff]
    %v2453 = vsel %vm2107, %v2440, 0
    %2455 = vmatprep.subr.mxu0 0.0
    %2456 = vmatpush1.msra.mxu0 %v2442
    %2457 = vmatprep.subr.mxu0 0.0
    %2458 = vmatpush1.msra.mxu0 %v2443
    %2459 = vmatprep.subr.mxu0 0.0
    %2460 = vmatpush1.msra.mxu0 %v2444
    %2461 = vmatprep.subr.mxu0 0.0
    %2462 = vmatpush1.msra.mxu0 %v2445
    %2463 = vmatprep.subr.mxu0 0.0
    %2464 = vmatpush1.msra.mxu0 %v2446
    %2465 = vmatprep.subr.mxu0 0.0
    %2466 = vmatpush1.msra.mxu0 %v2447
    %2467 = vmatprep.subr.mxu0 0.0
    %2468 = vmatpush1.msra.mxu0 %v2448
    %2469 = vmatprep.subr.mxu0 0.0
    %2470 = vmatpush1.msra.mxu0 %v2449
    %2471 = vmatprep.subr.mxu0 0.0
    %2472 = vmatpush1.msra.mxu0 %v2450
    %2473 = vmatprep.subr.mxu0 0.0
    %2474 = vmatpush1.msra.mxu0 %v2451
    %2475 = vmatprep.subr.mxu0 0.0
    %2476 = vmatpush1.msra.mxu0 0.0
    %2477 = vmatprep.subr.mxu0 0.0
    %2478 = vmatpush1.msra.mxu0 0.0
    %2479 = vmatprep.subr.mxu0 0.0
    %2480 = vmatpush1.msra.mxu0 0.0
    %2481 = vmatprep.subr.mxu0 0.0
    %2482 = vmatpush1.msra.mxu0 0.0
    %2483 = vmatprep.subr.mxu0 0.0
    %2484 = vmatpush1.msra.mxu0 0.0
    %2485 = vmatprep.subr.mxu0 0.0
    %2486 = vmatpush1.msra.mxu0 0.0
    %2487 = vmatprep.subr.mxu0 0.0
    %2488 = vmatpush1.msra.mxu0 0.0
    %2489 = vmatprep.subr.mxu0 0.0
    %2490 = vmatpush1.msra.mxu0 0.0
    %2491 = vmatprep.subr.mxu0 0.0
    %2492 = vmatpush1.msra.mxu0 0.0
    %2493 = vmatprep.subr.mxu0 0.0
    %2494 = vmatpush1.msra.mxu0 0.0
    %2495 = vmatprep.subr.mxu0 0.0
    %2496 = vmatpush1.msra.mxu0 0.0
    %2497 = vmatprep.subr.mxu0 0.0
    %2498 = vmatpush1.msra.mxu0 0.0
    %2499 = vmatprep.subr.mxu0 0.0
    %2500 = vmatpush1.msra.mxu0 0.0
    %2501 = vmatprep.subr.mxu0 0.0
    %2502 = vmatpush1.msra.mxu0 0.0
    %2503 = vmatprep.subr.mxu0 0.0
    %2504 = vmatpush1.msra.mxu0 0.0
    %2505 = vmatprep.subr.mxu0 0.0
    %2506 = vmatpush1.msra.mxu0 0.0
    %2507 = vmatprep.subr.mxu0 0.0
    %2508 = vmatpush1.msra.mxu0 0.0
    %2509 = vmatprep.subr.mxu0 0.0
    %2510 = vmatpush1.msra.mxu0 0.0
    %2511 = vmatprep.subr.mxu0 0.0
    %2512 = vmatpush1.msra.mxu0 0.0
    %2513 = vmatprep.subr.mxu0 0.0
    %2514 = vmatpush1.msra.mxu0 0.0
    %2515 = vmatprep.subr.mxu0 0.0
    %2516 = vmatpush1.msra.mxu0 0.0
    %2517 = vmatprep.subr.mxu0 0.0
    %2518 = vmatpush1.msra.mxu0 0.0
    %2519 = vmatprep.mubr.f32.mxu0 0.0
    %2520 = vmatmul.mubr.f32.gmra.mrb[0].mxu0 %v2453
    %v2521 = vpop.f32.mrb[0].mxu0
    %v2522 = vadd.f32 0.0, %v2521
    %v2523 = vpop.f32.mrb[0].mxu0
    %2524 = vdwg.mxu0
    %v2525 = vadd.f32 %v2439, %v2522
    %v2526 = vmax.f32 %v2525, 0.0
    %v2527 = vld [vmem:[%s11] sm:$0xff]
    %v2528 = vld [vmem:[%s11 + $0x8] sm:$0xff]
    %v2529 = vld [vmem:[%s11 + $0x10] sm:$0xff]
    %v2530 = vld [vmem:[%s11 + $0x18] sm:$0xff]
    %v2531 = vld [vmem:[%s11 + $0x20] sm:$0xff]
    %v2532 = vld [vmem:[%s11 + $0x28] sm:$0xff]
    %v2533 = vld [vmem:[%s11 + $0x30] sm:$0xff]
    %v2534 = vld [vmem:[%s11 + $0x38] sm:$0xff]
    %v2535 = vld [vmem:[%s11 + $0x40] sm:$0xff]
    %v2536 = vld [vmem:[%s11 + $0x48] sm:$0xff]
    %v2537 = vld [vmem:[%s11 + $0x50] sm:$0xff]
    %v2538 = vld [vmem:[%s11 + $0x58] sm:$0xff]
    %v2539 = vld [vmem:[%s11 + $0x60] sm:$0xff]
    %v2540 = vld [vmem:[%s11 + $0x68] sm:$0xff]
    %v2541 = vld [vmem:[%s11 + $0x70] sm:$0xff]
    %v2542 = vld [vmem:[%s11 + $0x78] sm:$0xff]
    %v2543 = vld [vmem:[%s12] sm:$0x1]
    %2544 = vmatprep.subr.mxu0 0.0
    %2545 = vmatpush1.msra.mxu0 %v2527
    %2546 = vmatprep.subr.mxu0 0.0
    %2547 = vmatpush1.msra.mxu0 %v2528
    %2548 = vmatprep.subr.mxu0 0.0
    %2549 = vmatpush1.msra.mxu0 %v2529
    %2550 = vmatprep.subr.mxu0 0.0
    %2551 = vmatpush1.msra.mxu0 %v2530
    %2552 = vmatprep.subr.mxu0 0.0
    %2553 = vmatpush1.msra.mxu0 %v2531
    %2554 = vmatprep.subr.mxu0 0.0
    %2555 = vmatpush1.msra.mxu0 %v2532
    %2556 = vmatprep.subr.mxu0 0.0
    %2557 = vmatpush1.msra.mxu0 %v2533
    %2558 = vmatprep.subr.mxu0 0.0
    %2559 = vmatpush1.msra.mxu0 %v2534
    %2560 = vmatprep.subr.mxu0 0.0
    %2561 = vmatpush1.msra.mxu0 %v2535
    %2562 = vmatprep.subr.mxu0 0.0
    %2563 = vmatpush1.msra.mxu0 %v2536
    %2564 = vmatprep.subr.mxu0 0.0
    %2565 = vmatpush1.msra.mxu0 %v2537
    %2566 = vmatprep.subr.mxu0 0.0
    %2567 = vmatpush1.msra.mxu0 %v2538
    %2568 = vmatprep.subr.mxu0 0.0
    %2569 = vmatpush1.msra.mxu0 %v2539
    %2570 = vmatprep.subr.mxu0 0.0
    %2571 = vmatpush1.msra.mxu0 %v2540
    %2572 = vmatprep.subr.mxu0 0.0
    %2573 = vmatpush1.msra.mxu0 %v2541
    %2574 = vmatprep.subr.mxu0 0.0
    %2575 = vmatpush1.msra.mxu0 %v2542
    %2576 = vmatprep.subr.mxu0 0.0
    %2577 = vmatpush1.msra.mxu0 0.0
    %2578 = vmatprep.subr.mxu0 0.0
    %2579 = vmatpush1.msra.mxu0 0.0
    %2580 = vmatprep.subr.mxu0 0.0
    %2581 = vmatpush1.msra.mxu0 0.0
    %2582 = vmatprep.subr.mxu0 0.0
    %2583 = vmatpush1.msra.mxu0 0.0
    %2584 = vmatprep.subr.mxu0 0.0
    %2585 = vmatpush1.msra.mxu0 0.0
    %2586 = vmatprep.subr.mxu0 0.0
    %2587 = vmatpush1.msra.mxu0 0.0
    %2588 = vmatprep.subr.mxu0 0.0
    %2589 = vmatpush1.msra.mxu0 0.0
    %2590 = vmatprep.subr.mxu0 0.0
    %2591 = vmatpush1.msra.mxu0 0.0
    %2592 = vmatprep.subr.mxu0 0.0
    %2593 = vmatpush1.msra.mxu0 0.0
    %2594 = vmatprep.subr.mxu0 0.0
    %2595 = vmatpush1.msra.mxu0 0.0
    %2596 = vmatprep.subr.mxu0 0.0
    %2597 = vmatpush1.msra.mxu0 0.0
    %2598 = vmatprep.subr.mxu0 0.0
    %2599 = vmatpush1.msra.mxu0 0.0
    %2600 = vmatprep.subr.mxu0 0.0
    %2601 = vmatpush1.msra.mxu0 0.0
    %2602 = vmatprep.subr.mxu0 0.0
    %2603 = vmatpush1.msra.mxu0 0.0
    %2604 = vmatprep.subr.mxu0 0.0
    %2605 = vmatpush1.msra.mxu0 0.0
    %2606 = vmatprep.subr.mxu0 0.0
    %2607 = vmatpush1.msra.mxu0 0.0
    %2608 = vmatprep.mubr.f32.mxu0 0.0
    %2609 = vmatmul.mubr.f32.gmra.mrb[0].mxu0 %v2526
    %v2610 = vpop.f32.mrb[0].mxu0
    %v2611 = vadd.f32 %v2543, %v2610
    %v2612 = vpop.f32.mrb[0].mxu0
    %2613 = vdwg.mxu0
    %v2614 = vmax.f32 %v2611, 0.0
    %v2615 = vld [vmem:[%s13] sm:$0xff]
    %v2616 = vld [vmem:[%s13 + $0x8] sm:$0xff]
    %v2617 = vld [vmem:[%s13 + $0x10] sm:$0xff]
    %v2618 = vld [vmem:[%s13 + $0x18] sm:$0xff]
    %v2619 = vld [vmem:[%s13 + $0x20] sm:$0xff]
    %v2620 = vld [vmem:[%s13 + $0x28] sm:$0xff]
    %v2621 = vld [vmem:[%s13 + $0x30] sm:$0xff]
    %v2622 = vld [vmem:[%s13 + $0x38] sm:$0xff]
    %v2623 = vld [vmem:[%s13 + $0x40] sm:$0xff]
    %v2624 = vld [vmem:[%s13 + $0x48] sm:$0xff]
    %v2625 = vld [vmem:[%s13 + $0x50] sm:$0xff]
    %v2626 = vld [vmem:[%s13 + $0x58] sm:$0xff]
    %v2627 = vld [vmem:[%s13 + $0x60] sm:$0xff]
    %v2628 = vld [vmem:[%s13 + $0x68] sm:$0xff]
    %v2629 = vld [vmem:[%s13 + $0x70] sm:$0xff]
    %v2630 = vld [vmem:[%s13 + $0x78] sm:$0xff]
    %v2631 = vld [vmem:[%s14] sm:$0x1]
    %2632 = vmatprep.subr.mxu0 0.0
    %2633 = vmatpush1.msra.mxu0 %v2615
    %2634 = vmatprep.subr.mxu0 0.0
    %2635 = vmatpush1.msra.mxu0 %v2616
    %2636 = vmatprep.subr.mxu0 0.0
    %2637 = vmatpush1.msra.mxu0 %v2617
    %2638 = vmatprep.subr.mxu0 0.0
    %2639 = vmatpush1.msra.mxu0 %v2618
    %2640 = vmatprep.subr.mxu0 0.0
    %2641 = vmatpush1.msra.mxu0 %v2619
    %2642 = vmatprep.subr.mxu0 0.0
    %2643 = vmatpush1.msra.mxu0 %v2620
    %2644 = vmatprep.subr.mxu0 0.0
    %2645 = vmatpush1.msra.mxu0 %v2621
    %2646 = vmatprep.subr.mxu0 0.0
    %2647 = vmatpush1.msra.mxu0 %v2622
    %2648 = vmatprep.subr.mxu0 0.0
    %2649 = vmatpush1.msra.mxu0 %v2623
    %2650 = vmatprep.subr.mxu0 0.0
    %2651 = vmatpush1.msra.mxu0 %v2624
    %2652 = vmatprep.subr.mxu0 0.0
    %2653 = vmatpush1.msra.mxu0 %v2625
    %2654 = vmatprep.subr.mxu0 0.0
    %2655 = vmatpush1.msra.mxu0 %v2626
    %2656 = vmatprep.subr.mxu0 0.0
    %2657 = vmatpush1.msra.mxu0 %v2627
    %2658 = vmatprep.subr.mxu0 0.0
    %2659 = vmatpush1.msra.mxu0 %v2628
    %2660 = vmatprep.subr.mxu0 0.0
    %2661 = vmatpush1.msra.mxu0 %v2629
    %2662 = vmatprep.subr.mxu0 0.0
    %2663 = vmatpush1.msra.mxu0 %v2630
    %2664 = vmatprep.subr.mxu0 0.0
    %2665 = vmatpush1.msra.mxu0 0.0
    %2666 = vmatprep.subr.mxu0 0.0
    %2667 = vmatpush1.msra.mxu0 0.0
    %2668 = vmatprep.subr.mxu0 0.0
    %2669 = vmatpush1.msra.mxu0 0.0
    %2670 = vmatprep.subr.mxu0 0.0
    %2671 = vmatpush1.msra.mxu0 0.0
    %2672 = vmatprep.subr.mxu0 0.0
    %2673 = vmatpush1.msra.mxu0 0.0
    %2674 = vmatprep.subr.mxu0 0.0
    %2675 = vmatpush1.msra.mxu0 0.0
    %2676 = vmatprep.subr.mxu0 0.0
    %2677 = vmatpush1.msra.mxu0 0.0
    %2678 = vmatprep.subr.mxu0 0.0
    %2679 = vmatpush1.msra.mxu0 0.0
    %2680 = vmatprep.subr.mxu0 0.0
    %2681 = vmatpush1.msra.mxu0 0.0
    %2682 = vmatprep.subr.mxu0 0.0
    %2683 = vmatpush1.msra.mxu0 0.0
    %2684 = vmatprep.subr.mxu0 0.0
    %2685 = vmatpush1.msra.mxu0 0.0
    %2686 = vmatprep.subr.mxu0 0.0
    %2687 = vmatpush1.msra.mxu0 0.0
    %2688 = vmatprep.subr.mxu0 0.0
    %2689 = vmatpush1.msra.mxu0 0.0
    %2690 = vmatprep.subr.mxu0 0.0
    %2691 = vmatpush1.msra.mxu0 0.0
    %2692 = vmatprep.subr.mxu0 0.0
    %2693 = vmatpush1.msra.mxu0 0.0
    %2694 = vmatprep.subr.mxu0 0.0
    %2695 = vmatpush1.msra.mxu0 0.0
    %2696 = vmatprep.mubr.f32.mxu0 0.0
    %2697 = vmatmul.mubr.f32.gmra.mrb[0].mxu0 %v2614
    %v2698 = vpop.f32.mrb[0].mxu0
    %v2699 = vadd.f32 %v2631, %v2698
    %v2700 = vpop.f32.mrb[0].mxu0
    %2701 = vdwg.mxu0
    %2702 = vst [vmem:[#allocation4] sm:$0x1] %v2614
    %2703 = vst [vmem:[#allocation6] sm:$0x1] %v2699
    %s2704 = scalar_lea.vmem %s0, 32
    %v2705 = vld [vmem:[%s2704] sm:$0xff]
    %v2706 = vld [vmem:[%s2704 + $0x8] sm:$0xff]
    %v2707 = vld [vmem:[%s2704 + $0x10] sm:$0xff]
    %v2708 = vld [vmem:[%s2704 + $0x18] sm:$0xf]
    %v2709 = vld [vmem:[%s1] sm:$0xff]
    %v2710 = vld [vmem:[%s1 + $0x8] sm:$0xff]
    %v2711 = vld [vmem:[%s1 + $0x10] sm:$0xff]
    %v2712 = vld [vmem:[%s1 + $0x18] sm:$0xff]
    %v2713 = vld [vmem:[%s1 + $0x20] sm:$0xff]
    %v2714 = vld [vmem:[%s1 + $0x28] sm:$0xff]
    %v2715 = vld [vmem:[%s1 + $0x30] sm:$0xff]
    %v2716 = vld [vmem:[%s1 + $0x38] sm:$0xff]
    %v2717 = vld [vmem:[%s1 + $0x40] sm:$0xff]
    %v2718 = vld [vmem:[%s1 + $0x48] sm:$0xff]
    %v2719 = vld [vmem:[%s1 + $0x50] sm:$0xff]
    %v2720 = vld [vmem:[%s1 + $0x58] sm:$0xff]
    %v2721 = vld [vmem:[%s1 + $0x60] sm:$0xff]
    %v2722 = vld [vmem:[%s1 + $0x68] sm:$0xff]
    %v2723 = vld [vmem:[%s1 + $0x70] sm:$0xff]
    %v2724 = vld [vmem:[%s1 + $0x78] sm:$0xff]
    %v2725 = vld [vmem:[%s1 + $0x80] sm:$0xff]
    %v2726 = vld [vmem:[%s1 + $0x88] sm:$0xff]
    %v2727 = vld [vmem:[%s1 + $0x90] sm:$0xff]
    %v2728 = vld [vmem:[%s1 + $0x98] sm:$0xff]
    %v2729 = vld [vmem:[%s1 + $0xa0] sm:$0xff]
    %v2730 = vld [vmem:[%s1 + $0xa8] sm:$0xff]
    %v2731 = vld [vmem:[%s1 + $0xb0] sm:$0xff]
    %v2732 = vld [vmem:[%s1 + $0xb8] sm:$0xff]
    %v2733 = vld [vmem:[%s2704 + $0x1] sm:$0xff]
    %v2734 = vld [vmem:[%s2704 + $0x9] sm:$0xff]
    %v2735 = vld [vmem:[%s2704 + $0x11] sm:$0xff]
    %v2736 = vld [vmem:[%s2704 + $0x19] sm:$0xf]
    %v2737 = vld [vmem:[%s86] sm:$0xff]
    %v2738 = vld [vmem:[%s86 + $0x8] sm:$0xff]
    %v2739 = vld [vmem:[%s86 + $0x10] sm:$0xff]
    %v2740 = vld [vmem:[%s86 + $0x18] sm:$0xff]
    %v2741 = vld [vmem:[%s86 + $0x20] sm:$0xff]
    %v2742 = vld [vmem:[%s86 + $0x28] sm:$0xff]
    %v2743 = vld [vmem:[%s86 + $0x30] sm:$0xff]
    %v2744 = vld [vmem:[%s86 + $0x38] sm:$0xff]
    %v2745 = vld [vmem:[%s86 + $0x40] sm:$0xff]
    %v2746 = vld [vmem:[%s86 + $0x48] sm:$0xff]
    %v2747 = vld [vmem:[%s86 + $0x50] sm:$0xff]
    %v2748 = vld [vmem:[%s86 + $0x58] sm:$0xff]
    %v2749 = vld [vmem:[%s86 + $0x60] sm:$0xff]
    %v2750 = vld [vmem:[%s86 + $0x68] sm:$0xff]
    %v2751 = vld [vmem:[%s86 + $0x70] sm:$0xff]
    %v2752 = vld [vmem:[%s86 + $0x78] sm:$0xff]
    %v2753 = vld [vmem:[%s86 + $0x80] sm:$0xff]
    %v2754 = vld [vmem:[%s86 + $0x88] sm:$0xff]
    %v2755 = vld [vmem:[%s86 + $0x90] sm:$0xff]
    %v2756 = vld [vmem:[%s86 + $0x98] sm:$0xff]
    %v2757 = vld [vmem:[%s86 + $0xa0] sm:$0xff]
    %v2758 = vld [vmem:[%s86 + $0xa8] sm:$0xff]
    %v2759 = vld [vmem:[%s86 + $0xb0] sm:$0xff]
    %v2760 = vld [vmem:[%s86 + $0xb8] sm:$0xff]
    %v2762 = vsel %vm111, %v2733, 0
    %v2765 = vsel %vm111, %v2734, 0
    %v2768 = vsel %vm111, %v2735, 0
    %v2771 = vsel %vm111, %v2736, 0
    %2773 = vmatprep.subr.mxu0 %v2738
    %2774 = vmatpush1.msra.mxu0 %v2737
    %2775 = vmatprep.subr.mxu0 %v2740
    %2776 = vmatpush1.msra.mxu0 %v2739
    %2777 = vmatprep.subr.mxu0 %v2742
    %2778 = vmatpush1.msra.mxu0 %v2741
    %2779 = vmatprep.subr.mxu0 %v2744
    %2780 = vmatpush1.msra.mxu0 %v2743
    %2781 = vmatprep.subr.mxu0 %v2746
    %2782 = vmatpush1.msra.mxu0 %v2745
    %2783 = vmatprep.subr.mxu0 %v2748
    %2784 = vmatpush1.msra.mxu0 %v2747
    %2785 = vmatprep.subr.mxu0 %v2750
    %2786 = vmatpush1.msra.mxu0 %v2749
    %2787 = vmatprep.subr.mxu0 %v2752
    %2788 = vmatpush1.msra.mxu0 %v2751
    %2789 = vmatprep.subr.mxu0 %v2754
    %2790 = vmatpush1.msra.mxu0 %v2753
    %2791 = vmatprep.subr.mxu0 %v2756
    %2792 = vmatpush1.msra.mxu0 %v2755
    %2793 = vmatprep.subr.mxu0 %v2758
    %2794 = vmatpush1.msra.mxu0 %v2757
    %2795 = vmatprep.subr.mxu0 %v2760
    %2796 = vmatpush1.msra.mxu0 %v2759
    %2797 = vmatprep.subr.mxu0 0.0
    %2798 = vmatpush1.msra.mxu0 0.0
    %2799 = vmatprep.subr.mxu0 0.0
    %2800 = vmatpush1.msra.mxu0 0.0
    %2801 = vmatprep.subr.mxu0 0.0
    %2802 = vmatpush1.msra.mxu0 0.0
    %2803 = vmatprep.subr.mxu0 0.0
    %2804 = vmatpush1.msra.mxu0 0.0
    %2805 = vmatprep.subr.mxu0 0.0
    %2806 = vmatpush1.msra.mxu0 0.0
    %2807 = vmatprep.subr.mxu0 0.0
    %2808 = vmatpush1.msra.mxu0 0.0
    %2809 = vmatprep.subr.mxu0 0.0
    %2810 = vmatpush1.msra.mxu0 0.0
    %2811 = vmatprep.subr.mxu0 0.0
    %2812 = vmatpush1.msra.mxu0 0.0
    %2813 = vmatprep.subr.mxu0 0.0
    %2814 = vmatpush1.msra.mxu0 0.0
    %2815 = vmatprep.subr.mxu0 0.0
    %2816 = vmatpush1.msra.mxu0 0.0
    %2817 = vmatprep.subr.mxu0 0.0
    %2818 = vmatpush1.msra.mxu0 0.0
    %2819 = vmatprep.subr.mxu0 0.0
    %2820 = vmatpush1.msra.mxu0 0.0
    %2821 = vmatprep.subr.mxu0 0.0
    %2822 = vmatpush1.msra.mxu0 0.0
    %2823 = vmatprep.subr.mxu0 0.0
    %2824 = vmatpush1.msra.mxu0 0.0
    %2825 = vmatprep.subr.mxu0 0.0
    %2826 = vmatpush1.msra.mxu0 0.0
    %2827 = vmatprep.subr.mxu0 0.0
    %2828 = vmatpush1.msra.mxu0 0.0
    %2829 = vmatprep.subr.mxu0 0.0
    %2830 = vmatpush1.msra.mxu0 0.0
    %2831 = vmatprep.subr.mxu0 0.0
    %2832 = vmatpush1.msra.mxu0 0.0
    %2833 = vmatprep.subr.mxu0 0.0
    %2834 = vmatpush1.msra.mxu0 0.0
    %2835 = vmatprep.subr.mxu0 0.0
    %2836 = vmatpush1.msra.mxu0 0.0
    %2837 = vmatprep.mubr.f32.mxu0 0.0
    %2838 = vmatmul.mubr.f32.gmra.mrb[0].mxu0 %v2762
    %v2839 = vpop.f32.mrb[0].mxu0
    %v2840 = vadd.f32 0.0, %v2839
    %v2841 = vpop.f32.mrb[0].mxu0
    %v2842 = vadd.f32 0.0, %v2841
    %2843 = vmatprep.mubr.f32.mxu0 0.0
    %2844 = vmatmul.mubr.f32.gmra.mrb[0].mxu0 %v2765
    %v2845 = vpop.f32.mrb[0].mxu0
    %v2846 = vadd.f32 0.0, %v2845
    %v2847 = vpop.f32.mrb[0].mxu0
    %v2848 = vadd.f32 0.0, %v2847
    %2849 = vmatprep.mubr.f32.mxu0 0.0
    %2850 = vmatmul.mubr.f32.gmra.mrb[0].mxu0 %v2768
    %v2851 = vpop.f32.mrb[0].mxu0
    %v2852 = vadd.f32 0.0, %v2851
    %v2853 = vpop.f32.mrb[0].mxu0
    %v2854 = vadd.f32 0.0, %v2853
    %2855 = vmatprep.mubr.f32.mxu0 0.0
    %2856 = vmatmul.mubr.f32.gmra.mrb[0].mxu0 %v2771
    %v2857 = vpop.f32.mrb[0].mxu0
    %v2858 = vadd.f32 0.0, %v2857
    %v2859 = vpop.f32.mrb[0].mxu0
    %v2860 = vadd.f32 0.0, %v2859
    %2861 = vdwg.mxu0
    %v2863 = vsel %vm111, %v2705, 0
    %v2866 = vsel %vm111, %v2706, 0
    %v2869 = vsel %vm111, %v2707, 0
    %v2872 = vsel %vm111, %v2708, 0
    %2874 = vmatprep.subr.mxu0 %v2710
    %2875 = vmatpush1.msra.mxu0 %v2709
    %2876 = vmatprep.subr.mxu0 %v2712
    %2877 = vmatpush1.msra.mxu0 %v2711
    %2878 = vmatprep.subr.mxu0 %v2714
    %2879 = vmatpush1.msra.mxu0 %v2713
    %2880 = vmatprep.subr.mxu0 %v2716
    %2881 = vmatpush1.msra.mxu0 %v2715
    %2882 = vmatprep.subr.mxu0 %v2718
    %2883 = vmatpush1.msra.mxu0 %v2717
    %2884 = vmatprep.subr.mxu0 %v2720
    %2885 = vmatpush1.msra.mxu0 %v2719
    %2886 = vmatprep.subr.mxu0 %v2722
    %2887 = vmatpush1.msra.mxu0 %v2721
    %2888 = vmatprep.subr.mxu0 %v2724
    %2889 = vmatpush1.msra.mxu0 %v2723
    %2890 = vmatprep.subr.mxu0 %v2726
    %2891 = vmatpush1.msra.mxu0 %v2725
    %2892 = vmatprep.subr.mxu0 %v2728
    %2893 = vmatpush1.msra.mxu0 %v2727
    %2894 = vmatprep.subr.mxu0 %v2730
    %2895 = vmatpush1.msra.mxu0 %v2729
    %2896 = vmatprep.subr.mxu0 %v2732
    %2897 = vmatpush1.msra.mxu0 %v2731
    %2898 = vmatprep.subr.mxu0 0.0
    %2899 = vmatpush1.msra.mxu0 0.0
    %2900 = vmatprep.subr.mxu0 0.0
    %2901 = vmatpush1.msra.mxu0 0.0
    %2902 = vmatprep.subr.mxu0 0.0
    %2903 = vmatpush1.msra.mxu0 0.0
    %2904 = vmatprep.subr.mxu0 0.0
    %2905 = vmatpush1.msra.mxu0 0.0
    %2906 = vmatprep.subr.mxu0 0.0
    %2907 = vmatpush1.msra.mxu0 0.0
    %2908 = vmatprep.subr.mxu0 0.0
    %2909 = vmatpush1.msra.mxu0 0.0
    %2910 = vmatprep.subr.mxu0 0.0
    %2911 = vmatpush1.msra.mxu0 0.0
    %2912 = vmatprep.subr.mxu0 0.0
    %2913 = vmatpush1.msra.mxu0 0.0
    %2914 = vmatprep.subr.mxu0 0.0
    %2915 = vmatpush1.msra.mxu0 0.0
    %2916 = vmatprep.subr.mxu0 0.0
    %2917 = vmatpush1.msra.mxu0 0.0
    %2918 = vmatprep.subr.mxu0 0.0
    %2919 = vmatpush1.msra.mxu0 0.0
    %2920 = vmatprep.subr.mxu0 0.0
    %2921 = vmatpush1.msra.mxu0 0.0
    %2922 = vmatprep.subr.mxu0 0.0
    %2923 = vmatpush1.msra.mxu0 0.0
    %2924 = vmatprep.subr.mxu0 0.0
    %2925 = vmatpush1.msra.mxu0 0.0
    %2926 = vmatprep.subr.mxu0 0.0
    %2927 = vmatpush1.msra.mxu0 0.0
    %2928 = vmatprep.subr.mxu0 0.0
    %2929 = vmatpush1.msra.mxu0 0.0
    %2930 = vmatprep.subr.mxu0 0.0
    %2931 = vmatpush1.msra.mxu0 0.0
    %2932 = vmatprep.subr.mxu0 0.0
    %2933 = vmatpush1.msra.mxu0 0.0
    %2934 = vmatprep.subr.mxu0 0.0
    %2935 = vmatpush1.msra.mxu0 0.0
    %2936 = vmatprep.subr.mxu0 0.0
    %2937 = vmatpush1.msra.mxu0 0.0
    %2938 = vmatprep.mubr.f32.mxu0 0.0
    %2939 = vmatmul.mubr.f32.gmra.mrb[0].mxu0 %v2863
    %v2940 = vpop.f32.mrb[0].mxu0
    %v2941 = vadd.f32 %v2840, %v2940
    %v2942 = vpop.f32.mrb[0].mxu0
    %v2943 = vadd.f32 %v2842, %v2942
    %2944 = vmatprep.mubr.f32.mxu0 0.0
    %2945 = vmatmul.mubr.f32.gmra.mrb[0].mxu0 %v2866
    %v2946 = vpop.f32.mrb[0].mxu0
    %v2947 = vadd.f32 %v2846, %v2946
    %v2948 = vpop.f32.mrb[0].mxu0
    %v2949 = vadd.f32 %v2848, %v2948
    %2950 = vmatprep.mubr.f32.mxu0 0.0
    %2951 = vmatmul.mubr.f32.gmra.mrb[0].mxu0 %v2869
    %v2952 = vpop.f32.mrb[0].mxu0
    %v2953 = vadd.f32 %v2852, %v2952
    %v2954 = vpop.f32.mrb[0].mxu0
    %v2955 = vadd.f32 %v2854, %v2954
    %2956 = vmatprep.mubr.f32.mxu0 0.0
    %2957 = vmatmul.mubr.f32.gmra.mrb[0].mxu0 %v2872
    %v2958 = vpop.f32.mrb[0].mxu0
    %v2959 = vadd.f32 %v2858, %v2958
    %v2960 = vpop.f32.mrb[0].mxu0
    %v2961 = vadd.f32 %v2860, %v2960
    %2962 = vdwg.mxu0
    %v2963 = vld [vmem:[%s2704 + $0x2] sm:$0xff]
    %v2964 = vld [vmem:[%s2704 + $0xa] sm:$0xff]
    %v2965 = vld [vmem:[%s2704 + $0x12] sm:$0xff]
    %v2966 = vld [vmem:[%s2704 + $0x1a] sm:$0xf]
    %v2967 = vld [vmem:[%s318] sm:$0xff]
    %v2968 = vld [vmem:[%s318 + $0x8] sm:$0xff]
    %v2969 = vld [vmem:[%s318 + $0x10] sm:$0xff]
    %v2970 = vld [vmem:[%s318 + $0x18] sm:$0xff]
    %v2971 = vld [vmem:[%s318 + $0x20] sm:$0xff]
    %v2972 = vld [vmem:[%s318 + $0x28] sm:$0xff]
    %v2973 = vld [vmem:[%s318 + $0x30] sm:$0xff]
    %v2974 = vld [vmem:[%s318 + $0x38] sm:$0xff]
    %v2975 = vld [vmem:[%s318 + $0x40] sm:$0xff]
    %v2976 = vld [vmem:[%s318 + $0x48] sm:$0xff]
    %v2977 = vld [vmem:[%s318 + $0x50] sm:$0xff]
    %v2978 = vld [vmem:[%s318 + $0x58] sm:$0xff]
    %v2979 = vld [vmem:[%s318 + $0x60] sm:$0xff]
    %v2980 = vld [vmem:[%s318 + $0x68] sm:$0xff]
    %v2981 = vld [vmem:[%s318 + $0x70] sm:$0xff]
    %v2982 = vld [vmem:[%s318 + $0x78] sm:$0xff]
    %v2983 = vld [vmem:[%s318 + $0x80] sm:$0xff]
    %v2984 = vld [vmem:[%s318 + $0x88] sm:$0xff]
    %v2985 = vld [vmem:[%s318 + $0x90] sm:$0xff]
    %v2986 = vld [vmem:[%s318 + $0x98] sm:$0xff]
    %v2987 = vld [vmem:[%s318 + $0xa0] sm:$0xff]
    %v2988 = vld [vmem:[%s318 + $0xa8] sm:$0xff]
    %v2989 = vld [vmem:[%s318 + $0xb0] sm:$0xff]
    %v2990 = vld [vmem:[%s318 + $0xb8] sm:$0xff]
    %v2992 = vsel %vm111, %v2963, 0
    %v2995 = vsel %vm111, %v2964, 0
    %v2998 = vsel %vm111, %v2965, 0
    %v3001 = vsel %vm111, %v2966, 0
    %3003 = vmatprep.subr.mxu0 %v2968
    %3004 = vmatpush1.msra.mxu0 %v2967
    %3005 = vmatprep.subr.mxu0 %v2970
    %3006 = vmatpush1.msra.mxu0 %v2969
    %3007 = vmatprep.subr.mxu0 %v2972
    %3008 = vmatpush1.msra.mxu0 %v2971
    %3009 = vmatprep.subr.mxu0 %v2974
    %3010 = vmatpush1.msra.mxu0 %v2973
    %3011 = vmatprep.subr.mxu0 %v2976
    %3012 = vmatpush1.msra.mxu0 %v2975
    %3013 = vmatprep.subr.mxu0 %v2978
    %3014 = vmatpush1.msra.mxu0 %v2977
    %3015 = vmatprep.subr.mxu0 %v2980
    %3016 = vmatpush1.msra.mxu0 %v2979
    %3017 = vmatprep.subr.mxu0 %v2982
    %3018 = vmatpush1.msra.mxu0 %v2981
    %3019 = vmatprep.subr.mxu0 %v2984
    %3020 = vmatpush1.msra.mxu0 %v2983
    %3021 = vmatprep.subr.mxu0 %v2986
    %3022 = vmatpush1.msra.mxu0 %v2985
    %3023 = vmatprep.subr.mxu0 %v2988
    %3024 = vmatpush1.msra.mxu0 %v2987
    %3025 = vmatprep.subr.mxu0 %v2990
    %3026 = vmatpush1.msra.mxu0 %v2989
    %3027 = vmatprep.subr.mxu0 0.0
    %3028 = vmatpush1.msra.mxu0 0.0
    %3029 = vmatprep.subr.mxu0 0.0
    %3030 = vmatpush1.msra.mxu0 0.0
    %3031 = vmatprep.subr.mxu0 0.0
    %3032 = vmatpush1.msra.mxu0 0.0
    %3033 = vmatprep.subr.mxu0 0.0
    %3034 = vmatpush1.msra.mxu0 0.0
    %3035 = vmatprep.subr.mxu0 0.0
    %3036 = vmatpush1.msra.mxu0 0.0
    %3037 = vmatprep.subr.mxu0 0.0
    %3038 = vmatpush1.msra.mxu0 0.0
    %3039 = vmatprep.subr.mxu0 0.0
    %3040 = vmatpush1.msra.mxu0 0.0
    %3041 = vmatprep.subr.mxu0 0.0
    %3042 = vmatpush1.msra.mxu0 0.0
    %3043 = vmatprep.subr.mxu0 0.0
    %3044 = vmatpush1.msra.mxu0 0.0
    %3045 = vmatprep.subr.mxu0 0.0
    %3046 = vmatpush1.msra.mxu0 0.0
    %3047 = vmatprep.subr.mxu0 0.0
    %3048 = vmatpush1.msra.mxu0 0.0
    %3049 = vmatprep.subr.mxu0 0.0
    %3050 = vmatpush1.msra.mxu0 0.0
    %3051 = vmatprep.subr.mxu0 0.0
    %3052 = vmatpush1.msra.mxu0 0.0
    %3053 = vmatprep.subr.mxu0 0.0
    %3054 = vmatpush1.msra.mxu0 0.0
    %3055 = vmatprep.subr.mxu0 0.0
    %3056 = vmatpush1.msra.mxu0 0.0
    %3057 = vmatprep.subr.mxu0 0.0
    %3058 = vmatpush1.msra.mxu0 0.0
    %3059 = vmatprep.subr.mxu0 0.0
    %3060 = vmatpush1.msra.mxu0 0.0
    %3061 = vmatprep.subr.mxu0 0.0
    %3062 = vmatpush1.msra.mxu0 0.0
    %3063 = vmatprep.subr.mxu0 0.0
    %3064 = vmatpush1.msra.mxu0 0.0
    %3065 = vmatprep.subr.mxu0 0.0
    %3066 = vmatpush1.msra.mxu0 0.0
    %3067 = vmatprep.mubr.f32.mxu0 0.0
    %3068 = vmatmul.mubr.f32.gmra.mrb[0].mxu0 %v2992
    %v3069 = vpop.f32.mrb[0].mxu0
    %v3070 = vadd.f32 0.0, %v3069
    %v3071 = vpop.f32.mrb[0].mxu0
    %v3072 = vadd.f32 0.0, %v3071
    %3073 = vmatprep.mubr.f32.mxu0 0.0
    %3074 = vmatmul.mubr.f32.gmra.mrb[0].mxu0 %v2995
    %v3075 = vpop.f32.mrb[0].mxu0
    %v3076 = vadd.f32 0.0, %v3075
    %v3077 = vpop.f32.mrb[0].mxu0
    %v3078 = vadd.f32 0.0, %v3077
    %3079 = vmatprep.mubr.f32.mxu0 0.0
    %3080 = vmatmul.mubr.f32.gmra.mrb[0].mxu0 %v2998
    %v3081 = vpop.f32.mrb[0].mxu0
    %v3082 = vadd.f32 0.0, %v3081
    %v3083 = vpop.f32.mrb[0].mxu0
    %v3084 = vadd.f32 0.0, %v3083
    %3085 = vmatprep.mubr.f32.mxu0 0.0
    %3086 = vmatmul.mubr.f32.gmra.mrb[0].mxu0 %v3001
    %v3087 = vpop.f32.mrb[0].mxu0
    %v3088 = vadd.f32 0.0, %v3087
    %v3089 = vpop.f32.mrb[0].mxu0
    %v3090 = vadd.f32 0.0, %v3089
    %3091 = vdwg.mxu0
    %v3092 = vadd.f32 %v2941, %v3070
    %v3093 = vadd.f32 %v2943, %v3072
    %v3094 = vadd.f32 %v2947, %v3076
    %v3095 = vadd.f32 %v2949, %v3078
    %v3096 = vadd.f32 %v2953, %v3082
    %v3097 = vadd.f32 %v2955, %v3084
    %v3098 = vadd.f32 %v2959, %v3088
    %v3099 = vadd.f32 %v2961, %v3090
    %v3100 = vld [vmem:[%s2704 + $0x3] sm:$0xff]
    %v3101 = vld [vmem:[%s2704 + $0xb] sm:$0xff]
    %v3102 = vld [vmem:[%s2704 + $0x13] sm:$0xff]
    %v3103 = vld [vmem:[%s2704 + $0x1b] sm:$0xf]
    %v3104 = vld [vmem:[%s456] sm:$0xff]
    %v3105 = vld [vmem:[%s456 + $0x8] sm:$0xff]
    %v3106 = vld [vmem:[%s456 + $0x10] sm:$0xff]
    %v3107 = vld [vmem:[%s456 + $0x18] sm:$0xff]
    %v3108 = vld [vmem:[%s456 + $0x20] sm:$0xff]
    %v3109 = vld [vmem:[%s456 + $0x28] sm:$0xff]
    %v3110 = vld [vmem:[%s456 + $0x30] sm:$0xff]
    %v3111 = vld [vmem:[%s456 + $0x38] sm:$0xff]
    %v3112 = vld [vmem:[%s456 + $0x40] sm:$0xff]
    %v3113 = vld [vmem:[%s456 + $0x48] sm:$0xff]
    %v3114 = vld [vmem:[%s456 + $0x50] sm:$0xff]
    %v3115 = vld [vmem:[%s456 + $0x58] sm:$0xff]
    %v3116 = vld [vmem:[%s456 + $0x60] sm:$0xff]
    %v3117 = vld [vmem:[%s456 + $0x68] sm:$0xff]
    %v3118 = vld [vmem:[%s456 + $0x70] sm:$0xff]
    %v3119 = vld [vmem:[%s456 + $0x78] sm:$0xff]
    %v3120 = vld [vmem:[%s456 + $0x80] sm:$0xff]
    %v3121 = vld [vmem:[%s456 + $0x88] sm:$0xff]
    %v3122 = vld [vmem:[%s456 + $0x90] sm:$0xff]
    %v3123 = vld [vmem:[%s456 + $0x98] sm:$0xff]
    %v3124 = vld [vmem:[%s456 + $0xa0] sm:$0xff]
    %v3125 = vld [vmem:[%s456 + $0xa8] sm:$0xff]
    %v3126 = vld [vmem:[%s456 + $0xb0] sm:$0xff]
    %v3127 = vld [vmem:[%s456 + $0xb8] sm:$0xff]
    %v3129 = vsel %vm111, %v3100, 0
    %v3132 = vsel %vm111, %v3101, 0
    %v3135 = vsel %vm111, %v3102, 0
    %v3138 = vsel %vm111, %v3103, 0
    %3140 = vmatprep.subr.mxu0 %v3105
    %3141 = vmatpush1.msra.mxu0 %v3104
    %3142 = vmatprep.subr.mxu0 %v3107
    %3143 = vmatpush1.msra.mxu0 %v3106
    %3144 = vmatprep.subr.mxu0 %v3109
    %3145 = vmatpush1.msra.mxu0 %v3108
    %3146 = vmatprep.subr.mxu0 %v3111
    %3147 = vmatpush1.msra.mxu0 %v3110
    %3148 = vmatprep.subr.mxu0 %v3113
    %3149 = vmatpush1.msra.mxu0 %v3112
    %3150 = vmatprep.subr.mxu0 %v3115
    %3151 = vmatpush1.msra.mxu0 %v3114
    %3152 = vmatprep.subr.mxu0 %v3117
    %3153 = vmatpush1.msra.mxu0 %v3116
    %3154 = vmatprep.subr.mxu0 %v3119
    %3155 = vmatpush1.msra.mxu0 %v3118
    %3156 = vmatprep.subr.mxu0 %v3121
    %3157 = vmatpush1.msra.mxu0 %v3120
    %3158 = vmatprep.subr.mxu0 %v3123
    %3159 = vmatpush1.msra.mxu0 %v3122
    %3160 = vmatprep.subr.mxu0 %v3125
    %3161 = vmatpush1.msra.mxu0 %v3124
    %3162 = vmatprep.subr.mxu0 %v3127
    %3163 = vmatpush1.msra.mxu0 %v3126
    %3164 = vmatprep.subr.mxu0 0.0
    %3165 = vmatpush1.msra.mxu0 0.0
    %3166 = vmatprep.subr.mxu0 0.0
    %3167 = vmatpush1.msra.mxu0 0.0
    %3168 = vmatprep.subr.mxu0 0.0
    %3169 = vmatpush1.msra.mxu0 0.0
    %3170 = vmatprep.subr.mxu0 0.0
    %3171 = vmatpush1.msra.mxu0 0.0
    %3172 = vmatprep.subr.mxu0 0.0
    %3173 = vmatpush1.msra.mxu0 0.0
    %3174 = vmatprep.subr.mxu0 0.0
    %3175 = vmatpush1.msra.mxu0 0.0
    %3176 = vmatprep.subr.mxu0 0.0
    %3177 = vmatpush1.msra.mxu0 0.0
    %3178 = vmatprep.subr.mxu0 0.0
    %3179 = vmatpush1.msra.mxu0 0.0
    %3180 = vmatprep.subr.mxu0 0.0
    %3181 = vmatpush1.msra.mxu0 0.0
    %3182 = vmatprep.subr.mxu0 0.0
    %3183 = vmatpush1.msra.mxu0 0.0
    %3184 = vmatprep.subr.mxu0 0.0
    %3185 = vmatpush1.msra.mxu0 0.0
    %3186 = vmatprep.subr.mxu0 0.0
    %3187 = vmatpush1.msra.mxu0 0.0
    %3188 = vmatprep.subr.mxu0 0.0
    %3189 = vmatpush1.msra.mxu0 0.0
    %3190 = vmatprep.subr.mxu0 0.0
    %3191 = vmatpush1.msra.mxu0 0.0
    %3192 = vmatprep.subr.mxu0 0.0
    %3193 = vmatpush1.msra.mxu0 0.0
    %3194 = vmatprep.subr.mxu0 0.0
    %3195 = vmatpush1.msra.mxu0 0.0
    %3196 = vmatprep.subr.mxu0 0.0
    %3197 = vmatpush1.msra.mxu0 0.0
    %3198 = vmatprep.subr.mxu0 0.0
    %3199 = vmatpush1.msra.mxu0 0.0
    %3200 = vmatprep.subr.mxu0 0.0
    %3201 = vmatpush1.msra.mxu0 0.0
    %3202 = vmatprep.subr.mxu0 0.0
    %3203 = vmatpush1.msra.mxu0 0.0
    %3204 = vmatprep.mubr.f32.mxu0 0.0
    %3205 = vmatmul.mubr.f32.gmra.mrb[0].mxu0 %v3129
    %v3206 = vpop.f32.mrb[0].mxu0
    %v3207 = vadd.f32 0.0, %v3206
    %v3208 = vpop.f32.mrb[0].mxu0
    %v3209 = vadd.f32 0.0, %v3208
    %3210 = vmatprep.mubr.f32.mxu0 0.0
    %3211 = vmatmul.mubr.f32.gmra.mrb[0].mxu0 %v3132
    %v3212 = vpop.f32.mrb[0].mxu0
    %v3213 = vadd.f32 0.0, %v3212
    %v3214 = vpop.f32.mrb[0].mxu0
    %v3215 = vadd.f32 0.0, %v3214
    %3216 = vmatprep.mubr.f32.mxu0 0.0
    %3217 = vmatmul.mubr.f32.gmra.mrb[0].mxu0 %v3135
    %v3218 = vpop.f32.mrb[0].mxu0
    %v3219 = vadd.f32 0.0, %v3218
    %v3220 = vpop.f32.mrb[0].mxu0
    %v3221 = vadd.f32 0.0, %v3220
    %3222 = vmatprep.mubr.f32.mxu0 0.0
    %3223 = vmatmul.mubr.f32.gmra.mrb[0].mxu0 %v3138
    %v3224 = vpop.f32.mrb[0].mxu0
    %v3225 = vadd.f32 0.0, %v3224
    %v3226 = vpop.f32.mrb[0].mxu0
    %v3227 = vadd.f32 0.0, %v3226
    %3228 = vdwg.mxu0
    %v3229 = vadd.f32 %v3092, %v3207
    %v3230 = vadd.f32 %v3093, %v3209
    %v3231 = vadd.f32 %v3094, %v3213
    %v3232 = vadd.f32 %v3095, %v3215
    %v3233 = vadd.f32 %v3096, %v3219
    %v3234 = vadd.f32 %v3097, %v3221
    %v3235 = vadd.f32 %v3098, %v3225
    %v3236 = vadd.f32 %v3099, %v3227
    %v3237 = vld [vmem:[%s2704 + $0x4] sm:$0xff]
    %v3238 = vld [vmem:[%s2704 + $0xc] sm:$0xff]
    %v3239 = vld [vmem:[%s2704 + $0x14] sm:$0xff]
    %v3240 = vld [vmem:[%s2704 + $0x1c] sm:$0xf]
    %v3241 = vld [vmem:[%s594] sm:$0xff]
    %v3242 = vld [vmem:[%s594 + $0x8] sm:$0xff]
    %v3243 = vld [vmem:[%s594 + $0x10] sm:$0xff]
    %v3244 = vld [vmem:[%s594 + $0x18] sm:$0xff]
    %v3245 = vld [vmem:[%s594 + $0x20] sm:$0xff]
    %v3246 = vld [vmem:[%s594 + $0x28] sm:$0xff]
    %v3247 = vld [vmem:[%s594 + $0x30] sm:$0xff]
    %v3248 = vld [vmem:[%s594 + $0x38] sm:$0xff]
    %v3249 = vld [vmem:[%s594 + $0x40] sm:$0xff]
    %v3250 = vld [vmem:[%s594 + $0x48] sm:$0xff]
    %v3251 = vld [vmem:[%s594 + $0x50] sm:$0xff]
    %v3252 = vld [vmem:[%s594 + $0x58] sm:$0xff]
    %v3253 = vld [vmem:[%s594 + $0x60] sm:$0xff]
    %v3254 = vld [vmem:[%s594 + $0x68] sm:$0xff]
    %v3255 = vld [vmem:[%s594 + $0x70] sm:$0xff]
    %v3256 = vld [vmem:[%s594 + $0x78] sm:$0xff]
    %v3257 = vld [vmem:[%s594 + $0x80] sm:$0xff]
    %v3258 = vld [vmem:[%s594 + $0x88] sm:$0xff]
    %v3259 = vld [vmem:[%s594 + $0x90] sm:$0xff]
    %v3260 = vld [vmem:[%s594 + $0x98] sm:$0xff]
    %v3261 = vld [vmem:[%s594 + $0xa0] sm:$0xff]
    %v3262 = vld [vmem:[%s594 + $0xa8] sm:$0xff]
    %v3263 = vld [vmem:[%s594 + $0xb0] sm:$0xff]
    %v3264 = vld [vmem:[%s594 + $0xb8] sm:$0xff]
    %v3266 = vsel %vm111, %v3237, 0
    %v3269 = vsel %vm111, %v3238, 0
    %v3272 = vsel %vm111, %v3239, 0
    %v3275 = vsel %vm111, %v3240, 0
    %3277 = vmatprep.subr.mxu0 %v3242
    %3278 = vmatpush1.msra.mxu0 %v3241
    %3279 = vmatprep.subr.mxu0 %v3244
    %3280 = vmatpush1.msra.mxu0 %v3243
    %3281 = vmatprep.subr.mxu0 %v3246
    %3282 = vmatpush1.msra.mxu0 %v3245
    %3283 = vmatprep.subr.mxu0 %v3248
    %3284 = vmatpush1.msra.mxu0 %v3247
    %3285 = vmatprep.subr.mxu0 %v3250
    %3286 = vmatpush1.msra.mxu0 %v3249
    %3287 = vmatprep.subr.mxu0 %v3252
    %3288 = vmatpush1.msra.mxu0 %v3251
    %3289 = vmatprep.subr.mxu0 %v3254
    %3290 = vmatpush1.msra.mxu0 %v3253
    %3291 = vmatprep.subr.mxu0 %v3256
    %3292 = vmatpush1.msra.mxu0 %v3255
    %3293 = vmatprep.subr.mxu0 %v3258
    %3294 = vmatpush1.msra.mxu0 %v3257
    %3295 = vmatprep.subr.mxu0 %v3260
    %3296 = vmatpush1.msra.mxu0 %v3259
    %3297 = vmatprep.subr.mxu0 %v3262
    %3298 = vmatpush1.msra.mxu0 %v3261
    %3299 = vmatprep.subr.mxu0 %v3264
    %3300 = vmatpush1.msra.mxu0 %v3263
    %3301 = vmatprep.subr.mxu0 0.0
    %3302 = vmatpush1.msra.mxu0 0.0
    %3303 = vmatprep.subr.mxu0 0.0
    %3304 = vmatpush1.msra.mxu0 0.0
    %3305 = vmatprep.subr.mxu0 0.0
    %3306 = vmatpush1.msra.mxu0 0.0
    %3307 = vmatprep.subr.mxu0 0.0
    %3308 = vmatpush1.msra.mxu0 0.0
    %3309 = vmatprep.subr.mxu0 0.0
    %3310 = vmatpush1.msra.mxu0 0.0
    %3311 = vmatprep.subr.mxu0 0.0
    %3312 = vmatpush1.msra.mxu0 0.0
    %3313 = vmatprep.subr.mxu0 0.0
    %3314 = vmatpush1.msra.mxu0 0.0
    %3315 = vmatprep.subr.mxu0 0.0
    %3316 = vmatpush1.msra.mxu0 0.0
    %3317 = vmatprep.subr.mxu0 0.0
    %3318 = vmatpush1.msra.mxu0 0.0
    %3319 = vmatprep.subr.mxu0 0.0
    %3320 = vmatpush1.msra.mxu0 0.0
    %3321 = vmatprep.subr.mxu0 0.0
    %3322 = vmatpush1.msra.mxu0 0.0
    %3323 = vmatprep.subr.mxu0 0.0
    %3324 = vmatpush1.msra.mxu0 0.0
    %3325 = vmatprep.subr.mxu0 0.0
    %3326 = vmatpush1.msra.mxu0 0.0
    %3327 = vmatprep.subr.mxu0 0.0
    %3328 = vmatpush1.msra.mxu0 0.0
    %3329 = vmatprep.subr.mxu0 0.0
    %3330 = vmatpush1.msra.mxu0 0.0
    %3331 = vmatprep.subr.mxu0 0.0
    %3332 = vmatpush1.msra.mxu0 0.0
    %3333 = vmatprep.subr.mxu0 0.0
    %3334 = vmatpush1.msra.mxu0 0.0
    %3335 = vmatprep.subr.mxu0 0.0
    %3336 = vmatpush1.msra.mxu0 0.0
    %3337 = vmatprep.subr.mxu0 0.0
    %3338 = vmatpush1.msra.mxu0 0.0
    %3339 = vmatprep.subr.mxu0 0.0
    %3340 = vmatpush1.msra.mxu0 0.0
    %3341 = vmatprep.mubr.f32.mxu0 0.0
    %3342 = vmatmul.mubr.f32.gmra.mrb[0].mxu0 %v3266
    %v3343 = vpop.f32.mrb[0].mxu0
    %v3344 = vadd.f32 0.0, %v3343
    %v3345 = vpop.f32.mrb[0].mxu0
    %v3346 = vadd.f32 0.0, %v3345
    %3347 = vmatprep.mubr.f32.mxu0 0.0
    %3348 = vmatmul.mubr.f32.gmra.mrb[0].mxu0 %v3269
    %v3349 = vpop.f32.mrb[0].mxu0
    %v3350 = vadd.f32 0.0, %v3349
    %v3351 = vpop.f32.mrb[0].mxu0
    %v3352 = vadd.f32 0.0, %v3351
    %3353 = vmatprep.mubr.f32.mxu0 0.0
    %3354 = vmatmul.mubr.f32.gmra.mrb[0].mxu0 %v3272
    %v3355 = vpop.f32.mrb[0].mxu0
    %v3356 = vadd.f32 0.0, %v3355
    %v3357 = vpop.f32.mrb[0].mxu0
    %v3358 = vadd.f32 0.0, %v3357
    %3359 = vmatprep.mubr.f32.mxu0 0.0
    %3360 = vmatmul.mubr.f32.gmra.mrb[0].mxu0 %v3275
    %v3361 = vpop.f32.mrb[0].mxu0
    %v3362 = vadd.f32 0.0, %v3361
    %v3363 = vpop.f32.mrb[0].mxu0
    %v3364 = vadd.f32 0.0, %v3363
    %3365 = vdwg.mxu0
    %v3366 = vadd.f32 %v3229, %v3344
    %v3367 = vadd.f32 %v3230, %v3346
    %v3368 = vadd.f32 %v3231, %v3350
    %v3369 = vadd.f32 %v3232, %v3352
    %v3370 = vadd.f32 %v3233, %v3356
    %v3371 = vadd.f32 %v3234, %v3358
    %v3372 = vadd.f32 %v3235, %v3362
    %v3373 = vadd.f32 %v3236, %v3364
    %v3374 = vld [vmem:[%s2] sm:$0x3]
    %v3376 = vlaneseq
    %v3377 = vshrl.u32 %v3376, 7
    %v3378 = vsub.s32 0, %v3377
    %v3379 = vrot.slane %v3374, %v3378
    %v3380 = vlaneseq
    %v3381 = vshrl.u32 %v3380, 7
    %v3382 = vsub.s32 1, %v3381
    %v3383 = vrot.slane %v3374, %v3382
    %v3386 = vadd.f32 %v3366, %v3379
    %v3387 = vadd.f32 %v3367, %v3383
    %v3388 = vadd.f32 %v3368, %v3379
    %v3389 = vadd.f32 %v3369, %v3383
    %v3390 = vadd.f32 %v3370, %v3379
    %v3391 = vadd.f32 %v3371, %v3383
    %v3392 = vadd.f32 %v3372, %v3379
    %v3393 = vadd.f32 %v3373, %v3383
    %v3394 = vmax.f32 %v3386, 0.0
    %v3395 = vmax.f32 %v3387, 0.0
    %v3396 = vmax.f32 %v3388, 0.0
    %v3397 = vmax.f32 %v3389, 0.0
    %v3398 = vmax.f32 %v3390, 0.0
    %v3399 = vmax.f32 %v3391, 0.0
    %v3400 = vmax.f32 %v3392, 0.0
    %v3401 = vmax.f32 %v3393, 0.0
    %v3402 = vld [vmem:[%s3] sm:$0xff]
    %v3403 = vld [vmem:[%s3 + $0x8] sm:$0x3f]
    %v3405 = vsel %vm758, %v3402, 0
    %v3408 = vsel %vm758, %v3403, 0
    %v3411 = vsel %vm765, %v3400, 0
    %v3414 = vsel %vm765, %v3401, 0
    %3416 = vmatprep.subr.mxu0 %v3395
    %3417 = vmatpush1.msra.mxu0 %v3394
    %3418 = vmatprep.subr.mxu0 %v3397
    %3419 = vmatpush1.msra.mxu0 %v3396
    %3420 = vmatprep.subr.mxu0 %v3399
    %3421 = vmatpush1.msra.mxu0 %v3398
    %3422 = vmatprep.subr.mxu0 %v3414
    %3423 = vmatpush1.msra.mxu0 %v3411
    %3424 = vmatprep.subr.mxu0 0.0
    %3425 = vmatpush1.msra.mxu0 0.0
    %3426 = vmatprep.subr.mxu0 0.0
    %3427 = vmatpush1.msra.mxu0 0.0
    %3428 = vmatprep.subr.mxu0 0.0
    %3429 = vmatpush1.msra.mxu0 0.0
    %3430 = vmatprep.subr.mxu0 0.0
    %3431 = vmatpush1.msra.mxu0 0.0
    %3432 = vmatprep.subr.mxu0 0.0
    %3433 = vmatpush1.msra.mxu0 0.0
    %3434 = vmatprep.subr.mxu0 0.0
    %3435 = vmatpush1.msra.mxu0 0.0
    %3436 = vmatprep.subr.mxu0 0.0
    %3437 = vmatpush1.msra.mxu0 0.0
    %3438 = vmatprep.subr.mxu0 0.0
    %3439 = vmatpush1.msra.mxu0 0.0
    %3440 = vmatprep.subr.mxu0 0.0
    %3441 = vmatpush1.msra.mxu0 0.0
    %3442 = vmatprep.subr.mxu0 0.0
    %3443 = vmatpush1.msra.mxu0 0.0
    %3444 = vmatprep.subr.mxu0 0.0
    %3445 = vmatpush1.msra.mxu0 0.0
    %3446 = vmatprep.subr.mxu0 0.0
    %3447 = vmatpush1.msra.mxu0 0.0
    %3448 = vmatprep.subr.mxu0 0.0
    %3449 = vmatpush1.msra.mxu0 0.0
    %3450 = vmatprep.subr.mxu0 0.0
    %3451 = vmatpush1.msra.mxu0 0.0
    %3452 = vmatprep.subr.mxu0 0.0
    %3453 = vmatpush1.msra.mxu0 0.0
    %3454 = vmatprep.subr.mxu0 0.0
    %3455 = vmatpush1.msra.mxu0 0.0
    %3456 = vmatprep.subr.mxu0 0.0
    %3457 = vmatpush1.msra.mxu0 0.0
    %3458 = vmatprep.subr.mxu0 0.0
    %3459 = vmatpush1.msra.mxu0 0.0
    %3460 = vmatprep.subr.mxu0 0.0
    %3461 = vmatpush1.msra.mxu0 0.0
    %3462 = vmatprep.subr.mxu0 0.0
    %3463 = vmatpush1.msra.mxu0 0.0
    %3464 = vmatprep.subr.mxu0 0.0
    %3465 = vmatpush1.msra.mxu0 0.0
    %3466 = vmatprep.subr.mxu0 0.0
    %3467 = vmatpush1.msra.mxu0 0.0
    %3468 = vmatprep.subr.mxu0 0.0
    %3469 = vmatpush1.msra.mxu0 0.0
    %3470 = vmatprep.subr.mxu0 0.0
    %3471 = vmatpush1.msra.mxu0 0.0
    %3472 = vmatprep.subr.mxu0 0.0
    %3473 = vmatpush1.msra.mxu0 0.0
    %3474 = vmatprep.subr.mxu0 0.0
    %3475 = vmatpush1.msra.mxu0 0.0
    %3476 = vmatprep.subr.mxu0 0.0
    %3477 = vmatpush1.msra.mxu0 0.0
    %3478 = vmatprep.subr.mxu0 0.0
    %3479 = vmatpush1.msra.mxu0 0.0
    %3480 = vmatprep.mubr.f32.mxu0 0.0
    %3481 = vmatmul.mubr.f32.gmra.mrb[0].mxu0 %v3405
    %v3482 = vpop.f32.mrb[0].mxu0
    %v3483 = vadd.f32 0.0, %v3482
    %v3484 = vpop.f32.mrb[0].mxu0
    %v3485 = vadd.f32 0.0, %v3484
    %3486 = vmatprep.mubr.f32.mxu0 0.0
    %3487 = vmatmul.mubr.f32.gmra.mrb[0].mxu0 %v3408
    %v3488 = vpop.f32.mrb[0].mxu0
    %v3489 = vadd.f32 0.0, %v3488
    %v3490 = vpop.f32.mrb[0].mxu0
    %v3491 = vadd.f32 0.0, %v3490
    %3492 = vdwg.mxu0
    %v3493 = vld [vmem:[%s849] sm:$0xff]
    %v3494 = vld [vmem:[%s849 + $0x8] sm:$0x3f]
    %v3496 = vsel %vm758, %v3493, 0
    %v3499 = vsel %vm758, %v3494, 0
    %3501 = vmatprep.subr.mxu0 %v3395
    %3502 = vmatpush1.msra.mxu0 %v3394
    %3503 = vmatprep.subr.mxu0 %v3397
    %3504 = vmatpush1.msra.mxu0 %v3396
    %3505 = vmatprep.subr.mxu0 %v3399
    %3506 = vmatpush1.msra.mxu0 %v3398
    %3507 = vmatprep.subr.mxu0 %v3414
    %3508 = vmatpush1.msra.mxu0 %v3411
    %3509 = vmatprep.subr.mxu0 0.0
    %3510 = vmatpush1.msra.mxu0 0.0
    %3511 = vmatprep.subr.mxu0 0.0
    %3512 = vmatpush1.msra.mxu0 0.0
    %3513 = vmatprep.subr.mxu0 0.0
    %3514 = vmatpush1.msra.mxu0 0.0
    %3515 = vmatprep.subr.mxu0 0.0
    %3516 = vmatpush1.msra.mxu0 0.0
    %3517 = vmatprep.subr.mxu0 0.0
    %3518 = vmatpush1.msra.mxu0 0.0
    %3519 = vmatprep.subr.mxu0 0.0
    %3520 = vmatpush1.msra.mxu0 0.0
    %3521 = vmatprep.subr.mxu0 0.0
    %3522 = vmatpush1.msra.mxu0 0.0
    %3523 = vmatprep.subr.mxu0 0.0
    %3524 = vmatpush1.msra.mxu0 0.0
    %3525 = vmatprep.subr.mxu0 0.0
    %3526 = vmatpush1.msra.mxu0 0.0
    %3527 = vmatprep.subr.mxu0 0.0
    %3528 = vmatpush1.msra.mxu0 0.0
    %3529 = vmatprep.subr.mxu0 0.0
    %3530 = vmatpush1.msra.mxu0 0.0
    %3531 = vmatprep.subr.mxu0 0.0
    %3532 = vmatpush1.msra.mxu0 0.0
    %3533 = vmatprep.subr.mxu0 0.0
    %3534 = vmatpush1.msra.mxu0 0.0
    %3535 = vmatprep.subr.mxu0 0.0
    %3536 = vmatpush1.msra.mxu0 0.0
    %3537 = vmatprep.subr.mxu0 0.0
    %3538 = vmatpush1.msra.mxu0 0.0
    %3539 = vmatprep.subr.mxu0 0.0
    %3540 = vmatpush1.msra.mxu0 0.0
    %3541 = vmatprep.subr.mxu0 0.0
    %3542 = vmatpush1.msra.mxu0 0.0
    %3543 = vmatprep.subr.mxu0 0.0
    %3544 = vmatpush1.msra.mxu0 0.0
    %3545 = vmatprep.subr.mxu0 0.0
    %3546 = vmatpush1.msra.mxu0 0.0
    %3547 = vmatprep.subr.mxu0 0.0
    %3548 = vmatpush1.msra.mxu0 0.0
    %3549 = vmatprep.subr.mxu0 0.0
    %3550 = vmatpush1.msra.mxu0 0.0
    %3551 = vmatprep.subr.mxu0 0.0
    %3552 = vmatpush1.msra.mxu0 0.0
    %3553 = vmatprep.subr.mxu0 0.0
    %3554 = vmatpush1.msra.mxu0 0.0
    %3555 = vmatprep.subr.mxu0 0.0
    %3556 = vmatpush1.msra.mxu0 0.0
    %3557 = vmatprep.subr.mxu0 0.0
    %3558 = vmatpush1.msra.mxu0 0.0
    %3559 = vmatprep.subr.mxu0 0.0
    %3560 = vmatpush1.msra.mxu0 0.0
    %3561 = vmatprep.subr.mxu0 0.0
    %3562 = vmatpush1.msra.mxu0 0.0
    %3563 = vmatprep.subr.mxu0 0.0
    %3564 = vmatpush1.msra.mxu0 0.0
    %3565 = vmatprep.mubr.f32.mxu0 0.0
    %3566 = vmatmul.mubr.f32.gmra.mrb[0].mxu0 %v3496
    %v3567 = vpop.f32.mrb[0].mxu0
    %v3568 = vadd.f32 0.0, %v3567
    %v3569 = vpop.f32.mrb[0].mxu0
    %v3570 = vadd.f32 0.0, %v3569
    %3571 = vmatprep.mubr.f32.mxu0 0.0
    %3572 = vmatmul.mubr.f32.gmra.mrb[0].mxu0 %v3499
    %v3573 = vpop.f32.mrb[0].mxu0
    %v3574 = vadd.f32 0.0, %v3573
    %v3575 = vpop.f32.mrb[0].mxu0
    %v3576 = vadd.f32 0.0, %v3575
    %3577 = vdwg.mxu0
    %v3578 = vmax.f32 %v3483, %v3568
    %v3579 = vmax.f32 %v3485, %v3570
    %v3580 = vmax.f32 %v3489, %v3574
    %v3581 = vmax.f32 %v3491, %v3576
    %v3582 = vld [vmem:[%s4] sm:$0xff]
    %v3583 = vld [vmem:[%s4 + $0x8] sm:$0xff]
    %v3584 = vld [vmem:[%s4 + $0x10] sm:$0xff]
    %v3585 = vld [vmem:[%s4 + $0x18] sm:$0xff]
    %v3586 = vld [vmem:[%s4 + $0x20] sm:$0xff]
    %v3587 = vld [vmem:[%s4 + $0x28] sm:$0xff]
    %v3588 = vld [vmem:[%s4 + $0x30] sm:$0xff]
    %v3589 = vld [vmem:[%s4 + $0x38] sm:$0xff]
    %v3590 = vld [vmem:[%s4 + $0x40] sm:$0xff]
    %v3591 = vld [vmem:[%s4 + $0x48] sm:$0xff]
    %v3592 = vld [vmem:[%s4 + $0x50] sm:$0xff]
    %v3593 = vld [vmem:[%s4 + $0x58] sm:$0xff]
    %v3594 = vld [vmem:[%s4 + $0x60] sm:$0xff]
    %v3595 = vld [vmem:[%s4 + $0x68] sm:$0xff]
    %v3596 = vld [vmem:[%s4 + $0x70] sm:$0xff]
    %v3597 = vld [vmem:[%s4 + $0x78] sm:$0xff]
    %v3598 = vld [vmem:[%s4 + $0x80] sm:$0xff]
    %v3599 = vld [vmem:[%s4 + $0x88] sm:$0xff]
    %v3600 = vld [vmem:[%s4 + $0x90] sm:$0xff]
    %v3601 = vld [vmem:[%s4 + $0x98] sm:$0xff]
    %v3602 = vld [vmem:[%s4 + $0xa0] sm:$0xff]
    %v3604 = vsel %vm960, %v3579, 0
    %v3607 = vsel %vm960, %v3581, 0
    %3609 = vmatprep.subr.mxu0 0.0
    %3610 = vmatpush1.msra.mxu0 %v3582
    %3611 = vmatprep.subr.mxu0 0.0
    %3612 = vmatpush1.msra.mxu0 %v3583
    %3613 = vmatprep.subr.mxu0 0.0
    %3614 = vmatpush1.msra.mxu0 %v3584
    %3615 = vmatprep.subr.mxu0 0.0
    %3616 = vmatpush1.msra.mxu0 %v3585
    %3617 = vmatprep.subr.mxu0 0.0
    %3618 = vmatpush1.msra.mxu0 %v3586
    %3619 = vmatprep.subr.mxu0 0.0
    %3620 = vmatpush1.msra.mxu0 %v3587
    %3621 = vmatprep.subr.mxu0 0.0
    %3622 = vmatpush1.msra.mxu0 %v3588
    %3623 = vmatprep.subr.mxu0 0.0
    %3624 = vmatpush1.msra.mxu0 %v3589
    %3625 = vmatprep.subr.mxu0 0.0
    %3626 = vmatpush1.msra.mxu0 %v3590
    %3627 = vmatprep.subr.mxu0 0.0
    %3628 = vmatpush1.msra.mxu0 %v3591
    %3629 = vmatprep.subr.mxu0 0.0
    %3630 = vmatpush1.msra.mxu0 %v3592
    %3631 = vmatprep.subr.mxu0 0.0
    %3632 = vmatpush1.msra.mxu0 %v3593
    %3633 = vmatprep.subr.mxu0 0.0
    %3634 = vmatpush1.msra.mxu0 %v3594
    %3635 = vmatprep.subr.mxu0 0.0
    %3636 = vmatpush1.msra.mxu0 %v3595
    %3637 = vmatprep.subr.mxu0 0.0
    %3638 = vmatpush1.msra.mxu0 %v3596
    %3639 = vmatprep.subr.mxu0 0.0
    %3640 = vmatpush1.msra.mxu0 %v3597
    %3641 = vmatprep.subr.mxu0 0.0
    %3642 = vmatpush1.msra.mxu0 %v3598
    %3643 = vmatprep.subr.mxu0 0.0
    %3644 = vmatpush1.msra.mxu0 %v3599
    %3645 = vmatprep.subr.mxu0 0.0
    %3646 = vmatpush1.msra.mxu0 %v3600
    %3647 = vmatprep.subr.mxu0 0.0
    %3648 = vmatpush1.msra.mxu0 %v3601
    %3649 = vmatprep.subr.mxu0 0.0
    %3650 = vmatpush1.msra.mxu0 %v3602
    %3651 = vmatprep.subr.mxu0 0.0
    %3652 = vmatpush1.msra.mxu0 0.0
    %3653 = vmatprep.subr.mxu0 0.0
    %3654 = vmatpush1.msra.mxu0 0.0
    %3655 = vmatprep.subr.mxu0 0.0
    %3656 = vmatpush1.msra.mxu0 0.0
    %3657 = vmatprep.subr.mxu0 0.0
    %3658 = vmatpush1.msra.mxu0 0.0
    %3659 = vmatprep.subr.mxu0 0.0
    %3660 = vmatpush1.msra.mxu0 0.0
    %3661 = vmatprep.subr.mxu0 0.0
    %3662 = vmatpush1.msra.mxu0 0.0
    %3663 = vmatprep.subr.mxu0 0.0
    %3664 = vmatpush1.msra.mxu0 0.0
    %3665 = vmatprep.subr.mxu0 0.0
    %3666 = vmatpush1.msra.mxu0 0.0
    %3667 = vmatprep.subr.mxu0 0.0
    %3668 = vmatpush1.msra.mxu0 0.0
    %3669 = vmatprep.subr.mxu0 0.0
    %3670 = vmatpush1.msra.mxu0 0.0
    %3671 = vmatprep.subr.mxu0 0.0
    %3672 = vmatpush1.msra.mxu0 0.0
    %3673 = vmatprep.mubr.f32.mxu0 %v3604
    %3674 = vmatmul.mubr.f32.gmra.mrb[0].mxu0 %v3578
    %v3675 = vpop.f32.mrb[0].mxu0
    %v3676 = vadd.f32 0.0, %v3675
    %v3677 = vpop.f32.mrb[0].mxu0
    %3678 = vmatprep.mubr.f32.mxu0 %v3607
    %3679 = vmatmul.mubr.f32.gmra.mrb[0].mxu0 %v3580
    %v3680 = vpop.f32.mrb[0].mxu0
    %v3681 = vadd.f32 0.0, %v3680
    %v3682 = vpop.f32.mrb[0].mxu0
    %3683 = vdwg.mxu0
    %v3684 = vld [vmem:[%s1042] sm:$0xff]
    %v3685 = vld [vmem:[%s1042 + $0x8] sm:$0xff]
    %v3686 = vld [vmem:[%s1042 + $0x10] sm:$0xff]
    %v3687 = vld [vmem:[%s1042 + $0x18] sm:$0xff]
    %v3688 = vld [vmem:[%s1042 + $0x20] sm:$0xff]
    %v3689 = vld [vmem:[%s1042 + $0x28] sm:$0xff]
    %v3690 = vld [vmem:[%s1042 + $0x30] sm:$0xff]
    %v3691 = vld [vmem:[%s1042 + $0x38] sm:$0xff]
    %v3692 = vld [vmem:[%s1042 + $0x40] sm:$0xff]
    %v3693 = vld [vmem:[%s1042 + $0x48] sm:$0xff]
    %v3694 = vld [vmem:[%s1042 + $0x50] sm:$0xff]
    %v3695 = vld [vmem:[%s1042 + $0x58] sm:$0xff]
    %v3696 = vld [vmem:[%s1042 + $0x60] sm:$0xff]
    %v3697 = vld [vmem:[%s1042 + $0x68] sm:$0xff]
    %v3698 = vld [vmem:[%s1042 + $0x70] sm:$0xff]
    %v3699 = vld [vmem:[%s1042 + $0x78] sm:$0xff]
    %v3700 = vld [vmem:[%s1042 + $0x80] sm:$0xff]
    %v3701 = vld [vmem:[%s1042 + $0x88] sm:$0xff]
    %v3702 = vld [vmem:[%s1042 + $0x90] sm:$0xff]
    %v3703 = vld [vmem:[%s1042 + $0x98] sm:$0xff]
    %v3704 = vld [vmem:[%s1042 + $0xa0] sm:$0xff]
    %3705 = vmatprep.subr.mxu0 0.0
    %3706 = vmatpush1.msra.mxu0 %v3684
    %3707 = vmatprep.subr.mxu0 0.0
    %3708 = vmatpush1.msra.mxu0 %v3685
    %3709 = vmatprep.subr.mxu0 0.0
    %3710 = vmatpush1.msra.mxu0 %v3686
    %3711 = vmatprep.subr.mxu0 0.0
    %3712 = vmatpush1.msra.mxu0 %v3687
    %3713 = vmatprep.subr.mxu0 0.0
    %3714 = vmatpush1.msra.mxu0 %v3688
    %3715 = vmatprep.subr.mxu0 0.0
    %3716 = vmatpush1.msra.mxu0 %v3689
    %3717 = vmatprep.subr.mxu0 0.0
    %3718 = vmatpush1.msra.mxu0 %v3690
    %3719 = vmatprep.subr.mxu0 0.0
    %3720 = vmatpush1.msra.mxu0 %v3691
    %3721 = vmatprep.subr.mxu0 0.0
    %3722 = vmatpush1.msra.mxu0 %v3692
    %3723 = vmatprep.subr.mxu0 0.0
    %3724 = vmatpush1.msra.mxu0 %v3693
    %3725 = vmatprep.subr.mxu0 0.0
    %3726 = vmatpush1.msra.mxu0 %v3694
    %3727 = vmatprep.subr.mxu0 0.0
    %3728 = vmatpush1.msra.mxu0 %v3695
    %3729 = vmatprep.subr.mxu0 0.0
    %3730 = vmatpush1.msra.mxu0 %v3696
    %3731 = vmatprep.subr.mxu0 0.0
    %3732 = vmatpush1.msra.mxu0 %v3697
    %3733 = vmatprep.subr.mxu0 0.0
    %3734 = vmatpush1.msra.mxu0 %v3698
    %3735 = vmatprep.subr.mxu0 0.0
    %3736 = vmatpush1.msra.mxu0 %v3699
    %3737 = vmatprep.subr.mxu0 0.0
    %3738 = vmatpush1.msra.mxu0 %v3700
    %3739 = vmatprep.subr.mxu0 0.0
    %3740 = vmatpush1.msra.mxu0 %v3701
    %3741 = vmatprep.subr.mxu0 0.0
    %3742 = vmatpush1.msra.mxu0 %v3702
    %3743 = vmatprep.subr.mxu0 0.0
    %3744 = vmatpush1.msra.mxu0 %v3703
    %3745 = vmatprep.subr.mxu0 0.0
    %3746 = vmatpush1.msra.mxu0 %v3704
    %3747 = vmatprep.subr.mxu0 0.0
    %3748 = vmatpush1.msra.mxu0 0.0
    %3749 = vmatprep.subr.mxu0 0.0
    %3750 = vmatpush1.msra.mxu0 0.0
    %3751 = vmatprep.subr.mxu0 0.0
    %3752 = vmatpush1.msra.mxu0 0.0
    %3753 = vmatprep.subr.mxu0 0.0
    %3754 = vmatpush1.msra.mxu0 0.0
    %3755 = vmatprep.subr.mxu0 0.0
    %3756 = vmatpush1.msra.mxu0 0.0
    %3757 = vmatprep.subr.mxu0 0.0
    %3758 = vmatpush1.msra.mxu0 0.0
    %3759 = vmatprep.subr.mxu0 0.0
    %3760 = vmatpush1.msra.mxu0 0.0
    %3761 = vmatprep.subr.mxu0 0.0
    %3762 = vmatpush1.msra.mxu0 0.0
    %3763 = vmatprep.subr.mxu0 0.0
    %3764 = vmatpush1.msra.mxu0 0.0
    %3765 = vmatprep.subr.mxu0 0.0
    %3766 = vmatpush1.msra.mxu0 0.0
    %3767 = vmatprep.subr.mxu0 0.0
    %3768 = vmatpush1.msra.mxu0 0.0
    %3769 = vmatprep.mubr.f32.mxu0 %v3604
    %3770 = vmatmul.mubr.f32.gmra.mrb[0].mxu0 %v3578
    %v3771 = vpop.f32.mrb[0].mxu0
    %v3772 = vadd.f32 0.0, %v3771
    %v3773 = vpop.f32.mrb[0].mxu0
    %3774 = vmatprep.mubr.f32.mxu0 %v3607
    %3775 = vmatmul.mubr.f32.gmra.mrb[0].mxu0 %v3580
    %v3776 = vpop.f32.mrb[0].mxu0
    %v3777 = vadd.f32 0.0, %v3776
    %v3778 = vpop.f32.mrb[0].mxu0
    %3779 = vdwg.mxu0
    %v3780 = vmax.f32 %v3676, %v3772
    %v3781 = vmax.f32 %v3681, %v3777
    %3782 = vst.msk [vmem:[#allocation2] sm:$0xff] %vm1141, %v3780
    %3783 = vst.msk [vmem:[#allocation2 + $0x8] sm:$0x3f] %vm1143, %v3781
    %v3784 = vld [vmem:[#allocation2] sm:$0xff]
    %v3785 = vld [vmem:[#allocation2 + $0x8] sm:$0x3]
    %v3786 = vld [vmem:[%s5] sm:$0xff]
    %v3787 = vld [vmem:[%s5 + $0x8] sm:$0xff]
    %v3788 = vld [vmem:[%s5 + $0x10] sm:$0xff]
    %v3789 = vld [vmem:[%s5 + $0x18] sm:$0xff]
    %v3790 = vld [vmem:[%s5 + $0x20] sm:$0xff]
    %v3791 = vld [vmem:[%s5 + $0x28] sm:$0xff]
    %v3792 = vld [vmem:[%s5 + $0x30] sm:$0xff]
    %v3793 = vld [vmem:[%s5 + $0x38] sm:$0xff]
    %v3794 = vld [vmem:[%s5 + $0x40] sm:$0xff]
    %v3795 = vld [vmem:[%s5 + $0x48] sm:$0xff]
    %v3796 = vld [vmem:[%s5 + $0x50] sm:$0xff]
    %v3797 = vld [vmem:[%s5 + $0x58] sm:$0xff]
    %v3798 = vld [vmem:[%s5 + $0x60] sm:$0xff]
    %v3799 = vld [vmem:[%s5 + $0x68] sm:$0xff]
    %v3800 = vld [vmem:[%s5 + $0x70] sm:$0xff]
    %v3801 = vld [vmem:[%s5 + $0x78] sm:$0xff]
    %v3802 = vld [vmem:[%s5 + $0x80] sm:$0xff]
    %v3803 = vld [vmem:[%s5 + $0x88] sm:$0xff]
    %v3804 = vld [vmem:[%s5 + $0x90] sm:$0xff]
    %v3805 = vld [vmem:[%s5 + $0x98] sm:$0xff]
    %v3806 = vld [vmem:[%s5 + $0xa0] sm:$0xf]
    %v3807 = vld [vmem:[%s5 + $0xa8] sm:$0xf]
    %v3808 = vld [vmem:[#allocation2 + $0x1] sm:$0xff]
    %v3809 = vld [vmem:[#allocation2 + $0x9] sm:$0x3]
    %v3810 = vld [vmem:[%s1171] sm:$0xff]
    %v3811 = vld [vmem:[%s1171 + $0x8] sm:$0xff]
    %v3812 = vld [vmem:[%s1171 + $0x10] sm:$0xff]
    %v3813 = vld [vmem:[%s1171 + $0x18] sm:$0xff]
    %v3814 = vld [vmem:[%s1171 + $0x20] sm:$0xff]
    %v3815 = vld [vmem:[%s1171 + $0x28] sm:$0xff]
    %v3816 = vld [vmem:[%s1171 + $0x30] sm:$0xff]
    %v3817 = vld [vmem:[%s1171 + $0x38] sm:$0xff]
    %v3818 = vld [vmem:[%s1171 + $0x40] sm:$0xff]
    %v3819 = vld [vmem:[%s1171 + $0x48] sm:$0xff]
    %v3820 = vld [vmem:[%s1171 + $0x50] sm:$0xff]
    %v3821 = vld [vmem:[%s1171 + $0x58] sm:$0xff]
    %v3822 = vld [vmem:[%s1171 + $0x60] sm:$0xff]
    %v3823 = vld [vmem:[%s1171 + $0x68] sm:$0xff]
    %v3824 = vld [vmem:[%s1171 + $0x70] sm:$0xff]
    %v3825 = vld [vmem:[%s1171 + $0x78] sm:$0xff]
    %v3826 = vld [vmem:[%s1171 + $0x80] sm:$0xff]
    %v3827 = vld [vmem:[%s1171 + $0x88] sm:$0xff]
    %v3828 = vld [vmem:[%s1171 + $0x90] sm:$0xff]
    %v3829 = vld [vmem:[%s1171 + $0x98] sm:$0xff]
    %v3830 = vld [vmem:[%s1171 + $0xa0] sm:$0xf]
    %v3831 = vld [vmem:[%s1171 + $0xa8] sm:$0xf]
    %v3833 = vsel %vm1141, %v3808, 0
    %v3836 = vsel %vm1141, %v3809, 0
    %v3839 = vsel %vm765, %v3830, 0
    %v3842 = vsel %vm765, %v3831, 0
    %3844 = vmatprep.subr.mxu0 %v3811
    %3845 = vmatpush1.msra.mxu0 %v3810
    %3846 = vmatprep.subr.mxu0 %v3813
    %3847 = vmatpush1.msra.mxu0 %v3812
    %3848 = vmatprep.subr.mxu0 %v3815
    %3849 = vmatpush1.msra.mxu0 %v3814
    %3850 = vmatprep.subr.mxu0 %v3817
    %3851 = vmatpush1.msra.mxu0 %v3816
    %3852 = vmatprep.subr.mxu0 %v3819
    %3853 = vmatpush1.msra.mxu0 %v3818
    %3854 = vmatprep.subr.mxu0 %v3821
    %3855 = vmatpush1.msra.mxu0 %v3820
    %3856 = vmatprep.subr.mxu0 %v3823
    %3857 = vmatpush1.msra.mxu0 %v3822
    %3858 = vmatprep.subr.mxu0 %v3825
    %3859 = vmatpush1.msra.mxu0 %v3824
    %3860 = vmatprep.subr.mxu0 %v3827
    %3861 = vmatpush1.msra.mxu0 %v3826
    %3862 = vmatprep.subr.mxu0 %v3829
    %3863 = vmatpush1.msra.mxu0 %v3828
    %3864 = vmatprep.subr.mxu0 %v3842
    %3865 = vmatpush1.msra.mxu0 %v3839
    %3866 = vmatprep.subr.mxu0 0.0
    %3867 = vmatpush1.msra.mxu0 0.0
    %3868 = vmatprep.subr.mxu0 0.0
    %3869 = vmatpush1.msra.mxu0 0.0
    %3870 = vmatprep.subr.mxu0 0.0
    %3871 = vmatpush1.msra.mxu0 0.0
    %3872 = vmatprep.subr.mxu0 0.0
    %3873 = vmatpush1.msra.mxu0 0.0
    %3874 = vmatprep.subr.mxu0 0.0
    %3875 = vmatpush1.msra.mxu0 0.0
    %3876 = vmatprep.subr.mxu0 0.0
    %3877 = vmatpush1.msra.mxu0 0.0
    %3878 = vmatprep.subr.mxu0 0.0
    %3879 = vmatpush1.msra.mxu0 0.0
    %3880 = vmatprep.subr.mxu0 0.0
    %3881 = vmatpush1.msra.mxu0 0.0
    %3882 = vmatprep.subr.mxu0 0.0
    %3883 = vmatpush1.msra.mxu0 0.0
    %3884 = vmatprep.subr.mxu0 0.0
    %3885 = vmatpush1.msra.mxu0 0.0
    %3886 = vmatprep.subr.mxu0 0.0
    %3887 = vmatpush1.msra.mxu0 0.0
    %3888 = vmatprep.subr.mxu0 0.0
    %3889 = vmatpush1.msra.mxu0 0.0
    %3890 = vmatprep.subr.mxu0 0.0
    %3891 = vmatpush1.msra.mxu0 0.0
    %3892 = vmatprep.subr.mxu0 0.0
    %3893 = vmatpush1.msra.mxu0 0.0
    %3894 = vmatprep.subr.mxu0 0.0
    %3895 = vmatpush1.msra.mxu0 0.0
    %3896 = vmatprep.subr.mxu0 0.0
    %3897 = vmatpush1.msra.mxu0 0.0
    %3898 = vmatprep.subr.mxu0 0.0
    %3899 = vmatpush1.msra.mxu0 0.0
    %3900 = vmatprep.subr.mxu0 0.0
    %3901 = vmatpush1.msra.mxu0 0.0
    %3902 = vmatprep.subr.mxu0 0.0
    %3903 = vmatpush1.msra.mxu0 0.0
    %3904 = vmatprep.subr.mxu0 0.0
    %3905 = vmatpush1.msra.mxu0 0.0
    %3906 = vmatprep.subr.mxu0 0.0
    %3907 = vmatpush1.msra.mxu0 0.0
    %3908 = vmatprep.mubr.f32.mxu0 0.0
    %3909 = vmatmul.mubr.f32.gmra.mrb[0].mxu0 %v3833
    %v3910 = vpop.f32.mrb[0].mxu0
    %v3911 = vadd.f32 0.0, %v3910
    %v3912 = vpop.f32.mrb[0].mxu0
    %v3913 = vadd.f32 0.0, %v3912
    %3914 = vmatprep.mubr.f32.mxu0 0.0
    %3915 = vmatmul.mubr.f32.gmra.mrb[0].mxu0 %v3836
    %v3916 = vpop.f32.mrb[0].mxu0
    %v3917 = vadd.f32 0.0, %v3916
    %v3918 = vpop.f32.mrb[0].mxu0
    %v3919 = vadd.f32 0.0, %v3918
    %3920 = vdwg.mxu0
    %v3922 = vsel %vm1141, %v3784, 0
    %v3925 = vsel %vm1141, %v3785, 0
    %v3928 = vsel %vm765, %v3806, 0
    %v3931 = vsel %vm765, %v3807, 0
    %3933 = vmatprep.subr.mxu0 %v3787
    %3934 = vmatpush1.msra.mxu0 %v3786
    %3935 = vmatprep.subr.mxu0 %v3789
    %3936 = vmatpush1.msra.mxu0 %v3788
    %3937 = vmatprep.subr.mxu0 %v3791
    %3938 = vmatpush1.msra.mxu0 %v3790
    %3939 = vmatprep.subr.mxu0 %v3793
    %3940 = vmatpush1.msra.mxu0 %v3792
    %3941 = vmatprep.subr.mxu0 %v3795
    %3942 = vmatpush1.msra.mxu0 %v3794
    %3943 = vmatprep.subr.mxu0 %v3797
    %3944 = vmatpush1.msra.mxu0 %v3796
    %3945 = vmatprep.subr.mxu0 %v3799
    %3946 = vmatpush1.msra.mxu0 %v3798
    %3947 = vmatprep.subr.mxu0 %v3801
    %3948 = vmatpush1.msra.mxu0 %v3800
    %3949 = vmatprep.subr.mxu0 %v3803
    %3950 = vmatpush1.msra.mxu0 %v3802
    %3951 = vmatprep.subr.mxu0 %v3805
    %3952 = vmatpush1.msra.mxu0 %v3804
    %3953 = vmatprep.subr.mxu0 %v3931
    %3954 = vmatpush1.msra.mxu0 %v3928
    %3955 = vmatprep.subr.mxu0 0.0
    %3956 = vmatpush1.msra.mxu0 0.0
    %3957 = vmatprep.subr.mxu0 0.0
    %3958 = vmatpush1.msra.mxu0 0.0
    %3959 = vmatprep.subr.mxu0 0.0
    %3960 = vmatpush1.msra.mxu0 0.0
    %3961 = vmatprep.subr.mxu0 0.0
    %3962 = vmatpush1.msra.mxu0 0.0
    %3963 = vmatprep.subr.mxu0 0.0
    %3964 = vmatpush1.msra.mxu0 0.0
    %3965 = vmatprep.subr.mxu0 0.0
    %3966 = vmatpush1.msra.mxu0 0.0
    %3967 = vmatprep.subr.mxu0 0.0
    %3968 = vmatpush1.msra.mxu0 0.0
    %3969 = vmatprep.subr.mxu0 0.0
    %3970 = vmatpush1.msra.mxu0 0.0
    %3971 = vmatprep.subr.mxu0 0.0
    %3972 = vmatpush1.msra.mxu0 0.0
    %3973 = vmatprep.subr.mxu0 0.0
    %3974 = vmatpush1.msra.mxu0 0.0
    %3975 = vmatprep.subr.mxu0 0.0
    %3976 = vmatpush1.msra.mxu0 0.0
    %3977 = vmatprep.subr.mxu0 0.0
    %3978 = vmatpush1.msra.mxu0 0.0
    %3979 = vmatprep.subr.mxu0 0.0
    %3980 = vmatpush1.msra.mxu0 0.0
    %3981 = vmatprep.subr.mxu0 0.0
    %3982 = vmatpush1.msra.mxu0 0.0
    %3983 = vmatprep.subr.mxu0 0.0
    %3984 = vmatpush1.msra.mxu0 0.0
    %3985 = vmatprep.subr.mxu0 0.0
    %3986 = vmatpush1.msra.mxu0 0.0
    %3987 = vmatprep.subr.mxu0 0.0
    %3988 = vmatpush1.msra.mxu0 0.0
    %3989 = vmatprep.subr.mxu0 0.0
    %3990 = vmatpush1.msra.mxu0 0.0
    %3991 = vmatprep.subr.mxu0 0.0
    %3992 = vmatpush1.msra.mxu0 0.0
    %3993 = vmatprep.subr.mxu0 0.0
    %3994 = vmatpush1.msra.mxu0 0.0
    %3995 = vmatprep.subr.mxu0 0.0
    %3996 = vmatpush1.msra.mxu0 0.0
    %3997 = vmatprep.mubr.f32.mxu0 0.0
    %3998 = vmatmul.mubr.f32.gmra.mrb[0].mxu0 %v3922
    %v3999 = vpop.f32.mrb[0].mxu0
    %v4000 = vadd.f32 %v3911, %v3999
    %v4001 = vpop.f32.mrb[0].mxu0
    %v4002 = vadd.f32 %v3913, %v4001
    %4003 = vmatprep.mubr.f32.mxu0 0.0
    %4004 = vmatmul.mubr.f32.gmra.mrb[0].mxu0 %v3925
    %v4005 = vpop.f32.mrb[0].mxu0
    %v4006 = vadd.f32 %v3917, %v4005
    %v4007 = vpop.f32.mrb[0].mxu0
    %v4008 = vadd.f32 %v3919, %v4007
    %4009 = vdwg.mxu0
    %v4010 = vld [vmem:[#allocation2 + $0x2] sm:$0xff]
    %v4011 = vld [vmem:[#allocation2 + $0xa] sm:$0x3]
    %v4012 = vld [vmem:[%s1374] sm:$0xff]
    %v4013 = vld [vmem:[%s1374 + $0x8] sm:$0xff]
    %v4014 = vld [vmem:[%s1374 + $0x10] sm:$0xff]
    %v4015 = vld [vmem:[%s1374 + $0x18] sm:$0xff]
    %v4016 = vld [vmem:[%s1374 + $0x20] sm:$0xff]
    %v4017 = vld [vmem:[%s1374 + $0x28] sm:$0xff]
    %v4018 = vld [vmem:[%s1374 + $0x30] sm:$0xff]
    %v4019 = vld [vmem:[%s1374 + $0x38] sm:$0xff]
    %v4020 = vld [vmem:[%s1374 + $0x40] sm:$0xff]
    %v4021 = vld [vmem:[%s1374 + $0x48] sm:$0xff]
    %v4022 = vld [vmem:[%s1374 + $0x50] sm:$0xff]
    %v4023 = vld [vmem:[%s1374 + $0x58] sm:$0xff]
    %v4024 = vld [vmem:[%s1374 + $0x60] sm:$0xff]
    %v4025 = vld [vmem:[%s1374 + $0x68] sm:$0xff]
    %v4026 = vld [vmem:[%s1374 + $0x70] sm:$0xff]
    %v4027 = vld [vmem:[%s1374 + $0x78] sm:$0xff]
    %v4028 = vld [vmem:[%s1374 + $0x80] sm:$0xff]
    %v4029 = vld [vmem:[%s1374 + $0x88] sm:$0xff]
    %v4030 = vld [vmem:[%s1374 + $0x90] sm:$0xff]
    %v4031 = vld [vmem:[%s1374 + $0x98] sm:$0xff]
    %v4032 = vld [vmem:[%s1374 + $0xa0] sm:$0xf]
    %v4033 = vld [vmem:[%s1374 + $0xa8] sm:$0xf]
    %v4035 = vsel %vm1141, %v4010, 0
    %v4038 = vsel %vm1141, %v4011, 0
    %v4041 = vsel %vm765, %v4032, 0
    %v4044 = vsel %vm765, %v4033, 0
    %4046 = vmatprep.subr.mxu0 %v4013
    %4047 = vmatpush1.msra.mxu0 %v4012
    %4048 = vmatprep.subr.mxu0 %v4015
    %4049 = vmatpush1.msra.mxu0 %v4014
    %4050 = vmatprep.subr.mxu0 %v4017
    %4051 = vmatpush1.msra.mxu0 %v4016
    %4052 = vmatprep.subr.mxu0 %v4019
    %4053 = vmatpush1.msra.mxu0 %v4018
    %4054 = vmatprep.subr.mxu0 %v4021
    %4055 = vmatpush1.msra.mxu0 %v4020
    %4056 = vmatprep.subr.mxu0 %v4023
    %4057 = vmatpush1.msra.mxu0 %v4022
    %4058 = vmatprep.subr.mxu0 %v4025
    %4059 = vmatpush1.msra.mxu0 %v4024
    %4060 = vmatprep.subr.mxu0 %v4027
    %4061 = vmatpush1.msra.mxu0 %v4026
    %4062 = vmatprep.subr.mxu0 %v4029
    %4063 = vmatpush1.msra.mxu0 %v4028
    %4064 = vmatprep.subr.mxu0 %v4031
    %4065 = vmatpush1.msra.mxu0 %v4030
    %4066 = vmatprep.subr.mxu0 %v4044
    %4067 = vmatpush1.msra.mxu0 %v4041
    %4068 = vmatprep.subr.mxu0 0.0
    %4069 = vmatpush1.msra.mxu0 0.0
    %4070 = vmatprep.subr.mxu0 0.0
    %4071 = vmatpush1.msra.mxu0 0.0
    %4072 = vmatprep.subr.mxu0 0.0
    %4073 = vmatpush1.msra.mxu0 0.0
    %4074 = vmatprep.subr.mxu0 0.0
    %4075 = vmatpush1.msra.mxu0 0.0
    %4076 = vmatprep.subr.mxu0 0.0
    %4077 = vmatpush1.msra.mxu0 0.0
    %4078 = vmatprep.subr.mxu0 0.0
    %4079 = vmatpush1.msra.mxu0 0.0
    %4080 = vmatprep.subr.mxu0 0.0
    %4081 = vmatpush1.msra.mxu0 0.0
    %4082 = vmatprep.subr.mxu0 0.0
    %4083 = vmatpush1.msra.mxu0 0.0
    %4084 = vmatprep.subr.mxu0 0.0
    %4085 = vmatpush1.msra.mxu0 0.0
    %4086 = vmatprep.subr.mxu0 0.0
    %4087 = vmatpush1.msra.mxu0 0.0
    %4088 = vmatprep.subr.mxu0 0.0
    %4089 = vmatpush1.msra.mxu0 0.0
    %4090 = vmatprep.subr.mxu0 0.0
    %4091 = vmatpush1.msra.mxu0 0.0
    %4092 = vmatprep.subr.mxu0 0.0
    %4093 = vmatpush1.msra.mxu0 0.0
    %4094 = vmatprep.subr.mxu0 0.0
    %4095 = vmatpush1.msra.mxu0 0.0
    %4096 = vmatprep.subr.mxu0 0.0
    %4097 = vmatpush1.msra.mxu0 0.0
    %4098 = vmatprep.subr.mxu0 0.0
    %4099 = vmatpush1.msra.mxu0 0.0
    %4100 = vmatprep.subr.mxu0 0.0
    %4101 = vmatpush1.msra.mxu0 0.0
    %4102 = vmatprep.subr.mxu0 0.0
    %4103 = vmatpush1.msra.mxu0 0.0
    %4104 = vmatprep.subr.mxu0 0.0
    %4105 = vmatpush1.msra.mxu0 0.0
    %4106 = vmatprep.subr.mxu0 0.0
    %4107 = vmatpush1.msra.mxu0 0.0
    %4108 = vmatprep.subr.mxu0 0.0
    %4109 = vmatpush1.msra.mxu0 0.0
    %4110 = vmatprep.mubr.f32.mxu0 0.0
    %4111 = vmatmul.mubr.f32.gmra.mrb[0].mxu0 %v4035
    %v4112 = vpop.f32.mrb[0].mxu0
    %v4113 = vadd.f32 0.0, %v4112
    %v4114 = vpop.f32.mrb[0].mxu0
    %v4115 = vadd.f32 0.0, %v4114
    %4116 = vmatprep.mubr.f32.mxu0 0.0
    %4117 = vmatmul.mubr.f32.gmra.mrb[0].mxu0 %v4038
    %v4118 = vpop.f32.mrb[0].mxu0
    %v4119 = vadd.f32 0.0, %v4118
    %v4120 = vpop.f32.mrb[0].mxu0
    %v4121 = vadd.f32 0.0, %v4120
    %4122 = vdwg.mxu0
    %v4123 = vadd.f32 %v4000, %v4113
    %v4124 = vadd.f32 %v4002, %v4115
    %v4125 = vadd.f32 %v4006, %v4119
    %v4126 = vadd.f32 %v4008, %v4121
    %v4127 = vld [vmem:[#allocation2 + $0x3] sm:$0xff]
    %v4128 = vld [vmem:[#allocation2 + $0xb] sm:$0x3]
    %v4129 = vld [vmem:[%s1492] sm:$0xff]
    %v4130 = vld [vmem:[%s1492 + $0x8] sm:$0xff]
    %v4131 = vld [vmem:[%s1492 + $0x10] sm:$0xff]
    %v4132 = vld [vmem:[%s1492 + $0x18] sm:$0xff]
    %v4133 = vld [vmem:[%s1492 + $0x20] sm:$0xff]
    %v4134 = vld [vmem:[%s1492 + $0x28] sm:$0xff]
    %v4135 = vld [vmem:[%s1492 + $0x30] sm:$0xff]
    %v4136 = vld [vmem:[%s1492 + $0x38] sm:$0xff]
    %v4137 = vld [vmem:[%s1492 + $0x40] sm:$0xff]
    %v4138 = vld [vmem:[%s1492 + $0x48] sm:$0xff]
    %v4139 = vld [vmem:[%s1492 + $0x50] sm:$0xff]
    %v4140 = vld [vmem:[%s1492 + $0x58] sm:$0xff]
    %v4141 = vld [vmem:[%s1492 + $0x60] sm:$0xff]
    %v4142 = vld [vmem:[%s1492 + $0x68] sm:$0xff]
    %v4143 = vld [vmem:[%s1492 + $0x70] sm:$0xff]
    %v4144 = vld [vmem:[%s1492 + $0x78] sm:$0xff]
    %v4145 = vld [vmem:[%s1492 + $0x80] sm:$0xff]
    %v4146 = vld [vmem:[%s1492 + $0x88] sm:$0xff]
    %v4147 = vld [vmem:[%s1492 + $0x90] sm:$0xff]
    %v4148 = vld [vmem:[%s1492 + $0x98] sm:$0xff]
    %v4149 = vld [vmem:[%s1492 + $0xa0] sm:$0xf]
    %v4150 = vld [vmem:[%s1492 + $0xa8] sm:$0xf]
    %v4152 = vsel %vm1141, %v4127, 0
    %v4155 = vsel %vm1141, %v4128, 0
    %v4158 = vsel %vm765, %v4149, 0
    %v4161 = vsel %vm765, %v4150, 0
    %4163 = vmatprep.subr.mxu0 %v4130
    %4164 = vmatpush1.msra.mxu0 %v4129
    %4165 = vmatprep.subr.mxu0 %v4132
    %4166 = vmatpush1.msra.mxu0 %v4131
    %4167 = vmatprep.subr.mxu0 %v4134
    %4168 = vmatpush1.msra.mxu0 %v4133
    %4169 = vmatprep.subr.mxu0 %v4136
    %4170 = vmatpush1.msra.mxu0 %v4135
    %4171 = vmatprep.subr.mxu0 %v4138
    %4172 = vmatpush1.msra.mxu0 %v4137
    %4173 = vmatprep.subr.mxu0 %v4140
    %4174 = vmatpush1.msra.mxu0 %v4139
    %4175 = vmatprep.subr.mxu0 %v4142
    %4176 = vmatpush1.msra.mxu0 %v4141
    %4177 = vmatprep.subr.mxu0 %v4144
    %4178 = vmatpush1.msra.mxu0 %v4143
    %4179 = vmatprep.subr.mxu0 %v4146
    %4180 = vmatpush1.msra.mxu0 %v4145
    %4181 = vmatprep.subr.mxu0 %v4148
    %4182 = vmatpush1.msra.mxu0 %v4147
    %4183 = vmatprep.subr.mxu0 %v4161
    %4184 = vmatpush1.msra.mxu0 %v4158
    %4185 = vmatprep.subr.mxu0 0.0
    %4186 = vmatpush1.msra.mxu0 0.0
    %4187 = vmatprep.subr.mxu0 0.0
    %4188 = vmatpush1.msra.mxu0 0.0
    %4189 = vmatprep.subr.mxu0 0.0
    %4190 = vmatpush1.msra.mxu0 0.0
    %4191 = vmatprep.subr.mxu0 0.0
    %4192 = vmatpush1.msra.mxu0 0.0
    %4193 = vmatprep.subr.mxu0 0.0
    %4194 = vmatpush1.msra.mxu0 0.0
    %4195 = vmatprep.subr.mxu0 0.0
    %4196 = vmatpush1.msra.mxu0 0.0
    %4197 = vmatprep.subr.mxu0 0.0
    %4198 = vmatpush1.msra.mxu0 0.0
    %4199 = vmatprep.subr.mxu0 0.0
    %4200 = vmatpush1.msra.mxu0 0.0
    %4201 = vmatprep.subr.mxu0 0.0
    %4202 = vmatpush1.msra.mxu0 0.0
    %4203 = vmatprep.subr.mxu0 0.0
    %4204 = vmatpush1.msra.mxu0 0.0
    %4205 = vmatprep.subr.mxu0 0.0
    %4206 = vmatpush1.msra.mxu0 0.0
    %4207 = vmatprep.subr.mxu0 0.0
    %4208 = vmatpush1.msra.mxu0 0.0
    %4209 = vmatprep.subr.mxu0 0.0
    %4210 = vmatpush1.msra.mxu0 0.0
    %4211 = vmatprep.subr.mxu0 0.0
    %4212 = vmatpush1.msra.mxu0 0.0
    %4213 = vmatprep.subr.mxu0 0.0
    %4214 = vmatpush1.msra.mxu0 0.0
    %4215 = vmatprep.subr.mxu0 0.0
    %4216 = vmatpush1.msra.mxu0 0.0
    %4217 = vmatprep.subr.mxu0 0.0
    %4218 = vmatpush1.msra.mxu0 0.0
    %4219 = vmatprep.subr.mxu0 0.0
    %4220 = vmatpush1.msra.mxu0 0.0
    %4221 = vmatprep.subr.mxu0 0.0
    %4222 = vmatpush1.msra.mxu0 0.0
    %4223 = vmatprep.subr.mxu0 0.0
    %4224 = vmatpush1.msra.mxu0 0.0
    %4225 = vmatprep.subr.mxu0 0.0
    %4226 = vmatpush1.msra.mxu0 0.0
    %4227 = vmatprep.mubr.f32.mxu0 0.0
    %4228 = vmatmul.mubr.f32.gmra.mrb[0].mxu0 %v4152
    %v4229 = vpop.f32.mrb[0].mxu0
    %v4230 = vadd.f32 0.0, %v4229
    %v4231 = vpop.f32.mrb[0].mxu0
    %v4232 = vadd.f32 0.0, %v4231
    %4233 = vmatprep.mubr.f32.mxu0 0.0
    %4234 = vmatmul.mubr.f32.gmra.mrb[0].mxu0 %v4155
    %v4235 = vpop.f32.mrb[0].mxu0
    %v4236 = vadd.f32 0.0, %v4235
    %v4237 = vpop.f32.mrb[0].mxu0
    %v4238 = vadd.f32 0.0, %v4237
    %4239 = vdwg.mxu0
    %v4240 = vadd.f32 %v4123, %v4230
    %v4241 = vadd.f32 %v4124, %v4232
    %v4242 = vadd.f32 %v4125, %v4236
    %v4243 = vadd.f32 %v4126, %v4238
    %v4244 = vld [vmem:[#allocation2 + $0x4] sm:$0xff]
    %v4245 = vld [vmem:[#allocation2 + $0xc] sm:$0x3]
    %v4246 = vld [vmem:[%s1610] sm:$0xff]
    %v4247 = vld [vmem:[%s1610 + $0x8] sm:$0xff]
    %v4248 = vld [vmem:[%s1610 + $0x10] sm:$0xff]
    %v4249 = vld [vmem:[%s1610 + $0x18] sm:$0xff]
    %v4250 = vld [vmem:[%s1610 + $0x20] sm:$0xff]
    %v4251 = vld [vmem:[%s1610 + $0x28] sm:$0xff]
    %v4252 = vld [vmem:[%s1610 + $0x30] sm:$0xff]
    %v4253 = vld [vmem:[%s1610 + $0x38] sm:$0xff]
    %v4254 = vld [vmem:[%s1610 + $0x40] sm:$0xff]
    %v4255 = vld [vmem:[%s1610 + $0x48] sm:$0xff]
    %v4256 = vld [vmem:[%s1610 + $0x50] sm:$0xff]
    %v4257 = vld [vmem:[%s1610 + $0x58] sm:$0xff]
    %v4258 = vld [vmem:[%s1610 + $0x60] sm:$0xff]
    %v4259 = vld [vmem:[%s1610 + $0x68] sm:$0xff]
    %v4260 = vld [vmem:[%s1610 + $0x70] sm:$0xff]
    %v4261 = vld [vmem:[%s1610 + $0x78] sm:$0xff]
    %v4262 = vld [vmem:[%s1610 + $0x80] sm:$0xff]
    %v4263 = vld [vmem:[%s1610 + $0x88] sm:$0xff]
    %v4264 = vld [vmem:[%s1610 + $0x90] sm:$0xff]
    %v4265 = vld [vmem:[%s1610 + $0x98] sm:$0xff]
    %v4266 = vld [vmem:[%s1610 + $0xa0] sm:$0xf]
    %v4267 = vld [vmem:[%s1610 + $0xa8] sm:$0xf]
    %v4269 = vsel %vm1141, %v4244, 0
    %v4272 = vsel %vm1141, %v4245, 0
    %v4275 = vsel %vm765, %v4266, 0
    %v4278 = vsel %vm765, %v4267, 0
    %4280 = vmatprep.subr.mxu0 %v4247
    %4281 = vmatpush1.msra.mxu0 %v4246
    %4282 = vmatprep.subr.mxu0 %v4249
    %4283 = vmatpush1.msra.mxu0 %v4248
    %4284 = vmatprep.subr.mxu0 %v4251
    %4285 = vmatpush1.msra.mxu0 %v4250
    %4286 = vmatprep.subr.mxu0 %v4253
    %4287 = vmatpush1.msra.mxu0 %v4252
    %4288 = vmatprep.subr.mxu0 %v4255
    %4289 = vmatpush1.msra.mxu0 %v4254
    %4290 = vmatprep.subr.mxu0 %v4257
    %4291 = vmatpush1.msra.mxu0 %v4256
    %4292 = vmatprep.subr.mxu0 %v4259
    %4293 = vmatpush1.msra.mxu0 %v4258
    %4294 = vmatprep.subr.mxu0 %v4261
    %4295 = vmatpush1.msra.mxu0 %v4260
    %4296 = vmatprep.subr.mxu0 %v4263
    %4297 = vmatpush1.msra.mxu0 %v4262
    %4298 = vmatprep.subr.mxu0 %v4265
    %4299 = vmatpush1.msra.mxu0 %v4264
    %4300 = vmatprep.subr.mxu0 %v4278
    %4301 = vmatpush1.msra.mxu0 %v4275
    %4302 = vmatprep.subr.mxu0 0.0
    %4303 = vmatpush1.msra.mxu0 0.0
    %4304 = vmatprep.subr.mxu0 0.0
    %4305 = vmatpush1.msra.mxu0 0.0
    %4306 = vmatprep.subr.mxu0 0.0
    %4307 = vmatpush1.msra.mxu0 0.0
    %4308 = vmatprep.subr.mxu0 0.0
    %4309 = vmatpush1.msra.mxu0 0.0
    %4310 = vmatprep.subr.mxu0 0.0
    %4311 = vmatpush1.msra.mxu0 0.0
    %4312 = vmatprep.subr.mxu0 0.0
    %4313 = vmatpush1.msra.mxu0 0.0
    %4314 = vmatprep.subr.mxu0 0.0
    %4315 = vmatpush1.msra.mxu0 0.0
    %4316 = vmatprep.subr.mxu0 0.0
    %4317 = vmatpush1.msra.mxu0 0.0
    %4318 = vmatprep.subr.mxu0 0.0
    %4319 = vmatpush1.msra.mxu0 0.0
    %4320 = vmatprep.subr.mxu0 0.0
    %4321 = vmatpush1.msra.mxu0 0.0
    %4322 = vmatprep.subr.mxu0 0.0
    %4323 = vmatpush1.msra.mxu0 0.0
    %4324 = vmatprep.subr.mxu0 0.0
    %4325 = vmatpush1.msra.mxu0 0.0
    %4326 = vmatprep.subr.mxu0 0.0
    %4327 = vmatpush1.msra.mxu0 0.0
    %4328 = vmatprep.subr.mxu0 0.0
    %4329 = vmatpush1.msra.mxu0 0.0
    %4330 = vmatprep.subr.mxu0 0.0
    %4331 = vmatpush1.msra.mxu0 0.0
    %4332 = vmatprep.subr.mxu0 0.0
    %4333 = vmatpush1.msra.mxu0 0.0
    %4334 = vmatprep.subr.mxu0 0.0
    %4335 = vmatpush1.msra.mxu0 0.0
    %4336 = vmatprep.subr.mxu0 0.0
    %4337 = vmatpush1.msra.mxu0 0.0
    %4338 = vmatprep.subr.mxu0 0.0
    %4339 = vmatpush1.msra.mxu0 0.0
    %4340 = vmatprep.subr.mxu0 0.0
    %4341 = vmatpush1.msra.mxu0 0.0
    %4342 = vmatprep.subr.mxu0 0.0
    %4343 = vmatpush1.msra.mxu0 0.0
    %4344 = vmatprep.mubr.f32.mxu0 0.0
    %4345 = vmatmul.mubr.f32.gmra.mrb[0].mxu0 %v4269
    %v4346 = vpop.f32.mrb[0].mxu0
    %v4347 = vadd.f32 0.0, %v4346
    %v4348 = vpop.f32.mrb[0].mxu0
    %v4349 = vadd.f32 0.0, %v4348
    %4350 = vmatprep.mubr.f32.mxu0 0.0
    %4351 = vmatmul.mubr.f32.gmra.mrb[0].mxu0 %v4272
    %v4352 = vpop.f32.mrb[0].mxu0
    %v4353 = vadd.f32 0.0, %v4352
    %v4354 = vpop.f32.mrb[0].mxu0
    %v4355 = vadd.f32 0.0, %v4354
    %4356 = vdwg.mxu0
    %v4357 = vadd.f32 %v4240, %v4347
    %v4358 = vadd.f32 %v4241, %v4349
    %v4359 = vadd.f32 %v4242, %v4353
    %v4360 = vadd.f32 %v4243, %v4355
    %v4361 = vld [vmem:[%s6] sm:$0x3]
    %v4363 = vlaneseq
    %v4364 = vshrl.u32 %v4363, 7
    %v4365 = vsub.s32 0, %v4364
    %v4366 = vrot.slane %v4361, %v4365
    %v4367 = vlaneseq
    %v4368 = vshrl.u32 %v4367, 7
    %v4369 = vsub.s32 1, %v4368
    %v4370 = vrot.slane %v4361, %v4369
    %v4373 = vadd.f32 %v4357, %v4366
    %v4374 = vadd.f32 %v4358, %v4370
    %v4375 = vadd.f32 %v4359, %v4366
    %v4376 = vadd.f32 %v4360, %v4370
    %v4377 = vmax.f32 %v4373, 0.0
    %v4378 = vmax.f32 %v4374, 0.0
    %v4379 = vmax.f32 %v4375, 0.0
    %v4380 = vmax.f32 %v4376, 0.0
    %v4381 = vld [vmem:[%s7] sm:$0x1f]
    %v4383 = vsel %vm1747, %v4381, 0
    %v4386 = vsel %vm1751, %v4379, 0
    %v4389 = vsel %vm1751, %v4380, 0
    %4391 = vmatprep.subr.mxu0 %v4378
    %4392 = vmatpush1.msra.mxu0 %v4377
    %4393 = vmatprep.subr.mxu0 %v4389
    %4394 = vmatpush1.msra.mxu0 %v4386
    %4395 = vmatprep.subr.mxu0 0.0
    %4396 = vmatpush1.msra.mxu0 0.0
    %4397 = vmatprep.subr.mxu0 0.0
    %4398 = vmatpush1.msra.mxu0 0.0
    %4399 = vmatprep.subr.mxu0 0.0
    %4400 = vmatpush1.msra.mxu0 0.0
    %4401 = vmatprep.subr.mxu0 0.0
    %4402 = vmatpush1.msra.mxu0 0.0
    %4403 = vmatprep.subr.mxu0 0.0
    %4404 = vmatpush1.msra.mxu0 0.0
    %4405 = vmatprep.subr.mxu0 0.0
    %4406 = vmatpush1.msra.mxu0 0.0
    %4407 = vmatprep.subr.mxu0 0.0
    %4408 = vmatpush1.msra.mxu0 0.0
    %4409 = vmatprep.subr.mxu0 0.0
    %4410 = vmatpush1.msra.mxu0 0.0
    %4411 = vmatprep.subr.mxu0 0.0
    %4412 = vmatpush1.msra.mxu0 0.0
    %4413 = vmatprep.subr.mxu0 0.0
    %4414 = vmatpush1.msra.mxu0 0.0
    %4415 = vmatprep.subr.mxu0 0.0
    %4416 = vmatpush1.msra.mxu0 0.0
    %4417 = vmatprep.subr.mxu0 0.0
    %4418 = vmatpush1.msra.mxu0 0.0
    %4419 = vmatprep.subr.mxu0 0.0
    %4420 = vmatpush1.msra.mxu0 0.0
    %4421 = vmatprep.subr.mxu0 0.0
    %4422 = vmatpush1.msra.mxu0 0.0
    %4423 = vmatprep.subr.mxu0 0.0
    %4424 = vmatpush1.msra.mxu0 0.0
    %4425 = vmatprep.subr.mxu0 0.0
    %4426 = vmatpush1.msra.mxu0 0.0
    %4427 = vmatprep.subr.mxu0 0.0
    %4428 = vmatpush1.msra.mxu0 0.0
    %4429 = vmatprep.subr.mxu0 0.0
    %4430 = vmatpush1.msra.mxu0 0.0
    %4431 = vmatprep.subr.mxu0 0.0
    %4432 = vmatpush1.msra.mxu0 0.0
    %4433 = vmatprep.subr.mxu0 0.0
    %4434 = vmatpush1.msra.mxu0 0.0
    %4435 = vmatprep.subr.mxu0 0.0
    %4436 = vmatpush1.msra.mxu0 0.0
    %4437 = vmatprep.subr.mxu0 0.0
    %4438 = vmatpush1.msra.mxu0 0.0
    %4439 = vmatprep.subr.mxu0 0.0
    %4440 = vmatpush1.msra.mxu0 0.0
    %4441 = vmatprep.subr.mxu0 0.0
    %4442 = vmatpush1.msra.mxu0 0.0
    %4443 = vmatprep.subr.mxu0 0.0
    %4444 = vmatpush1.msra.mxu0 0.0
    %4445 = vmatprep.subr.mxu0 0.0
    %4446 = vmatpush1.msra.mxu0 0.0
    %4447 = vmatprep.subr.mxu0 0.0
    %4448 = vmatpush1.msra.mxu0 0.0
    %4449 = vmatprep.subr.mxu0 0.0
    %4450 = vmatpush1.msra.mxu0 0.0
    %4451 = vmatprep.subr.mxu0 0.0
    %4452 = vmatpush1.msra.mxu0 0.0
    %4453 = vmatprep.subr.mxu0 0.0
    %4454 = vmatpush1.msra.mxu0 0.0
    %4455 = vmatprep.mubr.f32.mxu0 0.0
    %4456 = vmatmul.mubr.f32.gmra.mrb[0].mxu0 %v4383
    %v4457 = vpop.f32.mrb[0].mxu0
    %v4458 = vadd.f32 0.0, %v4457
    %v4459 = vpop.f32.mrb[0].mxu0
    %v4460 = vadd.f32 0.0, %v4459
    %4461 = vdwg.mxu0
    %v4462 = vld [vmem:[%s1829] sm:$0x1f]
    %v4464 = vsel %vm1747, %v4462, 0
    %4466 = vmatprep.subr.mxu0 %v4378
    %4467 = vmatpush1.msra.mxu0 %v4377
    %4468 = vmatprep.subr.mxu0 %v4389
    %4469 = vmatpush1.msra.mxu0 %v4386
    %4470 = vmatprep.subr.mxu0 0.0
    %4471 = vmatpush1.msra.mxu0 0.0
    %4472 = vmatprep.subr.mxu0 0.0
    %4473 = vmatpush1.msra.mxu0 0.0
    %4474 = vmatprep.subr.mxu0 0.0
    %4475 = vmatpush1.msra.mxu0 0.0
    %4476 = vmatprep.subr.mxu0 0.0
    %4477 = vmatpush1.msra.mxu0 0.0
    %4478 = vmatprep.subr.mxu0 0.0
    %4479 = vmatpush1.msra.mxu0 0.0
    %4480 = vmatprep.subr.mxu0 0.0
    %4481 = vmatpush1.msra.mxu0 0.0
    %4482 = vmatprep.subr.mxu0 0.0
    %4483 = vmatpush1.msra.mxu0 0.0
    %4484 = vmatprep.subr.mxu0 0.0
    %4485 = vmatpush1.msra.mxu0 0.0
    %4486 = vmatprep.subr.mxu0 0.0
    %4487 = vmatpush1.msra.mxu0 0.0
    %4488 = vmatprep.subr.mxu0 0.0
    %4489 = vmatpush1.msra.mxu0 0.0
    %4490 = vmatprep.subr.mxu0 0.0
    %4491 = vmatpush1.msra.mxu0 0.0
    %4492 = vmatprep.subr.mxu0 0.0
    %4493 = vmatpush1.msra.mxu0 0.0
    %4494 = vmatprep.subr.mxu0 0.0
    %4495 = vmatpush1.msra.mxu0 0.0
    %4496 = vmatprep.subr.mxu0 0.0
    %4497 = vmatpush1.msra.mxu0 0.0
    %4498 = vmatprep.subr.mxu0 0.0
    %4499 = vmatpush1.msra.mxu0 0.0
    %4500 = vmatprep.subr.mxu0 0.0
    %4501 = vmatpush1.msra.mxu0 0.0
    %4502 = vmatprep.subr.mxu0 0.0
    %4503 = vmatpush1.msra.mxu0 0.0
    %4504 = vmatprep.subr.mxu0 0.0
    %4505 = vmatpush1.msra.mxu0 0.0
    %4506 = vmatprep.subr.mxu0 0.0
    %4507 = vmatpush1.msra.mxu0 0.0
    %4508 = vmatprep.subr.mxu0 0.0
    %4509 = vmatpush1.msra.mxu0 0.0
    %4510 = vmatprep.subr.mxu0 0.0
    %4511 = vmatpush1.msra.mxu0 0.0
    %4512 = vmatprep.subr.mxu0 0.0
    %4513 = vmatpush1.msra.mxu0 0.0
    %4514 = vmatprep.subr.mxu0 0.0
    %4515 = vmatpush1.msra.mxu0 0.0
    %4516 = vmatprep.subr.mxu0 0.0
    %4517 = vmatpush1.msra.mxu0 0.0
    %4518 = vmatprep.subr.mxu0 0.0
    %4519 = vmatpush1.msra.mxu0 0.0
    %4520 = vmatprep.subr.mxu0 0.0
    %4521 = vmatpush1.msra.mxu0 0.0
    %4522 = vmatprep.subr.mxu0 0.0
    %4523 = vmatpush1.msra.mxu0 0.0
    %4524 = vmatprep.subr.mxu0 0.0
    %4525 = vmatpush1.msra.mxu0 0.0
    %4526 = vmatprep.subr.mxu0 0.0
    %4527 = vmatpush1.msra.mxu0 0.0
    %4528 = vmatprep.subr.mxu0 0.0
    %4529 = vmatpush1.msra.mxu0 0.0
    %4530 = vmatprep.mubr.f32.mxu0 0.0
    %4531 = vmatmul.mubr.f32.gmra.mrb[0].mxu0 %v4464
    %v4532 = vpop.f32.mrb[0].mxu0
    %v4533 = vadd.f32 0.0, %v4532
    %v4534 = vpop.f32.mrb[0].mxu0
    %v4535 = vadd.f32 0.0, %v4534
    %4536 = vdwg.mxu0
    %v4537 = vmax.f32 %v4458, %v4533
    %v4538 = vmax.f32 %v4460, %v4535
    %v4539 = vld [vmem:[%s8] sm:$0xff]
    %v4540 = vld [vmem:[%s8 + $0x8] sm:$0xff]
    %v4541 = vld [vmem:[%s8 + $0x10] sm:$0xff]
    %v4542 = vld [vmem:[%s8 + $0x18] sm:$0xff]
    %v4543 = vld [vmem:[%s8 + $0x20] sm:$0xff]
    %v4544 = vld [vmem:[%s8 + $0x28] sm:$0xff]
    %v4545 = vld [vmem:[%s8 + $0x30] sm:$0xff]
    %v4546 = vld [vmem:[%s8 + $0x38] sm:$0xff]
    %v4547 = vld [vmem:[%s8 + $0x40] sm:$0xff]
    %v4548 = vld [vmem:[%s8 + $0x48] sm:$0xff]
    %v4549 = vld [vmem:[%s8 + $0x50] sm:$0xff]
    %v4550 = vld [vmem:[%s8 + $0x58] sm:$0xff]
    %v4551 = vld [vmem:[%s8 + $0x60] sm:$0xff]
    %v4552 = vld [vmem:[%s8 + $0x68] sm:$0xff]
    %v4553 = vld [vmem:[%s8 + $0x70] sm:$0xff]
    %v4554 = vld [vmem:[%s8 + $0x78] sm:$0xff]
    %v4555 = vld [vmem:[%s8 + $0x80] sm:$0xff]
    %v4556 = vld [vmem:[%s8 + $0x88] sm:$0xff]
    %v4557 = vld [vmem:[%s8 + $0x90] sm:$0xff]
    %v4558 = vld [vmem:[%s8 + $0x98] sm:$0xff]
    %v4560 = vsel %vm1927, %v4538, 0
    %4562 = vmatprep.subr.mxu0 0.0
    %4563 = vmatpush1.msra.mxu0 %v4539
    %4564 = vmatprep.subr.mxu0 0.0
    %4565 = vmatpush1.msra.mxu0 %v4540
    %4566 = vmatprep.subr.mxu0 0.0
    %4567 = vmatpush1.msra.mxu0 %v4541
    %4568 = vmatprep.subr.mxu0 0.0
    %4569 = vmatpush1.msra.mxu0 %v4542
    %4570 = vmatprep.subr.mxu0 0.0
    %4571 = vmatpush1.msra.mxu0 %v4543
    %4572 = vmatprep.subr.mxu0 0.0
    %4573 = vmatpush1.msra.mxu0 %v4544
    %4574 = vmatprep.subr.mxu0 0.0
    %4575 = vmatpush1.msra.mxu0 %v4545
    %4576 = vmatprep.subr.mxu0 0.0
    %4577 = vmatpush1.msra.mxu0 %v4546
    %4578 = vmatprep.subr.mxu0 0.0
    %4579 = vmatpush1.msra.mxu0 %v4547
    %4580 = vmatprep.subr.mxu0 0.0
    %4581 = vmatpush1.msra.mxu0 %v4548
    %4582 = vmatprep.subr.mxu0 0.0
    %4583 = vmatpush1.msra.mxu0 %v4549
    %4584 = vmatprep.subr.mxu0 0.0
    %4585 = vmatpush1.msra.mxu0 %v4550
    %4586 = vmatprep.subr.mxu0 0.0
    %4587 = vmatpush1.msra.mxu0 %v4551
    %4588 = vmatprep.subr.mxu0 0.0
    %4589 = vmatpush1.msra.mxu0 %v4552
    %4590 = vmatprep.subr.mxu0 0.0
    %4591 = vmatpush1.msra.mxu0 %v4553
    %4592 = vmatprep.subr.mxu0 0.0
    %4593 = vmatpush1.msra.mxu0 %v4554
    %4594 = vmatprep.subr.mxu0 0.0
    %4595 = vmatpush1.msra.mxu0 %v4555
    %4596 = vmatprep.subr.mxu0 0.0
    %4597 = vmatpush1.msra.mxu0 %v4556
    %4598 = vmatprep.subr.mxu0 0.0
    %4599 = vmatpush1.msra.mxu0 %v4557
    %4600 = vmatprep.subr.mxu0 0.0
    %4601 = vmatpush1.msra.mxu0 %v4558
    %4602 = vmatprep.subr.mxu0 0.0
    %4603 = vmatpush1.msra.mxu0 0.0
    %4604 = vmatprep.subr.mxu0 0.0
    %4605 = vmatpush1.msra.mxu0 0.0
    %4606 = vmatprep.subr.mxu0 0.0
    %4607 = vmatpush1.msra.mxu0 0.0
    %4608 = vmatprep.subr.mxu0 0.0
    %4609 = vmatpush1.msra.mxu0 0.0
    %4610 = vmatprep.subr.mxu0 0.0
    %4611 = vmatpush1.msra.mxu0 0.0
    %4612 = vmatprep.subr.mxu0 0.0
    %4613 = vmatpush1.msra.mxu0 0.0
    %4614 = vmatprep.subr.mxu0 0.0
    %4615 = vmatpush1.msra.mxu0 0.0
    %4616 = vmatprep.subr.mxu0 0.0
    %4617 = vmatpush1.msra.mxu0 0.0
    %4618 = vmatprep.subr.mxu0 0.0
    %4619 = vmatpush1.msra.mxu0 0.0
    %4620 = vmatprep.subr.mxu0 0.0
    %4621 = vmatpush1.msra.mxu0 0.0
    %4622 = vmatprep.subr.mxu0 0.0
    %4623 = vmatpush1.msra.mxu0 0.0
    %4624 = vmatprep.subr.mxu0 0.0
    %4625 = vmatpush1.msra.mxu0 0.0
    %4626 = vmatprep.mubr.f32.mxu0 %v4560
    %4627 = vmatmul.mubr.f32.gmra.mrb[0].mxu0 %v4537
    %v4628 = vpop.f32.mrb[0].mxu0
    %v4629 = vadd.f32 0.0, %v4628
    %v4630 = vpop.f32.mrb[0].mxu0
    %4631 = vdwg.mxu0
    %v4632 = vld [vmem:[%s2001] sm:$0xff]
    %v4633 = vld [vmem:[%s2001 + $0x8] sm:$0xff]
    %v4634 = vld [vmem:[%s2001 + $0x10] sm:$0xff]
    %v4635 = vld [vmem:[%s2001 + $0x18] sm:$0xff]
    %v4636 = vld [vmem:[%s2001 + $0x20] sm:$0xff]
    %v4637 = vld [vmem:[%s2001 + $0x28] sm:$0xff]
    %v4638 = vld [vmem:[%s2001 + $0x30] sm:$0xff]
    %v4639 = vld [vmem:[%s2001 + $0x38] sm:$0xff]
    %v4640 = vld [vmem:[%s2001 + $0x40] sm:$0xff]
    %v4641 = vld [vmem:[%s2001 + $0x48] sm:$0xff]
    %v4642 = vld [vmem:[%s2001 + $0x50] sm:$0xff]
    %v4643 = vld [vmem:[%s2001 + $0x58] sm:$0xff]
    %v4644 = vld [vmem:[%s2001 + $0x60] sm:$0xff]
    %v4645 = vld [vmem:[%s2001 + $0x68] sm:$0xff]
    %v4646 = vld [vmem:[%s2001 + $0x70] sm:$0xff]
    %v4647 = vld [vmem:[%s2001 + $0x78] sm:$0xff]
    %v4648 = vld [vmem:[%s2001 + $0x80] sm:$0xff]
    %v4649 = vld [vmem:[%s2001 + $0x88] sm:$0xff]
    %v4650 = vld [vmem:[%s2001 + $0x90] sm:$0xff]
    %v4651 = vld [vmem:[%s2001 + $0x98] sm:$0xff]
    %4652 = vmatprep.subr.mxu0 0.0
    %4653 = vmatpush1.msra.mxu0 %v4632
    %4654 = vmatprep.subr.mxu0 0.0
    %4655 = vmatpush1.msra.mxu0 %v4633
    %4656 = vmatprep.subr.mxu0 0.0
    %4657 = vmatpush1.msra.mxu0 %v4634
    %4658 = vmatprep.subr.mxu0 0.0
    %4659 = vmatpush1.msra.mxu0 %v4635
    %4660 = vmatprep.subr.mxu0 0.0
    %4661 = vmatpush1.msra.mxu0 %v4636
    %4662 = vmatprep.subr.mxu0 0.0
    %4663 = vmatpush1.msra.mxu0 %v4637
    %4664 = vmatprep.subr.mxu0 0.0
    %4665 = vmatpush1.msra.mxu0 %v4638
    %4666 = vmatprep.subr.mxu0 0.0
    %4667 = vmatpush1.msra.mxu0 %v4639
    %4668 = vmatprep.subr.mxu0 0.0
    %4669 = vmatpush1.msra.mxu0 %v4640
    %4670 = vmatprep.subr.mxu0 0.0
    %4671 = vmatpush1.msra.mxu0 %v4641
    %4672 = vmatprep.subr.mxu0 0.0
    %4673 = vmatpush1.msra.mxu0 %v4642
    %4674 = vmatprep.subr.mxu0 0.0
    %4675 = vmatpush1.msra.mxu0 %v4643
    %4676 = vmatprep.subr.mxu0 0.0
    %4677 = vmatpush1.msra.mxu0 %v4644
    %4678 = vmatprep.subr.mxu0 0.0
    %4679 = vmatpush1.msra.mxu0 %v4645
    %4680 = vmatprep.subr.mxu0 0.0
    %4681 = vmatpush1.msra.mxu0 %v4646
    %4682 = vmatprep.subr.mxu0 0.0
    %4683 = vmatpush1.msra.mxu0 %v4647
    %4684 = vmatprep.subr.mxu0 0.0
    %4685 = vmatpush1.msra.mxu0 %v4648
    %4686 = vmatprep.subr.mxu0 0.0
    %4687 = vmatpush1.msra.mxu0 %v4649
    %4688 = vmatprep.subr.mxu0 0.0
    %4689 = vmatpush1.msra.mxu0 %v4650
    %4690 = vmatprep.subr.mxu0 0.0
    %4691 = vmatpush1.msra.mxu0 %v4651
    %4692 = vmatprep.subr.mxu0 0.0
    %4693 = vmatpush1.msra.mxu0 0.0
    %4694 = vmatprep.subr.mxu0 0.0
    %4695 = vmatpush1.msra.mxu0 0.0
    %4696 = vmatprep.subr.mxu0 0.0
    %4697 = vmatpush1.msra.mxu0 0.0
    %4698 = vmatprep.subr.mxu0 0.0
    %4699 = vmatpush1.msra.mxu0 0.0
    %4700 = vmatprep.subr.mxu0 0.0
    %4701 = vmatpush1.msra.mxu0 0.0
    %4702 = vmatprep.subr.mxu0 0.0
    %4703 = vmatpush1.msra.mxu0 0.0
    %4704 = vmatprep.subr.mxu0 0.0
    %4705 = vmatpush1.msra.mxu0 0.0
    %4706 = vmatprep.subr.mxu0 0.0
    %4707 = vmatpush1.msra.mxu0 0.0
    %4708 = vmatprep.subr.mxu0 0.0
    %4709 = vmatpush1.msra.mxu0 0.0
    %4710 = vmatprep.subr.mxu0 0.0
    %4711 = vmatpush1.msra.mxu0 0.0
    %4712 = vmatprep.subr.mxu0 0.0
    %4713 = vmatpush1.msra.mxu0 0.0
    %4714 = vmatprep.subr.mxu0 0.0
    %4715 = vmatpush1.msra.mxu0 0.0
    %4716 = vmatprep.mubr.f32.mxu0 %v4560
    %4717 = vmatmul.mubr.f32.gmra.mrb[0].mxu0 %v4537
    %v4718 = vpop.f32.mrb[0].mxu0
    %v4719 = vadd.f32 0.0, %v4718
    %v4720 = vpop.f32.mrb[0].mxu0
    %4721 = vdwg.mxu0
    %v4722 = vmax.f32 %v4629, %v4719
    %4723 = vst.msk [vmem:[#allocation3] sm:$0x1f] %vm2093, %v4722
    %v4724 = vld [vmem:[%s10] sm:$0x1]
    %v4725 = vld [vmem:[#allocation3] sm:$0x1]
    %v4726 = vld [vmem:[%s9] sm:$0xff]
    %v4727 = vld [vmem:[%s9 + $0x8] sm:$0xff]
    %v4728 = vld [vmem:[%s9 + $0x10] sm:$0xff]
    %v4729 = vld [vmem:[%s9 + $0x18] sm:$0xff]
    %v4730 = vld [vmem:[%s9 + $0x20] sm:$0xff]
    %v4731 = vld [vmem:[%s9 + $0x28] sm:$0xff]
    %v4732 = vld [vmem:[%s9 + $0x30] sm:$0xff]
    %v4733 = vld [vmem:[%s9 + $0x38] sm:$0xff]
    %v4734 = vld [vmem:[%s9 + $0x40] sm:$0xff]
    %v4735 = vld [vmem:[%s9 + $0x48] sm:$0xff]
    %v4737 = vsel %vm2107, %v4725, 0
    %4739 = vmatprep.subr.mxu0 0.0
    %4740 = vmatpush1.msra.mxu0 %v4726
    %4741 = vmatprep.subr.mxu0 0.0
    %4742 = vmatpush1.msra.mxu0 %v4727
    %4743 = vmatprep.subr.mxu0 0.0
    %4744 = vmatpush1.msra.mxu0 %v4728
    %4745 = vmatprep.subr.mxu0 0.0
    %4746 = vmatpush1.msra.mxu0 %v4729
    %4747 = vmatprep.subr.mxu0 0.0
    %4748 = vmatpush1.msra.mxu0 %v4730
    %4749 = vmatprep.subr.mxu0 0.0
    %4750 = vmatpush1.msra.mxu0 %v4731
    %4751 = vmatprep.subr.mxu0 0.0
    %4752 = vmatpush1.msra.mxu0 %v4732
    %4753 = vmatprep.subr.mxu0 0.0
    %4754 = vmatpush1.msra.mxu0 %v4733
    %4755 = vmatprep.subr.mxu0 0.0
    %4756 = vmatpush1.msra.mxu0 %v4734
    %4757 = vmatprep.subr.mxu0 0.0
    %4758 = vmatpush1.msra.mxu0 %v4735
    %4759 = vmatprep.subr.mxu0 0.0
    %4760 = vmatpush1.msra.mxu0 0.0
    %4761 = vmatprep.subr.mxu0 0.0
    %4762 = vmatpush1.msra.mxu0 0.0
    %4763 = vmatprep.subr.mxu0 0.0
    %4764 = vmatpush1.msra.mxu0 0.0
    %4765 = vmatprep.subr.mxu0 0.0
    %4766 = vmatpush1.msra.mxu0 0.0
    %4767 = vmatprep.subr.mxu0 0.0
    %4768 = vmatpush1.msra.mxu0 0.0
    %4769 = vmatprep.subr.mxu0 0.0
    %4770 = vmatpush1.msra.mxu0 0.0
    %4771 = vmatprep.subr.mxu0 0.0
    %4772 = vmatpush1.msra.mxu0 0.0
    %4773 = vmatprep.subr.mxu0 0.0
    %4774 = vmatpush1.msra.mxu0 0.0
    %4775 = vmatprep.subr.mxu0 0.0
    %4776 = vmatpush1.msra.mxu0 0.0
    %4777 = vmatprep.subr.mxu0 0.0
    %4778 = vmatpush1.msra.mxu0 0.0
    %4779 = vmatprep.subr.mxu0 0.0
    %4780 = vmatpush1.msra.mxu0 0.0
    %4781 = vmatprep.subr.mxu0 0.0
    %4782 = vmatpush1.msra.mxu0 0.0
    %4783 = vmatprep.subr.mxu0 0.0
    %4784 = vmatpush1.msra.mxu0 0.0
    %4785 = vmatprep.subr.mxu0 0.0
    %4786 = vmatpush1.msra.mxu0 0.0
    %4787 = vmatprep.subr.mxu0 0.0
    %4788 = vmatpush1.msra.mxu0 0.0
    %4789 = vmatprep.subr.mxu0 0.0
    %4790 = vmatpush1.msra.mxu0 0.0
    %4791 = vmatprep.subr.mxu0 0.0
    %4792 = vmatpush1.msra.mxu0 0.0
    %4793 = vmatprep.subr.mxu0 0.0
    %4794 = vmatpush1.msra.mxu0 0.0
    %4795 = vmatprep.subr.mxu0 0.0
    %4796 = vmatpush1.msra.mxu0 0.0
    %4797 = vmatprep.subr.mxu0 0.0
    %4798 = vmatpush1.msra.mxu0 0.0
    %4799 = vmatprep.subr.mxu0 0.0
    %4800 = vmatpush1.msra.mxu0 0.0
    %4801 = vmatprep.subr.mxu0 0.0
    %4802 = vmatpush1.msra.mxu0 0.0
    %4803 = vmatprep.mubr.f32.mxu0 0.0
    %4804 = vmatmul.mubr.f32.gmra.mrb[0].mxu0 %v4737
    %v4805 = vpop.f32.mrb[0].mxu0
    %v4806 = vadd.f32 0.0, %v4805
    %v4807 = vpop.f32.mrb[0].mxu0
    %4808 = vdwg.mxu0
    %v4809 = vadd.f32 %v4724, %v4806
    %v4810 = vld [vmem:[#allocation3 + $0x1] sm:$0x1]
    %v4811 = vld [vmem:[%s2183] sm:$0xff]
    %v4812 = vld [vmem:[%s2183 + $0x8] sm:$0xff]
    %v4813 = vld [vmem:[%s2183 + $0x10] sm:$0xff]
    %v4814 = vld [vmem:[%s2183 + $0x18] sm:$0xff]
    %v4815 = vld [vmem:[%s2183 + $0x20] sm:$0xff]
    %v4816 = vld [vmem:[%s2183 + $0x28] sm:$0xff]
    %v4817 = vld [vmem:[%s2183 + $0x30] sm:$0xff]
    %v4818 = vld [vmem:[%s2183 + $0x38] sm:$0xff]
    %v4819 = vld [vmem:[%s2183 + $0x40] sm:$0xff]
    %v4820 = vld [vmem:[%s2183 + $0x48] sm:$0xff]
    %v4822 = vsel %vm2107, %v4810, 0
    %4824 = vmatprep.subr.mxu0 0.0
    %4825 = vmatpush1.msra.mxu0 %v4811
    %4826 = vmatprep.subr.mxu0 0.0
    %4827 = vmatpush1.msra.mxu0 %v4812
    %4828 = vmatprep.subr.mxu0 0.0
    %4829 = vmatpush1.msra.mxu0 %v4813
    %4830 = vmatprep.subr.mxu0 0.0
    %4831 = vmatpush1.msra.mxu0 %v4814
    %4832 = vmatprep.subr.mxu0 0.0
    %4833 = vmatpush1.msra.mxu0 %v4815
    %4834 = vmatprep.subr.mxu0 0.0
    %4835 = vmatpush1.msra.mxu0 %v4816
    %4836 = vmatprep.subr.mxu0 0.0
    %4837 = vmatpush1.msra.mxu0 %v4817
    %4838 = vmatprep.subr.mxu0 0.0
    %4839 = vmatpush1.msra.mxu0 %v4818
    %4840 = vmatprep.subr.mxu0 0.0
    %4841 = vmatpush1.msra.mxu0 %v4819
    %4842 = vmatprep.subr.mxu0 0.0
    %4843 = vmatpush1.msra.mxu0 %v4820
    %4844 = vmatprep.subr.mxu0 0.0
    %4845 = vmatpush1.msra.mxu0 0.0
    %4846 = vmatprep.subr.mxu0 0.0
    %4847 = vmatpush1.msra.mxu0 0.0
    %4848 = vmatprep.subr.mxu0 0.0
    %4849 = vmatpush1.msra.mxu0 0.0
    %4850 = vmatprep.subr.mxu0 0.0
    %4851 = vmatpush1.msra.mxu0 0.0
    %4852 = vmatprep.subr.mxu0 0.0
    %4853 = vmatpush1.msra.mxu0 0.0
    %4854 = vmatprep.subr.mxu0 0.0
    %4855 = vmatpush1.msra.mxu0 0.0
    %4856 = vmatprep.subr.mxu0 0.0
    %4857 = vmatpush1.msra.mxu0 0.0
    %4858 = vmatprep.subr.mxu0 0.0
    %4859 = vmatpush1.msra.mxu0 0.0
    %4860 = vmatprep.subr.mxu0 0.0
    %4861 = vmatpush1.msra.mxu0 0.0
    %4862 = vmatprep.subr.mxu0 0.0
    %4863 = vmatpush1.msra.mxu0 0.0
    %4864 = vmatprep.subr.mxu0 0.0
    %4865 = vmatpush1.msra.mxu0 0.0
    %4866 = vmatprep.subr.mxu0 0.0
    %4867 = vmatpush1.msra.mxu0 0.0
    %4868 = vmatprep.subr.mxu0 0.0
    %4869 = vmatpush1.msra.mxu0 0.0
    %4870 = vmatprep.subr.mxu0 0.0
    %4871 = vmatpush1.msra.mxu0 0.0
    %4872 = vmatprep.subr.mxu0 0.0
    %4873 = vmatpush1.msra.mxu0 0.0
    %4874 = vmatprep.subr.mxu0 0.0
    %4875 = vmatpush1.msra.mxu0 0.0
    %4876 = vmatprep.subr.mxu0 0.0
    %4877 = vmatpush1.msra.mxu0 0.0
    %4878 = vmatprep.subr.mxu0 0.0
    %4879 = vmatpush1.msra.mxu0 0.0
    %4880 = vmatprep.subr.mxu0 0.0
    %4881 = vmatpush1.msra.mxu0 0.0
    %4882 = vmatprep.subr.mxu0 0.0
    %4883 = vmatpush1.msra.mxu0 0.0
    %4884 = vmatprep.subr.mxu0 0.0
    %4885 = vmatpush1.msra.mxu0 0.0
    %4886 = vmatprep.subr.mxu0 0.0
    %4887 = vmatpush1.msra.mxu0 0.0
    %4888 = vmatprep.mubr.f32.mxu0 0.0
    %4889 = vmatmul.mubr.f32.gmra.mrb[0].mxu0 %v4822
    %v4890 = vpop.f32.mrb[0].mxu0
    %v4891 = vadd.f32 0.0, %v4890
    %v4892 = vpop.f32.mrb[0].mxu0
    %4893 = vdwg.mxu0
    %v4894 = vadd.f32 %v4809, %v4891
    %v4895 = vld [vmem:[#allocation3 + $0x2] sm:$0x1]
    %v4896 = vld [vmem:[%s2269] sm:$0xff]
    %v4897 = vld [vmem:[%s2269 + $0x8] sm:$0xff]
    %v4898 = vld [vmem:[%s2269 + $0x10] sm:$0xff]
    %v4899 = vld [vmem:[%s2269 + $0x18] sm:$0xff]
    %v4900 = vld [vmem:[%s2269 + $0x20] sm:$0xff]
    %v4901 = vld [vmem:[%s2269 + $0x28] sm:$0xff]
    %v4902 = vld [vmem:[%s2269 + $0x30] sm:$0xff]
    %v4903 = vld [vmem:[%s2269 + $0x38] sm:$0xff]
    %v4904 = vld [vmem:[%s2269 + $0x40] sm:$0xff]
    %v4905 = vld [vmem:[%s2269 + $0x48] sm:$0xff]
    %v4907 = vsel %vm2107, %v4895, 0
    %4909 = vmatprep.subr.mxu0 0.0
    %4910 = vmatpush1.msra.mxu0 %v4896
    %4911 = vmatprep.subr.mxu0 0.0
    %4912 = vmatpush1.msra.mxu0 %v4897
    %4913 = vmatprep.subr.mxu0 0.0
    %4914 = vmatpush1.msra.mxu0 %v4898
    %4915 = vmatprep.subr.mxu0 0.0
    %4916 = vmatpush1.msra.mxu0 %v4899
    %4917 = vmatprep.subr.mxu0 0.0
    %4918 = vmatpush1.msra.mxu0 %v4900
    %4919 = vmatprep.subr.mxu0 0.0
    %4920 = vmatpush1.msra.mxu0 %v4901
    %4921 = vmatprep.subr.mxu0 0.0
    %4922 = vmatpush1.msra.mxu0 %v4902
    %4923 = vmatprep.subr.mxu0 0.0
    %4924 = vmatpush1.msra.mxu0 %v4903
    %4925 = vmatprep.subr.mxu0 0.0
    %4926 = vmatpush1.msra.mxu0 %v4904
    %4927 = vmatprep.subr.mxu0 0.0
    %4928 = vmatpush1.msra.mxu0 %v4905
    %4929 = vmatprep.subr.mxu0 0.0
    %4930 = vmatpush1.msra.mxu0 0.0
    %4931 = vmatprep.subr.mxu0 0.0
    %4932 = vmatpush1.msra.mxu0 0.0
    %4933 = vmatprep.subr.mxu0 0.0
    %4934 = vmatpush1.msra.mxu0 0.0
    %4935 = vmatprep.subr.mxu0 0.0
    %4936 = vmatpush1.msra.mxu0 0.0
    %4937 = vmatprep.subr.mxu0 0.0
    %4938 = vmatpush1.msra.mxu0 0.0
    %4939 = vmatprep.subr.mxu0 0.0
    %4940 = vmatpush1.msra.mxu0 0.0
    %4941 = vmatprep.subr.mxu0 0.0
    %4942 = vmatpush1.msra.mxu0 0.0
    %4943 = vmatprep.subr.mxu0 0.0
    %4944 = vmatpush1.msra.mxu0 0.0
    %4945 = vmatprep.subr.mxu0 0.0
    %4946 = vmatpush1.msra.mxu0 0.0
    %4947 = vmatprep.subr.mxu0 0.0
    %4948 = vmatpush1.msra.mxu0 0.0
    %4949 = vmatprep.subr.mxu0 0.0
    %4950 = vmatpush1.msra.mxu0 0.0
    %4951 = vmatprep.subr.mxu0 0.0
    %4952 = vmatpush1.msra.mxu0 0.0
    %4953 = vmatprep.subr.mxu0 0.0
    %4954 = vmatpush1.msra.mxu0 0.0
    %4955 = vmatprep.subr.mxu0 0.0
    %4956 = vmatpush1.msra.mxu0 0.0
    %4957 = vmatprep.subr.mxu0 0.0
    %4958 = vmatpush1.msra.mxu0 0.0
    %4959 = vmatprep.subr.mxu0 0.0
    %4960 = vmatpush1.msra.mxu0 0.0
    %4961 = vmatprep.subr.mxu0 0.0
    %4962 = vmatpush1.msra.mxu0 0.0
    %4963 = vmatprep.subr.mxu0 0.0
    %4964 = vmatpush1.msra.mxu0 0.0
    %4965 = vmatprep.subr.mxu0 0.0
    %4966 = vmatpush1.msra.mxu0 0.0
    %4967 = vmatprep.subr.mxu0 0.0
    %4968 = vmatpush1.msra.mxu0 0.0
    %4969 = vmatprep.subr.mxu0 0.0
    %4970 = vmatpush1.msra.mxu0 0.0
    %4971 = vmatprep.subr.mxu0 0.0
    %4972 = vmatpush1.msra.mxu0 0.0
    %4973 = vmatprep.mubr.f32.mxu0 0.0
    %4974 = vmatmul.mubr.f32.gmra.mrb[0].mxu0 %v4907
    %v4975 = vpop.f32.mrb[0].mxu0
    %v4976 = vadd.f32 0.0, %v4975
    %v4977 = vpop.f32.mrb[0].mxu0
    %4978 = vdwg.mxu0
    %v4979 = vadd.f32 %v4894, %v4976
    %v4980 = vld [vmem:[#allocation3 + $0x3] sm:$0x1]
    %v4981 = vld [vmem:[%s2355] sm:$0xff]
    %v4982 = vld [vmem:[%s2355 + $0x8] sm:$0xff]
    %v4983 = vld [vmem:[%s2355 + $0x10] sm:$0xff]
    %v4984 = vld [vmem:[%s2355 + $0x18] sm:$0xff]
    %v4985 = vld [vmem:[%s2355 + $0x20] sm:$0xff]
    %v4986 = vld [vmem:[%s2355 + $0x28] sm:$0xff]
    %v4987 = vld [vmem:[%s2355 + $0x30] sm:$0xff]
    %v4988 = vld [vmem:[%s2355 + $0x38] sm:$0xff]
    %v4989 = vld [vmem:[%s2355 + $0x40] sm:$0xff]
    %v4990 = vld [vmem:[%s2355 + $0x48] sm:$0xff]
    %v4992 = vsel %vm2107, %v4980, 0
    %4994 = vmatprep.subr.mxu0 0.0
    %4995 = vmatpush1.msra.mxu0 %v4981
    %4996 = vmatprep.subr.mxu0 0.0
    %4997 = vmatpush1.msra.mxu0 %v4982
    %4998 = vmatprep.subr.mxu0 0.0
    %4999 = vmatpush1.msra.mxu0 %v4983
    %5000 = vmatprep.subr.mxu0 0.0
    %5001 = vmatpush1.msra.mxu0 %v4984
    %5002 = vmatprep.subr.mxu0 0.0
    %5003 = vmatpush1.msra.mxu0 %v4985
    %5004 = vmatprep.subr.mxu0 0.0
    %5005 = vmatpush1.msra.mxu0 %v4986
    %5006 = vmatprep.subr.mxu0 0.0
    %5007 = vmatpush1.msra.mxu0 %v4987
    %5008 = vmatprep.subr.mxu0 0.0
    %5009 = vmatpush1.msra.mxu0 %v4988
    %5010 = vmatprep.subr.mxu0 0.0
    %5011 = vmatpush1.msra.mxu0 %v4989
    %5012 = vmatprep.subr.mxu0 0.0
    %5013 = vmatpush1.msra.mxu0 %v4990
    %5014 = vmatprep.subr.mxu0 0.0
    %5015 = vmatpush1.msra.mxu0 0.0
    %5016 = vmatprep.subr.mxu0 0.0
    %5017 = vmatpush1.msra.mxu0 0.0
    %5018 = vmatprep.subr.mxu0 0.0
    %5019 = vmatpush1.msra.mxu0 0.0
    %5020 = vmatprep.subr.mxu0 0.0
    %5021 = vmatpush1.msra.mxu0 0.0
    %5022 = vmatprep.subr.mxu0 0.0
    %5023 = vmatpush1.msra.mxu0 0.0
    %5024 = vmatprep.subr.mxu0 0.0
    %5025 = vmatpush1.msra.mxu0 0.0
    %5026 = vmatprep.subr.mxu0 0.0
    %5027 = vmatpush1.msra.mxu0 0.0
    %5028 = vmatprep.subr.mxu0 0.0
    %5029 = vmatpush1.msra.mxu0 0.0
    %5030 = vmatprep.subr.mxu0 0.0
    %5031 = vmatpush1.msra.mxu0 0.0
    %5032 = vmatprep.subr.mxu0 0.0
    %5033 = vmatpush1.msra.mxu0 0.0
    %5034 = vmatprep.subr.mxu0 0.0
    %5035 = vmatpush1.msra.mxu0 0.0
    %5036 = vmatprep.subr.mxu0 0.0
    %5037 = vmatpush1.msra.mxu0 0.0
    %5038 = vmatprep.subr.mxu0 0.0
    %5039 = vmatpush1.msra.mxu0 0.0
    %5040 = vmatprep.subr.mxu0 0.0
    %5041 = vmatpush1.msra.mxu0 0.0
    %5042 = vmatprep.subr.mxu0 0.0
    %5043 = vmatpush1.msra.mxu0 0.0
    %5044 = vmatprep.subr.mxu0 0.0
    %5045 = vmatpush1.msra.mxu0 0.0
    %5046 = vmatprep.subr.mxu0 0.0
    %5047 = vmatpush1.msra.mxu0 0.0
    %5048 = vmatprep.subr.mxu0 0.0
    %5049 = vmatpush1.msra.mxu0 0.0
    %5050 = vmatprep.subr.mxu0 0.0
    %5051 = vmatpush1.msra.mxu0 0.0
    %5052 = vmatprep.subr.mxu0 0.0
    %5053 = vmatpush1.msra.mxu0 0.0
    %5054 = vmatprep.subr.mxu0 0.0
    %5055 = vmatpush1.msra.mxu0 0.0
    %5056 = vmatprep.subr.mxu0 0.0
    %5057 = vmatpush1.msra.mxu0 0.0
    %5058 = vmatprep.mubr.f32.mxu0 0.0
    %5059 = vmatmul.mubr.f32.gmra.mrb[0].mxu0 %v4992
    %v5060 = vpop.f32.mrb[0].mxu0
    %v5061 = vadd.f32 0.0, %v5060
    %v5062 = vpop.f32.mrb[0].mxu0
    %5063 = vdwg.mxu0
    %v5064 = vadd.f32 %v4979, %v5061
    %v5065 = vld [vmem:[#allocation3 + $0x4] sm:$0x1]
    %v5066 = vld [vmem:[%s2441] sm:$0xff]
    %v5067 = vld [vmem:[%s2441 + $0x8] sm:$0xff]
    %v5068 = vld [vmem:[%s2441 + $0x10] sm:$0xff]
    %v5069 = vld [vmem:[%s2441 + $0x18] sm:$0xff]
    %v5070 = vld [vmem:[%s2441 + $0x20] sm:$0xff]
    %v5071 = vld [vmem:[%s2441 + $0x28] sm:$0xff]
    %v5072 = vld [vmem:[%s2441 + $0x30] sm:$0xff]
    %v5073 = vld [vmem:[%s2441 + $0x38] sm:$0xff]
    %v5074 = vld [vmem:[%s2441 + $0x40] sm:$0xff]
    %v5075 = vld [vmem:[%s2441 + $0x48] sm:$0xff]
    %v5077 = vsel %vm2107, %v5065, 0
    %5079 = vmatprep.subr.mxu0 0.0
    %5080 = vmatpush1.msra.mxu0 %v5066
    %5081 = vmatprep.subr.mxu0 0.0
    %5082 = vmatpush1.msra.mxu0 %v5067
    %5083 = vmatprep.subr.mxu0 0.0
    %5084 = vmatpush1.msra.mxu0 %v5068
    %5085 = vmatprep.subr.mxu0 0.0
    %5086 = vmatpush1.msra.mxu0 %v5069
    %5087 = vmatprep.subr.mxu0 0.0
    %5088 = vmatpush1.msra.mxu0 %v5070
    %5089 = vmatprep.subr.mxu0 0.0
    %5090 = vmatpush1.msra.mxu0 %v5071
    %5091 = vmatprep.subr.mxu0 0.0
    %5092 = vmatpush1.msra.mxu0 %v5072
    %5093 = vmatprep.subr.mxu0 0.0
    %5094 = vmatpush1.msra.mxu0 %v5073
    %5095 = vmatprep.subr.mxu0 0.0
    %5096 = vmatpush1.msra.mxu0 %v5074
    %5097 = vmatprep.subr.mxu0 0.0
    %5098 = vmatpush1.msra.mxu0 %v5075
    %5099 = vmatprep.subr.mxu0 0.0
    %5100 = vmatpush1.msra.mxu0 0.0
    %5101 = vmatprep.subr.mxu0 0.0
    %5102 = vmatpush1.msra.mxu0 0.0
    %5103 = vmatprep.subr.mxu0 0.0
    %5104 = vmatpush1.msra.mxu0 0.0
    %5105 = vmatprep.subr.mxu0 0.0
    %5106 = vmatpush1.msra.mxu0 0.0
    %5107 = vmatprep.subr.mxu0 0.0
    %5108 = vmatpush1.msra.mxu0 0.0
    %5109 = vmatprep.subr.mxu0 0.0
    %5110 = vmatpush1.msra.mxu0 0.0
    %5111 = vmatprep.subr.mxu0 0.0
    %5112 = vmatpush1.msra.mxu0 0.0
    %5113 = vmatprep.subr.mxu0 0.0
    %5114 = vmatpush1.msra.mxu0 0.0
    %5115 = vmatprep.subr.mxu0 0.0
    %5116 = vmatpush1.msra.mxu0 0.0
    %5117 = vmatprep.subr.mxu0 0.0
    %5118 = vmatpush1.msra.mxu0 0.0
    %5119 = vmatprep.subr.mxu0 0.0
    %5120 = vmatpush1.msra.mxu0 0.0
    %5121 = vmatprep.subr.mxu0 0.0
    %5122 = vmatpush1.msra.mxu0 0.0
    %5123 = vmatprep.subr.mxu0 0.0
    %5124 = vmatpush1.msra.mxu0 0.0
    %5125 = vmatprep.subr.mxu0 0.0
    %5126 = vmatpush1.msra.mxu0 0.0
    %5127 = vmatprep.subr.mxu0 0.0
    %5128 = vmatpush1.msra.mxu0 0.0
    %5129 = vmatprep.subr.mxu0 0.0
    %5130 = vmatpush1.msra.mxu0 0.0
    %5131 = vmatprep.subr.mxu0 0.0
    %5132 = vmatpush1.msra.mxu0 0.0
    %5133 = vmatprep.subr.mxu0 0.0
    %5134 = vmatpush1.msra.mxu0 0.0
    %5135 = vmatprep.subr.mxu0 0.0
    %5136 = vmatpush1.msra.mxu0 0.0
    %5137 = vmatprep.subr.mxu0 0.0
    %5138 = vmatpush1.msra.mxu0 0.0
    %5139 = vmatprep.subr.mxu0 0.0
    %5140 = vmatpush1.msra.mxu0 0.0
    %5141 = vmatprep.subr.mxu0 0.0
    %5142 = vmatpush1.msra.mxu0 0.0
    %5143 = vmatprep.mubr.f32.mxu0 0.0
    %5144 = vmatmul.mubr.f32.gmra.mrb[0].mxu0 %v5077
    %v5145 = vpop.f32.mrb[0].mxu0
    %v5146 = vadd.f32 0.0, %v5145
    %v5147 = vpop.f32.mrb[0].mxu0
    %5148 = vdwg.mxu0
    %v5149 = vadd.f32 %v5064, %v5146
    %v5150 = vmax.f32 %v5149, 0.0
    %v5151 = vld [vmem:[%s11] sm:$0xff]
    %v5152 = vld [vmem:[%s11 + $0x8] sm:$0xff]
    %v5153 = vld [vmem:[%s11 + $0x10] sm:$0xff]
    %v5154 = vld [vmem:[%s11 + $0x18] sm:$0xff]
    %v5155 = vld [vmem:[%s11 + $0x20] sm:$0xff]
    %v5156 = vld [vmem:[%s11 + $0x28] sm:$0xff]
    %v5157 = vld [vmem:[%s11 + $0x30] sm:$0xff]
    %v5158 = vld [vmem:[%s11 + $0x38] sm:$0xff]
    %v5159 = vld [vmem:[%s11 + $0x40] sm:$0xff]
    %v5160 = vld [vmem:[%s11 + $0x48] sm:$0xff]
    %v5161 = vld [vmem:[%s11 + $0x50] sm:$0xff]
    %v5162 = vld [vmem:[%s11 + $0x58] sm:$0xff]
    %v5163 = vld [vmem:[%s11 + $0x60] sm:$0xff]
    %v5164 = vld [vmem:[%s11 + $0x68] sm:$0xff]
    %v5165 = vld [vmem:[%s11 + $0x70] sm:$0xff]
    %v5166 = vld [vmem:[%s11 + $0x78] sm:$0xff]
    %v5167 = vld [vmem:[%s12] sm:$0x1]
    %5168 = vmatprep.subr.mxu0 0.0
    %5169 = vmatpush1.msra.mxu0 %v5151
    %5170 = vmatprep.subr.mxu0 0.0
    %5171 = vmatpush1.msra.mxu0 %v5152
    %5172 = vmatprep.subr.mxu0 0.0
    %5173 = vmatpush1.msra.mxu0 %v5153
    %5174 = vmatprep.subr.mxu0 0.0
    %5175 = vmatpush1.msra.mxu0 %v5154
    %5176 = vmatprep.subr.mxu0 0.0
    %5177 = vmatpush1.msra.mxu0 %v5155
    %5178 = vmatprep.subr.mxu0 0.0
    %5179 = vmatpush1.msra.mxu0 %v5156
    %5180 = vmatprep.subr.mxu0 0.0
    %5181 = vmatpush1.msra.mxu0 %v5157
    %5182 = vmatprep.subr.mxu0 0.0
    %5183 = vmatpush1.msra.mxu0 %v5158
    %5184 = vmatprep.subr.mxu0 0.0
    %5185 = vmatpush1.msra.mxu0 %v5159
    %5186 = vmatprep.subr.mxu0 0.0
    %5187 = vmatpush1.msra.mxu0 %v5160
    %5188 = vmatprep.subr.mxu0 0.0
    %5189 = vmatpush1.msra.mxu0 %v5161
    %5190 = vmatprep.subr.mxu0 0.0
    %5191 = vmatpush1.msra.mxu0 %v5162
    %5192 = vmatprep.subr.mxu0 0.0
    %5193 = vmatpush1.msra.mxu0 %v5163
    %5194 = vmatprep.subr.mxu0 0.0
    %5195 = vmatpush1.msra.mxu0 %v5164
    %5196 = vmatprep.subr.mxu0 0.0
    %5197 = vmatpush1.msra.mxu0 %v5165
    %5198 = vmatprep.subr.mxu0 0.0
    %5199 = vmatpush1.msra.mxu0 %v5166
    %5200 = vmatprep.subr.mxu0 0.0
    %5201 = vmatpush1.msra.mxu0 0.0
    %5202 = vmatprep.subr.mxu0 0.0
    %5203 = vmatpush1.msra.mxu0 0.0
    %5204 = vmatprep.subr.mxu0 0.0
    %5205 = vmatpush1.msra.mxu0 0.0
    %5206 = vmatprep.subr.mxu0 0.0
    %5207 = vmatpush1.msra.mxu0 0.0
    %5208 = vmatprep.subr.mxu0 0.0
    %5209 = vmatpush1.msra.mxu0 0.0
    %5210 = vmatprep.subr.mxu0 0.0
    %5211 = vmatpush1.msra.mxu0 0.0
    %5212 = vmatprep.subr.mxu0 0.0
    %5213 = vmatpush1.msra.mxu0 0.0
    %5214 = vmatprep.subr.mxu0 0.0
    %5215 = vmatpush1.msra.mxu0 0.0
    %5216 = vmatprep.subr.mxu0 0.0
    %5217 = vmatpush1.msra.mxu0 0.0
    %5218 = vmatprep.subr.mxu0 0.0
    %5219 = vmatpush1.msra.mxu0 0.0
    %5220 = vmatprep.subr.mxu0 0.0
    %5221 = vmatpush1.msra.mxu0 0.0
    %5222 = vmatprep.subr.mxu0 0.0
    %5223 = vmatpush1.msra.mxu0 0.0
    %5224 = vmatprep.subr.mxu0 0.0
    %5225 = vmatpush1.msra.mxu0 0.0
    %5226 = vmatprep.subr.mxu0 0.0
    %5227 = vmatpush1.msra.mxu0 0.0
    %5228 = vmatprep.subr.mxu0 0.0
    %5229 = vmatpush1.msra.mxu0 0.0
    %5230 = vmatprep.subr.mxu0 0.0
    %5231 = vmatpush1.msra.mxu0 0.0
    %5232 = vmatprep.mubr.f32.mxu0 0.0
    %5233 = vmatmul.mubr.f32.gmra.mrb[0].mxu0 %v5150
    %v5234 = vpop.f32.mrb[0].mxu0
    %v5235 = vadd.f32 %v5167, %v5234
    %v5236 = vpop.f32.mrb[0].mxu0
    %5237 = vdwg.mxu0
    %v5238 = vmax.f32 %v5235, 0.0
    %v5239 = vld [vmem:[%s13] sm:$0xff]
    %v5240 = vld [vmem:[%s13 + $0x8] sm:$0xff]
    %v5241 = vld [vmem:[%s13 + $0x10] sm:$0xff]
    %v5242 = vld [vmem:[%s13 + $0x18] sm:$0xff]
    %v5243 = vld [vmem:[%s13 + $0x20] sm:$0xff]
    %v5244 = vld [vmem:[%s13 + $0x28] sm:$0xff]
    %v5245 = vld [vmem:[%s13 + $0x30] sm:$0xff]
    %v5246 = vld [vmem:[%s13 + $0x38] sm:$0xff]
    %v5247 = vld [vmem:[%s13 + $0x40] sm:$0xff]
    %v5248 = vld [vmem:[%s13 + $0x48] sm:$0xff]
    %v5249 = vld [vmem:[%s13 + $0x50] sm:$0xff]
    %v5250 = vld [vmem:[%s13 + $0x58] sm:$0xff]
    %v5251 = vld [vmem:[%s13 + $0x60] sm:$0xff]
    %v5252 = vld [vmem:[%s13 + $0x68] sm:$0xff]
    %v5253 = vld [vmem:[%s13 + $0x70] sm:$0xff]
    %v5254 = vld [vmem:[%s13 + $0x78] sm:$0xff]
    %v5255 = vld [vmem:[%s14] sm:$0x1]
    %5256 = vmatprep.subr.mxu0 0.0
    %5257 = vmatpush1.msra.mxu0 %v5239
    %5258 = vmatprep.subr.mxu0 0.0
    %5259 = vmatpush1.msra.mxu0 %v5240
    %5260 = vmatprep.subr.mxu0 0.0
    %5261 = vmatpush1.msra.mxu0 %v5241
    %5262 = vmatprep.subr.mxu0 0.0
    %5263 = vmatpush1.msra.mxu0 %v5242
    %5264 = vmatprep.subr.mxu0 0.0
    %5265 = vmatpush1.msra.mxu0 %v5243
    %5266 = vmatprep.subr.mxu0 0.0
    %5267 = vmatpush1.msra.mxu0 %v5244
    %5268 = vmatprep.subr.mxu0 0.0
    %5269 = vmatpush1.msra.mxu0 %v5245
    %5270 = vmatprep.subr.mxu0 0.0
    %5271 = vmatpush1.msra.mxu0 %v5246
    %5272 = vmatprep.subr.mxu0 0.0
    %5273 = vmatpush1.msra.mxu0 %v5247
    %5274 = vmatprep.subr.mxu0 0.0
    %5275 = vmatpush1.msra.mxu0 %v5248
    %5276 = vmatprep.subr.mxu0 0.0
    %5277 = vmatpush1.msra.mxu0 %v5249
    %5278 = vmatprep.subr.mxu0 0.0
    %5279 = vmatpush1.msra.mxu0 %v5250
    %5280 = vmatprep.subr.mxu0 0.0
    %5281 = vmatpush1.msra.mxu0 %v5251
    %5282 = vmatprep.subr.mxu0 0.0
    %5283 = vmatpush1.msra.mxu0 %v5252
    %5284 = vmatprep.subr.mxu0 0.0
    %5285 = vmatpush1.msra.mxu0 %v5253
    %5286 = vmatprep.subr.mxu0 0.0
    %5287 = vmatpush1.msra.mxu0 %v5254
    %5288 = vmatprep.subr.mxu0 0.0
    %5289 = vmatpush1.msra.mxu0 0.0
    %5290 = vmatprep.subr.mxu0 0.0
    %5291 = vmatpush1.msra.mxu0 0.0
    %5292 = vmatprep.subr.mxu0 0.0
    %5293 = vmatpush1.msra.mxu0 0.0
    %5294 = vmatprep.subr.mxu0 0.0
    %5295 = vmatpush1.msra.mxu0 0.0
    %5296 = vmatprep.subr.mxu0 0.0
    %5297 = vmatpush1.msra.mxu0 0.0
    %5298 = vmatprep.subr.mxu0 0.0
    %5299 = vmatpush1.msra.mxu0 0.0
    %5300 = vmatprep.subr.mxu0 0.0
    %5301 = vmatpush1.msra.mxu0 0.0
    %5302 = vmatprep.subr.mxu0 0.0
    %5303 = vmatpush1.msra.mxu0 0.0
    %5304 = vmatprep.subr.mxu0 0.0
    %5305 = vmatpush1.msra.mxu0 0.0
    %5306 = vmatprep.subr.mxu0 0.0
    %5307 = vmatpush1.msra.mxu0 0.0
    %5308 = vmatprep.subr.mxu0 0.0
    %5309 = vmatpush1.msra.mxu0 0.0
    %5310 = vmatprep.subr.mxu0 0.0
    %5311 = vmatpush1.msra.mxu0 0.0
    %5312 = vmatprep.subr.mxu0 0.0
    %5313 = vmatpush1.msra.mxu0 0.0
    %5314 = vmatprep.subr.mxu0 0.0
    %5315 = vmatpush1.msra.mxu0 0.0
    %5316 = vmatprep.subr.mxu0 0.0
    %5317 = vmatpush1.msra.mxu0 0.0
    %5318 = vmatprep.subr.mxu0 0.0
    %5319 = vmatpush1.msra.mxu0 0.0
    %5320 = vmatprep.mubr.f32.mxu0 0.0
    %5321 = vmatmul.mubr.f32.gmra.mrb[0].mxu0 %v5238
    %v5322 = vpop.f32.mrb[0].mxu0
    %v5323 = vadd.f32 %v5255, %v5322
    %v5324 = vpop.f32.mrb[0].mxu0
    %5325 = vdwg.mxu0
    %5326 = vst [vmem:[#allocation4 + $0x1] sm:$0x1] %v5238
    %5327 = vst [vmem:[#allocation6 + $0x1] sm:$0x1] %v5323
    // Predicated region
    $region62: #{cifar10_cnn_forward.1} parent=1 // pred_check
      _
    $region63: #{cifar10_cnn_forward.1} parent=1 // pred_check_branch
      %5329 = sbr.rel (0) target = $region65
    $region64: #{cifar10_cnn_forward.1} parent=1 // pred_region
      %s5331 = ssub.s32 32, 32
      %5332 = vsyncadd [#allocation5], %s5331
      %s5334 = sshll.u32 [#allocation4], 4
      %s5335 = int_to_ptr.vmem [resolvable:$true] %s5334
      %5337 = dma.vmem_to_hbm [thread:$0]  %s5335, 32, %s15, [#allocation5]
    $region65: #{cifar10_cnn_forward.1} parent=1 // pred_fallthru
      _
    // Predicated region
    $region66: #{cifar10_cnn_forward.1} parent=1 // pred_check
      _
    $region67: #{cifar10_cnn_forward.1} parent=1 // pred_check_branch
      %5339 = sbr.rel (0) target = $region69
    $region68: #{cifar10_cnn_forward.1} parent=1 // pred_region
      %s5341 = ssub.s32 32, 32
      %5342 = vsyncadd [#allocation7], %s5341
      %s5344 = sshll.u32 [#allocation6], 4
      %s5345 = int_to_ptr.vmem [resolvable:$true] %s5344
      %5347 = dma.vmem_to_hbm [thread:$0]  %s5345, 32, %s16, [#allocation7]
    $region69: #{cifar10_cnn_forward.1} parent=1 // pred_fallthru
      _
    // Predicated region
    $region70: #{cifar10_cnn_forward.1} parent=1 // pred_check
      _
    $region71: #{cifar10_cnn_forward.1} parent=1 // pred_check_branch
      %5349 = sbr.rel (0) target = $region73
    $region72: #{cifar10_cnn_forward.1} parent=1 // pred_region
      %5350 = dma.done [#allocation5], 32
    $region73: #{cifar10_cnn_forward.1} parent=1 // pred_fallthru
      _
    // Predicated region
    $region74: #{cifar10_cnn_forward.1} parent=1 // pred_check
      _
    $region75: #{cifar10_cnn_forward.1} parent=1 // pred_check_branch
      %5352 = sbr.rel (0) target = $region77
    $region76: #{cifar10_cnn_forward.1} parent=1 // pred_region
      %5353 = dma.done [#allocation7], 32
    $region77: #{cifar10_cnn_forward.1} parent=1 // pred_fallthru
      _
    %5354 = vsyncpa [#allocation5], 1
    %5355 = vsyncpa [#allocation7], 1

</llo_original>
